<compile_context>
chip_gen: v7x
topology: tpu7x:2x2x1
jax: 0.10.0
libtpu: 0.0.40
codegen_flags: <defaults>
</compile_context>

<pallas_src>
import functools

import jax
import jax.numpy as jnp
from jax.experimental import pallas as pl
from jax.experimental.pallas import tpu as pltpu

LANE = 128


def _round_up(x, m):
    return (x + m - 1) // m * m


def _compute_vmem_limit():
    try:
        cap = int(pltpu.get_tpu_info().vmem_capacity_bytes)
        return min(64 * 1024 * 1024, (cap * 3) // 4)
    except Exception:
        return 32 * 1024 * 1024


_VMEM_LIMIT = _compute_vmem_limit()


def _pick_images_per_step(n, hw):
    """Largest divisor of n with b*hw <= 512 rows per matmul."""
    b = 1
    for d in range(1, n + 1):
        if n % d == 0 and d * hw <= 512:
            b = d
    return b


# --------------------------------------------------------------------------- #
# pass 1: conv1 (3x3, stride s) fused with the 1x1 projection shortcut         #
# --------------------------------------------------------------------------- #
def _pass1_kernel(B, s, Hq, Ho, Wo, x_ref, w_ref, a_ref, st_ref, col_ref):
    HW = Ho * Wo
    Cip = x_ref.shape[-1]
    Ncols = a_ref.shape[-1]          # Cop, or 2*Cop when the projection is fused

    acc = jnp.zeros((B * HW, Ncols), jnp.float32)
    for ky in range(3):
        # Width-only im2col for this ky (K = 3*Cip), unit-stride slices thanks
        # to the glue-side phase split; bf16 -> bf16 copies (no casts).
        for b in range(B):
            for kx in range(3):
                t = (ky % s) * s + (kx % s)
                oy, ox = ky // s, kx // s
                win = x_ref[b, t * Hq + oy:t * Hq + oy + Ho, ox:ox + Wo, :]
                col_ref[b * HW:(b + 1) * HW, kx * Cip:(kx + 1) * Cip] = (
                    win.reshape(HW, Cip))
        acc = acc + jnp.dot(col_ref[...],
                            w_ref[ky * 3 * Cip:(ky + 1) * 3 * Cip, :],
                            preferred_element_type=jnp.float32)

    # Per-block BN partial statistics from the f32 accumulator (pre bf16 cast).
    st_ref[0, 0:1, :] = jnp.sum(acc, axis=0, keepdims=True)
    st_ref[0, 1:2, :] = jnp.sum(acc * acc, axis=0, keepdims=True)
    a_ref[...] = acc.reshape(B, HW, Ncols).astype(a_ref.dtype)


# --------------------------------------------------------------------------- #
# pass 2: bn1 (folded scale/shift) + ReLU -> conv2 (3x3, stride 1)             #
# --------------------------------------------------------------------------- #
def _pass2_kernel(B, Ho, Wo, a1_ref, sc1_ref, sh1_ref, w2_ref,
                  a2_ref, st_ref, y1pad_ref, col_ref):
    HW = Ho * Wo
    Cop = a1_ref.shape[-1]

    y1 = jnp.maximum(a1_ref[...].astype(jnp.float32) * sc1_ref[...]
                     + sh1_ref[...], 0.0)
    y1b = y1.astype(y1pad_ref.dtype).reshape(B, Ho, Wo, Cop)

    # Spatially padded bf16 activation: centre write + four zero strips only.
    zrow = jnp.zeros((1, Wo + 2, Cop), y1pad_ref.dtype)
    zcol = jnp.zeros((Ho, 1, Cop), y1pad_ref.dtype)
    for b in range(B):
        y1pad_ref[b, 0:1, :, :] = zrow
        y1pad_ref[b, Ho + 1:Ho + 2, :, :] = zrow
        y1pad_ref[b, 1:1 + Ho, 0:1, :] = zcol
        y1pad_ref[b, 1:1 + Ho, Wo + 1:Wo + 2, :] = zcol
        y1pad_ref[b, 1:1 + Ho, 1:1 + Wo, :] = y1b[b]

    acc = jnp.zeros((B * HW, Cop), jnp.float32)
    for ky in range(3):
        for b in range(B):
            for kx in range(3):
                win = y1pad_ref[b, ky:ky + Ho, kx:kx + Wo, :]
                col_ref[b * HW:(b + 1) * HW, kx * Cop:(kx + 1) * Cop] = (
                    win.reshape(HW, Cop))
        acc = acc + jnp.dot(col_ref[...],
                            w2_ref[ky * 3 * Cop:(ky + 1) * 3 * Cop, :],
                            preferred_element_type=jnp.float32)

    st_ref[0, 0:1, :] = jnp.sum(acc, axis=0, keepdims=True)
    st_ref[0, 1:2, :] = jnp.sum(acc * acc, axis=0, keepdims=True)
    a2_ref[...] = acc.reshape(B, HW, Cop).astype(a2_ref.dtype)


# --------------------------------------------------------------------------- #
# pass 3: bn2 (+ shortcut-bn) + residual add + ReLU                            #
# --------------------------------------------------------------------------- #
def _pass3_proj_kernel(a2_ref, sc_ref, s2_ref, b2_ref, ss_ref, bs_ref, out_ref):
    o = a2_ref[...].astype(jnp.float32) * s2_ref[...] + b2_ref[...]
    sc = sc_ref[...].astype(jnp.float32) * ss_ref[...] + bs_ref[...]
    out_ref[...] = jnp.maximum(o + sc, 0.0).astype(out_ref.dtype)


def _pass3_id_kernel(B, Ho, Wo, a2_ref, x_ref, s2_ref, b2_ref, out_ref):
    HW = Ho * Wo
    Cop = a2_ref.shape[-1]
    o = a2_ref[...].astype(jnp.float32) * s2_ref[...] + b2_ref[...]
    for b in range(B):
        xw = x_ref[b, 1:1 + Ho, 1:1 + Wo, :].reshape(HW, Cop).astype(jnp.float32)
        out_ref[b] = jnp.maximum(o[b] + xw, 0.0).astype(out_ref.dtype)


# --------------------------------------------------------------------------- #
# glue                                                                         #
# --------------------------------------------------------------------------- #
def basic_block_forward(x_nchw, params, stride, eps=1e-5,
                        compute_dtype=jnp.bfloat16):
    x = x_nchw.astype(jnp.float32)
    N, Cin, H, W = x.shape
    Co = params["w1"].shape[0]
    s = stride
    Ho = (H + 2 - 3) // s + 1
    Wo = (W + 2 - 3) // s + 1
    HW = Ho * Wo
    M = N * HW
    has_proj = (s != 1) or (Cin != Co)
    Cip = _round_up(Cin, LANE)
    Cop = _round_up(Co, LANE)
    Hq = 2 // s + Ho                 # per-phase rows needed by the 3x3 window
    Wq = 2 // s + Wo
    B = _pick_images_per_step(N, HW)
    G = N // B

    # NHWC, spatial pad 1, channel pad to a lane multiple, bf16.
    x_nhwc = jnp.transpose(x, (0, 2, 3, 1))
    x_pad = jnp.pad(x_nhwc, ((0, 0), (1, 1), (1, 1),
                             (0, Cip - Cin))).astype(compute_dtype)

    # Phase split: s*s interleaved sub-grids stacked along H so every strided
    # conv1 tap becomes a unit-stride window inside the kernel (~1x data).
    phases = []
    for ph in range(s):
        for pw in range(s):
            sl = x_pad[:, ph::s, pw::s, :][:, :Hq, :Wq, :]
            sl = jnp.pad(sl, ((0, 0), (0, Hq - sl.shape[1]),
                              (0, Wq - sl.shape[2]), (0, 0)))
            phases.append(sl)
    x_ph = jnp.concatenate(phases, axis=1)       # (N, s*s*Hq, Wq, Cip) bf16

    def pack3x3_f32(w, ci, cip, co, cop):
        # torch (O, I, 3, 3) -> (9*cip, cop), tap-major rows, padded channels 0
        wp = jnp.transpose(w, (2, 3, 1, 0)).reshape(9, ci, co)
        wp = jnp.pad(wp, ((0, 0), (0, cip - ci), (0, cop - co)))
        return wp.reshape(9 * cip, cop)

    def pad_c(v, cop):
        return jnp.pad(v, (0, cop - v.shape[0]))

    w1f = pack3x3_f32(params["w1"], Cin, Cip, Co, Cop)
    if has_proj:
        # Fuse the 1x1 projection into the conv1 weight: second Cop columns are
        # zero except the center-tap rows [4*Cip : 4*Cip+Cin] = ws.
        wsp = jnp.pad(params["ws"].reshape(Co, Cin).T,
                      ((0, Cip - Cin), (0, Cop - Co)))
        ws_full = jnp.zeros((9 * Cip, Cop), jnp.float32)
        ws_full = ws_full.at[4 * Cip:5 * Cip, :].set(wsp)
        w1f = jnp.concatenate([w1f, ws_full], axis=1)
    w1p = w1f.astype(compute_dtype)
    w2p = pack3x3_f32(params["w2"], Co, Cop, Co, Cop).astype(compute_dtype)

    Ncols = 2 * Cop if has_proj else Cop
    act_dtype = compute_dtype
    cparams = pltpu.CompilerParams(
        dimension_semantics=("parallel",), vmem_limit_bytes=_VMEM_LIMIT)

    # ------------------------------ pass 1 -----------------------------------
    a1sc, st1_all = pl.pallas_call(
        functools.partial(_pass1_kernel, B, s, Hq, Ho, Wo),
        grid=(G,),
        in_specs=[pl.BlockSpec((B, s * s * Hq, Wq, Cip), lambda g: (g, 0, 0, 0)),
                  pl.BlockSpec((9 * Cip, Ncols), lambda g: (0, 0))],
        out_specs=[pl.BlockSpec((B, HW, Ncols), lambda g: (g, 0, 0)),
                   pl.BlockSpec((1, 2, Ncols), lambda g: (g, 0, 0))],
        out_shape=[jax.ShapeDtypeStruct((N, HW, Ncols), act_dtype),
                   jax.ShapeDtypeStruct((G, 2, Ncols), jnp.float32)],
        scratch_shapes=[pltpu.VMEM((B * HW, 3 * Cip), compute_dtype)],
        compiler_params=cparams,
    )(x_ph, w1p)

    # TODO(synk): E[x^2]-E[x]^2 in f32 cancels catastrophically when |mean|>>std;
    # switch to a compensated/offset accumulation if that regime shows up.
    def bn_fold(stats_partials, gamma, beta):
        st = jnp.sum(stats_partials, axis=0)                   # (2, Cop)
        mu = st[0] / M
        var = jnp.maximum(st[1] / M - mu * mu, 0.0)
        scale = gamma * jax.lax.rsqrt(var + eps)
        shift = beta - mu * scale
        return (scale.reshape(1, Cop).astype(jnp.float32),
                shift.reshape(1, Cop).astype(jnp.float32))

    sc1, sh1 = bn_fold(st1_all[:, :, :Cop],
                       pad_c(params["bn1_gamma"], Cop),
                       pad_c(params["bn1_beta"], Cop))

    # ------------------------------ pass 2 -----------------------------------
    a2, st2_all = pl.pallas_call(
        functools.partial(_pass2_kernel, B, Ho, Wo),
        grid=(G,),
        in_specs=[pl.BlockSpec((B, HW, Cop), lambda g: (g, 0, 0)),   # a1 half
                  pl.BlockSpec((1, Cop), lambda g: (0, 0)),
                  pl.BlockSpec((1, Cop), lambda g: (0, 0)),
                  pl.BlockSpec((9 * Cop, Cop), lambda g: (0, 0))],
        out_specs=[pl.BlockSpec((B, HW, Cop), lambda g: (g, 0, 0)),
                   pl.BlockSpec((1, 2, Cop), lambda g: (g, 0, 0))],
        out_shape=[jax.ShapeDtypeStruct((N, HW, Cop), act_dtype),
                   jax.ShapeDtypeStruct((G, 2, Cop), jnp.float32)],
        scratch_shapes=[pltpu.VMEM((B, Ho + 2, Wo + 2, Cop), compute_dtype),
                        pltpu.VMEM((B * HW, 3 * Cop), compute_dtype)],
        compiler_params=cparams,
    )(a1sc, sc1, sh1, w2p)

    sc2, sh2 = bn_fold(st2_all,
                       pad_c(params["bn2_gamma"], Cop),
                       pad_c(params["bn2_beta"], Cop))

    # ------------------------------ pass 3 -----------------------------------
    if has_proj:
        scs, shs = bn_fold(st1_all[:, :, Cop:],
                           pad_c(params["bns_gamma"], Cop),
                           pad_c(params["bns_beta"], Cop))
        out = pl.pallas_call(
            _pass3_proj_kernel,
            grid=(G,),
            in_specs=[pl.BlockSpec((B, HW, Cop), lambda g: (g, 0, 0)),   # a2
                      pl.BlockSpec((B, HW, Cop), lambda g: (g, 0, 1)),   # shortcut
                      pl.BlockSpec((1, Cop), lambda g: (0, 0)),
                      pl.BlockSpec((1, Cop), lambda g: (0, 0)),
                      pl.BlockSpec((1, Cop), lambda g: (0, 0)),
                      pl.BlockSpec((1, Cop), lambda g: (0, 0))],
            out_specs=pl.BlockSpec((B, HW, Cop), lambda g: (g, 0, 0)),
            out_shape=jax.ShapeDtypeStruct((N, HW, Cop), jnp.float32),
            compiler_params=cparams,
        )(a2, a1sc, sc2, sh2, scs, shs)
    else:
        # Identity shortcut: re-read the phase-split input (s==1 so it is just
        # the padded image) and take the centre window in-kernel.
        out = pl.pallas_call(
            functools.partial(_pass3_id_kernel, B, Ho, Wo),
            grid=(G,),
            in_specs=[pl.BlockSpec((B, HW, Cop), lambda g: (g, 0, 0)),
                      pl.BlockSpec((B, Hq, Wq, Cip), lambda g: (g, 0, 0, 0)),
                      pl.BlockSpec((1, Cop), lambda g: (0, 0)),
                      pl.BlockSpec((1, Cop), lambda g: (0, 0))],
            out_specs=pl.BlockSpec((B, HW, Cop), lambda g: (g, 0, 0)),
            out_shape=jax.ShapeDtypeStruct((N, HW, Cop), jnp.float32),
            compiler_params=cparams,
        )(a2, x_ph, sc2, sh2)

    # TODO(synk): if the consumer accepts NHWC (optionally channel-padded),
    # skip this slice + transpose to save one HBM round-trip.
    out = out[:, :, :Co].reshape(N, Ho, Wo, Co)
    return jnp.transpose(out, (0, 3, 1, 2))                    # back to NCHW


# --------------------------------------------------------------------------- #
# pure-JAX reference (PyTorch BasicBlock, train-mode BN) + param init          #
# --------------------------------------------------------------------------- #
def _reference_forward(x_nchw, params, stride, eps=1e-5):
    dn = ("NCHW", "OIHW", "NCHW")
    hi = jax.lax.Precision.HIGHEST

    def bn_train(x, gamma, beta):
        mu = jnp.mean(x, axis=(0, 2, 3), keepdims=True)
        var = jnp.mean((x - mu) ** 2, axis=(0, 2, 3), keepdims=True)
        return ((x - mu) * jax.lax.rsqrt(var + eps)
                * gamma.reshape(1, -1, 1, 1) + beta.reshape(1, -1, 1, 1))

    out = jax.lax.conv_general_dilated(x_nchw, params["w1"], (stride, stride),
                                       ((1, 1), (1, 1)), dimension_numbers=dn,
                                       precision=hi)
    out = jnp.maximum(bn_train(out, params["bn1_gamma"], params["bn1_beta"]), 0.0)
    out = jax.lax.conv_general_dilated(out, params["w2"], (1, 1),
                                       ((1, 1), (1, 1)), dimension_numbers=dn,
                                       precision=hi)
    out = bn_train(out, params["bn2_gamma"], params["bn2_beta"])
    Cin, Co = x_nchw.shape[1], params["w1"].shape[0]
    if stride != 1 or Cin != Co:
        sc = jax.lax.conv_general_dilated(x_nchw, params["ws"], (stride, stride),
                                          ((0, 0), (0, 0)), dimension_numbers=dn,
                                          precision=hi)
        sc = bn_train(sc, params["bns_gamma"], params["bns_beta"])
    else:
        sc = x_nchw
    return jnp.maximum(out + sc, 0.0)


def init_params(key, cin, cout, stride):
    ks = jax.random.split(key, 8)
    p = {
        "w1": 0.1 * jax.random.normal(ks[0], (cout, cin, 3, 3), jnp.float32),
        "bn1_gamma": 1.0 + 0.1 * jax.random.normal(ks[1], (cout,), jnp.float32),
        "bn1_beta": 0.1 * jax.random.normal(ks[2], (cout,), jnp.float32),
        "w2": 0.1 * jax.random.normal(ks[3], (cout, cout, 3, 3), jnp.float32),
        "bn2_gamma": 1.0 + 0.1 * jax.random.normal(ks[4], (cout,), jnp.float32),
        "bn2_beta": 0.1 * jax.random.normal(ks[5], (cout,), jnp.float32),
    }
    if stride != 1 or cin != cout:
        p["ws"] = 0.1 * jax.random.normal(ks[6], (cout, cin, 1, 1), jnp.float32)
        p["bns_gamma"] = 1.0 + 0.1 * jax.random.normal(ks[7], (cout,), jnp.float32)
        p["bns_beta"] = jnp.zeros((cout,), jnp.float32)
    return p


if __name__ == "__main__":
    key = jax.random.PRNGKey(0)
    kx, kpa, kpb = jax.random.split(key, 3)
    x = jax.random.normal(kx, (2, 4, 16, 16), jnp.float32)   # NCHW, like PyTorch

    fwd = jax.jit(basic_block_forward, static_argnums=(2,))

    # bf16 MXU inputs + bf16 inter-pass activations (f32 accumulation & BN math)
    # -> a looser tolerance than a pure-f32 pipeline (errors are amplified by
    # the BN normalization 1/sigma).
    TOL = 5e-2

    # Case 1: projection shortcut (stride=2, channels 4 -> 8)
    pa = init_params(kpa, 4, 8, 2)
    y1 = jax.block_until_ready(fwd(x, pa, 2))
    r1 = _reference_forward(x, pa, 2)
    assert y1.shape == (2, 8, 8, 8), y1.shape
    assert jnp.allclose(y1, r1, atol=TOL, rtol=TOL), float(jnp.max(jnp.abs(y1 - r1)))

    # Case 2: identity shortcut (stride=1, channels 4 -> 4)
    pb = init_params(kpb, 4, 4, 1)
    y2 = jax.block_until_ready(fwd(x, pb, 1))
    r2 = _reference_forward(x, pb, 1)
    assert y2.shape == (2, 4, 16, 16), y2.shape
    assert jnp.allclose(y2, r2, atol=TOL, rtol=TOL), float(jnp.max(jnp.abs(y2 - r2)))

    print("KERNEL_OK")
</pallas_src>

<mosaic_0001>
module attributes {stable_mosaic.version = 11 : i64} {
  func.func @_pass1_kernel(%arg0: i32, %arg1: memref<2x36x9x128xbf16, #tpu.memory_space<vmem>>, %arg2: memref<1152x256xbf16, #tpu.memory_space<vmem>>, %arg3: memref<2x64x256xbf16, #tpu.memory_space<vmem>>, %arg4: memref<1x2x256xf32, #tpu.memory_space<vmem>>, %arg5: memref<128x384xbf16, #tpu.memory_space<vmem>>) attributes {dimension_semantics = [#tpu.dimension_semantics<parallel>], iteration_bounds = array<i64: 1>, scalar_prefetch = 0 : i64, scratch_operands = 1 : i64, tpu.core_type = #tpu.core_type<tc>, window_params = [{transform_indices = @transform_0, window_bounds = array<i64: 2, 36, 9, 128>}, {pipeline_mode = #tpu.pipeline_mode<synchronous>, transform_indices = @transform_1, window_bounds = array<i64: 1152, 256>}, {transform_indices = @transform_2, window_bounds = array<i64: 2, 64, 256>}, {transform_indices = @transform_3, window_bounds = array<i64: 1, 2, 256>}]} {
    %cst = arith.constant 0.000000e+00 : f32
    %0 = vector.broadcast %cst : f32 to vector<128x256xf32>
    %c0 = arith.constant 0 : index
    %c0_0 = arith.constant 0 : index
    %c0_1 = arith.constant 0 : index
    %c0_2 = arith.constant 0 : index
    %1 = vector.load %arg1[%c0, %c0_0, %c0_1, %c0_2] : memref<2x36x9x128xbf16, #tpu.memory_space<vmem>>, vector<1x8x8x128xbf16>
    %2 = vector.shape_cast %1 : vector<1x8x8x128xbf16> to vector<8x8x128xbf16>
    %3 = vector.shape_cast %2 : vector<8x8x128xbf16> to vector<64x128xbf16>
    %c0_3 = arith.constant 0 : index
    %c0_4 = arith.constant 0 : index
    %4 = vector.load %arg5[%c0_3, %c0_4] : memref<128x384xbf16, #tpu.memory_space<vmem>>, vector<64x128xbf16>
    tpu.vector_store %arg5[%c0_3, %c0_4], %3 {strides = array<i32>} : memref<128x384xbf16, #tpu.memory_space<vmem>>, vector<64x128xbf16>,
    %c0_5 = arith.constant 0 : index
    %c9 = arith.constant 9 : index
    %c0_6 = arith.constant 0 : index
    %c0_7 = arith.constant 0 : index
    %5 = vector.load %arg1[%c0_5, %c9, %c0_6, %c0_7] : memref<2x36x9x128xbf16, #tpu.memory_space<vmem>>, vector<1x8x8x128xbf16>
    %6 = vector.shape_cast %5 : vector<1x8x8x128xbf16> to vector<8x8x128xbf16>
    %7 = vector.shape_cast %6 : vector<8x8x128xbf16> to vector<64x128xbf16>
    %c0_8 = arith.constant 0 : index
    %c128 = arith.constant 128 : index
    %8 = vector.load %arg5[%c0_8, %c128] : memref<128x384xbf16, #tpu.memory_space<vmem>>, vector<64x128xbf16>
    tpu.vector_store %arg5[%c0_8, %c128], %7 {strides = array<i32>} : memref<128x384xbf16, #tpu.memory_space<vmem>>, vector<64x128xbf16>,
    %c0_9 = arith.constant 0 : index
    %c0_10 = arith.constant 0 : index
    %c1 = arith.constant 1 : index
    %c0_11 = arith.constant 0 : index
    %9 = vector.load %arg1[%c0_9, %c0_10, %c1, %c0_11] : memref<2x36x9x128xbf16, #tpu.memory_space<vmem>>, vector<1x8x8x128xbf16>
    %10 = vector.shape_cast %9 : vector<1x8x8x128xbf16> to vector<8x8x128xbf16>
    %11 = vector.shape_cast %10 : vector<8x8x128xbf16> to vector<64x128xbf16>
    %c0_12 = arith.constant 0 : index
    %c256 = arith.constant 256 : index
    %12 = vector.load %arg5[%c0_12, %c256] : memref<128x384xbf16, #tpu.memory_space<vmem>>, vector<64x128xbf16>
    tpu.vector_store %arg5[%c0_12, %c256], %11 {strides = array<i32>} : memref<128x384xbf16, #tpu.memory_space<vmem>>, vector<64x128xbf16>,
    %c1_13 = arith.constant 1 : index
    %c0_14 = arith.constant 0 : index
    %c0_15 = arith.constant 0 : index
    %c0_16 = arith.constant 0 : index
    %13 = vector.load %arg1[%c1_13, %c0_14, %c0_15, %c0_16] : memref<2x36x9x128xbf16, #tpu.memory_space<vmem>>, vector<1x8x8x128xbf16>
    %14 = vector.shape_cast %13 : vector<1x8x8x128xbf16> to vector<8x8x128xbf16>
    %15 = vector.shape_cast %14 : vector<8x8x128xbf16> to vector<64x128xbf16>
    %c64 = arith.constant 64 : index
    %c0_17 = arith.constant 0 : index
    %16 = vector.load %arg5[%c64, %c0_17] : memref<128x384xbf16, #tpu.memory_space<vmem>>, vector<64x128xbf16>
    tpu.vector_store %arg5[%c64, %c0_17], %15 {strides = array<i32>} : memref<128x384xbf16, #tpu.memory_space<vmem>>, vector<64x128xbf16>,
    %c1_18 = arith.constant 1 : index
    %c9_19 = arith.constant 9 : index
    %c0_20 = arith.constant 0 : index
    %c0_21 = arith.constant 0 : index
    %17 = vector.load %arg1[%c1_18, %c9_19, %c0_20, %c0_21] : memref<2x36x9x128xbf16, #tpu.memory_space<vmem>>, vector<1x8x8x128xbf16>
    %18 = vector.shape_cast %17 : vector<1x8x8x128xbf16> to vector<8x8x128xbf16>
    %19 = vector.shape_cast %18 : vector<8x8x128xbf16> to vector<64x128xbf16>
    %c64_22 = arith.constant 64 : index
    %c128_23 = arith.constant 128 : index
    %20 = vector.load %arg5[%c64_22, %c128_23] : memref<128x384xbf16, #tpu.memory_space<vmem>>, vector<64x128xbf16>
    tpu.vector_store %arg5[%c64_22, %c128_23], %19 {strides = array<i32>} : memref<128x384xbf16, #tpu.memory_space<vmem>>, vector<64x128xbf16>,
    %c1_24 = arith.constant 1 : index
    %c0_25 = arith.constant 0 : index
    %c1_26 = arith.constant 1 : index
    %c0_27 = arith.constant 0 : index
    %21 = vector.load %arg1[%c1_24, %c0_25, %c1_26, %c0_27] : memref<2x36x9x128xbf16, #tpu.memory_space<vmem>>, vector<1x8x8x128xbf16>
    %22 = vector.shape_cast %21 : vector<1x8x8x128xbf16> to vector<8x8x128xbf16>
    %23 = vector.shape_cast %22 : vector<8x8x128xbf16> to vector<64x128xbf16>
    %c64_28 = arith.constant 64 : index
    %c256_29 = arith.constant 256 : index
    %24 = vector.load %arg5[%c64_28, %c256_29] : memref<128x384xbf16, #tpu.memory_space<vmem>>, vector<64x128xbf16>
    tpu.vector_store %arg5[%c64_28, %c256_29], %23 {strides = array<i32>} : memref<128x384xbf16, #tpu.memory_space<vmem>>, vector<64x128xbf16>,
    %c0_30 = arith.constant 0 : index
    %c0_31 = arith.constant 0 : index
    %25 = vector.load %arg5[%c0_30, %c0_31] : memref<128x384xbf16, #tpu.memory_space<vmem>>, vector<128x384xbf16>
    %c0_32 = arith.constant 0 : index
    %c0_33 = arith.constant 0 : index
    %26 = vector.load %arg2[%c0_32, %c0_33] : memref<1152x256xbf16, #tpu.memory_space<vmem>>, vector<384x256xbf16>
    %cst_34 = arith.constant dense<0.000000e+00> : vector<128x256xf32>
    %27 = tpu.matmul %25, %26, %cst_34 {dimension_numbers = #tpu.dot_dimension_numbers<[1], [0], [0], [1], [0, 0, 1, 1], [], []>} : vector<128x384xbf16>, vector<384x256xbf16>, vector<128x256xf32> -> vector<128x256xf32>
    %28 = arith.addf %0, %27 : vector<128x256xf32>
    %c0_35 = arith.constant 0 : index
    %c18 = arith.constant 18 : index
    %c0_36 = arith.constant 0 : index
    %c0_37 = arith.constant 0 : index
    %29 = vector.load %arg1[%c0_35, %c18, %c0_36, %c0_37] : memref<2x36x9x128xbf16, #tpu.memory_space<vmem>>, vector<1x8x8x128xbf16>
    %30 = vector.shape_cast %29 : vector<1x8x8x128xbf16> to vector<8x8x128xbf16>
    %31 = vector.shape_cast %30 : vector<8x8x128xbf16> to vector<64x128xbf16>
    %c0_38 = arith.constant 0 : index
    %c0_39 = arith.constant 0 : index
    %32 = vector.load %arg5[%c0_38, %c0_39] : memref<128x384xbf16, #tpu.memory_space<vmem>>, vector<64x128xbf16>
    tpu.vector_store %arg5[%c0_38, %c0_39], %31 {strides = array<i32>} : memref<128x384xbf16, #tpu.memory_space<vmem>>, vector<64x128xbf16>,
    %c0_40 = arith.constant 0 : index
    %c27 = arith.constant 27 : index
    %c0_41 = arith.constant 0 : index
    %c0_42 = arith.constant 0 : index
    %33 = vector.load %arg1[%c0_40, %c27, %c0_41, %c0_42] : memref<2x36x9x128xbf16, #tpu.memory_space<vmem>>, vector<1x8x8x128xbf16>
    %34 = vector.shape_cast %33 : vector<1x8x8x128xbf16> to vector<8x8x128xbf16>
    %35 = vector.shape_cast %34 : vector<8x8x128xbf16> to vector<64x128xbf16>
    %c0_43 = arith.constant 0 : index
    %c128_44 = arith.constant 128 : index
    %36 = vector.load %arg5[%c0_43, %c128_44] : memref<128x384xbf16, #tpu.memory_space<vmem>>, vector<64x128xbf16>
    tpu.vector_store %arg5[%c0_43, %c128_44], %35 {strides = array<i32>} : memref<128x384xbf16, #tpu.memory_space<vmem>>, vector<64x128xbf16>,
    %c0_45 = arith.constant 0 : index
    %c18_46 = arith.constant 18 : index
    %c1_47 = arith.constant 1 : index
    %c0_48 = arith.constant 0 : index
    %37 = vector.load %arg1[%c0_45, %c18_46, %c1_47, %c0_48] : memref<2x36x9x128xbf16, #tpu.memory_space<vmem>>, vector<1x8x8x128xbf16>
    %38 = vector.shape_cast %37 : vector<1x8x8x128xbf16> to vector<8x8x128xbf16>
    %39 = vector.shape_cast %38 : vector<8x8x128xbf16> to vector<64x128xbf16>
    %c0_49 = arith.constant 0 : index
    %c256_50 = arith.constant 256 : index
    %40 = vector.load %arg5[%c0_49, %c256_50] : memref<128x384xbf16, #tpu.memory_space<vmem>>, vector<64x128xbf16>
    tpu.vector_store %arg5[%c0_49, %c256_50], %39 {strides = array<i32>} : memref<128x384xbf16, #tpu.memory_space<vmem>>, vector<64x128xbf16>,
    %c1_51 = arith.constant 1 : index
    %c18_52 = arith.constant 18 : index
    %c0_53 = arith.constant 0 : index
    %c0_54 = arith.constant 0 : index
    %41 = vector.load %arg1[%c1_51, %c18_52, %c0_53, %c0_54] : memref<2x36x9x128xbf16, #tpu.memory_space<vmem>>, vector<1x8x8x128xbf16>
    %42 = vector.shape_cast %41 : vector<1x8x8x128xbf16> to vector<8x8x128xbf16>
    %43 = vector.shape_cast %42 : vector<8x8x128xbf16> to vector<64x128xbf16>
    %c64_55 = arith.constant 64 : index
    %c0_56 = arith.constant 0 : index
    %44 = vector.load %arg5[%c64_55, %c0_56] : memref<128x384xbf16, #tpu.memory_space<vmem>>, vector<64x128xbf16>
    tpu.vector_store %arg5[%c64_55, %c0_56], %43 {strides = array<i32>} : memref<128x384xbf16, #tpu.memory_space<vmem>>, vector<64x128xbf16>,
    %c1_57 = arith.constant 1 : index
    %c27_58 = arith.constant 27 : index
    %c0_59 = arith.constant 0 : index
    %c0_60 = arith.constant 0 : index
    %45 = vector.load %arg1[%c1_57, %c27_58, %c0_59, %c0_60] : memref<2x36x9x128xbf16, #tpu.memory_space<vmem>>, vector<1x8x8x128xbf16>
    %46 = vector.shape_cast %45 : vector<1x8x8x128xbf16> to vector<8x8x128xbf16>
    %47 = vector.shape_cast %46 : vector<8x8x128xbf16> to vector<64x128xbf16>
    %c64_61 = arith.constant 64 : index
    %c128_62 = arith.constant 128 : index
    %48 = vector.load %arg5[%c64_61, %c128_62] : memref<128x384xbf16, #tpu.memory_space<vmem>>, vector<64x128xbf16>
    tpu.vector_store %arg5[%c64_61, %c128_62], %47 {strides = array<i32>} : memref<128x384xbf16, #tpu.memory_space<vmem>>, vector<64x128xbf16>,
    %c1_63 = arith.constant 1 : index
    %c18_64 = arith.constant 18 : index
    %c1_65 = arith.constant 1 : index
    %c0_66 = arith.constant 0 : index
    %49 = vector.load %arg1[%c1_63, %c18_64, %c1_65, %c0_66] : memref<2x36x9x128xbf16, #tpu.memory_space<vmem>>, vector<1x8x8x128xbf16>
    %50 = vector.shape_cast %49 : vector<1x8x8x128xbf16> to vector<8x8x128xbf16>
    %51 = vector.shape_cast %50 : vector<8x8x128xbf16> to vector<64x128xbf16>
    %c64_67 = arith.constant 64 : index
    %c256_68 = arith.constant 256 : index
    %52 = vector.load %arg5[%c64_67, %c256_68] : memref<128x384xbf16, #tpu.memory_space<vmem>>, vector<64x128xbf16>
    tpu.vector_store %arg5[%c64_67, %c256_68], %51 {strides = array<i32>} : memref<128x384xbf16, #tpu.memory_space<vmem>>, vector<64x128xbf16>,
    %c0_69 = arith.constant 0 : index
    %c0_70 = arith.constant 0 : index
    %53 = vector.load %arg5[%c0_69, %c0_70] : memref<128x384xbf16, #tpu.memory_space<vmem>>, vector<128x384xbf16>
    %c384 = arith.constant 384 : index
    %c0_71 = arith.constant 0 : index
    %54 = vector.load %arg2[%c384, %c0_71] : memref<1152x256xbf16, #tpu.memory_space<vmem>>, vector<384x256xbf16>
    %cst_72 = arith.constant dense<0.000000e+00> : vector<128x256xf32>
    %55 = tpu.matmul %53, %54, %cst_72 {dimension_numbers = #tpu.dot_dimension_numbers<[1], [0], [0], [1], [0, 0, 1, 1], [], []>} : vector<128x384xbf16>, vector<384x256xbf16>, vector<128x256xf32> -> vector<128x256xf32>
    %56 = arith.addf %28, %55 : vector<128x256xf32>
    %c0_73 = arith.constant 0 : index
    %c1_74 = arith.constant 1 : index
    %c0_75 = arith.constant 0 : index
    %c0_76 = arith.constant 0 : index
    %57 = vector.load %arg1[%c0_73, %c1_74, %c0_75, %c0_76] : memref<2x36x9x128xbf16, #tpu.memory_space<vmem>>, vector<1x8x8x128xbf16>
    %58 = vector.shape_cast %57 : vector<1x8x8x128xbf16> to vector<8x8x128xbf16>
    %59 = vector.shape_cast %58 : vector<8x8x128xbf16> to vector<64x128xbf16>
    %c0_77 = arith.constant 0 : index
    %c0_78 = arith.constant 0 : index
    %60 = vector.load %arg5[%c0_77, %c0_78] : memref<128x384xbf16, #tpu.memory_space<vmem>>, vector<64x128xbf16>
    tpu.vector_store %arg5[%c0_77, %c0_78], %59 {strides = array<i32>} : memref<128x384xbf16, #tpu.memory_space<vmem>>, vector<64x128xbf16>,
    %c0_79 = arith.constant 0 : index
    %c10 = arith.constant 10 : index
    %c0_80 = arith.constant 0 : index
    %c0_81 = arith.constant 0 : index
    %61 = vector.load %arg1[%c0_79, %c10, %c0_80, %c0_81] : memref<2x36x9x128xbf16, #tpu.memory_space<vmem>>, vector<1x8x8x128xbf16>
    %62 = vector.shape_cast %61 : vector<1x8x8x128xbf16> to vector<8x8x128xbf16>
    %63 = vector.shape_cast %62 : vector<8x8x128xbf16> to vector<64x128xbf16>
    %c0_82 = arith.constant 0 : index
    %c128_83 = arith.constant 128 : index
    %64 = vector.load %arg5[%c0_82, %c128_83] : memref<128x384xbf16, #tpu.memory_space<vmem>>, vector<64x128xbf16>
    tpu.vector_store %arg5[%c0_82, %c128_83], %63 {strides = array<i32>} : memref<128x384xbf16, #tpu.memory_space<vmem>>, vector<64x128xbf16>,
    %c0_84 = arith.constant 0 : index
    %c1_85 = arith.constant 1 : index
    %c1_86 = arith.constant 1 : index
    %c0_87 = arith.constant 0 : index
    %65 = vector.load %arg1[%c0_84, %c1_85, %c1_86, %c0_87] : memref<2x36x9x128xbf16, #tpu.memory_space<vmem>>, vector<1x8x8x128xbf16>
    %66 = vector.shape_cast %65 : vector<1x8x8x128xbf16> to vector<8x8x128xbf16>
    %67 = vector.shape_cast %66 : vector<8x8x128xbf16> to vector<64x128xbf16>
    %c0_88 = arith.constant 0 : index
    %c256_89 = arith.constant 256 : index
    %68 = vector.load %arg5[%c0_88, %c256_89] : memref<128x384xbf16, #tpu.memory_space<vmem>>, vector<64x128xbf16>
    tpu.vector_store %arg5[%c0_88, %c256_89], %67 {strides = array<i32>} : memref<128x384xbf16, #tpu.memory_space<vmem>>, vector<64x128xbf16>,
    %c1_90 = arith.constant 1 : index
    %c1_91 = arith.constant 1 : index
    %c0_92 = arith.constant 0 : index
    %c0_93 = arith.constant 0 : index
    %69 = vector.load %arg1[%c1_90, %c1_91, %c0_92, %c0_93] : memref<2x36x9x128xbf16, #tpu.memory_space<vmem>>, vector<1x8x8x128xbf16>
    %70 = vector.shape_cast %69 : vector<1x8x8x128xbf16> to vector<8x8x128xbf16>
    %71 = vector.shape_cast %70 : vector<8x8x128xbf16> to vector<64x128xbf16>
    %c64_94 = arith.constant 64 : index
    %c0_95 = arith.constant 0 : index
    %72 = vector.load %arg5[%c64_94, %c0_95] : memref<128x384xbf16, #tpu.memory_space<vmem>>, vector<64x128xbf16>
    tpu.vector_store %arg5[%c64_94, %c0_95], %71 {strides = array<i32>} : memref<128x384xbf16, #tpu.memory_space<vmem>>, vector<64x128xbf16>,
    %c1_96 = arith.constant 1 : index
    %c10_97 = arith.constant 10 : index
    %c0_98 = arith.constant 0 : index
    %c0_99 = arith.constant 0 : index
    %73 = vector.load %arg1[%c1_96, %c10_97, %c0_98, %c0_99] : memref<2x36x9x128xbf16, #tpu.memory_space<vmem>>, vector<1x8x8x128xbf16>
    %74 = vector.shape_cast %73 : vector<1x8x8x128xbf16> to vector<8x8x128xbf16>
    %75 = vector.shape_cast %74 : vector<8x8x128xbf16> to vector<64x128xbf16>
    %c64_100 = arith.constant 64 : index
    %c128_101 = arith.constant 128 : index
    %76 = vector.load %arg5[%c64_100, %c128_101] : memref<128x384xbf16, #tpu.memory_space<vmem>>, vector<64x128xbf16>
    tpu.vector_store %arg5[%c64_100, %c128_101], %75 {strides = array<i32>} : memref<128x384xbf16, #tpu.memory_space<vmem>>, vector<64x128xbf16>,
    %c1_102 = arith.constant 1 : index
    %c1_103 = arith.constant 1 : index
    %c1_104 = arith.constant 1 : index
    %c0_105 = arith.constant 0 : index
    %77 = vector.load %arg1[%c1_102, %c1_103, %c1_104, %c0_105] : memref<2x36x9x128xbf16, #tpu.memory_space<vmem>>, vector<1x8x8x128xbf16>
    %78 = vector.shape_cast %77 : vector<1x8x8x128xbf16> to vector<8x8x128xbf16>
    %79 = vector.shape_cast %78 : vector<8x8x128xbf16> to vector<64x128xbf16>
    %c64_106 = arith.constant 64 : index
    %c256_107 = arith.constant 256 : index
    %80 = vector.load %arg5[%c64_106, %c256_107] : memref<128x384xbf16, #tpu.memory_space<vmem>>, vector<64x128xbf16>
    tpu.vector_store %arg5[%c64_106, %c256_107], %79 {strides = array<i32>} : memref<128x384xbf16, #tpu.memory_space<vmem>>, vector<64x128xbf16>,
    %c0_108 = arith.constant 0 : index
    %c0_109 = arith.constant 0 : index
    %81 = vector.load %arg5[%c0_108, %c0_109] : memref<128x384xbf16, #tpu.memory_space<vmem>>, vector<128x384xbf16>
    %c768 = arith.constant 768 : index
    %c0_110 = arith.constant 0 : index
    %82 = vector.load %arg2[%c768, %c0_110] : memref<1152x256xbf16, #tpu.memory_space<vmem>>, vector<384x256xbf16>
    %cst_111 = arith.constant dense<0.000000e+00> : vector<128x256xf32>
    %83 = tpu.matmul %81, %82, %cst_111 {dimension_numbers = #tpu.dot_dimension_numbers<[1], [0], [0], [1], [0, 0, 1, 1], [], []>} : vector<128x384xbf16>, vector<384x256xbf16>, vector<128x256xf32> -> vector<128x256xf32>
    %84 = arith.addf %56, %83 : vector<128x256xf32>
    %cst_112 = arith.constant dense<0.000000e+00> : vector<256xf32>
    %85 = vector.multi_reduction <add>, %84, %cst_112 [0] : vector<128x256xf32> to vector<256xf32>
    %86 = vector.shape_cast %85 : vector<256xf32> to vector<1x256xf32>
    %c0_113 = arith.constant 0 : index
    %c0_114 = arith.constant 0 : index
    %c0_115 = arith.constant 0 : index
    %87 = vector.load %arg4[%c0_113, %c0_114, %c0_115] : memref<1x2x256xf32, #tpu.memory_space<vmem>>, vector<1x1x256xf32>
    %88 = vector.shape_cast %87 : vector<1x1x256xf32> to vector<1x256xf32>
    %89 = vector.shape_cast %86 : vector<1x256xf32> to vector<1x1x256xf32>
    tpu.vector_store %arg4[%c0_113, %c0_114, %c0_115], %89 {strides = array<i32>} : memref<1x2x256xf32, #tpu.memory_space<vmem>>, vector<1x1x256xf32>,
    %90 = arith.mulf %84, %84 : vector<128x256xf32>
    %cst_116 = arith.constant dense<0.000000e+00> : vector<256xf32>
    %91 = vector.multi_reduction <add>, %90, %cst_116 [0] : vector<128x256xf32> to vector<256xf32>
    %92 = vector.shape_cast %91 : vector<256xf32> to vector<1x256xf32>
    %c0_117 = arith.constant 0 : index
    %c1_118 = arith.constant 1 : index
    %c0_119 = arith.constant 0 : index
    %93 = vector.load %arg4[%c0_117, %c1_118, %c0_119] : memref<1x2x256xf32, #tpu.memory_space<vmem>>, vector<1x1x256xf32>
    %94 = vector.shape_cast %93 : vector<1x1x256xf32> to vector<1x256xf32>
    %95 = vector.shape_cast %92 : vector<1x256xf32> to vector<1x1x256xf32>
    tpu.vector_store %arg4[%c0_117, %c1_118, %c0_119], %95 {strides = array<i32>} : memref<1x2x256xf32, #tpu.memory_space<vmem>>, vector<1x1x256xf32>,
    %96 = vector.shape_cast %84 : vector<128x256xf32> to vector<2x64x256xf32>
    %97 = arith.truncf %96 : vector<2x64x256xf32> to vector<2x64x256xbf16>
    %c0_120 = arith.constant 0 : index
    %c0_121 = arith.constant 0 : index
    %c0_122 = arith.constant 0 : index
    %98 = vector.load %arg3[%c0_120, %c0_121, %c0_122] : memref<2x64x256xbf16, #tpu.memory_space<vmem>>, vector<2x64x256xbf16>
    tpu.vector_store %arg3[%c0_120, %c0_121, %c0_122], %97 {strides = array<i32>} : memref<2x64x256xbf16, #tpu.memory_space<vmem>>, vector<2x64x256xbf16>,
    return
  }
  func.func @transform_0(%arg0: i32) -> (i32, i32, i32, i32) {
    %c0_i32 = arith.constant 0 : i32
    %c0_i32_0 = arith.constant 0 : i32
    %c0_i32_1 = arith.constant 0 : i32
    %c0_i32_2 = arith.constant 0 : i32
    return %arg0, %c0_i32, %c0_i32_0, %c0_i32_1 : i32, i32, i32, i32
  }
  func.func @transform_1(%arg0: i32) -> (i32, i32) {
    %c0_i32 = arith.constant 0 : i32
    %c0_i32_0 = arith.constant 0 : i32
    %c0_i32_1 = arith.constant 0 : i32
    return %c0_i32, %c0_i32_0 : i32, i32
  }
  func.func @transform_2(%arg0: i32) -> (i32, i32, i32) {
    %c0_i32 = arith.constant 0 : i32
    %c0_i32_0 = arith.constant 0 : i32
    %c0_i32_1 = arith.constant 0 : i32
    return %arg0, %c0_i32, %c0_i32_0 : i32, i32, i32
  }
  func.func @transform_3(%arg0: i32) -> (i32, i32, i32) {
    %c0_i32 = arith.constant 0 : i32
    %c0_i32_0 = arith.constant 0 : i32
    %c0_i32_1 = arith.constant 0 : i32
    return %arg0, %c0_i32, %c0_i32_0 : i32, i32, i32
  }
}

module attributes {stable_mosaic.version = 11 : i64} {
  func.func @_pass3_proj_kernel(%arg0: i32, %arg1: memref<2x64x128xbf16, #tpu.memory_space<vmem>>, %arg2: memref<2x64x128xbf16, #tpu.memory_space<vmem>>, %arg3: memref<1x128xf32, #tpu.memory_space<vmem>>, %arg4: memref<1x128xf32, #tpu.memory_space<vmem>>, %arg5: memref<1x128xf32, #tpu.memory_space<vmem>>, %arg6: memref<1x128xf32, #tpu.memory_space<vmem>>, %arg7: memref<2x64x128xf32, #tpu.memory_space<vmem>>) attributes {dimension_semantics = [#tpu.dimension_semantics<parallel>], iteration_bounds = array<i64: 1>, scalar_prefetch = 0 : i64, scratch_operands = 0 : i64, tpu.core_type = #tpu.core_type<tc>, window_params = [{transform_indices = @transform_0, window_bounds = array<i64: 2, 64, 128>}, {transform_indices = @transform_1, window_bounds = array<i64: 2, 64, 128>}, {pipeline_mode = #tpu.pipeline_mode<synchronous>, transform_indices = @transform_2, window_bounds = array<i64: 1, 128>}, {pipeline_mode = #tpu.pipeline_mode<synchronous>, transform_indices = @transform_3, window_bounds = array<i64: 1, 128>}, {pipeline_mode = #tpu.pipeline_mode<synchronous>, transform_indices = @transform_4, window_bounds = array<i64: 1, 128>}, {pipeline_mode = #tpu.pipeline_mode<synchronous>, transform_indices = @transform_5, window_bounds = array<i64: 1, 128>}, {transform_indices = @transform_6, window_bounds = array<i64: 2, 64, 128>}]} {
    %c0 = arith.constant 0 : index
    %c0_0 = arith.constant 0 : index
    %c0_1 = arith.constant 0 : index
    %0 = vector.load %arg1[%c0, %c0_0, %c0_1] : memref<2x64x128xbf16, #tpu.memory_space<vmem>>, vector<2x64x128xbf16>
    %1 = arith.extf %0 : vector<2x64x128xbf16> to vector<2x64x128xf32>
    %c0_2 = arith.constant 0 : index
    %c0_3 = arith.constant 0 : index
    %2 = vector.load %arg3[%c0_2, %c0_3] : memref<1x128xf32, #tpu.memory_space<vmem>>, vector<1x128xf32>
    %3 = vector.shape_cast %2 : vector<1x128xf32> to vector<1x1x128xf32>
    %4 = vector.broadcast %3 : vector<1x1x128xf32> to vector<2x64x128xf32>
    %5 = arith.mulf %1, %4 : vector<2x64x128xf32>
    %c0_4 = arith.constant 0 : index
    %c0_5 = arith.constant 0 : index
    %6 = vector.load %arg4[%c0_4, %c0_5] : memref<1x128xf32, #tpu.memory_space<vmem>>, vector<1x128xf32>
    %7 = vector.shape_cast %6 : vector<1x128xf32> to vector<1x1x128xf32>
    %8 = vector.broadcast %7 : vector<1x1x128xf32> to vector<2x64x128xf32>
    %9 = arith.addf %5, %8 : vector<2x64x128xf32>
    %c0_6 = arith.constant 0 : index
    %c0_7 = arith.constant 0 : index
    %c0_8 = arith.constant 0 : index
    %10 = vector.load %arg2[%c0_6, %c0_7, %c0_8] : memref<2x64x128xbf16, #tpu.memory_space<vmem>>, vector<2x64x128xbf16>
    %11 = arith.extf %10 : vector<2x64x128xbf16> to vector<2x64x128xf32>
    %c0_9 = arith.constant 0 : index
    %c0_10 = arith.constant 0 : index
    %12 = vector.load %arg5[%c0_9, %c0_10] : memref<1x128xf32, #tpu.memory_space<vmem>>, vector<1x128xf32>
    %13 = vector.shape_cast %12 : vector<1x128xf32> to vector<1x1x128xf32>
    %14 = vector.broadcast %13 : vector<1x1x128xf32> to vector<2x64x128xf32>
    %15 = arith.mulf %11, %14 : vector<2x64x128xf32>
    %c0_11 = arith.constant 0 : index
    %c0_12 = arith.constant 0 : index
    %16 = vector.load %arg6[%c0_11, %c0_12] : memref<1x128xf32, #tpu.memory_space<vmem>>, vector<1x128xf32>
    %17 = vector.shape_cast %16 : vector<1x128xf32> to vector<1x1x128xf32>
    %18 = vector.broadcast %17 : vector<1x1x128xf32> to vector<2x64x128xf32>
    %19 = arith.addf %15, %18 : vector<2x64x128xf32>
    %20 = arith.addf %9, %19 : vector<2x64x128xf32>
    %cst = arith.constant 0.000000e+00 : f32
    %21 = vector.broadcast %cst : f32 to vector<2x64x128xf32>
    %22 = arith.maximumf %20, %21 : vector<2x64x128xf32>
    %c0_13 = arith.constant 0 : index
    %c0_14 = arith.constant 0 : index
    %c0_15 = arith.constant 0 : index
    %23 = vector.load %arg7[%c0_13, %c0_14, %c0_15] : memref<2x64x128xf32, #tpu.memory_space<vmem>>, vector<2x64x128xf32>
    tpu.vector_store %arg7[%c0_13, %c0_14, %c0_15], %22 {strides = array<i32>} : memref<2x64x128xf32, #tpu.memory_space<vmem>>, vector<2x64x128xf32>,
    return
  }
  func.func @transform_0(%arg0: i32) -> (i32, i32, i32) {
    %c0_i32 = arith.constant 0 : i32
    %c0_i32_0 = arith.constant 0 : i32
    %c0_i32_1 = arith.constant 0 : i32
    return %arg0, %c0_i32, %c0_i32_0 : i32, i32, i32
  }
  func.func @transform_1(%arg0: i32) -> (i32, i32, i32) {
    %c0_i32 = arith.constant 0 : i32
    %c1_i32 = arith.constant 1 : i32
    %c0_i32_0 = arith.constant 0 : i32
    return %arg0, %c0_i32, %c1_i32 : i32, i32, i32
  }
  func.func @transform_2(%arg0: i32) -> (i32, i32) {
    %c0_i32 = arith.constant 0 : i32
    %c0_i32_0 = arith.constant 0 : i32
    %c0_i32_1 = arith.constant 0 : i32
    return %c0_i32, %c0_i32_0 : i32, i32
  }
  func.func @transform_3(%arg0: i32) -> (i32, i32) {
    %c0_i32 = arith.constant 0 : i32
    %c0_i32_0 = arith.constant 0 : i32
    %c0_i32_1 = arith.constant 0 : i32
    return %c0_i32, %c0_i32_0 : i32, i32
  }
  func.func @transform_4(%arg0: i32) -> (i32, i32) {
    %c0_i32 = arith.constant 0 : i32
    %c0_i32_0 = arith.constant 0 : i32
    %c0_i32_1 = arith.constant 0 : i32
    return %c0_i32, %c0_i32_0 : i32, i32
  }
  func.func @transform_5(%arg0: i32) -> (i32, i32) {
    %c0_i32 = arith.constant 0 : i32
    %c0_i32_0 = arith.constant 0 : i32
    %c0_i32_1 = arith.constant 0 : i32
    return %c0_i32, %c0_i32_0 : i32, i32
  }
  func.func @transform_6(%arg0: i32) -> (i32, i32, i32) {
    %c0_i32 = arith.constant 0 : i32
    %c0_i32_0 = arith.constant 0 : i32
    %c0_i32_1 = arith.constant 0 : i32
    return %arg0, %c0_i32, %c0_i32_0 : i32, i32, i32
  }
}

module attributes {stable_mosaic.version = 11 : i64} {
  func.func @_pass2_kernel(%arg0: i32, %arg1: memref<2x64x128xbf16, #tpu.memory_space<vmem>>, %arg2: memref<1x128xf32, #tpu.memory_space<vmem>>, %arg3: memref<1x128xf32, #tpu.memory_space<vmem>>, %arg4: memref<1152x128xbf16, #tpu.memory_space<vmem>>, %arg5: memref<2x64x128xbf16, #tpu.memory_space<vmem>>, %arg6: memref<1x2x128xf32, #tpu.memory_space<vmem>>, %arg7: memref<2x10x10x128xbf16, #tpu.memory_space<vmem>>, %arg8: memref<128x384xbf16, #tpu.memory_space<vmem>>) attributes {dimension_semantics = [#tpu.dimension_semantics<parallel>], iteration_bounds = array<i64: 1>, scalar_prefetch = 0 : i64, scratch_operands = 2 : i64, tpu.core_type = #tpu.core_type<tc>, window_params = [{transform_indices = @transform_0, window_bounds = array<i64: 2, 64, 128>}, {pipeline_mode = #tpu.pipeline_mode<synchronous>, transform_indices = @transform_1, window_bounds = array<i64: 1, 128>}, {pipeline_mode = #tpu.pipeline_mode<synchronous>, transform_indices = @transform_2, window_bounds = array<i64: 1, 128>}, {pipeline_mode = #tpu.pipeline_mode<synchronous>, transform_indices = @transform_3, window_bounds = array<i64: 1152, 128>}, {transform_indices = @transform_4, window_bounds = array<i64: 2, 64, 128>}, {transform_indices = @transform_5, window_bounds = array<i64: 1, 2, 128>}]} {
    %c0 = arith.constant 0 : index
    %c0_0 = arith.constant 0 : index
    %c0_1 = arith.constant 0 : index
    %0 = vector.load %arg1[%c0, %c0_0, %c0_1] : memref<2x64x128xbf16, #tpu.memory_space<vmem>>, vector<2x64x128xbf16>
    %1 = arith.extf %0 : vector<2x64x128xbf16> to vector<2x64x128xf32>
    %c0_2 = arith.constant 0 : index
    %c0_3 = arith.constant 0 : index
    %2 = vector.load %arg2[%c0_2, %c0_3] : memref<1x128xf32, #tpu.memory_space<vmem>>, vector<1x128xf32>
    %3 = vector.shape_cast %2 : vector<1x128xf32> to vector<1x1x128xf32>
    %4 = vector.broadcast %3 : vector<1x1x128xf32> to vector<2x64x128xf32>
    %5 = arith.mulf %1, %4 : vector<2x64x128xf32>
    %c0_4 = arith.constant 0 : index
    %c0_5 = arith.constant 0 : index
    %6 = vector.load %arg3[%c0_4, %c0_5] : memref<1x128xf32, #tpu.memory_space<vmem>>, vector<1x128xf32>
    %7 = vector.shape_cast %6 : vector<1x128xf32> to vector<1x1x128xf32>
    %8 = vector.broadcast %7 : vector<1x1x128xf32> to vector<2x64x128xf32>
    %9 = arith.addf %5, %8 : vector<2x64x128xf32>
    %cst = arith.constant 0.000000e+00 : f32
    %10 = vector.broadcast %cst : f32 to vector<2x64x128xf32>
    %11 = arith.maximumf %9, %10 : vector<2x64x128xf32>
    %12 = arith.truncf %11 : vector<2x64x128xf32> to vector<2x64x128xbf16>
    %13 = vector.shape_cast %12 : vector<2x64x128xbf16> to vector<2x8x8x128xbf16>
    %cst_6 = arith.constant 0.000000e+00 : bf16
    %14 = vector.broadcast %cst_6 : bf16 to vector<1x10x128xbf16>
    %cst_7 = arith.constant 0.000000e+00 : bf16
    %15 = vector.broadcast %cst_7 : bf16 to vector<8x1x128xbf16>
    %c0_8 = arith.constant 0 : index
    %c0_9 = arith.constant 0 : index
    %c0_10 = arith.constant 0 : index
    %c0_11 = arith.constant 0 : index
    %16 = vector.load %arg7[%c0_8, %c0_9, %c0_10, %c0_11] : memref<2x10x10x128xbf16, #tpu.memory_space<vmem>>, vector<1x1x10x128xbf16>
    %17 = vector.shape_cast %16 : vector<1x1x10x128xbf16> to vector<1x10x128xbf16>
    %18 = vector.shape_cast %14 : vector<1x10x128xbf16> to vector<1x1x10x128xbf16>
    tpu.vector_store %arg7[%c0_8, %c0_9, %c0_10, %c0_11], %18 {strides = array<i32>} : memref<2x10x10x128xbf16, #tpu.memory_space<vmem>>, vector<1x1x10x128xbf16>,
    %c0_12 = arith.constant 0 : index
    %c9 = arith.constant 9 : index
    %c0_13 = arith.constant 0 : index
    %c0_14 = arith.constant 0 : index
    %19 = vector.load %arg7[%c0_12, %c9, %c0_13, %c0_14] : memref<2x10x10x128xbf16, #tpu.memory_space<vmem>>, vector<1x1x10x128xbf16>
    %20 = vector.shape_cast %19 : vector<1x1x10x128xbf16> to vector<1x10x128xbf16>
    %21 = vector.shape_cast %14 : vector<1x10x128xbf16> to vector<1x1x10x128xbf16>
    tpu.vector_store %arg7[%c0_12, %c9, %c0_13, %c0_14], %21 {strides = array<i32>} : memref<2x10x10x128xbf16, #tpu.memory_space<vmem>>, vector<1x1x10x128xbf16>,
    %c0_15 = arith.constant 0 : index
    %c1 = arith.constant 1 : index
    %c0_16 = arith.constant 0 : index
    %c0_17 = arith.constant 0 : index
    %22 = vector.load %arg7[%c0_15, %c1, %c0_16, %c0_17] : memref<2x10x10x128xbf16, #tpu.memory_space<vmem>>, vector<1x8x1x128xbf16>
    %23 = vector.shape_cast %22 : vector<1x8x1x128xbf16> to vector<8x1x128xbf16>
    %24 = vector.shape_cast %15 : vector<8x1x128xbf16> to vector<1x8x1x128xbf16>
    tpu.vector_store %arg7[%c0_15, %c1, %c0_16, %c0_17], %24 {strides = array<i32>} : memref<2x10x10x128xbf16, #tpu.memory_space<vmem>>, vector<1x8x1x128xbf16>,
    %c0_18 = arith.constant 0 : index
    %c1_19 = arith.constant 1 : index
    %c9_20 = arith.constant 9 : index
    %c0_21 = arith.constant 0 : index
    %25 = vector.load %arg7[%c0_18, %c1_19, %c9_20, %c0_21] : memref<2x10x10x128xbf16, #tpu.memory_space<vmem>>, vector<1x8x1x128xbf16>
    %26 = vector.shape_cast %25 : vector<1x8x1x128xbf16> to vector<8x1x128xbf16>
    %27 = vector.shape_cast %15 : vector<8x1x128xbf16> to vector<1x8x1x128xbf16>
    tpu.vector_store %arg7[%c0_18, %c1_19, %c9_20, %c0_21], %27 {strides = array<i32>} : memref<2x10x10x128xbf16, #tpu.memory_space<vmem>>, vector<1x8x1x128xbf16>,
    %28 = vector.extract_strided_slice %13 {offsets = [0, 0, 0, 0], sizes = [1, 8, 8, 128], strides = [1, 1, 1, 1]} : vector<2x8x8x128xbf16> to vector<1x8x8x128xbf16>
    %29 = vector.shape_cast %28 : vector<1x8x8x128xbf16> to vector<8x8x128xbf16>
    %c0_22 = arith.constant 0 : index
    %c1_23 = arith.constant 1 : index
    %c1_24 = arith.constant 1 : index
    %c0_25 = arith.constant 0 : index
    %30 = vector.load %arg7[%c0_22, %c1_23, %c1_24, %c0_25] : memref<2x10x10x128xbf16, #tpu.memory_space<vmem>>, vector<1x8x8x128xbf16>
    %31 = vector.shape_cast %30 : vector<1x8x8x128xbf16> to vector<8x8x128xbf16>
    %32 = vector.shape_cast %29 : vector<8x8x128xbf16> to vector<1x8x8x128xbf16>
    tpu.vector_store %arg7[%c0_22, %c1_23, %c1_24, %c0_25], %32 {strides = array<i32>} : memref<2x10x10x128xbf16, #tpu.memory_space<vmem>>, vector<1x8x8x128xbf16>,
    %c1_26 = arith.constant 1 : index
    %c0_27 = arith.constant 0 : index
    %c0_28 = arith.constant 0 : index
    %c0_29 = arith.constant 0 : index
    %33 = vector.load %arg7[%c1_26, %c0_27, %c0_28, %c0_29] : memref<2x10x10x128xbf16, #tpu.memory_space<vmem>>, vector<1x1x10x128xbf16>
    %34 = vector.shape_cast %33 : vector<1x1x10x128xbf16> to vector<1x10x128xbf16>
    %35 = vector.shape_cast %14 : vector<1x10x128xbf16> to vector<1x1x10x128xbf16>
    tpu.vector_store %arg7[%c1_26, %c0_27, %c0_28, %c0_29], %35 {strides = array<i32>} : memref<2x10x10x128xbf16, #tpu.memory_space<vmem>>, vector<1x1x10x128xbf16>,
    %c1_30 = arith.constant 1 : index
    %c9_31 = arith.constant 9 : index
    %c0_32 = arith.constant 0 : index
    %c0_33 = arith.constant 0 : index
    %36 = vector.load %arg7[%c1_30, %c9_31, %c0_32, %c0_33] : memref<2x10x10x128xbf16, #tpu.memory_space<vmem>>, vector<1x1x10x128xbf16>
    %37 = vector.shape_cast %36 : vector<1x1x10x128xbf16> to vector<1x10x128xbf16>
    %38 = vector.shape_cast %14 : vector<1x10x128xbf16> to vector<1x1x10x128xbf16>
    tpu.vector_store %arg7[%c1_30, %c9_31, %c0_32, %c0_33], %38 {strides = array<i32>} : memref<2x10x10x128xbf16, #tpu.memory_space<vmem>>, vector<1x1x10x128xbf16>,
    %c1_34 = arith.constant 1 : index
    %c1_35 = arith.constant 1 : index
    %c0_36 = arith.constant 0 : index
    %c0_37 = arith.constant 0 : index
    %39 = vector.load %arg7[%c1_34, %c1_35, %c0_36, %c0_37] : memref<2x10x10x128xbf16, #tpu.memory_space<vmem>>, vector<1x8x1x128xbf16>
    %40 = vector.shape_cast %39 : vector<1x8x1x128xbf16> to vector<8x1x128xbf16>
    %41 = vector.shape_cast %15 : vector<8x1x128xbf16> to vector<1x8x1x128xbf16>
    tpu.vector_store %arg7[%c1_34, %c1_35, %c0_36, %c0_37], %41 {strides = array<i32>} : memref<2x10x10x128xbf16, #tpu.memory_space<vmem>>, vector<1x8x1x128xbf16>,
    %c1_38 = arith.constant 1 : index
    %c1_39 = arith.constant 1 : index
    %c9_40 = arith.constant 9 : index
    %c0_41 = arith.constant 0 : index
    %42 = vector.load %arg7[%c1_38, %c1_39, %c9_40, %c0_41] : memref<2x10x10x128xbf16, #tpu.memory_space<vmem>>, vector<1x8x1x128xbf16>
    %43 = vector.shape_cast %42 : vector<1x8x1x128xbf16> to vector<8x1x128xbf16>
    %44 = vector.shape_cast %15 : vector<8x1x128xbf16> to vector<1x8x1x128xbf16>
    tpu.vector_store %arg7[%c1_38, %c1_39, %c9_40, %c0_41], %44 {strides = array<i32>} : memref<2x10x10x128xbf16, #tpu.memory_space<vmem>>, vector<1x8x1x128xbf16>,
    %45 = vector.extract_strided_slice %13 {offsets = [1, 0, 0, 0], sizes = [1, 8, 8, 128], strides = [1, 1, 1, 1]} : vector<2x8x8x128xbf16> to vector<1x8x8x128xbf16>
    %46 = vector.shape_cast %45 : vector<1x8x8x128xbf16> to vector<8x8x128xbf16>
    %c1_42 = arith.constant 1 : index
    %c1_43 = arith.constant 1 : index
    %c1_44 = arith.constant 1 : index
    %c0_45 = arith.constant 0 : index
    %47 = vector.load %arg7[%c1_42, %c1_43, %c1_44, %c0_45] : memref<2x10x10x128xbf16, #tpu.memory_space<vmem>>, vector<1x8x8x128xbf16>
    %48 = vector.shape_cast %47 : vector<1x8x8x128xbf16> to vector<8x8x128xbf16>
    %49 = vector.shape_cast %46 : vector<8x8x128xbf16> to vector<1x8x8x128xbf16>
    tpu.vector_store %arg7[%c1_42, %c1_43, %c1_44, %c0_45], %49 {strides = array<i32>} : memref<2x10x10x128xbf16, #tpu.memory_space<vmem>>, vector<1x8x8x128xbf16>,
    %cst_46 = arith.constant 0.000000e+00 : f32
    %50 = vector.broadcast %cst_46 : f32 to vector<128x128xf32>
    %c0_47 = arith.constant 0 : index
    %c0_48 = arith.constant 0 : index
    %c0_49 = arith.constant 0 : index
    %c0_50 = arith.constant 0 : index
    %51 = vector.load %arg7[%c0_47, %c0_48, %c0_49, %c0_50] : memref<2x10x10x128xbf16, #tpu.memory_space<vmem>>, vector<1x8x8x128xbf16>
    %52 = vector.shape_cast %51 : vector<1x8x8x128xbf16> to vector<8x8x128xbf16>
    %53 = vector.shape_cast %52 : vector<8x8x128xbf16> to vector<64x128xbf16>
    %c0_51 = arith.constant 0 : index
    %c0_52 = arith.constant 0 : index
    %54 = vector.load %arg8[%c0_51, %c0_52] : memref<128x384xbf16, #tpu.memory_space<vmem>>, vector<64x128xbf16>
    tpu.vector_store %arg8[%c0_51, %c0_52], %53 {strides = array<i32>} : memref<128x384xbf16, #tpu.memory_space<vmem>>, vector<64x128xbf16>,
    %c0_53 = arith.constant 0 : index
    %c0_54 = arith.constant 0 : index
    %c1_55 = arith.constant 1 : index
    %c0_56 = arith.constant 0 : index
    %55 = vector.load %arg7[%c0_53, %c0_54, %c1_55, %c0_56] : memref<2x10x10x128xbf16, #tpu.memory_space<vmem>>, vector<1x8x8x128xbf16>
    %56 = vector.shape_cast %55 : vector<1x8x8x128xbf16> to vector<8x8x128xbf16>
    %57 = vector.shape_cast %56 : vector<8x8x128xbf16> to vector<64x128xbf16>
    %c0_57 = arith.constant 0 : index
    %c128 = arith.constant 128 : index
    %58 = vector.load %arg8[%c0_57, %c128] : memref<128x384xbf16, #tpu.memory_space<vmem>>, vector<64x128xbf16>
    tpu.vector_store %arg8[%c0_57, %c128], %57 {strides = array<i32>} : memref<128x384xbf16, #tpu.memory_space<vmem>>, vector<64x128xbf16>,
    %c0_58 = arith.constant 0 : index
    %c0_59 = arith.constant 0 : index
    %c2 = arith.constant 2 : index
    %c0_60 = arith.constant 0 : index
    %59 = vector.load %arg7[%c0_58, %c0_59, %c2, %c0_60] : memref<2x10x10x128xbf16, #tpu.memory_space<vmem>>, vector<1x8x8x128xbf16>
    %60 = vector.shape_cast %59 : vector<1x8x8x128xbf16> to vector<8x8x128xbf16>
    %61 = vector.shape_cast %60 : vector<8x8x128xbf16> to vector<64x128xbf16>
    %c0_61 = arith.constant 0 : index
    %c256 = arith.constant 256 : index
    %62 = vector.load %arg8[%c0_61, %c256] : memref<128x384xbf16, #tpu.memory_space<vmem>>, vector<64x128xbf16>
    tpu.vector_store %arg8[%c0_61, %c256], %61 {strides = array<i32>} : memref<128x384xbf16, #tpu.memory_space<vmem>>, vector<64x128xbf16>,
    %c1_62 = arith.constant 1 : index
    %c0_63 = arith.constant 0 : index
    %c0_64 = arith.constant 0 : index
    %c0_65 = arith.constant 0 : index
    %63 = vector.load %arg7[%c1_62, %c0_63, %c0_64, %c0_65] : memref<2x10x10x128xbf16, #tpu.memory_space<vmem>>, vector<1x8x8x128xbf16>
    %64 = vector.shape_cast %63 : vector<1x8x8x128xbf16> to vector<8x8x128xbf16>
    %65 = vector.shape_cast %64 : vector<8x8x128xbf16> to vector<64x128xbf16>
    %c64 = arith.constant 64 : index
    %c0_66 = arith.constant 0 : index
    %66 = vector.load %arg8[%c64, %c0_66] : memref<128x384xbf16, #tpu.memory_space<vmem>>, vector<64x128xbf16>
    tpu.vector_store %arg8[%c64, %c0_66], %65 {strides = array<i32>} : memref<128x384xbf16, #tpu.memory_space<vmem>>, vector<64x128xbf16>,
    %c1_67 = arith.constant 1 : index
    %c0_68 = arith.constant 0 : index
    %c1_69 = arith.constant 1 : index
    %c0_70 = arith.constant 0 : index
    %67 = vector.load %arg7[%c1_67, %c0_68, %c1_69, %c0_70] : memref<2x10x10x128xbf16, #tpu.memory_space<vmem>>, vector<1x8x8x128xbf16>
    %68 = vector.shape_cast %67 : vector<1x8x8x128xbf16> to vector<8x8x128xbf16>
    %69 = vector.shape_cast %68 : vector<8x8x128xbf16> to vector<64x128xbf16>
    %c64_71 = arith.constant 64 : index
    %c128_72 = arith.constant 128 : index
    %70 = vector.load %arg8[%c64_71, %c128_72] : memref<128x384xbf16, #tpu.memory_space<vmem>>, vector<64x128xbf16>
    tpu.vector_store %arg8[%c64_71, %c128_72], %69 {strides = array<i32>} : memref<128x384xbf16, #tpu.memory_space<vmem>>, vector<64x128xbf16>,
    %c1_73 = arith.constant 1 : index
    %c0_74 = arith.constant 0 : index
    %c2_75 = arith.constant 2 : index
    %c0_76 = arith.constant 0 : index
    %71 = vector.load %arg7[%c1_73, %c0_74, %c2_75, %c0_76] : memref<2x10x10x128xbf16, #tpu.memory_space<vmem>>, vector<1x8x8x128xbf16>
    %72 = vector.shape_cast %71 : vector<1x8x8x128xbf16> to vector<8x8x128xbf16>
    %73 = vector.shape_cast %72 : vector<8x8x128xbf16> to vector<64x128xbf16>
    %c64_77 = arith.constant 64 : index
    %c256_78 = arith.constant 256 : index
    %74 = vector.load %arg8[%c64_77, %c256_78] : memref<128x384xbf16, #tpu.memory_space<vmem>>, vector<64x128xbf16>
    tpu.vector_store %arg8[%c64_77, %c256_78], %73 {strides = array<i32>} : memref<128x384xbf16, #tpu.memory_space<vmem>>, vector<64x128xbf16>,
    %c0_79 = arith.constant 0 : index
    %c0_80 = arith.constant 0 : index
    %75 = vector.load %arg8[%c0_79, %c0_80] : memref<128x384xbf16, #tpu.memory_space<vmem>>, vector<128x384xbf16>
    %c0_81 = arith.constant 0 : index
    %c0_82 = arith.constant 0 : index
    %76 = vector.load %arg4[%c0_81, %c0_82] : memref<1152x128xbf16, #tpu.memory_space<vmem>>, vector<384x128xbf16>
    %cst_83 = arith.constant dense<0.000000e+00> : vector<128x128xf32>
    %77 = tpu.matmul %75, %76, %cst_83 {dimension_numbers = #tpu.dot_dimension_numbers<[1], [0], [0], [1], [0, 0, 1, 1], [], []>} : vector<128x384xbf16>, vector<384x128xbf16>, vector<128x128xf32> -> vector<128x128xf32>
    %78 = arith.addf %50, %77 : vector<128x128xf32>
    %c0_84 = arith.constant 0 : index
    %c1_85 = arith.constant 1 : index
    %c0_86 = arith.constant 0 : index
    %c0_87 = arith.constant 0 : index
    %79 = vector.load %arg7[%c0_84, %c1_85, %c0_86, %c0_87] : memref<2x10x10x128xbf16, #tpu.memory_space<vmem>>, vector<1x8x8x128xbf16>
    %80 = vector.shape_cast %79 : vector<1x8x8x128xbf16> to vector<8x8x128xbf16>
    %81 = vector.shape_cast %80 : vector<8x8x128xbf16> to vector<64x128xbf16>
    %c0_88 = arith.constant 0 : index
    %c0_89 = arith.constant 0 : index
    %82 = vector.load %arg8[%c0_88, %c0_89] : memref<128x384xbf16, #tpu.memory_space<vmem>>, vector<64x128xbf16>
    tpu.vector_store %arg8[%c0_88, %c0_89], %81 {strides = array<i32>} : memref<128x384xbf16, #tpu.memory_space<vmem>>, vector<64x128xbf16>,
    %c0_90 = arith.constant 0 : index
    %c1_91 = arith.constant 1 : index
    %c1_92 = arith.constant 1 : index
    %c0_93 = arith.constant 0 : index
    %83 = vector.load %arg7[%c0_90, %c1_91, %c1_92, %c0_93] : memref<2x10x10x128xbf16, #tpu.memory_space<vmem>>, vector<1x8x8x128xbf16>
    %84 = vector.shape_cast %83 : vector<1x8x8x128xbf16> to vector<8x8x128xbf16>
    %85 = vector.shape_cast %84 : vector<8x8x128xbf16> to vector<64x128xbf16>
    %c0_94 = arith.constant 0 : index
    %c128_95 = arith.constant 128 : index
    %86 = vector.load %arg8[%c0_94, %c128_95] : memref<128x384xbf16, #tpu.memory_space<vmem>>, vector<64x128xbf16>
    tpu.vector_store %arg8[%c0_94, %c128_95], %85 {strides = array<i32>} : memref<128x384xbf16, #tpu.memory_space<vmem>>, vector<64x128xbf16>,
    %c0_96 = arith.constant 0 : index
    %c1_97 = arith.constant 1 : index
    %c2_98 = arith.constant 2 : index
    %c0_99 = arith.constant 0 : index
    %87 = vector.load %arg7[%c0_96, %c1_97, %c2_98, %c0_99] : memref<2x10x10x128xbf16, #tpu.memory_space<vmem>>, vector<1x8x8x128xbf16>
    %88 = vector.shape_cast %87 : vector<1x8x8x128xbf16> to vector<8x8x128xbf16>
    %89 = vector.shape_cast %88 : vector<8x8x128xbf16> to vector<64x128xbf16>
    %c0_100 = arith.constant 0 : index
    %c256_101 = arith.constant 256 : index
    %90 = vector.load %arg8[%c0_100, %c256_101] : memref<128x384xbf16, #tpu.memory_space<vmem>>, vector<64x128xbf16>
    tpu.vector_store %arg8[%c0_100, %c256_101], %89 {strides = array<i32>} : memref<128x384xbf16, #tpu.memory_space<vmem>>, vector<64x128xbf16>,
    %c1_102 = arith.constant 1 : index
    %c1_103 = arith.constant 1 : index
    %c0_104 = arith.constant 0 : index
    %c0_105 = arith.constant 0 : index
    %91 = vector.load %arg7[%c1_102, %c1_103, %c0_104, %c0_105] : memref<2x10x10x128xbf16, #tpu.memory_space<vmem>>, vector<1x8x8x128xbf16>
    %92 = vector.shape_cast %91 : vector<1x8x8x128xbf16> to vector<8x8x128xbf16>
    %93 = vector.shape_cast %92 : vector<8x8x128xbf16> to vector<64x128xbf16>
    %c64_106 = arith.constant 64 : index
    %c0_107 = arith.constant 0 : index
    %94 = vector.load %arg8[%c64_106, %c0_107] : memref<128x384xbf16, #tpu.memory_space<vmem>>, vector<64x128xbf16>
    tpu.vector_store %arg8[%c64_106, %c0_107], %93 {strides = array<i32>} : memref<128x384xbf16, #tpu.memory_space<vmem>>, vector<64x128xbf16>,
    %c1_108 = arith.constant 1 : index
    %c1_109 = arith.constant 1 : index
    %c1_110 = arith.constant 1 : index
    %c0_111 = arith.constant 0 : index
    %95 = vector.load %arg7[%c1_108, %c1_109, %c1_110, %c0_111] : memref<2x10x10x128xbf16, #tpu.memory_space<vmem>>, vector<1x8x8x128xbf16>
    %96 = vector.shape_cast %95 : vector<1x8x8x128xbf16> to vector<8x8x128xbf16>
    %97 = vector.shape_cast %96 : vector<8x8x128xbf16> to vector<64x128xbf16>
    %c64_112 = arith.constant 64 : index
    %c128_113 = arith.constant 128 : index
    %98 = vector.load %arg8[%c64_112, %c128_113] : memref<128x384xbf16, #tpu.memory_space<vmem>>, vector<64x128xbf16>
    tpu.vector_store %arg8[%c64_112, %c128_113], %97 {strides = array<i32>} : memref<128x384xbf16, #tpu.memory_space<vmem>>, vector<64x128xbf16>,
    %c1_114 = arith.constant 1 : index
    %c1_115 = arith.constant 1 : index
    %c2_116 = arith.constant 2 : index
    %c0_117 = arith.constant 0 : index
    %99 = vector.load %arg7[%c1_114, %c1_115, %c2_116, %c0_117] : memref<2x10x10x128xbf16, #tpu.memory_space<vmem>>, vector<1x8x8x128xbf16>
    %100 = vector.shape_cast %99 : vector<1x8x8x128xbf16> to vector<8x8x128xbf16>
    %101 = vector.shape_cast %100 : vector<8x8x128xbf16> to vector<64x128xbf16>
    %c64_118 = arith.constant 64 : index
    %c256_119 = arith.constant 256 : index
    %102 = vector.load %arg8[%c64_118, %c256_119] : memref<128x384xbf16, #tpu.memory_space<vmem>>, vector<64x128xbf16>
    tpu.vector_store %arg8[%c64_118, %c256_119], %101 {strides = array<i32>} : memref<128x384xbf16, #tpu.memory_space<vmem>>, vector<64x128xbf16>,
    %c0_120 = arith.constant 0 : index
    %c0_121 = arith.constant 0 : index
    %103 = vector.load %arg8[%c0_120, %c0_121] : memref<128x384xbf16, #tpu.memory_space<vmem>>, vector<128x384xbf16>
    %c384 = arith.constant 384 : index
    %c0_122 = arith.constant 0 : index
    %104 = vector.load %arg4[%c384, %c0_122] : memref<1152x128xbf16, #tpu.memory_space<vmem>>, vector<384x128xbf16>
    %cst_123 = arith.constant dense<0.000000e+00> : vector<128x128xf32>
    %105 = tpu.matmul %103, %104, %cst_123 {dimension_numbers = #tpu.dot_dimension_numbers<[1], [0], [0], [1], [0, 0, 1, 1], [], []>} : vector<128x384xbf16>, vector<384x128xbf16>, vector<128x128xf32> -> vector<128x128xf32>
    %106 = arith.addf %78, %105 : vector<128x128xf32>
    %c0_124 = arith.constant 0 : index
    %c2_125 = arith.constant 2 : index
    %c0_126 = arith.constant 0 : index
    %c0_127 = arith.constant 0 : index
    %107 = vector.load %arg7[%c0_124, %c2_125, %c0_126, %c0_127] : memref<2x10x10x128xbf16, #tpu.memory_space<vmem>>, vector<1x8x8x128xbf16>
    %108 = vector.shape_cast %107 : vector<1x8x8x128xbf16> to vector<8x8x128xbf16>
    %109 = vector.shape_cast %108 : vector<8x8x128xbf16> to vector<64x128xbf16>
    %c0_128 = arith.constant 0 : index
    %c0_129 = arith.constant 0 : index
    %110 = vector.load %arg8[%c0_128, %c0_129] : memref<128x384xbf16, #tpu.memory_space<vmem>>, vector<64x128xbf16>
    tpu.vector_store %arg8[%c0_128, %c0_129], %109 {strides = array<i32>} : memref<128x384xbf16, #tpu.memory_space<vmem>>, vector<64x128xbf16>,
    %c0_130 = arith.constant 0 : index
    %c2_131 = arith.constant 2 : index
    %c1_132 = arith.constant 1 : index
    %c0_133 = arith.constant 0 : index
    %111 = vector.load %arg7[%c0_130, %c2_131, %c1_132, %c0_133] : memref<2x10x10x128xbf16, #tpu.memory_space<vmem>>, vector<1x8x8x128xbf16>
    %112 = vector.shape_cast %111 : vector<1x8x8x128xbf16> to vector<8x8x128xbf16>
    %113 = vector.shape_cast %112 : vector<8x8x128xbf16> to vector<64x128xbf16>
    %c0_134 = arith.constant 0 : index
    %c128_135 = arith.constant 128 : index
    %114 = vector.load %arg8[%c0_134, %c128_135] : memref<128x384xbf16, #tpu.memory_space<vmem>>, vector<64x128xbf16>
    tpu.vector_store %arg8[%c0_134, %c128_135], %113 {strides = array<i32>} : memref<128x384xbf16, #tpu.memory_space<vmem>>, vector<64x128xbf16>,
    %c0_136 = arith.constant 0 : index
    %c2_137 = arith.constant 2 : index
    %c2_138 = arith.constant 2 : index
    %c0_139 = arith.constant 0 : index
    %115 = vector.load %arg7[%c0_136, %c2_137, %c2_138, %c0_139] : memref<2x10x10x128xbf16, #tpu.memory_space<vmem>>, vector<1x8x8x128xbf16>
    %116 = vector.shape_cast %115 : vector<1x8x8x128xbf16> to vector<8x8x128xbf16>
    %117 = vector.shape_cast %116 : vector<8x8x128xbf16> to vector<64x128xbf16>
    %c0_140 = arith.constant 0 : index
    %c256_141 = arith.constant 256 : index
    %118 = vector.load %arg8[%c0_140, %c256_141] : memref<128x384xbf16, #tpu.memory_space<vmem>>, vector<64x128xbf16>
    tpu.vector_store %arg8[%c0_140, %c256_141], %117 {strides = array<i32>} : memref<128x384xbf16, #tpu.memory_space<vmem>>, vector<64x128xbf16>,
    %c1_142 = arith.constant 1 : index
    %c2_143 = arith.constant 2 : index
    %c0_144 = arith.constant 0 : index
    %c0_145 = arith.constant 0 : index
    %119 = vector.load %arg7[%c1_142, %c2_143, %c0_144, %c0_145] : memref<2x10x10x128xbf16, #tpu.memory_space<vmem>>, vector<1x8x8x128xbf16>
    %120 = vector.shape_cast %119 : vector<1x8x8x128xbf16> to vector<8x8x128xbf16>
    %121 = vector.shape_cast %120 : vector<8x8x128xbf16> to vector<64x128xbf16>
    %c64_146 = arith.constant 64 : index
    %c0_147 = arith.constant 0 : index
    %122 = vector.load %arg8[%c64_146, %c0_147] : memref<128x384xbf16, #tpu.memory_space<vmem>>, vector<64x128xbf16>
    tpu.vector_store %arg8[%c64_146, %c0_147], %121 {strides = array<i32>} : memref<128x384xbf16, #tpu.memory_space<vmem>>, vector<64x128xbf16>,
    %c1_148 = arith.constant 1 : index
    %c2_149 = arith.constant 2 : index
    %c1_150 = arith.constant 1 : index
    %c0_151 = arith.constant 0 : index
    %123 = vector.load %arg7[%c1_148, %c2_149, %c1_150, %c0_151] : memref<2x10x10x128xbf16, #tpu.memory_space<vmem>>, vector<1x8x8x128xbf16>
    %124 = vector.shape_cast %123 : vector<1x8x8x128xbf16> to vector<8x8x128xbf16>
    %125 = vector.shape_cast %124 : vector<8x8x128xbf16> to vector<64x128xbf16>
    %c64_152 = arith.constant 64 : index
    %c128_153 = arith.constant 128 : index
    %126 = vector.load %arg8[%c64_152, %c128_153] : memref<128x384xbf16, #tpu.memory_space<vmem>>, vector<64x128xbf16>
    tpu.vector_store %arg8[%c64_152, %c128_153], %125 {strides = array<i32>} : memref<128x384xbf16, #tpu.memory_space<vmem>>, vector<64x128xbf16>,
    %c1_154 = arith.constant 1 : index
    %c2_155 = arith.constant 2 : index
    %c2_156 = arith.constant 2 : index
    %c0_157 = arith.constant 0 : index
    %127 = vector.load %arg7[%c1_154, %c2_155, %c2_156, %c0_157] : memref<2x10x10x128xbf16, #tpu.memory_space<vmem>>, vector<1x8x8x128xbf16>
    %128 = vector.shape_cast %127 : vector<1x8x8x128xbf16> to vector<8x8x128xbf16>
    %129 = vector.shape_cast %128 : vector<8x8x128xbf16> to vector<64x128xbf16>
    %c64_158 = arith.constant 64 : index
    %c256_159 = arith.constant 256 : index
    %130 = vector.load %arg8[%c64_158, %c256_159] : memref<128x384xbf16, #tpu.memory_space<vmem>>, vector<64x128xbf16>
    tpu.vector_store %arg8[%c64_158, %c256_159], %129 {strides = array<i32>} : memref<128x384xbf16, #tpu.memory_space<vmem>>, vector<64x128xbf16>,
    %c0_160 = arith.constant 0 : index
    %c0_161 = arith.constant 0 : index
    %131 = vector.load %arg8[%c0_160, %c0_161] : memref<128x384xbf16, #tpu.memory_space<vmem>>, vector<128x384xbf16>
    %c768 = arith.constant 768 : index
    %c0_162 = arith.constant 0 : index
    %132 = vector.load %arg4[%c768, %c0_162] : memref<1152x128xbf16, #tpu.memory_space<vmem>>, vector<384x128xbf16>
    %cst_163 = arith.constant dense<0.000000e+00> : vector<128x128xf32>
    %133 = tpu.matmul %131, %132, %cst_163 {dimension_numbers = #tpu.dot_dimension_numbers<[1], [0], [0], [1], [0, 0, 1, 1], [], []>} : vector<128x384xbf16>, vector<384x128xbf16>, vector<128x128xf32> -> vector<128x128xf32>
    %134 = arith.addf %106, %133 : vector<128x128xf32>
    %cst_164 = arith.constant dense<0.000000e+00> : vector<128xf32>
    %135 = vector.multi_reduction <add>, %134, %cst_164 [0] : vector<128x128xf32> to vector<128xf32>
    %136 = vector.shape_cast %135 : vector<128xf32> to vector<1x128xf32>
    %c0_165 = arith.constant 0 : index
    %c0_166 = arith.constant 0 : index
    %c0_167 = arith.constant 0 : index
    %137 = vector.load %arg6[%c0_165, %c0_166, %c0_167] : memref<1x2x128xf32, #tpu.memory_space<vmem>>, vector<1x1x128xf32>
    %138 = vector.shape_cast %137 : vector<1x1x128xf32> to vector<1x128xf32>
    %139 = vector.shape_cast %136 : vector<1x128xf32> to vector<1x1x128xf32>
    tpu.vector_store %arg6[%c0_165, %c0_166, %c0_167], %139 {strides = array<i32>} : memref<1x2x128xf32, #tpu.memory_space<vmem>>, vector<1x1x128xf32>,
    %140 = arith.mulf %134, %134 : vector<128x128xf32>
    %cst_168 = arith.constant dense<0.000000e+00> : vector<128xf32>
    %141 = vector.multi_reduction <add>, %140, %cst_168 [0] : vector<128x128xf32> to vector<128xf32>
    %142 = vector.shape_cast %141 : vector<128xf32> to vector<1x128xf32>
    %c0_169 = arith.constant 0 : index
    %c1_170 = arith.constant 1 : index
    %c0_171 = arith.constant 0 : index
    %143 = vector.load %arg6[%c0_169, %c1_170, %c0_171] : memref<1x2x128xf32, #tpu.memory_space<vmem>>, vector<1x1x128xf32>
    %144 = vector.shape_cast %143 : vector<1x1x128xf32> to vector<1x128xf32>
    %145 = vector.shape_cast %142 : vector<1x128xf32> to vector<1x1x128xf32>
    tpu.vector_store %arg6[%c0_169, %c1_170, %c0_171], %145 {strides = array<i32>} : memref<1x2x128xf32, #tpu.memory_space<vmem>>, vector<1x1x128xf32>,
    %146 = vector.shape_cast %134 : vector<128x128xf32> to vector<2x64x128xf32>
    %147 = arith.truncf %146 : vector<2x64x128xf32> to vector<2x64x128xbf16>
    %c0_172 = arith.constant 0 : index
    %c0_173 = arith.constant 0 : index
    %c0_174 = arith.constant 0 : index
    %148 = vector.load %arg5[%c0_172, %c0_173, %c0_174] : memref<2x64x128xbf16, #tpu.memory_space<vmem>>, vector<2x64x128xbf16>
    tpu.vector_store %arg5[%c0_172, %c0_173, %c0_174], %147 {strides = array<i32>} : memref<2x64x128xbf16, #tpu.memory_space<vmem>>, vector<2x64x128xbf16>,
    return
  }
  func.func @transform_0(%arg0: i32) -> (i32, i32, i32) {
    %c0_i32 = arith.constant 0 : i32
    %c0_i32_0 = arith.constant 0 : i32
    %c0_i32_1 = arith.constant 0 : i32
    return %arg0, %c0_i32, %c0_i32_0 : i32, i32, i32
  }
  func.func @transform_1(%arg0: i32) -> (i32, i32) {
    %c0_i32 = arith.constant 0 : i32
    %c0_i32_0 = arith.constant 0 : i32
    %c0_i32_1 = arith.constant 0 : i32
    return %c0_i32, %c0_i32_0 : i32, i32
  }
  func.func @transform_2(%arg0: i32) -> (i32, i32) {
    %c0_i32 = arith.constant 0 : i32
    %c0_i32_0 = arith.constant 0 : i32
    %c0_i32_1 = arith.constant 0 : i32
    return %c0_i32, %c0_i32_0 : i32, i32
  }
  func.func @transform_3(%arg0: i32) -> (i32, i32) {
    %c0_i32 = arith.constant 0 : i32
    %c0_i32_0 = arith.constant 0 : i32
    %c0_i32_1 = arith.constant 0 : i32
    return %c0_i32, %c0_i32_0 : i32, i32
  }
  func.func @transform_4(%arg0: i32) -> (i32, i32, i32) {
    %c0_i32 = arith.constant 0 : i32
    %c0_i32_0 = arith.constant 0 : i32
    %c0_i32_1 = arith.constant 0 : i32
    return %arg0, %c0_i32, %c0_i32_0 : i32, i32, i32
  }
  func.func @transform_5(%arg0: i32) -> (i32, i32, i32) {
    %c0_i32 = arith.constant 0 : i32
    %c0_i32_0 = arith.constant 0 : i32
    %c0_i32_1 = arith.constant 0 : i32
    return %arg0, %c0_i32, %c0_i32_0 : i32, i32, i32
  }
}

</mosaic_0001>

<llo_original>
// kernel: basic_block_forward.5
$region0: #{basic_block_forward.5}
  #allocation0 [shape = 'u32[]', space=smem, size = 0x4, offset = 0x4, fixed_abs, tag = 'smem constant byte address 0x4 - core index']
  #allocation1 [shape = 'u32[144,128]{1,0:T(1,128)}', space=vmem, size = 0x12000, scoped, tag = 'internal scratch']
  %s0 = inlined_call_operand.vmem [shape: bf16[2,64,128], index: 0, kind: input, shape index: {}]
  %s1 = inlined_call_operand.vmem [shape: bf16[2,64,256], index: 1, kind: input, shape index: {}]
  %s2 = inlined_call_operand.vmem [shape: f32[1,128], index: 2, kind: input, shape index: {}]
  %s3 = inlined_call_operand.vmem [shape: f32[1,128], index: 3, kind: input, shape index: {}]
  %s4 = inlined_call_operand.vmem [shape: f32[1,128], index: 4, kind: input, shape index: {}]
  %s5 = inlined_call_operand.vmem [shape: f32[1,128], index: 5, kind: input, shape index: {}]
  %s6 = inlined_call_operand.vmem [shape: f32[2,64,128], index: 6, kind: output, shape index: {}]
  %s7 = sld [smem:[#allocation0]]
  $region75: #{basic_block_forward.5} parent=0
    _
  %s9 = ssub.s32 1, %s7
  %s10 = scalar_select 0, %s9, %s7
  $region1: #{basic_block_forward.5} parent=0
    #allocation2 [shape = 'u8[32768]{0}', space=vmem, size = 0x8000, scoped, tag = 'input window, operand 1, single buffered']
    // Predicated region
    $region2: #{basic_block_forward.5} parent=1 // pred_check
      _
    $region3: #{basic_block_forward.5} parent=1 // pred_check_branch
      %12 = sbr.rel (0) target = $region5
    $region4: #{basic_block_forward.5} parent=1 // pred_region
      _
    $region5: #{basic_block_forward.5} parent=1 // pred_fallthru
      _
    // Predicated region
    $region6: #{basic_block_forward.5} parent=1 // pred_check
      _
    $region7: #{basic_block_forward.5} parent=1 // pred_check_branch
      %14 = sbr.rel (0) target = $region9
    $region8: #{basic_block_forward.5} parent=1 // pred_region
      %s15 = scalar_lea.vmem %s1, 4
      // Predicated region
      $region10: #{basic_block_forward.5} parent=8 // pred_check
        _
      $region11: #{basic_block_forward.5} parent=8 // pred_check_branch
        %17 = sbr.rel (0) target = $region13
      $region12: #{basic_block_forward.5} parent=8 // pred_region
        // Predicated region
        $region14: #{basic_block_forward.5} parent=12 // pred_check
          _
        $region15: #{basic_block_forward.5} parent=12 // pred_check_branch
          %19 = sbr.rel target = $region17
        $region16: #{basic_block_forward.5} parent=12 // pred_region
          // Predicated region
          $region29: #{basic_block_forward.5} parent=16 // pred_check
            _
          $region30: #{basic_block_forward.5} parent=16 // pred_check_branch
            %64 = sbr.rel (0) target = $region32
          $region31: #{basic_block_forward.5} parent=16 // pred_region
            loop: start=0, step=1, limit=1
            $region33: #{basic_block_forward.5} parent=31 // loop_pre_header
              _
            $region34: #{basic_block_forward.5} parent=31 // loop_header
              %s66 = sphi 0, %s70
              %p67 = scmp.ge.s32.totalorder %s66, 1
              %s71 = sphi %s15, %s15
              %s72 = sphi [#allocation2], [#allocation2]
            $region35: #{basic_block_forward.5} parent=31 // loop_header_branch
              %69 = sbr.rel (%p67) target = $region39
            $region36: #{basic_block_forward.5} parent=31 // loop_body
              _
            $region37: #{basic_block_forward.5} parent=31 // loop_footer
              %s70 = sadd.s32 1, %s66
            $region38: #{basic_block_forward.5} parent=31 // loop_footer_branch
              %65 = sbr.rel target = $region34
            $region39: #{basic_block_forward.5} parent=31 // loop_exit
              _
            loop: start=0, step=1, limit=1
            $region40: #{basic_block_forward.5} parent=31 // loop_pre_header
              _
            $region41: #{basic_block_forward.5} parent=31 // loop_header
              %s75 = sphi 0, %s79
              %p76 = scmp.ge.s32.totalorder %s75, 1
              %s80 = sphi %s15, %s15
              %s81 = sphi [#allocation2], [#allocation2]
            $region42: #{basic_block_forward.5} parent=31 // loop_header_branch
              %78 = sbr.rel (%p76) target = $region46
            $region43: #{basic_block_forward.5} parent=31 // loop_body
              %v82 = vld [vmem:[%s80] sm:$0xf]
              %83 = vst [vmem:[%s81] sm:$0xf] %v82
              %v84 = vld [vmem:[%s80 + $0x8] sm:$0xf]
              %85 = vst [vmem:[%s81 + $0x4] sm:$0xf] %v84
              %v86 = vld [vmem:[%s80 + $0x10] sm:$0xf]
              %87 = vst [vmem:[%s81 + $0x8] sm:$0xf] %v86
              %v88 = vld [vmem:[%s80 + $0x18] sm:$0xf]
              %89 = vst [vmem:[%s81 + $0xc] sm:$0xf] %v88
              %v90 = vld [vmem:[%s80 + $0x20] sm:$0xf]
              %91 = vst [vmem:[%s81 + $0x10] sm:$0xf] %v90
              %v92 = vld [vmem:[%s80 + $0x28] sm:$0xf]
              %93 = vst [vmem:[%s81 + $0x14] sm:$0xf] %v92
              %v94 = vld [vmem:[%s80 + $0x30] sm:$0xf]
              %95 = vst [vmem:[%s81 + $0x18] sm:$0xf] %v94
              %v96 = vld [vmem:[%s80 + $0x38] sm:$0xf]
              %97 = vst [vmem:[%s81 + $0x1c] sm:$0xf] %v96
              %v98 = vld [vmem:[%s80 + $0x40] sm:$0xf]
              %99 = vst [vmem:[%s81 + $0x20] sm:$0xf] %v98
              %v100 = vld [vmem:[%s80 + $0x48] sm:$0xf]
              %101 = vst [vmem:[%s81 + $0x24] sm:$0xf] %v100
              %v102 = vld [vmem:[%s80 + $0x50] sm:$0xf]
              %103 = vst [vmem:[%s81 + $0x28] sm:$0xf] %v102
              %v104 = vld [vmem:[%s80 + $0x58] sm:$0xf]
              %105 = vst [vmem:[%s81 + $0x2c] sm:$0xf] %v104
              %v106 = vld [vmem:[%s80 + $0x60] sm:$0xf]
              %107 = vst [vmem:[%s81 + $0x30] sm:$0xf] %v106
              %v108 = vld [vmem:[%s80 + $0x68] sm:$0xf]
              %109 = vst [vmem:[%s81 + $0x34] sm:$0xf] %v108
              %v110 = vld [vmem:[%s80 + $0x70] sm:$0xf]
              %111 = vst [vmem:[%s81 + $0x38] sm:$0xf] %v110
              %v112 = vld [vmem:[%s80 + $0x78] sm:$0xf]
              %113 = vst [vmem:[%s81 + $0x3c] sm:$0xf] %v112
            $region44: #{basic_block_forward.5} parent=31 // loop_footer
              %s79 = sadd.s32 1, %s75
            $region45: #{basic_block_forward.5} parent=31 // loop_footer_branch
              %74 = sbr.rel target = $region41
            $region46: #{basic_block_forward.5} parent=31 // loop_exit
              _
          $region32: #{basic_block_forward.5} parent=16 // pred_fallthru
            _
        $region17: #{basic_block_forward.5} parent=12 // pred_fallthru
          _
        // Predicated region
        $region18: #{basic_block_forward.5} parent=12 // pred_check
          _
        $region19: #{basic_block_forward.5} parent=12 // pred_check_branch
          %21 = sbr.rel (0) target = $region21
        $region20: #{basic_block_forward.5} parent=12 // pred_region
          loop: start=0, step=1, limit=1
          $region22: #{basic_block_forward.5} parent=20 // loop_pre_header
            _
          $region23: #{basic_block_forward.5} parent=20 // loop_header
            %s24 = sphi 0, %s28
            %p25 = scmp.ge.s32.totalorder %s24, 1
            %s29 = sphi %s15, %s15
            %s30 = sphi [#allocation2], [#allocation2]
          $region24: #{basic_block_forward.5} parent=20 // loop_header_branch
            %27 = sbr.rel (%p25) target = $region28
          $region25: #{basic_block_forward.5} parent=20 // loop_body
            %v31 = vld [vmem:[%s29] sm:$0xf]
            %32 = vst [vmem:[%s30] sm:$0xf] %v31
            %v33 = vld [vmem:[%s29 + $0x8] sm:$0xf]
            %34 = vst [vmem:[%s30 + $0x4] sm:$0xf] %v33
            %v35 = vld [vmem:[%s29 + $0x10] sm:$0xf]
            %36 = vst [vmem:[%s30 + $0x8] sm:$0xf] %v35
            %v37 = vld [vmem:[%s29 + $0x18] sm:$0xf]
            %38 = vst [vmem:[%s30 + $0xc] sm:$0xf] %v37
            %v39 = vld [vmem:[%s29 + $0x20] sm:$0xf]
            %40 = vst [vmem:[%s30 + $0x10] sm:$0xf] %v39
            %v41 = vld [vmem:[%s29 + $0x28] sm:$0xf]
            %42 = vst [vmem:[%s30 + $0x14] sm:$0xf] %v41
            %v43 = vld [vmem:[%s29 + $0x30] sm:$0xf]
            %44 = vst [vmem:[%s30 + $0x18] sm:$0xf] %v43
            %v45 = vld [vmem:[%s29 + $0x38] sm:$0xf]
            %46 = vst [vmem:[%s30 + $0x1c] sm:$0xf] %v45
            %v47 = vld [vmem:[%s29 + $0x40] sm:$0xf]
            %48 = vst [vmem:[%s30 + $0x20] sm:$0xf] %v47
            %v49 = vld [vmem:[%s29 + $0x48] sm:$0xf]
            %50 = vst [vmem:[%s30 + $0x24] sm:$0xf] %v49
            %v51 = vld [vmem:[%s29 + $0x50] sm:$0xf]
            %52 = vst [vmem:[%s30 + $0x28] sm:$0xf] %v51
            %v53 = vld [vmem:[%s29 + $0x58] sm:$0xf]
            %54 = vst [vmem:[%s30 + $0x2c] sm:$0xf] %v53
            %v55 = vld [vmem:[%s29 + $0x60] sm:$0xf]
            %56 = vst [vmem:[%s30 + $0x30] sm:$0xf] %v55
            %v57 = vld [vmem:[%s29 + $0x68] sm:$0xf]
            %58 = vst [vmem:[%s30 + $0x34] sm:$0xf] %v57
            %v59 = vld [vmem:[%s29 + $0x70] sm:$0xf]
            %60 = vst [vmem:[%s30 + $0x38] sm:$0xf] %v59
            %v61 = vld [vmem:[%s29 + $0x78] sm:$0xf]
            %62 = vst [vmem:[%s30 + $0x3c] sm:$0xf] %v61
          $region26: #{basic_block_forward.5} parent=20 // loop_footer
            %s28 = sadd.s32 1, %s24
          $region27: #{basic_block_forward.5} parent=20 // loop_footer_branch
            %23 = sbr.rel target = $region23
          $region28: #{basic_block_forward.5} parent=20 // loop_exit
            _
        $region21: #{basic_block_forward.5} parent=12 // pred_fallthru
          _
      $region13: #{basic_block_forward.5} parent=8 // pred_fallthru
        _
      %114 = vnop
    $region9: #{basic_block_forward.5} parent=1 // pred_fallthru
      _
    // Predicated region
    $region47: #{basic_block_forward.5} parent=1 // pred_check
      _
    $region48: #{basic_block_forward.5} parent=1 // pred_check_branch
      %116 = sbr.rel (0) target = $region50
    $region49: #{basic_block_forward.5} parent=1 // pred_region
      _
    $region50: #{basic_block_forward.5} parent=1 // pred_fallthru
      _
    // Predicated region
    $region51: #{basic_block_forward.5} parent=1 // pred_check
      _
    $region52: #{basic_block_forward.5} parent=1 // pred_check_branch
      %118 = sbr.rel (0) target = $region54
    $region53: #{basic_block_forward.5} parent=1 // pred_region
      _
    $region54: #{basic_block_forward.5} parent=1 // pred_fallthru
      _
    // Predicated region
    $region55: #{basic_block_forward.5} parent=1 // pred_check
      _
    $region56: #{basic_block_forward.5} parent=1 // pred_check_branch
      %120 = sbr.rel (0) target = $region58
    $region57: #{basic_block_forward.5} parent=1 // pred_region
      _
    $region58: #{basic_block_forward.5} parent=1 // pred_fallthru
      _
    // Predicated region
    $region59: #{basic_block_forward.5} parent=1 // pred_check
      _
    $region60: #{basic_block_forward.5} parent=1 // pred_check_branch
      %122 = sbr.rel (0) target = $region62
    $region61: #{basic_block_forward.5} parent=1 // pred_region
      _
    $region62: #{basic_block_forward.5} parent=1 // pred_fallthru
      _
    // Predicated region
    $region63: #{basic_block_forward.5} parent=1 // pred_check
      _
    $region64: #{basic_block_forward.5} parent=1 // pred_check_branch
      %124 = sbr.rel (0) target = $region66
    $region65: #{basic_block_forward.5} parent=1 // pred_region
      _
    $region66: #{basic_block_forward.5} parent=1 // pred_fallthru
      _
    %v125 = vld [vmem:[%s0] sm:$0xf]
    %v126 = vld [vmem:[%s0 + $0x4] sm:$0xf]
    %v127 = vld [vmem:[%s0 + $0x8] sm:$0xf]
    %v128 = vld [vmem:[%s0 + $0xc] sm:$0xf]
    %v129 = vld [vmem:[%s0 + $0x10] sm:$0xf]
    %v130 = vld [vmem:[%s0 + $0x14] sm:$0xf]
    %v131 = vld [vmem:[%s0 + $0x18] sm:$0xf]
    %v132 = vld [vmem:[%s0 + $0x1c] sm:$0xf]
    %v133 = vld [vmem:[%s0 + $0x20] sm:$0xf]
    %v134 = vld [vmem:[%s0 + $0x24] sm:$0xf]
    %v135 = vld [vmem:[%s0 + $0x28] sm:$0xf]
    %v136 = vld [vmem:[%s0 + $0x2c] sm:$0xf]
    %v137 = vld [vmem:[%s0 + $0x30] sm:$0xf]
    %v138 = vld [vmem:[%s0 + $0x34] sm:$0xf]
    %v139 = vld [vmem:[%s0 + $0x38] sm:$0xf]
    %v140 = vld [vmem:[%s0 + $0x3c] sm:$0xf]
    %v141 = vunpack.c.l.bf16 %v125
    %v142 = vunpack.c.l.bf16 %v126
    %v143 = vunpack.c.l.bf16 %v127
    %v144 = vunpack.c.l.bf16 %v128
    %v145 = vunpack.c.l.bf16 %v129
    %v146 = vunpack.c.l.bf16 %v130
    %v147 = vunpack.c.l.bf16 %v131
    %v148 = vunpack.c.l.bf16 %v132
    %v149 = vunpack.c.l.bf16 %v133
    %v150 = vunpack.c.l.bf16 %v134
    %v151 = vunpack.c.l.bf16 %v135
    %v152 = vunpack.c.l.bf16 %v136
    %v153 = vunpack.c.l.bf16 %v137
    %v154 = vunpack.c.l.bf16 %v138
    %v155 = vunpack.c.l.bf16 %v139
    %v156 = vunpack.c.l.bf16 %v140
    %v157 = vld [vmem:[%s2] sm:$0x1]
    %v159 = vlaneseq
    %v160 = vshrl.u32 %v159, 7
    %v161 = vsub.s32 0, %v160
    %v162 = vrot.slane %v157, %v161
    %v164 = vmul.f32 %v141, %v162
    %v165 = vmul.f32 %v142, %v162
    %v166 = vmul.f32 %v143, %v162
    %v167 = vmul.f32 %v144, %v162
    %v168 = vmul.f32 %v145, %v162
    %v169 = vmul.f32 %v146, %v162
    %v170 = vmul.f32 %v147, %v162
    %v171 = vmul.f32 %v148, %v162
    %v172 = vmul.f32 %v149, %v162
    %v173 = vmul.f32 %v150, %v162
    %v174 = vmul.f32 %v151, %v162
    %v175 = vmul.f32 %v152, %v162
    %v176 = vmul.f32 %v153, %v162
    %v177 = vmul.f32 %v154, %v162
    %v178 = vmul.f32 %v155, %v162
    %v179 = vmul.f32 %v156, %v162
    %v180 = vld [vmem:[%s3] sm:$0x1]
    %v182 = vlaneseq
    %v183 = vshrl.u32 %v182, 7
    %v184 = vsub.s32 0, %v183
    %v185 = vrot.slane %v180, %v184
    %v187 = vadd.f32 %v164, %v185
    %v188 = vadd.f32 %v165, %v185
    %v189 = vadd.f32 %v166, %v185
    %v190 = vadd.f32 %v167, %v185
    %v191 = vadd.f32 %v168, %v185
    %v192 = vadd.f32 %v169, %v185
    %v193 = vadd.f32 %v170, %v185
    %v194 = vadd.f32 %v171, %v185
    %v195 = vadd.f32 %v172, %v185
    %v196 = vadd.f32 %v173, %v185
    %v197 = vadd.f32 %v174, %v185
    %v198 = vadd.f32 %v175, %v185
    %v199 = vadd.f32 %v176, %v185
    %v200 = vadd.f32 %v177, %v185
    %v201 = vadd.f32 %v178, %v185
    %v202 = vadd.f32 %v179, %v185
    %v203 = vld [vmem:[#allocation2] sm:$0xf]
    %v204 = vld [vmem:[#allocation2 + $0x4] sm:$0xf]
    %v205 = vld [vmem:[#allocation2 + $0x8] sm:$0xf]
    %v206 = vld [vmem:[#allocation2 + $0xc] sm:$0xf]
    %v207 = vld [vmem:[#allocation2 + $0x10] sm:$0xf]
    %v208 = vld [vmem:[#allocation2 + $0x14] sm:$0xf]
    %v209 = vld [vmem:[#allocation2 + $0x18] sm:$0xf]
    %v210 = vld [vmem:[#allocation2 + $0x1c] sm:$0xf]
    %v211 = vld [vmem:[#allocation2 + $0x20] sm:$0xf]
    %v212 = vld [vmem:[#allocation2 + $0x24] sm:$0xf]
    %v213 = vld [vmem:[#allocation2 + $0x28] sm:$0xf]
    %v214 = vld [vmem:[#allocation2 + $0x2c] sm:$0xf]
    %v215 = vld [vmem:[#allocation2 + $0x30] sm:$0xf]
    %v216 = vld [vmem:[#allocation2 + $0x34] sm:$0xf]
    %v217 = vld [vmem:[#allocation2 + $0x38] sm:$0xf]
    %v218 = vld [vmem:[#allocation2 + $0x3c] sm:$0xf]
    %v219 = vunpack.c.l.bf16 %v203
    %v220 = vunpack.c.l.bf16 %v204
    %v221 = vunpack.c.l.bf16 %v205
    %v222 = vunpack.c.l.bf16 %v206
    %v223 = vunpack.c.l.bf16 %v207
    %v224 = vunpack.c.l.bf16 %v208
    %v225 = vunpack.c.l.bf16 %v209
    %v226 = vunpack.c.l.bf16 %v210
    %v227 = vunpack.c.l.bf16 %v211
    %v228 = vunpack.c.l.bf16 %v212
    %v229 = vunpack.c.l.bf16 %v213
    %v230 = vunpack.c.l.bf16 %v214
    %v231 = vunpack.c.l.bf16 %v215
    %v232 = vunpack.c.l.bf16 %v216
    %v233 = vunpack.c.l.bf16 %v217
    %v234 = vunpack.c.l.bf16 %v218
    %v235 = vld [vmem:[%s4] sm:$0x1]
    %v237 = vlaneseq
    %v238 = vshrl.u32 %v237, 7
    %v239 = vsub.s32 0, %v238
    %v240 = vrot.slane %v235, %v239
    %v242 = vmul.f32 %v219, %v240
    %v243 = vmul.f32 %v220, %v240
    %v244 = vmul.f32 %v221, %v240
    %v245 = vmul.f32 %v222, %v240
    %v246 = vmul.f32 %v223, %v240
    %v247 = vmul.f32 %v224, %v240
    %v248 = vmul.f32 %v225, %v240
    %v249 = vmul.f32 %v226, %v240
    %v250 = vmul.f32 %v227, %v240
    %v251 = vmul.f32 %v228, %v240
    %v252 = vmul.f32 %v229, %v240
    %v253 = vmul.f32 %v230, %v240
    %v254 = vmul.f32 %v231, %v240
    %v255 = vmul.f32 %v232, %v240
    %v256 = vmul.f32 %v233, %v240
    %v257 = vmul.f32 %v234, %v240
    %v258 = vld [vmem:[%s5] sm:$0x1]
    %v260 = vlaneseq
    %v261 = vshrl.u32 %v260, 7
    %v262 = vsub.s32 0, %v261
    %v263 = vrot.slane %v258, %v262
    %v265 = vadd.f32 %v242, %v263
    %v266 = vadd.f32 %v243, %v263
    %v267 = vadd.f32 %v244, %v263
    %v268 = vadd.f32 %v245, %v263
    %v269 = vadd.f32 %v246, %v263
    %v270 = vadd.f32 %v247, %v263
    %v271 = vadd.f32 %v248, %v263
    %v272 = vadd.f32 %v249, %v263
    %v273 = vadd.f32 %v250, %v263
    %v274 = vadd.f32 %v251, %v263
    %v275 = vadd.f32 %v252, %v263
    %v276 = vadd.f32 %v253, %v263
    %v277 = vadd.f32 %v254, %v263
    %v278 = vadd.f32 %v255, %v263
    %v279 = vadd.f32 %v256, %v263
    %v280 = vadd.f32 %v257, %v263
    %v281 = vadd.f32 %v187, %v265
    %v282 = vadd.f32 %v188, %v266
    %v283 = vadd.f32 %v189, %v267
    %v284 = vadd.f32 %v190, %v268
    %v285 = vadd.f32 %v191, %v269
    %v286 = vadd.f32 %v192, %v270
    %v287 = vadd.f32 %v193, %v271
    %v288 = vadd.f32 %v194, %v272
    %v289 = vadd.f32 %v195, %v273
    %v290 = vadd.f32 %v196, %v274
    %v291 = vadd.f32 %v197, %v275
    %v292 = vadd.f32 %v198, %v276
    %v293 = vadd.f32 %v199, %v277
    %v294 = vadd.f32 %v200, %v278
    %v295 = vadd.f32 %v201, %v279
    %v296 = vadd.f32 %v202, %v280
    %v297 = vmax.f32 %v281, 0.0
    %v298 = vmax.f32 %v282, 0.0
    %v299 = vmax.f32 %v283, 0.0
    %v300 = vmax.f32 %v284, 0.0
    %v301 = vmax.f32 %v285, 0.0
    %v302 = vmax.f32 %v286, 0.0
    %v303 = vmax.f32 %v287, 0.0
    %v304 = vmax.f32 %v288, 0.0
    %v305 = vmax.f32 %v289, 0.0
    %v306 = vmax.f32 %v290, 0.0
    %v307 = vmax.f32 %v291, 0.0
    %v308 = vmax.f32 %v292, 0.0
    %v309 = vmax.f32 %v293, 0.0
    %v310 = vmax.f32 %v294, 0.0
    %v311 = vmax.f32 %v295, 0.0
    %v312 = vmax.f32 %v296, 0.0
    %313 = vst [vmem:[%s6] sm:$0xff] %v297
    %314 = vst [vmem:[%s6 + $0x8] sm:$0xff] %v298
    %315 = vst [vmem:[%s6 + $0x10] sm:$0xff] %v299
    %316 = vst [vmem:[%s6 + $0x18] sm:$0xff] %v300
    %317 = vst [vmem:[%s6 + $0x20] sm:$0xff] %v301
    %318 = vst [vmem:[%s6 + $0x28] sm:$0xff] %v302
    %319 = vst [vmem:[%s6 + $0x30] sm:$0xff] %v303
    %320 = vst [vmem:[%s6 + $0x38] sm:$0xff] %v304
    %321 = vst [vmem:[%s6 + $0x40] sm:$0xff] %v305
    %322 = vst [vmem:[%s6 + $0x48] sm:$0xff] %v306
    %323 = vst [vmem:[%s6 + $0x50] sm:$0xff] %v307
    %324 = vst [vmem:[%s6 + $0x58] sm:$0xff] %v308
    %325 = vst [vmem:[%s6 + $0x60] sm:$0xff] %v309
    %326 = vst [vmem:[%s6 + $0x68] sm:$0xff] %v310
    %327 = vst [vmem:[%s6 + $0x70] sm:$0xff] %v311
    %328 = vst [vmem:[%s6 + $0x78] sm:$0xff] %v312
    // Predicated region
    $region67: #{basic_block_forward.5} parent=1 // pred_check
      _
    $region68: #{basic_block_forward.5} parent=1 // pred_check_branch
      %330 = sbr.rel (0) target = $region70
    $region69: #{basic_block_forward.5} parent=1 // pred_region
      _
    $region70: #{basic_block_forward.5} parent=1 // pred_fallthru
      _
    // Predicated region
    $region71: #{basic_block_forward.5} parent=1 // pred_check
      _
    $region72: #{basic_block_forward.5} parent=1 // pred_check_branch
      %332 = sbr.rel (0) target = $region74
    $region73: #{basic_block_forward.5} parent=1 // pred_region
      _
    $region74: #{basic_block_forward.5} parent=1 // pred_fallthru
      _

// kernel: basic_block_forward.3
$region0: #{basic_block_forward.3}
  #allocation0 [shape = 'u32[]', space=smem, size = 0x4, offset = 0x4, fixed_abs, tag = 'smem constant byte address 0x4 - core index']
  #allocation1 [shape = 'u32[144,128]{1,0:T(1,128)}', space=vmem, size = 0x12000, scoped, tag = 'internal scratch']
  #allocation2 [shape = 'bf16[128,384]{1,0:T(16,128)(2,1)}', space=vmem, size = 0x18000, scoped, tag = 'scratch operand']
  %s0 = inlined_call_operand.vmem [shape: bf16[2,36,9,128], index: 0, kind: input, shape index: {}]
  %s1 = inlined_call_operand.vmem [shape: bf16[1152,256], index: 1, kind: input, shape index: {}]
  %s2 = inlined_call_operand.vmem [shape: bf16[2,64,256], index: 2, kind: output, shape index: {0}]
  %s3 = inlined_call_operand.vmem [shape: f32[1,2,256], index: 3, kind: output, shape index: {1}]
  %4 = xla_tuple %s2, %s3
  %s5 = sld [smem:[#allocation0]]
  $region26: #{basic_block_forward.3} parent=0
    _
  %s7 = ssub.s32 1, %s5
  %s8 = scalar_select 0, %s7, %s5
  // Predicated region
  $region2: #{basic_block_forward.3} parent=0 // pred_check
    _
  $region3: #{basic_block_forward.3} parent=0 // pred_check_branch
    %10 = sbr.rel (0) target = $region5
  $region4: #{basic_block_forward.3} parent=0 // pred_region
    _
  $region5: #{basic_block_forward.3} parent=0 // pred_fallthru
    _
  // Predicated region
  $region6: #{basic_block_forward.3} parent=0 // pred_check
    _
  $region7: #{basic_block_forward.3} parent=0 // pred_check_branch
    %12 = sbr.rel (0) target = $region9
  $region8: #{basic_block_forward.3} parent=0 // pred_region
    _
  $region9: #{basic_block_forward.3} parent=0 // pred_fallthru
    _
  %v14 = vld [vmem:[%s0] sm:$0xf]
  %v15 = vld [vmem:[%s0 + $0x8] sm:$0xf]
  %v16 = vld [vmem:[%s0 + $0x10] sm:$0xf]
  %v17 = vld [vmem:[%s0 + $0x18] sm:$0xf]
  %v18 = vld [vmem:[%s0 + $0x20] sm:$0xf]
  %v19 = vld [vmem:[%s0 + $0x28] sm:$0xf]
  %v20 = vld [vmem:[%s0 + $0x30] sm:$0xf]
  %v21 = vld [vmem:[%s0 + $0x38] sm:$0xf]
  %v30 = vunpack.c.l.b16 %v14
  %v31 = vunpack.c.l.b16 %v15
  %v32 = vunpack.c.l.b16 %v16
  %v33 = vunpack.c.l.b16 %v17
  %v34 = vunpack.c.l.b16 %v18
  %v35 = vunpack.c.l.b16 %v19
  %v36 = vunpack.c.l.b16 %v20
  %v37 = vunpack.c.l.b16 %v21
  %v38 = vpack.c.b16 %v31, %v30
  %v39 = vpack.c.b16 %v33, %v32
  %v40 = vpack.c.b16 %v35, %v34
  %v41 = vpack.c.b16 %v37, %v36
  %46 = vst [vmem:[#allocation2] sm:$0xff] %v38
  %47 = vst [vmem:[#allocation2 + $0x18] sm:$0xff] %v39
  %48 = vst [vmem:[#allocation2 + $0x30] sm:$0xff] %v40
  %49 = vst [vmem:[#allocation2 + $0x48] sm:$0xff] %v41
  %s50 = scalar_lea.vmem %s0, 72
  %v51 = vld [vmem:[%s50] sm:$0xf]
  %v52 = vld [vmem:[%s50 + $0x8] sm:$0xf]
  %v53 = vld [vmem:[%s50 + $0x10] sm:$0xf]
  %v54 = vld [vmem:[%s50 + $0x18] sm:$0xf]
  %v55 = vld [vmem:[%s50 + $0x20] sm:$0xf]
  %v56 = vld [vmem:[%s50 + $0x28] sm:$0xf]
  %v57 = vld [vmem:[%s50 + $0x30] sm:$0xf]
  %v58 = vld [vmem:[%s50 + $0x38] sm:$0xf]
  %v67 = vunpack.c.l.b16 %v51
  %v68 = vunpack.c.l.b16 %v52
  %v69 = vunpack.c.l.b16 %v53
  %v70 = vunpack.c.l.b16 %v54
  %v71 = vunpack.c.l.b16 %v55
  %v72 = vunpack.c.l.b16 %v56
  %v73 = vunpack.c.l.b16 %v57
  %v74 = vunpack.c.l.b16 %v58
  %v75 = vpack.c.b16 %v68, %v67
  %v76 = vpack.c.b16 %v70, %v69
  %v77 = vpack.c.b16 %v72, %v71
  %v78 = vpack.c.b16 %v74, %v73
  %83 = vst [vmem:[#allocation2 + $0x8] sm:$0xff] %v75
  %84 = vst [vmem:[#allocation2 + $0x20] sm:$0xff] %v76
  %85 = vst [vmem:[#allocation2 + $0x38] sm:$0xff] %v77
  %86 = vst [vmem:[#allocation2 + $0x50] sm:$0xff] %v78
  %v87 = vld [vmem:[%s0] sm:$0xf]
  %v88 = vld [vmem:[%s0 + $0x4] sm:$0x1]
  %v89 = vld [vmem:[%s0 + $0x8] sm:$0xf]
  %v90 = vld [vmem:[%s0 + $0xc] sm:$0x1]
  %v91 = vld [vmem:[%s0 + $0x10] sm:$0xf]
  %v92 = vld [vmem:[%s0 + $0x14] sm:$0x1]
  %v93 = vld [vmem:[%s0 + $0x18] sm:$0xf]
  %v94 = vld [vmem:[%s0 + $0x1c] sm:$0x1]
  %v95 = vld [vmem:[%s0 + $0x20] sm:$0xf]
  %v96 = vld [vmem:[%s0 + $0x24] sm:$0x1]
  %v97 = vld [vmem:[%s0 + $0x28] sm:$0xf]
  %v98 = vld [vmem:[%s0 + $0x2c] sm:$0x1]
  %v99 = vld [vmem:[%s0 + $0x30] sm:$0xf]
  %v100 = vld [vmem:[%s0 + $0x34] sm:$0x1]
  %v101 = vld [vmem:[%s0 + $0x38] sm:$0xf]
  %v102 = vld [vmem:[%s0 + $0x3c] sm:$0x1]
  %vm103 = vsmask.f32 3328
  %vm104 = vsmask.f32 7440
  %vm105 = vmor %vm103, %vm104
  %v107 = vshrl.u32 %v87, 16
  %v109 = vrot.slane %v107, 4
  %v110 = vshll.u32 %v87, 16
  %v112 = vrot.slane %v110, 5
  %v113 = vor.u32 %v109, %v112
  %v114 = vrot.slane %v113, 4
  %v116 = vshll.u32 %v88, 16
  %v118 = vrot.slane %v116, 5
  %v119 = vsel %vm105, %v114, %v118
  %v121 = vshrl.u32 %v89, 16
  %v123 = vrot.slane %v121, 4
  %v124 = vshll.u32 %v89, 16
  %v126 = vrot.slane %v124, 5
  %v127 = vor.u32 %v123, %v126
  %v128 = vrot.slane %v127, 4
  %v130 = vshll.u32 %v90, 16
  %v132 = vrot.slane %v130, 5
  %v133 = vsel %vm105, %v128, %v132
  %v135 = vshrl.u32 %v91, 16
  %v137 = vrot.slane %v135, 4
  %v138 = vshll.u32 %v91, 16
  %v140 = vrot.slane %v138, 5
  %v141 = vor.u32 %v137, %v140
  %v142 = vrot.slane %v141, 4
  %v144 = vshll.u32 %v92, 16
  %v146 = vrot.slane %v144, 5
  %v147 = vsel %vm105, %v142, %v146
  %v149 = vshrl.u32 %v93, 16
  %v151 = vrot.slane %v149, 4
  %v152 = vshll.u32 %v93, 16
  %v154 = vrot.slane %v152, 5
  %v155 = vor.u32 %v151, %v154
  %v156 = vrot.slane %v155, 4
  %v158 = vshll.u32 %v94, 16
  %v160 = vrot.slane %v158, 5
  %v161 = vsel %vm105, %v156, %v160
  %v163 = vshrl.u32 %v95, 16
  %v165 = vrot.slane %v163, 4
  %v166 = vshll.u32 %v95, 16
  %v168 = vrot.slane %v166, 5
  %v169 = vor.u32 %v165, %v168
  %v170 = vrot.slane %v169, 4
  %v172 = vshll.u32 %v96, 16
  %v174 = vrot.slane %v172, 5
  %v175 = vsel %vm105, %v170, %v174
  %v177 = vshrl.u32 %v97, 16
  %v179 = vrot.slane %v177, 4
  %v180 = vshll.u32 %v97, 16
  %v182 = vrot.slane %v180, 5
  %v183 = vor.u32 %v179, %v182
  %v184 = vrot.slane %v183, 4
  %v186 = vshll.u32 %v98, 16
  %v188 = vrot.slane %v186, 5
  %v189 = vsel %vm105, %v184, %v188
  %v191 = vshrl.u32 %v99, 16
  %v193 = vrot.slane %v191, 4
  %v194 = vshll.u32 %v99, 16
  %v196 = vrot.slane %v194, 5
  %v197 = vor.u32 %v193, %v196
  %v198 = vrot.slane %v197, 4
  %v200 = vshll.u32 %v100, 16
  %v202 = vrot.slane %v200, 5
  %v203 = vsel %vm105, %v198, %v202
  %v205 = vshrl.u32 %v101, 16
  %v207 = vrot.slane %v205, 4
  %v208 = vshll.u32 %v101, 16
  %v210 = vrot.slane %v208, 5
  %v211 = vor.u32 %v207, %v210
  %v212 = vrot.slane %v211, 4
  %v214 = vshll.u32 %v102, 16
  %v216 = vrot.slane %v214, 5
  %v217 = vsel %vm105, %v212, %v216
  %v218 = vunpack.c.l.b16 %v119
  %v219 = vunpack.c.l.b16 %v133
  %v220 = vunpack.c.l.b16 %v147
  %v221 = vunpack.c.l.b16 %v161
  %v222 = vunpack.c.l.b16 %v175
  %v223 = vunpack.c.l.b16 %v189
  %v224 = vunpack.c.l.b16 %v203
  %v225 = vunpack.c.l.b16 %v217
  %v226 = vpack.c.b16 %v219, %v218
  %v227 = vpack.c.b16 %v221, %v220
  %v228 = vpack.c.b16 %v223, %v222
  %v229 = vpack.c.b16 %v225, %v224
  %234 = vst [vmem:[#allocation2 + $0x10] sm:$0xff] %v226
  %235 = vst [vmem:[#allocation2 + $0x28] sm:$0xff] %v227
  %236 = vst [vmem:[#allocation2 + $0x40] sm:$0xff] %v228
  %237 = vst [vmem:[#allocation2 + $0x58] sm:$0xff] %v229
  %s238 = scalar_lea.vmem %s0, 288
  %v239 = vld [vmem:[%s238] sm:$0xf]
  %v240 = vld [vmem:[%s238 + $0x8] sm:$0xf]
  %v241 = vld [vmem:[%s238 + $0x10] sm:$0xf]
  %v242 = vld [vmem:[%s238 + $0x18] sm:$0xf]
  %v243 = vld [vmem:[%s238 + $0x20] sm:$0xf]
  %v244 = vld [vmem:[%s238 + $0x28] sm:$0xf]
  %v245 = vld [vmem:[%s238 + $0x30] sm:$0xf]
  %v246 = vld [vmem:[%s238 + $0x38] sm:$0xf]
  %v255 = vunpack.c.l.b16 %v239
  %v256 = vunpack.c.l.b16 %v240
  %v257 = vunpack.c.l.b16 %v241
  %v258 = vunpack.c.l.b16 %v242
  %v259 = vunpack.c.l.b16 %v243
  %v260 = vunpack.c.l.b16 %v244
  %v261 = vunpack.c.l.b16 %v245
  %v262 = vunpack.c.l.b16 %v246
  %v263 = vpack.c.b16 %v256, %v255
  %v264 = vpack.c.b16 %v258, %v257
  %v265 = vpack.c.b16 %v260, %v259
  %v266 = vpack.c.b16 %v262, %v261
  %271 = vst [vmem:[#allocation2 + $0x60] sm:$0xff] %v263
  %272 = vst [vmem:[#allocation2 + $0x78] sm:$0xff] %v264
  %273 = vst [vmem:[#allocation2 + $0x90] sm:$0xff] %v265
  %274 = vst [vmem:[#allocation2 + $0xa8] sm:$0xff] %v266
  %s275 = scalar_lea.vmem %s0, 360
  %v276 = vld [vmem:[%s275] sm:$0xf]
  %v277 = vld [vmem:[%s275 + $0x8] sm:$0xf]
  %v278 = vld [vmem:[%s275 + $0x10] sm:$0xf]
  %v279 = vld [vmem:[%s275 + $0x18] sm:$0xf]
  %v280 = vld [vmem:[%s275 + $0x20] sm:$0xf]
  %v281 = vld [vmem:[%s275 + $0x28] sm:$0xf]
  %v282 = vld [vmem:[%s275 + $0x30] sm:$0xf]
  %v283 = vld [vmem:[%s275 + $0x38] sm:$0xf]
  %v292 = vunpack.c.l.b16 %v276
  %v293 = vunpack.c.l.b16 %v277
  %v294 = vunpack.c.l.b16 %v278
  %v295 = vunpack.c.l.b16 %v279
  %v296 = vunpack.c.l.b16 %v280
  %v297 = vunpack.c.l.b16 %v281
  %v298 = vunpack.c.l.b16 %v282
  %v299 = vunpack.c.l.b16 %v283
  %v300 = vpack.c.b16 %v293, %v292
  %v301 = vpack.c.b16 %v295, %v294
  %v302 = vpack.c.b16 %v297, %v296
  %v303 = vpack.c.b16 %v299, %v298
  %308 = vst [vmem:[#allocation2 + $0x68] sm:$0xff] %v300
  %309 = vst [vmem:[#allocation2 + $0x80] sm:$0xff] %v301
  %310 = vst [vmem:[#allocation2 + $0x98] sm:$0xff] %v302
  %311 = vst [vmem:[#allocation2 + $0xb0] sm:$0xff] %v303
  %v312 = vld [vmem:[%s238] sm:$0xf]
  %v313 = vld [vmem:[%s238 + $0x4] sm:$0x1]
  %v314 = vld [vmem:[%s238 + $0x8] sm:$0xf]
  %v315 = vld [vmem:[%s238 + $0xc] sm:$0x1]
  %v316 = vld [vmem:[%s238 + $0x10] sm:$0xf]
  %v317 = vld [vmem:[%s238 + $0x14] sm:$0x1]
  %v318 = vld [vmem:[%s238 + $0x18] sm:$0xf]
  %v319 = vld [vmem:[%s238 + $0x1c] sm:$0x1]
  %v320 = vld [vmem:[%s238 + $0x20] sm:$0xf]
  %v321 = vld [vmem:[%s238 + $0x24] sm:$0x1]
  %v322 = vld [vmem:[%s238 + $0x28] sm:$0xf]
  %v323 = vld [vmem:[%s238 + $0x2c] sm:$0x1]
  %v324 = vld [vmem:[%s238 + $0x30] sm:$0xf]
  %v325 = vld [vmem:[%s238 + $0x34] sm:$0x1]
  %v326 = vld [vmem:[%s238 + $0x38] sm:$0xf]
  %v327 = vld [vmem:[%s238 + $0x3c] sm:$0x1]
  %v329 = vshrl.u32 %v312, 16
  %v331 = vrot.slane %v329, 4
  %v332 = vshll.u32 %v312, 16
  %v334 = vrot.slane %v332, 5
  %v335 = vor.u32 %v331, %v334
  %v336 = vrot.slane %v335, 4
  %v338 = vshll.u32 %v313, 16
  %v340 = vrot.slane %v338, 5
  %v341 = vsel %vm105, %v336, %v340
  %v343 = vshrl.u32 %v314, 16
  %v345 = vrot.slane %v343, 4
  %v346 = vshll.u32 %v314, 16
  %v348 = vrot.slane %v346, 5
  %v349 = vor.u32 %v345, %v348
  %v350 = vrot.slane %v349, 4
  %v352 = vshll.u32 %v315, 16
  %v354 = vrot.slane %v352, 5
  %v355 = vsel %vm105, %v350, %v354
  %v357 = vshrl.u32 %v316, 16
  %v359 = vrot.slane %v357, 4
  %v360 = vshll.u32 %v316, 16
  %v362 = vrot.slane %v360, 5
  %v363 = vor.u32 %v359, %v362
  %v364 = vrot.slane %v363, 4
  %v366 = vshll.u32 %v317, 16
  %v368 = vrot.slane %v366, 5
  %v369 = vsel %vm105, %v364, %v368
  %v371 = vshrl.u32 %v318, 16
  %v373 = vrot.slane %v371, 4
  %v374 = vshll.u32 %v318, 16
  %v376 = vrot.slane %v374, 5
  %v377 = vor.u32 %v373, %v376
  %v378 = vrot.slane %v377, 4
  %v380 = vshll.u32 %v319, 16
  %v382 = vrot.slane %v380, 5
  %v383 = vsel %vm105, %v378, %v382
  %v385 = vshrl.u32 %v320, 16
  %v387 = vrot.slane %v385, 4
  %v388 = vshll.u32 %v320, 16
  %v390 = vrot.slane %v388, 5
  %v391 = vor.u32 %v387, %v390
  %v392 = vrot.slane %v391, 4
  %v394 = vshll.u32 %v321, 16
  %v396 = vrot.slane %v394, 5
  %v397 = vsel %vm105, %v392, %v396
  %v399 = vshrl.u32 %v322, 16
  %v401 = vrot.slane %v399, 4
  %v402 = vshll.u32 %v322, 16
  %v404 = vrot.slane %v402, 5
  %v405 = vor.u32 %v401, %v404
  %v406 = vrot.slane %v405, 4
  %v408 = vshll.u32 %v323, 16
  %v410 = vrot.slane %v408, 5
  %v411 = vsel %vm105, %v406, %v410
  %v413 = vshrl.u32 %v324, 16
  %v415 = vrot.slane %v413, 4
  %v416 = vshll.u32 %v324, 16
  %v418 = vrot.slane %v416, 5
  %v419 = vor.u32 %v415, %v418
  %v420 = vrot.slane %v419, 4
  %v422 = vshll.u32 %v325, 16
  %v424 = vrot.slane %v422, 5
  %v425 = vsel %vm105, %v420, %v424
  %v427 = vshrl.u32 %v326, 16
  %v429 = vrot.slane %v427, 4
  %v430 = vshll.u32 %v326, 16
  %v432 = vrot.slane %v430, 5
  %v433 = vor.u32 %v429, %v432
  %v434 = vrot.slane %v433, 4
  %v436 = vshll.u32 %v327, 16
  %v438 = vrot.slane %v436, 5
  %v439 = vsel %vm105, %v434, %v438
  %v440 = vunpack.c.l.b16 %v341
  %v441 = vunpack.c.l.b16 %v355
  %v442 = vunpack.c.l.b16 %v369
  %v443 = vunpack.c.l.b16 %v383
  %v444 = vunpack.c.l.b16 %v397
  %v445 = vunpack.c.l.b16 %v411
  %v446 = vunpack.c.l.b16 %v425
  %v447 = vunpack.c.l.b16 %v439
  %v448 = vpack.c.b16 %v441, %v440
  %v449 = vpack.c.b16 %v443, %v442
  %v450 = vpack.c.b16 %v445, %v444
  %v451 = vpack.c.b16 %v447, %v446
  %456 = vst [vmem:[#allocation2 + $0x70] sm:$0xff] %v448
  %457 = vst [vmem:[#allocation2 + $0x88] sm:$0xff] %v449
  %458 = vst [vmem:[#allocation2 + $0xa0] sm:$0xff] %v450
  %459 = vst [vmem:[#allocation2 + $0xb8] sm:$0xff] %v451
  %v460 = vld [vmem:[#allocation2] sm:$0xff]
  %v461 = vld [vmem:[#allocation2 + $0x8] sm:$0xff]
  %v462 = vld [vmem:[#allocation2 + $0x10] sm:$0xff]
  %v463 = vld [vmem:[#allocation2 + $0x18] sm:$0xff]
  %v464 = vld [vmem:[#allocation2 + $0x20] sm:$0xff]
  %v465 = vld [vmem:[#allocation2 + $0x28] sm:$0xff]
  %v466 = vld [vmem:[#allocation2 + $0x30] sm:$0xff]
  %v467 = vld [vmem:[#allocation2 + $0x38] sm:$0xff]
  %v468 = vld [vmem:[#allocation2 + $0x40] sm:$0xff]
  %v469 = vld [vmem:[#allocation2 + $0x48] sm:$0xff]
  %v470 = vld [vmem:[#allocation2 + $0x50] sm:$0xff]
  %v471 = vld [vmem:[#allocation2 + $0x58] sm:$0xff]
  %v472 = vld [vmem:[#allocation2 + $0x60] sm:$0xff]
  %v473 = vld [vmem:[#allocation2 + $0x68] sm:$0xff]
  %v474 = vld [vmem:[#allocation2 + $0x70] sm:$0xff]
  %v475 = vld [vmem:[#allocation2 + $0x78] sm:$0xff]
  %v476 = vld [vmem:[#allocation2 + $0x80] sm:$0xff]
  %v477 = vld [vmem:[#allocation2 + $0x88] sm:$0xff]
  %v478 = vld [vmem:[#allocation2 + $0x90] sm:$0xff]
  %v479 = vld [vmem:[#allocation2 + $0x98] sm:$0xff]
  %v480 = vld [vmem:[#allocation2 + $0xa0] sm:$0xff]
  %v481 = vld [vmem:[#allocation2 + $0xa8] sm:$0xff]
  %v482 = vld [vmem:[#allocation2 + $0xb0] sm:$0xff]
  %v483 = vld [vmem:[#allocation2 + $0xb8] sm:$0xff]
  %v484 = vld [vmem:[%s1] sm:$0xff]
  %v485 = vld [vmem:[%s1 + $0x8] sm:$0xff]
  %v486 = vld [vmem:[%s1 + $0x10] sm:$0xff]
  %v487 = vld [vmem:[%s1 + $0x18] sm:$0xff]
  %v488 = vld [vmem:[%s1 + $0x20] sm:$0xff]
  %v489 = vld [vmem:[%s1 + $0x28] sm:$0xff]
  %v490 = vld [vmem:[%s1 + $0x30] sm:$0xff]
  %v491 = vld [vmem:[%s1 + $0x38] sm:$0xff]
  %v492 = vld [vmem:[%s1 + $0x40] sm:$0xff]
  %v493 = vld [vmem:[%s1 + $0x48] sm:$0xff]
  %v494 = vld [vmem:[%s1 + $0x50] sm:$0xff]
  %v495 = vld [vmem:[%s1 + $0x58] sm:$0xff]
  %v496 = vld [vmem:[%s1 + $0x60] sm:$0xff]
  %v497 = vld [vmem:[%s1 + $0x68] sm:$0xff]
  %v498 = vld [vmem:[%s1 + $0x70] sm:$0xff]
  %v499 = vld [vmem:[%s1 + $0x78] sm:$0xff]
  %v500 = vld [vmem:[%s1 + $0x80] sm:$0xff]
  %v501 = vld [vmem:[%s1 + $0x88] sm:$0xff]
  %v502 = vld [vmem:[%s1 + $0x90] sm:$0xff]
  %v503 = vld [vmem:[%s1 + $0x98] sm:$0xff]
  %v504 = vld [vmem:[%s1 + $0xa0] sm:$0xff]
  %v505 = vld [vmem:[%s1 + $0xa8] sm:$0xff]
  %v506 = vld [vmem:[%s1 + $0xb0] sm:$0xff]
  %v507 = vld [vmem:[%s1 + $0xb8] sm:$0xff]
  %v508 = vld [vmem:[%s1 + $0xc0] sm:$0xff]
  %v509 = vld [vmem:[%s1 + $0xc8] sm:$0xff]
  %v510 = vld [vmem:[%s1 + $0xd0] sm:$0xff]
  %v511 = vld [vmem:[%s1 + $0xd8] sm:$0xff]
  %v512 = vld [vmem:[%s1 + $0xe0] sm:$0xff]
  %v513 = vld [vmem:[%s1 + $0xe8] sm:$0xff]
  %v514 = vld [vmem:[%s1 + $0xf0] sm:$0xff]
  %v515 = vld [vmem:[%s1 + $0xf8] sm:$0xff]
  %v516 = vld [vmem:[%s1 + $0x100] sm:$0xff]
  %v517 = vld [vmem:[%s1 + $0x108] sm:$0xff]
  %v518 = vld [vmem:[%s1 + $0x110] sm:$0xff]
  %v519 = vld [vmem:[%s1 + $0x118] sm:$0xff]
  %v520 = vld [vmem:[%s1 + $0x120] sm:$0xff]
  %v521 = vld [vmem:[%s1 + $0x128] sm:$0xff]
  %v522 = vld [vmem:[%s1 + $0x130] sm:$0xff]
  %v523 = vld [vmem:[%s1 + $0x138] sm:$0xff]
  %v524 = vld [vmem:[%s1 + $0x140] sm:$0xff]
  %v525 = vld [vmem:[%s1 + $0x148] sm:$0xff]
  %v526 = vld [vmem:[%s1 + $0x150] sm:$0xff]
  %v527 = vld [vmem:[%s1 + $0x158] sm:$0xff]
  %v528 = vld [vmem:[%s1 + $0x160] sm:$0xff]
  %v529 = vld [vmem:[%s1 + $0x168] sm:$0xff]
  %v530 = vld [vmem:[%s1 + $0x170] sm:$0xff]
  %v531 = vld [vmem:[%s1 + $0x178] sm:$0xff]
  %s532 = scalar_lea.vmem %s0, 144
  %v533 = vld [vmem:[%s532] sm:$0xf]
  %v534 = vld [vmem:[%s532 + $0x8] sm:$0xf]
  %v535 = vld [vmem:[%s532 + $0x10] sm:$0xf]
  %v536 = vld [vmem:[%s532 + $0x18] sm:$0xf]
  %v537 = vld [vmem:[%s532 + $0x20] sm:$0xf]
  %v538 = vld [vmem:[%s532 + $0x28] sm:$0xf]
  %v539 = vld [vmem:[%s532 + $0x30] sm:$0xf]
  %v540 = vld [vmem:[%s532 + $0x38] sm:$0xf]
  %v549 = vunpack.c.l.b16 %v533
  %v550 = vunpack.c.l.b16 %v534
  %v551 = vunpack.c.l.b16 %v535
  %v552 = vunpack.c.l.b16 %v536
  %v553 = vunpack.c.l.b16 %v537
  %v554 = vunpack.c.l.b16 %v538
  %v555 = vunpack.c.l.b16 %v539
  %v556 = vunpack.c.l.b16 %v540
  %v557 = vpack.c.b16 %v550, %v549
  %v558 = vpack.c.b16 %v552, %v551
  %v559 = vpack.c.b16 %v554, %v553
  %v560 = vpack.c.b16 %v556, %v555
  %565 = vst [vmem:[#allocation2] sm:$0xff] %v557
  %566 = vst [vmem:[#allocation2 + $0x18] sm:$0xff] %v558
  %567 = vst [vmem:[#allocation2 + $0x30] sm:$0xff] %v559
  %568 = vst [vmem:[#allocation2 + $0x48] sm:$0xff] %v560
  %s569 = scalar_lea.vmem %s0, 216
  %v570 = vld [vmem:[%s569] sm:$0xf]
  %v571 = vld [vmem:[%s569 + $0x8] sm:$0xf]
  %v572 = vld [vmem:[%s569 + $0x10] sm:$0xf]
  %v573 = vld [vmem:[%s569 + $0x18] sm:$0xf]
  %v574 = vld [vmem:[%s569 + $0x20] sm:$0xf]
  %v575 = vld [vmem:[%s569 + $0x28] sm:$0xf]
  %v576 = vld [vmem:[%s569 + $0x30] sm:$0xf]
  %v577 = vld [vmem:[%s569 + $0x38] sm:$0xf]
  %v586 = vunpack.c.l.b16 %v570
  %v587 = vunpack.c.l.b16 %v571
  %v588 = vunpack.c.l.b16 %v572
  %v589 = vunpack.c.l.b16 %v573
  %v590 = vunpack.c.l.b16 %v574
  %v591 = vunpack.c.l.b16 %v575
  %v592 = vunpack.c.l.b16 %v576
  %v593 = vunpack.c.l.b16 %v577
  %v594 = vpack.c.b16 %v587, %v586
  %v595 = vpack.c.b16 %v589, %v588
  %v596 = vpack.c.b16 %v591, %v590
  %v597 = vpack.c.b16 %v593, %v592
  %602 = vst [vmem:[#allocation2 + $0x8] sm:$0xff] %v594
  %603 = vst [vmem:[#allocation2 + $0x20] sm:$0xff] %v595
  %604 = vst [vmem:[#allocation2 + $0x38] sm:$0xff] %v596
  %605 = vst [vmem:[#allocation2 + $0x50] sm:$0xff] %v597
  %v606 = vld [vmem:[%s532] sm:$0xf]
  %v607 = vld [vmem:[%s532 + $0x4] sm:$0x1]
  %v608 = vld [vmem:[%s532 + $0x8] sm:$0xf]
  %v609 = vld [vmem:[%s532 + $0xc] sm:$0x1]
  %v610 = vld [vmem:[%s532 + $0x10] sm:$0xf]
  %v611 = vld [vmem:[%s532 + $0x14] sm:$0x1]
  %v612 = vld [vmem:[%s532 + $0x18] sm:$0xf]
  %v613 = vld [vmem:[%s532 + $0x1c] sm:$0x1]
  %v614 = vld [vmem:[%s532 + $0x20] sm:$0xf]
  %v615 = vld [vmem:[%s532 + $0x24] sm:$0x1]
  %v616 = vld [vmem:[%s532 + $0x28] sm:$0xf]
  %v617 = vld [vmem:[%s532 + $0x2c] sm:$0x1]
  %v618 = vld [vmem:[%s532 + $0x30] sm:$0xf]
  %v619 = vld [vmem:[%s532 + $0x34] sm:$0x1]
  %v620 = vld [vmem:[%s532 + $0x38] sm:$0xf]
  %v621 = vld [vmem:[%s532 + $0x3c] sm:$0x1]
  %v623 = vshrl.u32 %v606, 16
  %v625 = vrot.slane %v623, 4
  %v626 = vshll.u32 %v606, 16
  %v628 = vrot.slane %v626, 5
  %v629 = vor.u32 %v625, %v628
  %v630 = vrot.slane %v629, 4
  %v632 = vshll.u32 %v607, 16
  %v634 = vrot.slane %v632, 5
  %v635 = vsel %vm105, %v630, %v634
  %v637 = vshrl.u32 %v608, 16
  %v639 = vrot.slane %v637, 4
  %v640 = vshll.u32 %v608, 16
  %v642 = vrot.slane %v640, 5
  %v643 = vor.u32 %v639, %v642
  %v644 = vrot.slane %v643, 4
  %v646 = vshll.u32 %v609, 16
  %v648 = vrot.slane %v646, 5
  %v649 = vsel %vm105, %v644, %v648
  %v651 = vshrl.u32 %v610, 16
  %v653 = vrot.slane %v651, 4
  %v654 = vshll.u32 %v610, 16
  %v656 = vrot.slane %v654, 5
  %v657 = vor.u32 %v653, %v656
  %v658 = vrot.slane %v657, 4
  %v660 = vshll.u32 %v611, 16
  %v662 = vrot.slane %v660, 5
  %v663 = vsel %vm105, %v658, %v662
  %v665 = vshrl.u32 %v612, 16
  %v667 = vrot.slane %v665, 4
  %v668 = vshll.u32 %v612, 16
  %v670 = vrot.slane %v668, 5
  %v671 = vor.u32 %v667, %v670
  %v672 = vrot.slane %v671, 4
  %v674 = vshll.u32 %v613, 16
  %v676 = vrot.slane %v674, 5
  %v677 = vsel %vm105, %v672, %v676
  %v679 = vshrl.u32 %v614, 16
  %v681 = vrot.slane %v679, 4
  %v682 = vshll.u32 %v614, 16
  %v684 = vrot.slane %v682, 5
  %v685 = vor.u32 %v681, %v684
  %v686 = vrot.slane %v685, 4
  %v688 = vshll.u32 %v615, 16
  %v690 = vrot.slane %v688, 5
  %v691 = vsel %vm105, %v686, %v690
  %v693 = vshrl.u32 %v616, 16
  %v695 = vrot.slane %v693, 4
  %v696 = vshll.u32 %v616, 16
  %v698 = vrot.slane %v696, 5
  %v699 = vor.u32 %v695, %v698
  %v700 = vrot.slane %v699, 4
  %v702 = vshll.u32 %v617, 16
  %v704 = vrot.slane %v702, 5
  %v705 = vsel %vm105, %v700, %v704
  %v707 = vshrl.u32 %v618, 16
  %v709 = vrot.slane %v707, 4
  %v710 = vshll.u32 %v618, 16
  %v712 = vrot.slane %v710, 5
  %v713 = vor.u32 %v709, %v712
  %v714 = vrot.slane %v713, 4
  %v716 = vshll.u32 %v619, 16
  %v718 = vrot.slane %v716, 5
  %v719 = vsel %vm105, %v714, %v718
  %v721 = vshrl.u32 %v620, 16
  %v723 = vrot.slane %v721, 4
  %v724 = vshll.u32 %v620, 16
  %v726 = vrot.slane %v724, 5
  %v727 = vor.u32 %v723, %v726
  %v728 = vrot.slane %v727, 4
  %v730 = vshll.u32 %v621, 16
  %v732 = vrot.slane %v730, 5
  %v733 = vsel %vm105, %v728, %v732
  %v734 = vunpack.c.l.b16 %v635
  %v735 = vunpack.c.l.b16 %v649
  %v736 = vunpack.c.l.b16 %v663
  %v737 = vunpack.c.l.b16 %v677
  %v738 = vunpack.c.l.b16 %v691
  %v739 = vunpack.c.l.b16 %v705
  %v740 = vunpack.c.l.b16 %v719
  %v741 = vunpack.c.l.b16 %v733
  %v742 = vpack.c.b16 %v735, %v734
  %v743 = vpack.c.b16 %v737, %v736
  %v744 = vpack.c.b16 %v739, %v738
  %v745 = vpack.c.b16 %v741, %v740
  %750 = vst [vmem:[#allocation2 + $0x10] sm:$0xff] %v742
  %751 = vst [vmem:[#allocation2 + $0x28] sm:$0xff] %v743
  %752 = vst [vmem:[#allocation2 + $0x40] sm:$0xff] %v744
  %753 = vst [vmem:[#allocation2 + $0x58] sm:$0xff] %v745
  %s754 = scalar_lea.vmem %s0, 432
  %v755 = vld [vmem:[%s754] sm:$0xf]
  %v756 = vld [vmem:[%s754 + $0x8] sm:$0xf]
  %v757 = vld [vmem:[%s754 + $0x10] sm:$0xf]
  %v758 = vld [vmem:[%s754 + $0x18] sm:$0xf]
  %v759 = vld [vmem:[%s754 + $0x20] sm:$0xf]
  %v760 = vld [vmem:[%s754 + $0x28] sm:$0xf]
  %v761 = vld [vmem:[%s754 + $0x30] sm:$0xf]
  %v762 = vld [vmem:[%s754 + $0x38] sm:$0xf]
  %v771 = vunpack.c.l.b16 %v755
  %v772 = vunpack.c.l.b16 %v756
  %v773 = vunpack.c.l.b16 %v757
  %v774 = vunpack.c.l.b16 %v758
  %v775 = vunpack.c.l.b16 %v759
  %v776 = vunpack.c.l.b16 %v760
  %v777 = vunpack.c.l.b16 %v761
  %v778 = vunpack.c.l.b16 %v762
  %v779 = vpack.c.b16 %v772, %v771
  %v780 = vpack.c.b16 %v774, %v773
  %v781 = vpack.c.b16 %v776, %v775
  %v782 = vpack.c.b16 %v778, %v777
  %787 = vst [vmem:[#allocation2 + $0x60] sm:$0xff] %v779
  %788 = vst [vmem:[#allocation2 + $0x78] sm:$0xff] %v780
  %789 = vst [vmem:[#allocation2 + $0x90] sm:$0xff] %v781
  %790 = vst [vmem:[#allocation2 + $0xa8] sm:$0xff] %v782
  %s791 = scalar_lea.vmem %s0, 504
  %v792 = vld [vmem:[%s791] sm:$0xf]
  %v793 = vld [vmem:[%s791 + $0x8] sm:$0xf]
  %v794 = vld [vmem:[%s791 + $0x10] sm:$0xf]
  %v795 = vld [vmem:[%s791 + $0x18] sm:$0xf]
  %v796 = vld [vmem:[%s791 + $0x20] sm:$0xf]
  %v797 = vld [vmem:[%s791 + $0x28] sm:$0xf]
  %v798 = vld [vmem:[%s791 + $0x30] sm:$0xf]
  %v799 = vld [vmem:[%s791 + $0x38] sm:$0xf]
  %v808 = vunpack.c.l.b16 %v792
  %v809 = vunpack.c.l.b16 %v793
  %v810 = vunpack.c.l.b16 %v794
  %v811 = vunpack.c.l.b16 %v795
  %v812 = vunpack.c.l.b16 %v796
  %v813 = vunpack.c.l.b16 %v797
  %v814 = vunpack.c.l.b16 %v798
  %v815 = vunpack.c.l.b16 %v799
  %v816 = vpack.c.b16 %v809, %v808
  %v817 = vpack.c.b16 %v811, %v810
  %v818 = vpack.c.b16 %v813, %v812
  %v819 = vpack.c.b16 %v815, %v814
  %824 = vst [vmem:[#allocation2 + $0x68] sm:$0xff] %v816
  %825 = vst [vmem:[#allocation2 + $0x80] sm:$0xff] %v817
  %826 = vst [vmem:[#allocation2 + $0x98] sm:$0xff] %v818
  %827 = vst [vmem:[#allocation2 + $0xb0] sm:$0xff] %v819
  %v828 = vld [vmem:[%s754] sm:$0xf]
  %v829 = vld [vmem:[%s754 + $0x4] sm:$0x1]
  %v830 = vld [vmem:[%s754 + $0x8] sm:$0xf]
  %v831 = vld [vmem:[%s754 + $0xc] sm:$0x1]
  %v832 = vld [vmem:[%s754 + $0x10] sm:$0xf]
  %v833 = vld [vmem:[%s754 + $0x14] sm:$0x1]
  %v834 = vld [vmem:[%s754 + $0x18] sm:$0xf]
  %v835 = vld [vmem:[%s754 + $0x1c] sm:$0x1]
  %v836 = vld [vmem:[%s754 + $0x20] sm:$0xf]
  %v837 = vld [vmem:[%s754 + $0x24] sm:$0x1]
  %v838 = vld [vmem:[%s754 + $0x28] sm:$0xf]
  %v839 = vld [vmem:[%s754 + $0x2c] sm:$0x1]
  %v840 = vld [vmem:[%s754 + $0x30] sm:$0xf]
  %v841 = vld [vmem:[%s754 + $0x34] sm:$0x1]
  %v842 = vld [vmem:[%s754 + $0x38] sm:$0xf]
  %v843 = vld [vmem:[%s754 + $0x3c] sm:$0x1]
  %v845 = vshrl.u32 %v828, 16
  %v847 = vrot.slane %v845, 4
  %v848 = vshll.u32 %v828, 16
  %v850 = vrot.slane %v848, 5
  %v851 = vor.u32 %v847, %v850
  %v852 = vrot.slane %v851, 4
  %v854 = vshll.u32 %v829, 16
  %v856 = vrot.slane %v854, 5
  %v857 = vsel %vm105, %v852, %v856
  %v859 = vshrl.u32 %v830, 16
  %v861 = vrot.slane %v859, 4
  %v862 = vshll.u32 %v830, 16
  %v864 = vrot.slane %v862, 5
  %v865 = vor.u32 %v861, %v864
  %v866 = vrot.slane %v865, 4
  %v868 = vshll.u32 %v831, 16
  %v870 = vrot.slane %v868, 5
  %v871 = vsel %vm105, %v866, %v870
  %v873 = vshrl.u32 %v832, 16
  %v875 = vrot.slane %v873, 4
  %v876 = vshll.u32 %v832, 16
  %v878 = vrot.slane %v876, 5
  %v879 = vor.u32 %v875, %v878
  %v880 = vrot.slane %v879, 4
  %v882 = vshll.u32 %v833, 16
  %v884 = vrot.slane %v882, 5
  %v885 = vsel %vm105, %v880, %v884
  %v887 = vshrl.u32 %v834, 16
  %v889 = vrot.slane %v887, 4
  %v890 = vshll.u32 %v834, 16
  %v892 = vrot.slane %v890, 5
  %v893 = vor.u32 %v889, %v892
  %v894 = vrot.slane %v893, 4
  %v896 = vshll.u32 %v835, 16
  %v898 = vrot.slane %v896, 5
  %v899 = vsel %vm105, %v894, %v898
  %v901 = vshrl.u32 %v836, 16
  %v903 = vrot.slane %v901, 4
  %v904 = vshll.u32 %v836, 16
  %v906 = vrot.slane %v904, 5
  %v907 = vor.u32 %v903, %v906
  %v908 = vrot.slane %v907, 4
  %v910 = vshll.u32 %v837, 16
  %v912 = vrot.slane %v910, 5
  %v913 = vsel %vm105, %v908, %v912
  %v915 = vshrl.u32 %v838, 16
  %v917 = vrot.slane %v915, 4
  %v918 = vshll.u32 %v838, 16
  %v920 = vrot.slane %v918, 5
  %v921 = vor.u32 %v917, %v920
  %v922 = vrot.slane %v921, 4
  %v924 = vshll.u32 %v839, 16
  %v926 = vrot.slane %v924, 5
  %v927 = vsel %vm105, %v922, %v926
  %v929 = vshrl.u32 %v840, 16
  %v931 = vrot.slane %v929, 4
  %v932 = vshll.u32 %v840, 16
  %v934 = vrot.slane %v932, 5
  %v935 = vor.u32 %v931, %v934
  %v936 = vrot.slane %v935, 4
  %v938 = vshll.u32 %v841, 16
  %v940 = vrot.slane %v938, 5
  %v941 = vsel %vm105, %v936, %v940
  %v943 = vshrl.u32 %v842, 16
  %v945 = vrot.slane %v943, 4
  %v946 = vshll.u32 %v842, 16
  %v948 = vrot.slane %v946, 5
  %v949 = vor.u32 %v945, %v948
  %v950 = vrot.slane %v949, 4
  %v952 = vshll.u32 %v843, 16
  %v954 = vrot.slane %v952, 5
  %v955 = vsel %vm105, %v950, %v954
  %v956 = vunpack.c.l.b16 %v857
  %v957 = vunpack.c.l.b16 %v871
  %v958 = vunpack.c.l.b16 %v885
  %v959 = vunpack.c.l.b16 %v899
  %v960 = vunpack.c.l.b16 %v913
  %v961 = vunpack.c.l.b16 %v927
  %v962 = vunpack.c.l.b16 %v941
  %v963 = vunpack.c.l.b16 %v955
  %v964 = vpack.c.b16 %v957, %v956
  %v965 = vpack.c.b16 %v959, %v958
  %v966 = vpack.c.b16 %v961, %v960
  %v967 = vpack.c.b16 %v963, %v962
  %972 = vst [vmem:[#allocation2 + $0x70] sm:$0xff] %v964
  %973 = vst [vmem:[#allocation2 + $0x88] sm:$0xff] %v965
  %974 = vst [vmem:[#allocation2 + $0xa0] sm:$0xff] %v966
  %975 = vst [vmem:[#allocation2 + $0xb8] sm:$0xff] %v967
  %v976 = vld [vmem:[#allocation2] sm:$0xff]
  %v977 = vld [vmem:[#allocation2 + $0x8] sm:$0xff]
  %v978 = vld [vmem:[#allocation2 + $0x10] sm:$0xff]
  %v979 = vld [vmem:[#allocation2 + $0x18] sm:$0xff]
  %v980 = vld [vmem:[#allocation2 + $0x20] sm:$0xff]
  %v981 = vld [vmem:[#allocation2 + $0x28] sm:$0xff]
  %v982 = vld [vmem:[#allocation2 + $0x30] sm:$0xff]
  %v983 = vld [vmem:[#allocation2 + $0x38] sm:$0xff]
  %v984 = vld [vmem:[#allocation2 + $0x40] sm:$0xff]
  %v985 = vld [vmem:[#allocation2 + $0x48] sm:$0xff]
  %v986 = vld [vmem:[#allocation2 + $0x50] sm:$0xff]
  %v987 = vld [vmem:[#allocation2 + $0x58] sm:$0xff]
  %v988 = vld [vmem:[#allocation2 + $0x60] sm:$0xff]
  %v989 = vld [vmem:[#allocation2 + $0x68] sm:$0xff]
  %v990 = vld [vmem:[#allocation2 + $0x70] sm:$0xff]
  %v991 = vld [vmem:[#allocation2 + $0x78] sm:$0xff]
  %v992 = vld [vmem:[#allocation2 + $0x80] sm:$0xff]
  %v993 = vld [vmem:[#allocation2 + $0x88] sm:$0xff]
  %v994 = vld [vmem:[#allocation2 + $0x90] sm:$0xff]
  %v995 = vld [vmem:[#allocation2 + $0x98] sm:$0xff]
  %v996 = vld [vmem:[#allocation2 + $0xa0] sm:$0xff]
  %v997 = vld [vmem:[#allocation2 + $0xa8] sm:$0xff]
  %v998 = vld [vmem:[#allocation2 + $0xb0] sm:$0xff]
  %v999 = vld [vmem:[#allocation2 + $0xb8] sm:$0xff]
  %v1000 = vld [vmem:[%s1 + $0x180] sm:$0xff]
  %v1001 = vld [vmem:[%s1 + $0x188] sm:$0xff]
  %v1002 = vld [vmem:[%s1 + $0x190] sm:$0xff]
  %v1003 = vld [vmem:[%s1 + $0x198] sm:$0xff]
  %v1004 = vld [vmem:[%s1 + $0x1a0] sm:$0xff]
  %v1005 = vld [vmem:[%s1 + $0x1a8] sm:$0xff]
  %v1006 = vld [vmem:[%s1 + $0x1b0] sm:$0xff]
  %v1007 = vld [vmem:[%s1 + $0x1b8] sm:$0xff]
  %v1008 = vld [vmem:[%s1 + $0x1c0] sm:$0xff]
  %v1009 = vld [vmem:[%s1 + $0x1c8] sm:$0xff]
  %v1010 = vld [vmem:[%s1 + $0x1d0] sm:$0xff]
  %v1011 = vld [vmem:[%s1 + $0x1d8] sm:$0xff]
  %v1012 = vld [vmem:[%s1 + $0x1e0] sm:$0xff]
  %v1013 = vld [vmem:[%s1 + $0x1e8] sm:$0xff]
  %v1014 = vld [vmem:[%s1 + $0x1f0] sm:$0xff]
  %v1015 = vld [vmem:[%s1 + $0x1f8] sm:$0xff]
  %v1016 = vld [vmem:[%s1 + $0x200] sm:$0xff]
  %v1017 = vld [vmem:[%s1 + $0x208] sm:$0xff]
  %v1018 = vld [vmem:[%s1 + $0x210] sm:$0xff]
  %v1019 = vld [vmem:[%s1 + $0x218] sm:$0xff]
  %v1020 = vld [vmem:[%s1 + $0x220] sm:$0xff]
  %v1021 = vld [vmem:[%s1 + $0x228] sm:$0xff]
  %v1022 = vld [vmem:[%s1 + $0x230] sm:$0xff]
  %v1023 = vld [vmem:[%s1 + $0x238] sm:$0xff]
  %v1024 = vld [vmem:[%s1 + $0x240] sm:$0xff]
  %v1025 = vld [vmem:[%s1 + $0x248] sm:$0xff]
  %v1026 = vld [vmem:[%s1 + $0x250] sm:$0xff]
  %v1027 = vld [vmem:[%s1 + $0x258] sm:$0xff]
  %v1028 = vld [vmem:[%s1 + $0x260] sm:$0xff]
  %v1029 = vld [vmem:[%s1 + $0x268] sm:$0xff]
  %v1030 = vld [vmem:[%s1 + $0x270] sm:$0xff]
  %v1031 = vld [vmem:[%s1 + $0x278] sm:$0xff]
  %v1032 = vld [vmem:[%s1 + $0x280] sm:$0xff]
  %v1033 = vld [vmem:[%s1 + $0x288] sm:$0xff]
  %v1034 = vld [vmem:[%s1 + $0x290] sm:$0xff]
  %v1035 = vld [vmem:[%s1 + $0x298] sm:$0xff]
  %v1036 = vld [vmem:[%s1 + $0x2a0] sm:$0xff]
  %v1037 = vld [vmem:[%s1 + $0x2a8] sm:$0xff]
  %v1038 = vld [vmem:[%s1 + $0x2b0] sm:$0xff]
  %v1039 = vld [vmem:[%s1 + $0x2b8] sm:$0xff]
  %v1040 = vld [vmem:[%s1 + $0x2c0] sm:$0xff]
  %v1041 = vld [vmem:[%s1 + $0x2c8] sm:$0xff]
  %v1042 = vld [vmem:[%s1 + $0x2d0] sm:$0xff]
  %v1043 = vld [vmem:[%s1 + $0x2d8] sm:$0xff]
  %v1044 = vld [vmem:[%s1 + $0x2e0] sm:$0xff]
  %v1045 = vld [vmem:[%s1 + $0x2e8] sm:$0xff]
  %v1046 = vld [vmem:[%s1 + $0x2f0] sm:$0xff]
  %v1047 = vld [vmem:[%s1 + $0x2f8] sm:$0xff]
  %v1096 = vunpack.c.l.b16 %v1000
  %v1097 = vunpack.c.h.b16 %v1000
  %v1098 = vunpack.c.l.b16 %v1001
  %v1099 = vunpack.c.h.b16 %v1001
  %v1100 = vunpack.c.l.b16 %v1002
  %v1101 = vunpack.c.h.b16 %v1002
  %v1102 = vunpack.c.l.b16 %v1003
  %v1103 = vunpack.c.h.b16 %v1003
  %v1104 = vunpack.c.l.b16 %v1004
  %v1105 = vunpack.c.h.b16 %v1004
  %v1106 = vunpack.c.l.b16 %v1005
  %v1107 = vunpack.c.h.b16 %v1005
  %v1108 = vunpack.c.l.b16 %v1006
  %v1109 = vunpack.c.h.b16 %v1006
  %v1110 = vunpack.c.l.b16 %v1007
  %v1111 = vunpack.c.h.b16 %v1007
  %v1112 = vunpack.c.l.b16 %v1008
  %v1113 = vunpack.c.h.b16 %v1008
  %v1114 = vunpack.c.l.b16 %v1009
  %v1115 = vunpack.c.h.b16 %v1009
  %v1116 = vunpack.c.l.b16 %v1010
  %v1117 = vunpack.c.h.b16 %v1010
  %v1118 = vunpack.c.l.b16 %v1011
  %v1119 = vunpack.c.h.b16 %v1011
  %v1120 = vunpack.c.l.b16 %v1012
  %v1121 = vunpack.c.h.b16 %v1012
  %v1122 = vunpack.c.l.b16 %v1013
  %v1123 = vunpack.c.h.b16 %v1013
  %v1124 = vunpack.c.l.b16 %v1014
  %v1125 = vunpack.c.h.b16 %v1014
  %v1126 = vunpack.c.l.b16 %v1015
  %v1127 = vunpack.c.h.b16 %v1015
  %v1128 = vunpack.c.l.b16 %v1016
  %v1129 = vunpack.c.h.b16 %v1016
  %v1130 = vunpack.c.l.b16 %v1017
  %v1131 = vunpack.c.h.b16 %v1017
  %v1132 = vunpack.c.l.b16 %v1018
  %v1133 = vunpack.c.h.b16 %v1018
  %v1134 = vunpack.c.l.b16 %v1019
  %v1135 = vunpack.c.h.b16 %v1019
  %v1136 = vunpack.c.l.b16 %v1020
  %v1137 = vunpack.c.h.b16 %v1020
  %v1138 = vunpack.c.l.b16 %v1021
  %v1139 = vunpack.c.h.b16 %v1021
  %v1140 = vunpack.c.l.b16 %v1022
  %v1141 = vunpack.c.h.b16 %v1022
  %v1142 = vunpack.c.l.b16 %v1023
  %v1143 = vunpack.c.h.b16 %v1023
  %v1144 = vunpack.c.l.b16 %v1024
  %v1145 = vunpack.c.h.b16 %v1024
  %v1146 = vunpack.c.l.b16 %v1025
  %v1147 = vunpack.c.h.b16 %v1025
  %v1148 = vunpack.c.l.b16 %v1026
  %v1149 = vunpack.c.h.b16 %v1026
  %v1150 = vunpack.c.l.b16 %v1027
  %v1151 = vunpack.c.h.b16 %v1027
  %v1152 = vunpack.c.l.b16 %v1028
  %v1153 = vunpack.c.h.b16 %v1028
  %v1154 = vunpack.c.l.b16 %v1029
  %v1155 = vunpack.c.h.b16 %v1029
  %v1156 = vunpack.c.l.b16 %v1030
  %v1157 = vunpack.c.h.b16 %v1030
  %v1158 = vunpack.c.l.b16 %v1031
  %v1159 = vunpack.c.h.b16 %v1031
  %v1160 = vunpack.c.l.b16 %v1032
  %v1161 = vunpack.c.h.b16 %v1032
  %v1162 = vunpack.c.l.b16 %v1033
  %v1163 = vunpack.c.h.b16 %v1033
  %v1164 = vunpack.c.l.b16 %v1034
  %v1165 = vunpack.c.h.b16 %v1034
  %v1166 = vunpack.c.l.b16 %v1035
  %v1167 = vunpack.c.h.b16 %v1035
  %v1168 = vunpack.c.l.b16 %v1036
  %v1169 = vunpack.c.h.b16 %v1036
  %v1170 = vunpack.c.l.b16 %v1037
  %v1171 = vunpack.c.h.b16 %v1037
  %v1172 = vunpack.c.l.b16 %v1038
  %v1173 = vunpack.c.h.b16 %v1038
  %v1174 = vunpack.c.l.b16 %v1039
  %v1175 = vunpack.c.h.b16 %v1039
  %v1176 = vunpack.c.l.b16 %v1040
  %v1177 = vunpack.c.h.b16 %v1040
  %v1178 = vunpack.c.l.b16 %v1041
  %v1179 = vunpack.c.h.b16 %v1041
  %v1180 = vunpack.c.l.b16 %v1042
  %v1181 = vunpack.c.h.b16 %v1042
  %v1182 = vunpack.c.l.b16 %v1043
  %v1183 = vunpack.c.h.b16 %v1043
  %v1184 = vunpack.c.l.b16 %v1044
  %v1185 = vunpack.c.h.b16 %v1044
  %v1186 = vunpack.c.l.b16 %v1045
  %v1187 = vunpack.c.h.b16 %v1045
  %v1188 = vunpack.c.l.b16 %v1046
  %v1189 = vunpack.c.h.b16 %v1046
  %v1190 = vunpack.c.l.b16 %v1047
  %v1191 = vunpack.c.h.b16 %v1047
  %v1192 = vpack.c.b16 %v1098, %v1096
  %v1193 = vpack.c.b16 %v1099, %v1097
  %v1194 = vpack.c.b16 %v1102, %v1100
  %v1195 = vpack.c.b16 %v1103, %v1101
  %v1196 = vpack.c.b16 %v1106, %v1104
  %v1197 = vpack.c.b16 %v1107, %v1105
  %v1198 = vpack.c.b16 %v1110, %v1108
  %v1199 = vpack.c.b16 %v1111, %v1109
  %v1200 = vpack.c.b16 %v1114, %v1112
  %v1201 = vpack.c.b16 %v1115, %v1113
  %v1202 = vpack.c.b16 %v1118, %v1116
  %v1203 = vpack.c.b16 %v1119, %v1117
  %v1204 = vpack.c.b16 %v1122, %v1120
  %v1205 = vpack.c.b16 %v1123, %v1121
  %v1206 = vpack.c.b16 %v1126, %v1124
  %v1207 = vpack.c.b16 %v1127, %v1125
  %v1208 = vpack.c.b16 %v1130, %v1128
  %v1209 = vpack.c.b16 %v1131, %v1129
  %v1210 = vpack.c.b16 %v1134, %v1132
  %v1211 = vpack.c.b16 %v1135, %v1133
  %v1212 = vpack.c.b16 %v1138, %v1136
  %v1213 = vpack.c.b16 %v1139, %v1137
  %v1214 = vpack.c.b16 %v1142, %v1140
  %v1215 = vpack.c.b16 %v1143, %v1141
  %v1216 = vpack.c.b16 %v1146, %v1144
  %v1217 = vpack.c.b16 %v1147, %v1145
  %v1218 = vpack.c.b16 %v1150, %v1148
  %v1219 = vpack.c.b16 %v1151, %v1149
  %v1220 = vpack.c.b16 %v1154, %v1152
  %v1221 = vpack.c.b16 %v1155, %v1153
  %v1222 = vpack.c.b16 %v1158, %v1156
  %v1223 = vpack.c.b16 %v1159, %v1157
  %v1224 = vpack.c.b16 %v1162, %v1160
  %v1225 = vpack.c.b16 %v1163, %v1161
  %v1226 = vpack.c.b16 %v1166, %v1164
  %v1227 = vpack.c.b16 %v1167, %v1165
  %v1228 = vpack.c.b16 %v1170, %v1168
  %v1229 = vpack.c.b16 %v1171, %v1169
  %v1230 = vpack.c.b16 %v1174, %v1172
  %v1231 = vpack.c.b16 %v1175, %v1173
  %v1232 = vpack.c.b16 %v1178, %v1176
  %v1233 = vpack.c.b16 %v1179, %v1177
  %v1234 = vpack.c.b16 %v1182, %v1180
  %v1235 = vpack.c.b16 %v1183, %v1181
  %v1236 = vpack.c.b16 %v1186, %v1184
  %v1237 = vpack.c.b16 %v1187, %v1185
  %v1238 = vpack.c.b16 %v1190, %v1188
  %v1239 = vpack.c.b16 %v1191, %v1189
  %1288 = vmatprep.subr.bf16.mxu0 %v1193
  %1289 = vmatpush1.bf16.msra.mxu0 %v1192
  %1290 = vmatprep.subr.bf16.mxu0 %v1195
  %1291 = vmatpush1.bf16.msra.mxu0 %v1194
  %1292 = vmatprep.subr.bf16.mxu0 %v1197
  %1293 = vmatpush1.bf16.msra.mxu0 %v1196
  %1294 = vmatprep.subr.bf16.mxu0 %v1199
  %1295 = vmatpush1.bf16.msra.mxu0 %v1198
  %1296 = vmatprep.subr.bf16.mxu0 %v1201
  %1297 = vmatpush1.bf16.msra.mxu0 %v1200
  %1298 = vmatprep.subr.bf16.mxu0 %v1203
  %1299 = vmatpush1.bf16.msra.mxu0 %v1202
  %1300 = vmatprep.subr.bf16.mxu0 %v1205
  %1301 = vmatpush1.bf16.msra.mxu0 %v1204
  %1302 = vmatprep.subr.bf16.mxu0 %v1207
  %1303 = vmatpush1.bf16.msra.mxu0 %v1206
  %1304 = vmatprep.subr.bf16.mxu0 %v1209
  %1305 = vmatpush1.bf16.msra.mxu0 %v1208
  %1306 = vmatprep.subr.bf16.mxu0 %v1211
  %1307 = vmatpush1.bf16.msra.mxu0 %v1210
  %1308 = vmatprep.subr.bf16.mxu0 %v1213
  %1309 = vmatpush1.bf16.msra.mxu0 %v1212
  %1310 = vmatprep.subr.bf16.mxu0 %v1215
  %1311 = vmatpush1.bf16.msra.mxu0 %v1214
  %1312 = vmatprep.subr.bf16.mxu0 %v1217
  %1313 = vmatpush1.bf16.msra.mxu0 %v1216
  %1314 = vmatprep.subr.bf16.mxu0 %v1219
  %1315 = vmatpush1.bf16.msra.mxu0 %v1218
  %1316 = vmatprep.subr.bf16.mxu0 %v1221
  %1317 = vmatpush1.bf16.msra.mxu0 %v1220
  %1318 = vmatprep.subr.bf16.mxu0 %v1223
  %1319 = vmatpush1.bf16.msra.mxu0 %v1222
  %1320 = vmatprep.mubr.bf16.mxu0 %v977
  %1321 = vmatmul.mubr.bf16.gmra.mrb[0].mxu0 %v976
  %v1322 = vpop.f32.mrb[0].mxu0
  %v1323 = vadd.f32 0.0, %v1322
  %v1324 = vpop.f32.mrb[0].mxu0
  %v1325 = vadd.f32 0.0, %v1324
  %v1326 = vpop.f32.mrb[0].mxu0
  %v1327 = vadd.f32 0.0, %v1326
  %v1328 = vpop.f32.mrb[0].mxu0
  %v1329 = vadd.f32 0.0, %v1328
  %1330 = vmatprep.mubr.bf16.mxu0 %v980
  %1331 = vmatmul.mubr.bf16.gmra.mrb[0].mxu0 %v979
  %v1332 = vpop.f32.mrb[0].mxu0
  %v1333 = vadd.f32 0.0, %v1332
  %v1334 = vpop.f32.mrb[0].mxu0
  %v1335 = vadd.f32 0.0, %v1334
  %v1336 = vpop.f32.mrb[0].mxu0
  %v1337 = vadd.f32 0.0, %v1336
  %v1338 = vpop.f32.mrb[0].mxu0
  %v1339 = vadd.f32 0.0, %v1338
  %1340 = vmatprep.mubr.bf16.mxu0 %v983
  %1341 = vmatmul.mubr.bf16.gmra.mrb[0].mxu0 %v982
  %v1342 = vpop.f32.mrb[0].mxu0
  %v1343 = vadd.f32 0.0, %v1342
  %v1344 = vpop.f32.mrb[0].mxu0
  %v1345 = vadd.f32 0.0, %v1344
  %v1346 = vpop.f32.mrb[0].mxu0
  %v1347 = vadd.f32 0.0, %v1346
  %v1348 = vpop.f32.mrb[0].mxu0
  %v1349 = vadd.f32 0.0, %v1348
  %1350 = vmatprep.mubr.bf16.mxu0 %v986
  %1351 = vmatmul.mubr.bf16.gmra.mrb[0].mxu0 %v985
  %v1352 = vpop.f32.mrb[0].mxu0
  %v1353 = vadd.f32 0.0, %v1352
  %v1354 = vpop.f32.mrb[0].mxu0
  %v1355 = vadd.f32 0.0, %v1354
  %v1356 = vpop.f32.mrb[0].mxu0
  %v1357 = vadd.f32 0.0, %v1356
  %v1358 = vpop.f32.mrb[0].mxu0
  %v1359 = vadd.f32 0.0, %v1358
  %1360 = vmatprep.mubr.bf16.mxu0 %v989
  %1361 = vmatmul.mubr.bf16.gmra.mrb[0].mxu0 %v988
  %v1362 = vpop.f32.mrb[0].mxu0
  %v1363 = vadd.f32 0.0, %v1362
  %v1364 = vpop.f32.mrb[0].mxu0
  %v1365 = vadd.f32 0.0, %v1364
  %v1366 = vpop.f32.mrb[0].mxu0
  %v1367 = vadd.f32 0.0, %v1366
  %v1368 = vpop.f32.mrb[0].mxu0
  %v1369 = vadd.f32 0.0, %v1368
  %1370 = vmatprep.mubr.bf16.mxu0 %v992
  %1371 = vmatmul.mubr.bf16.gmra.mrb[0].mxu0 %v991
  %v1372 = vpop.f32.mrb[0].mxu0
  %v1373 = vadd.f32 0.0, %v1372
  %v1374 = vpop.f32.mrb[0].mxu0
  %v1375 = vadd.f32 0.0, %v1374
  %v1376 = vpop.f32.mrb[0].mxu0
  %v1377 = vadd.f32 0.0, %v1376
  %v1378 = vpop.f32.mrb[0].mxu0
  %v1379 = vadd.f32 0.0, %v1378
  %1380 = vmatprep.mubr.bf16.mxu0 %v995
  %1381 = vmatmul.mubr.bf16.gmra.mrb[0].mxu0 %v994
  %v1382 = vpop.f32.mrb[0].mxu0
  %v1383 = vadd.f32 0.0, %v1382
  %v1384 = vpop.f32.mrb[0].mxu0
  %v1385 = vadd.f32 0.0, %v1384
  %v1386 = vpop.f32.mrb[0].mxu0
  %v1387 = vadd.f32 0.0, %v1386
  %v1388 = vpop.f32.mrb[0].mxu0
  %v1389 = vadd.f32 0.0, %v1388
  %1390 = vmatprep.mubr.bf16.mxu0 %v998
  %1391 = vmatmul.mubr.bf16.gmra.mrb[0].mxu0 %v997
  %v1392 = vpop.f32.mrb[0].mxu0
  %v1393 = vadd.f32 0.0, %v1392
  %v1394 = vpop.f32.mrb[0].mxu0
  %v1395 = vadd.f32 0.0, %v1394
  %v1396 = vpop.f32.mrb[0].mxu0
  %v1397 = vadd.f32 0.0, %v1396
  %v1398 = vpop.f32.mrb[0].mxu0
  %v1399 = vadd.f32 0.0, %v1398
  %1400 = vdwg.mxu0
  %1401 = vmatprep.subr.bf16.mxu0 %v1225
  %1402 = vmatpush1.bf16.msra.mxu0 %v1224
  %1403 = vmatprep.subr.bf16.mxu0 %v1227
  %1404 = vmatpush1.bf16.msra.mxu0 %v1226
  %1405 = vmatprep.subr.bf16.mxu0 %v1229
  %1406 = vmatpush1.bf16.msra.mxu0 %v1228
  %1407 = vmatprep.subr.bf16.mxu0 %v1231
  %1408 = vmatpush1.bf16.msra.mxu0 %v1230
  %1409 = vmatprep.subr.bf16.mxu0 %v1233
  %1410 = vmatpush1.bf16.msra.mxu0 %v1232
  %1411 = vmatprep.subr.bf16.mxu0 %v1235
  %1412 = vmatpush1.bf16.msra.mxu0 %v1234
  %1413 = vmatprep.subr.bf16.mxu0 %v1237
  %1414 = vmatpush1.bf16.msra.mxu0 %v1236
  %1415 = vmatprep.subr.bf16.mxu0 %v1239
  %1416 = vmatpush1.bf16.msra.mxu0 %v1238
  %1417 = vmatprep.subr.bf16.mxu0 0
  %1418 = vmatpush1.bf16.msra.mxu0 0
  %1419 = vmatprep.subr.bf16.mxu0 0
  %1420 = vmatpush1.bf16.msra.mxu0 0
  %1421 = vmatprep.subr.bf16.mxu0 0
  %1422 = vmatpush1.bf16.msra.mxu0 0
  %1423 = vmatprep.subr.bf16.mxu0 0
  %1424 = vmatpush1.bf16.msra.mxu0 0
  %1425 = vmatprep.subr.bf16.mxu0 0
  %1426 = vmatpush1.bf16.msra.mxu0 0
  %1427 = vmatprep.subr.bf16.mxu0 0
  %1428 = vmatpush1.bf16.msra.mxu0 0
  %1429 = vmatprep.subr.bf16.mxu0 0
  %1430 = vmatpush1.bf16.msra.mxu0 0
  %1431 = vmatprep.subr.bf16.mxu0 0
  %1432 = vmatpush1.bf16.msra.mxu0 0
  %1433 = vmatprep.mubr.bf16.mxu0 0
  %1434 = vmatmul.mubr.bf16.gmra.mrb[0].mxu0 %v978
  %v1435 = vpop.f32.mrb[0].mxu0
  %v1436 = vadd.f32 %v1323, %v1435
  %v1437 = vpop.f32.mrb[0].mxu0
  %v1438 = vadd.f32 %v1325, %v1437
  %v1439 = vpop.f32.mrb[0].mxu0
  %v1440 = vadd.f32 %v1327, %v1439
  %v1441 = vpop.f32.mrb[0].mxu0
  %v1442 = vadd.f32 %v1329, %v1441
  %1443 = vmatprep.mubr.bf16.mxu0 0
  %1444 = vmatmul.mubr.bf16.gmra.mrb[0].mxu0 %v981
  %v1445 = vpop.f32.mrb[0].mxu0
  %v1446 = vadd.f32 %v1333, %v1445
  %v1447 = vpop.f32.mrb[0].mxu0
  %v1448 = vadd.f32 %v1335, %v1447
  %v1449 = vpop.f32.mrb[0].mxu0
  %v1450 = vadd.f32 %v1337, %v1449
  %v1451 = vpop.f32.mrb[0].mxu0
  %v1452 = vadd.f32 %v1339, %v1451
  %1453 = vmatprep.mubr.bf16.mxu0 0
  %1454 = vmatmul.mubr.bf16.gmra.mrb[0].mxu0 %v984
  %v1455 = vpop.f32.mrb[0].mxu0
  %v1456 = vadd.f32 %v1343, %v1455
  %v1457 = vpop.f32.mrb[0].mxu0
  %v1458 = vadd.f32 %v1345, %v1457
  %v1459 = vpop.f32.mrb[0].mxu0
  %v1460 = vadd.f32 %v1347, %v1459
  %v1461 = vpop.f32.mrb[0].mxu0
  %v1462 = vadd.f32 %v1349, %v1461
  %1463 = vmatprep.mubr.bf16.mxu0 0
  %1464 = vmatmul.mubr.bf16.gmra.mrb[0].mxu0 %v987
  %v1465 = vpop.f32.mrb[0].mxu0
  %v1466 = vadd.f32 %v1353, %v1465
  %v1467 = vpop.f32.mrb[0].mxu0
  %v1468 = vadd.f32 %v1355, %v1467
  %v1469 = vpop.f32.mrb[0].mxu0
  %v1470 = vadd.f32 %v1357, %v1469
  %v1471 = vpop.f32.mrb[0].mxu0
  %v1472 = vadd.f32 %v1359, %v1471
  %1473 = vmatprep.mubr.bf16.mxu0 0
  %1474 = vmatmul.mubr.bf16.gmra.mrb[0].mxu0 %v990
  %v1475 = vpop.f32.mrb[0].mxu0
  %v1476 = vadd.f32 %v1363, %v1475
  %v1477 = vpop.f32.mrb[0].mxu0
  %v1478 = vadd.f32 %v1365, %v1477
  %v1479 = vpop.f32.mrb[0].mxu0
  %v1480 = vadd.f32 %v1367, %v1479
  %v1481 = vpop.f32.mrb[0].mxu0
  %v1482 = vadd.f32 %v1369, %v1481
  %1483 = vmatprep.mubr.bf16.mxu0 0
  %1484 = vmatmul.mubr.bf16.gmra.mrb[0].mxu0 %v993
  %v1485 = vpop.f32.mrb[0].mxu0
  %v1486 = vadd.f32 %v1373, %v1485
  %v1487 = vpop.f32.mrb[0].mxu0
  %v1488 = vadd.f32 %v1375, %v1487
  %v1489 = vpop.f32.mrb[0].mxu0
  %v1490 = vadd.f32 %v1377, %v1489
  %v1491 = vpop.f32.mrb[0].mxu0
  %v1492 = vadd.f32 %v1379, %v1491
  %1493 = vmatprep.mubr.bf16.mxu0 0
  %1494 = vmatmul.mubr.bf16.gmra.mrb[0].mxu0 %v996
  %v1495 = vpop.f32.mrb[0].mxu0
  %v1496 = vadd.f32 %v1383, %v1495
  %v1497 = vpop.f32.mrb[0].mxu0
  %v1498 = vadd.f32 %v1385, %v1497
  %v1499 = vpop.f32.mrb[0].mxu0
  %v1500 = vadd.f32 %v1387, %v1499
  %v1501 = vpop.f32.mrb[0].mxu0
  %v1502 = vadd.f32 %v1389, %v1501
  %1503 = vmatprep.mubr.bf16.mxu0 0
  %1504 = vmatmul.mubr.bf16.gmra.mrb[0].mxu0 %v999
  %v1505 = vpop.f32.mrb[0].mxu0
  %v1506 = vadd.f32 %v1393, %v1505
  %v1507 = vpop.f32.mrb[0].mxu0
  %v1508 = vadd.f32 %v1395, %v1507
  %v1509 = vpop.f32.mrb[0].mxu0
  %v1510 = vadd.f32 %v1397, %v1509
  %v1511 = vpop.f32.mrb[0].mxu0
  %v1512 = vadd.f32 %v1399, %v1511
  %1513 = vdwg.mxu0
  %v1562 = vunpack.c.l.b16 %v484
  %v1563 = vunpack.c.h.b16 %v484
  %v1564 = vunpack.c.l.b16 %v485
  %v1565 = vunpack.c.h.b16 %v485
  %v1566 = vunpack.c.l.b16 %v486
  %v1567 = vunpack.c.h.b16 %v486
  %v1568 = vunpack.c.l.b16 %v487
  %v1569 = vunpack.c.h.b16 %v487
  %v1570 = vunpack.c.l.b16 %v488
  %v1571 = vunpack.c.h.b16 %v488
  %v1572 = vunpack.c.l.b16 %v489
  %v1573 = vunpack.c.h.b16 %v489
  %v1574 = vunpack.c.l.b16 %v490
  %v1575 = vunpack.c.h.b16 %v490
  %v1576 = vunpack.c.l.b16 %v491
  %v1577 = vunpack.c.h.b16 %v491
  %v1578 = vunpack.c.l.b16 %v492
  %v1579 = vunpack.c.h.b16 %v492
  %v1580 = vunpack.c.l.b16 %v493
  %v1581 = vunpack.c.h.b16 %v493
  %v1582 = vunpack.c.l.b16 %v494
  %v1583 = vunpack.c.h.b16 %v494
  %v1584 = vunpack.c.l.b16 %v495
  %v1585 = vunpack.c.h.b16 %v495
  %v1586 = vunpack.c.l.b16 %v496
  %v1587 = vunpack.c.h.b16 %v496
  %v1588 = vunpack.c.l.b16 %v497
  %v1589 = vunpack.c.h.b16 %v497
  %v1590 = vunpack.c.l.b16 %v498
  %v1591 = vunpack.c.h.b16 %v498
  %v1592 = vunpack.c.l.b16 %v499
  %v1593 = vunpack.c.h.b16 %v499
  %v1594 = vunpack.c.l.b16 %v500
  %v1595 = vunpack.c.h.b16 %v500
  %v1596 = vunpack.c.l.b16 %v501
  %v1597 = vunpack.c.h.b16 %v501
  %v1598 = vunpack.c.l.b16 %v502
  %v1599 = vunpack.c.h.b16 %v502
  %v1600 = vunpack.c.l.b16 %v503
  %v1601 = vunpack.c.h.b16 %v503
  %v1602 = vunpack.c.l.b16 %v504
  %v1603 = vunpack.c.h.b16 %v504
  %v1604 = vunpack.c.l.b16 %v505
  %v1605 = vunpack.c.h.b16 %v505
  %v1606 = vunpack.c.l.b16 %v506
  %v1607 = vunpack.c.h.b16 %v506
  %v1608 = vunpack.c.l.b16 %v507
  %v1609 = vunpack.c.h.b16 %v507
  %v1610 = vunpack.c.l.b16 %v508
  %v1611 = vunpack.c.h.b16 %v508
  %v1612 = vunpack.c.l.b16 %v509
  %v1613 = vunpack.c.h.b16 %v509
  %v1614 = vunpack.c.l.b16 %v510
  %v1615 = vunpack.c.h.b16 %v510
  %v1616 = vunpack.c.l.b16 %v511
  %v1617 = vunpack.c.h.b16 %v511
  %v1618 = vunpack.c.l.b16 %v512
  %v1619 = vunpack.c.h.b16 %v512
  %v1620 = vunpack.c.l.b16 %v513
  %v1621 = vunpack.c.h.b16 %v513
  %v1622 = vunpack.c.l.b16 %v514
  %v1623 = vunpack.c.h.b16 %v514
  %v1624 = vunpack.c.l.b16 %v515
  %v1625 = vunpack.c.h.b16 %v515
  %v1626 = vunpack.c.l.b16 %v516
  %v1627 = vunpack.c.h.b16 %v516
  %v1628 = vunpack.c.l.b16 %v517
  %v1629 = vunpack.c.h.b16 %v517
  %v1630 = vunpack.c.l.b16 %v518
  %v1631 = vunpack.c.h.b16 %v518
  %v1632 = vunpack.c.l.b16 %v519
  %v1633 = vunpack.c.h.b16 %v519
  %v1634 = vunpack.c.l.b16 %v520
  %v1635 = vunpack.c.h.b16 %v520
  %v1636 = vunpack.c.l.b16 %v521
  %v1637 = vunpack.c.h.b16 %v521
  %v1638 = vunpack.c.l.b16 %v522
  %v1639 = vunpack.c.h.b16 %v522
  %v1640 = vunpack.c.l.b16 %v523
  %v1641 = vunpack.c.h.b16 %v523
  %v1642 = vunpack.c.l.b16 %v524
  %v1643 = vunpack.c.h.b16 %v524
  %v1644 = vunpack.c.l.b16 %v525
  %v1645 = vunpack.c.h.b16 %v525
  %v1646 = vunpack.c.l.b16 %v526
  %v1647 = vunpack.c.h.b16 %v526
  %v1648 = vunpack.c.l.b16 %v527
  %v1649 = vunpack.c.h.b16 %v527
  %v1650 = vunpack.c.l.b16 %v528
  %v1651 = vunpack.c.h.b16 %v528
  %v1652 = vunpack.c.l.b16 %v529
  %v1653 = vunpack.c.h.b16 %v529
  %v1654 = vunpack.c.l.b16 %v530
  %v1655 = vunpack.c.h.b16 %v530
  %v1656 = vunpack.c.l.b16 %v531
  %v1657 = vunpack.c.h.b16 %v531
  %v1658 = vpack.c.b16 %v1564, %v1562
  %v1659 = vpack.c.b16 %v1565, %v1563
  %v1660 = vpack.c.b16 %v1568, %v1566
  %v1661 = vpack.c.b16 %v1569, %v1567
  %v1662 = vpack.c.b16 %v1572, %v1570
  %v1663 = vpack.c.b16 %v1573, %v1571
  %v1664 = vpack.c.b16 %v1576, %v1574
  %v1665 = vpack.c.b16 %v1577, %v1575
  %v1666 = vpack.c.b16 %v1580, %v1578
  %v1667 = vpack.c.b16 %v1581, %v1579
  %v1668 = vpack.c.b16 %v1584, %v1582
  %v1669 = vpack.c.b16 %v1585, %v1583
  %v1670 = vpack.c.b16 %v1588, %v1586
  %v1671 = vpack.c.b16 %v1589, %v1587
  %v1672 = vpack.c.b16 %v1592, %v1590
  %v1673 = vpack.c.b16 %v1593, %v1591
  %v1674 = vpack.c.b16 %v1596, %v1594
  %v1675 = vpack.c.b16 %v1597, %v1595
  %v1676 = vpack.c.b16 %v1600, %v1598
  %v1677 = vpack.c.b16 %v1601, %v1599
  %v1678 = vpack.c.b16 %v1604, %v1602
  %v1679 = vpack.c.b16 %v1605, %v1603
  %v1680 = vpack.c.b16 %v1608, %v1606
  %v1681 = vpack.c.b16 %v1609, %v1607
  %v1682 = vpack.c.b16 %v1612, %v1610
  %v1683 = vpack.c.b16 %v1613, %v1611
  %v1684 = vpack.c.b16 %v1616, %v1614
  %v1685 = vpack.c.b16 %v1617, %v1615
  %v1686 = vpack.c.b16 %v1620, %v1618
  %v1687 = vpack.c.b16 %v1621, %v1619
  %v1688 = vpack.c.b16 %v1624, %v1622
  %v1689 = vpack.c.b16 %v1625, %v1623
  %v1690 = vpack.c.b16 %v1628, %v1626
  %v1691 = vpack.c.b16 %v1629, %v1627
  %v1692 = vpack.c.b16 %v1632, %v1630
  %v1693 = vpack.c.b16 %v1633, %v1631
  %v1694 = vpack.c.b16 %v1636, %v1634
  %v1695 = vpack.c.b16 %v1637, %v1635
  %v1696 = vpack.c.b16 %v1640, %v1638
  %v1697 = vpack.c.b16 %v1641, %v1639
  %v1698 = vpack.c.b16 %v1644, %v1642
  %v1699 = vpack.c.b16 %v1645, %v1643
  %v1700 = vpack.c.b16 %v1648, %v1646
  %v1701 = vpack.c.b16 %v1649, %v1647
  %v1702 = vpack.c.b16 %v1652, %v1650
  %v1703 = vpack.c.b16 %v1653, %v1651
  %v1704 = vpack.c.b16 %v1656, %v1654
  %v1705 = vpack.c.b16 %v1657, %v1655
  %1754 = vmatprep.subr.bf16.mxu0 %v1659
  %1755 = vmatpush1.bf16.msra.mxu0 %v1658
  %1756 = vmatprep.subr.bf16.mxu0 %v1661
  %1757 = vmatpush1.bf16.msra.mxu0 %v1660
  %1758 = vmatprep.subr.bf16.mxu0 %v1663
  %1759 = vmatpush1.bf16.msra.mxu0 %v1662
  %1760 = vmatprep.subr.bf16.mxu0 %v1665
  %1761 = vmatpush1.bf16.msra.mxu0 %v1664
  %1762 = vmatprep.subr.bf16.mxu0 %v1667
  %1763 = vmatpush1.bf16.msra.mxu0 %v1666
  %1764 = vmatprep.subr.bf16.mxu0 %v1669
  %1765 = vmatpush1.bf16.msra.mxu0 %v1668
  %1766 = vmatprep.subr.bf16.mxu0 %v1671
  %1767 = vmatpush1.bf16.msra.mxu0 %v1670
  %1768 = vmatprep.subr.bf16.mxu0 %v1673
  %1769 = vmatpush1.bf16.msra.mxu0 %v1672
  %1770 = vmatprep.subr.bf16.mxu0 %v1675
  %1771 = vmatpush1.bf16.msra.mxu0 %v1674
  %1772 = vmatprep.subr.bf16.mxu0 %v1677
  %1773 = vmatpush1.bf16.msra.mxu0 %v1676
  %1774 = vmatprep.subr.bf16.mxu0 %v1679
  %1775 = vmatpush1.bf16.msra.mxu0 %v1678
  %1776 = vmatprep.subr.bf16.mxu0 %v1681
  %1777 = vmatpush1.bf16.msra.mxu0 %v1680
  %1778 = vmatprep.subr.bf16.mxu0 %v1683
  %1779 = vmatpush1.bf16.msra.mxu0 %v1682
  %1780 = vmatprep.subr.bf16.mxu0 %v1685
  %1781 = vmatpush1.bf16.msra.mxu0 %v1684
  %1782 = vmatprep.subr.bf16.mxu0 %v1687
  %1783 = vmatpush1.bf16.msra.mxu0 %v1686
  %1784 = vmatprep.subr.bf16.mxu0 %v1689
  %1785 = vmatpush1.bf16.msra.mxu0 %v1688
  %1786 = vmatprep.mubr.bf16.mxu0 %v461
  %1787 = vmatmul.mubr.bf16.gmra.mrb[0].mxu0 %v460
  %v1788 = vpop.f32.mrb[0].mxu0
  %v1789 = vadd.f32 %v1436, %v1788
  %v1790 = vpop.f32.mrb[0].mxu0
  %v1791 = vadd.f32 %v1438, %v1790
  %v1792 = vpop.f32.mrb[0].mxu0
  %v1793 = vadd.f32 %v1440, %v1792
  %v1794 = vpop.f32.mrb[0].mxu0
  %v1795 = vadd.f32 %v1442, %v1794
  %1796 = vmatprep.mubr.bf16.mxu0 %v464
  %1797 = vmatmul.mubr.bf16.gmra.mrb[0].mxu0 %v463
  %v1798 = vpop.f32.mrb[0].mxu0
  %v1799 = vadd.f32 %v1446, %v1798
  %v1800 = vpop.f32.mrb[0].mxu0
  %v1801 = vadd.f32 %v1448, %v1800
  %v1802 = vpop.f32.mrb[0].mxu0
  %v1803 = vadd.f32 %v1450, %v1802
  %v1804 = vpop.f32.mrb[0].mxu0
  %v1805 = vadd.f32 %v1452, %v1804
  %1806 = vmatprep.mubr.bf16.mxu0 %v467
  %1807 = vmatmul.mubr.bf16.gmra.mrb[0].mxu0 %v466
  %v1808 = vpop.f32.mrb[0].mxu0
  %v1809 = vadd.f32 %v1456, %v1808
  %v1810 = vpop.f32.mrb[0].mxu0
  %v1811 = vadd.f32 %v1458, %v1810
  %v1812 = vpop.f32.mrb[0].mxu0
  %v1813 = vadd.f32 %v1460, %v1812
  %v1814 = vpop.f32.mrb[0].mxu0
  %v1815 = vadd.f32 %v1462, %v1814
  %1816 = vmatprep.mubr.bf16.mxu0 %v470
  %1817 = vmatmul.mubr.bf16.gmra.mrb[0].mxu0 %v469
  %v1818 = vpop.f32.mrb[0].mxu0
  %v1819 = vadd.f32 %v1466, %v1818
  %v1820 = vpop.f32.mrb[0].mxu0
  %v1821 = vadd.f32 %v1468, %v1820
  %v1822 = vpop.f32.mrb[0].mxu0
  %v1823 = vadd.f32 %v1470, %v1822
  %v1824 = vpop.f32.mrb[0].mxu0
  %v1825 = vadd.f32 %v1472, %v1824
  %1826 = vmatprep.mubr.bf16.mxu0 %v473
  %1827 = vmatmul.mubr.bf16.gmra.mrb[0].mxu0 %v472
  %v1828 = vpop.f32.mrb[0].mxu0
  %v1829 = vadd.f32 %v1476, %v1828
  %v1830 = vpop.f32.mrb[0].mxu0
  %v1831 = vadd.f32 %v1478, %v1830
  %v1832 = vpop.f32.mrb[0].mxu0
  %v1833 = vadd.f32 %v1480, %v1832
  %v1834 = vpop.f32.mrb[0].mxu0
  %v1835 = vadd.f32 %v1482, %v1834
  %1836 = vmatprep.mubr.bf16.mxu0 %v476
  %1837 = vmatmul.mubr.bf16.gmra.mrb[0].mxu0 %v475
  %v1838 = vpop.f32.mrb[0].mxu0
  %v1839 = vadd.f32 %v1486, %v1838
  %v1840 = vpop.f32.mrb[0].mxu0
  %v1841 = vadd.f32 %v1488, %v1840
  %v1842 = vpop.f32.mrb[0].mxu0
  %v1843 = vadd.f32 %v1490, %v1842
  %v1844 = vpop.f32.mrb[0].mxu0
  %v1845 = vadd.f32 %v1492, %v1844
  %1846 = vmatprep.mubr.bf16.mxu0 %v479
  %1847 = vmatmul.mubr.bf16.gmra.mrb[0].mxu0 %v478
  %v1848 = vpop.f32.mrb[0].mxu0
  %v1849 = vadd.f32 %v1496, %v1848
  %v1850 = vpop.f32.mrb[0].mxu0
  %v1851 = vadd.f32 %v1498, %v1850
  %v1852 = vpop.f32.mrb[0].mxu0
  %v1853 = vadd.f32 %v1500, %v1852
  %v1854 = vpop.f32.mrb[0].mxu0
  %v1855 = vadd.f32 %v1502, %v1854
  %1856 = vmatprep.mubr.bf16.mxu0 %v482
  %1857 = vmatmul.mubr.bf16.gmra.mrb[0].mxu0 %v481
  %v1858 = vpop.f32.mrb[0].mxu0
  %v1859 = vadd.f32 %v1506, %v1858
  %v1860 = vpop.f32.mrb[0].mxu0
  %v1861 = vadd.f32 %v1508, %v1860
  %v1862 = vpop.f32.mrb[0].mxu0
  %v1863 = vadd.f32 %v1510, %v1862
  %v1864 = vpop.f32.mrb[0].mxu0
  %v1865 = vadd.f32 %v1512, %v1864
  %1866 = vdwg.mxu0
  %1867 = vmatprep.subr.bf16.mxu0 %v1691
  %1868 = vmatpush1.bf16.msra.mxu0 %v1690
  %1869 = vmatprep.subr.bf16.mxu0 %v1693
  %1870 = vmatpush1.bf16.msra.mxu0 %v1692
  %1871 = vmatprep.subr.bf16.mxu0 %v1695
  %1872 = vmatpush1.bf16.msra.mxu0 %v1694
  %1873 = vmatprep.subr.bf16.mxu0 %v1697
  %1874 = vmatpush1.bf16.msra.mxu0 %v1696
  %1875 = vmatprep.subr.bf16.mxu0 %v1699
  %1876 = vmatpush1.bf16.msra.mxu0 %v1698
  %1877 = vmatprep.subr.bf16.mxu0 %v1701
  %1878 = vmatpush1.bf16.msra.mxu0 %v1700
  %1879 = vmatprep.subr.bf16.mxu0 %v1703
  %1880 = vmatpush1.bf16.msra.mxu0 %v1702
  %1881 = vmatprep.subr.bf16.mxu0 %v1705
  %1882 = vmatpush1.bf16.msra.mxu0 %v1704
  %1883 = vmatprep.subr.bf16.mxu0 0
  %1884 = vmatpush1.bf16.msra.mxu0 0
  %1885 = vmatprep.subr.bf16.mxu0 0
  %1886 = vmatpush1.bf16.msra.mxu0 0
  %1887 = vmatprep.subr.bf16.mxu0 0
  %1888 = vmatpush1.bf16.msra.mxu0 0
  %1889 = vmatprep.subr.bf16.mxu0 0
  %1890 = vmatpush1.bf16.msra.mxu0 0
  %1891 = vmatprep.subr.bf16.mxu0 0
  %1892 = vmatpush1.bf16.msra.mxu0 0
  %1893 = vmatprep.subr.bf16.mxu0 0
  %1894 = vmatpush1.bf16.msra.mxu0 0
  %1895 = vmatprep.subr.bf16.mxu0 0
  %1896 = vmatpush1.bf16.msra.mxu0 0
  %1897 = vmatprep.subr.bf16.mxu0 0
  %1898 = vmatpush1.bf16.msra.mxu0 0
  %1899 = vmatprep.mubr.bf16.mxu0 0
  %1900 = vmatmul.mubr.bf16.gmra.mrb[0].mxu0 %v462
  %v1901 = vpop.f32.mrb[0].mxu0
  %v1902 = vadd.f32 %v1789, %v1901
  %v1903 = vpop.f32.mrb[0].mxu0
  %v1904 = vadd.f32 %v1791, %v1903
  %v1905 = vpop.f32.mrb[0].mxu0
  %v1906 = vadd.f32 %v1793, %v1905
  %v1907 = vpop.f32.mrb[0].mxu0
  %v1908 = vadd.f32 %v1795, %v1907
  %1909 = vmatprep.mubr.bf16.mxu0 0
  %1910 = vmatmul.mubr.bf16.gmra.mrb[0].mxu0 %v465
  %v1911 = vpop.f32.mrb[0].mxu0
  %v1912 = vadd.f32 %v1799, %v1911
  %v1913 = vpop.f32.mrb[0].mxu0
  %v1914 = vadd.f32 %v1801, %v1913
  %v1915 = vpop.f32.mrb[0].mxu0
  %v1916 = vadd.f32 %v1803, %v1915
  %v1917 = vpop.f32.mrb[0].mxu0
  %v1918 = vadd.f32 %v1805, %v1917
  %1919 = vmatprep.mubr.bf16.mxu0 0
  %1920 = vmatmul.mubr.bf16.gmra.mrb[0].mxu0 %v468
  %v1921 = vpop.f32.mrb[0].mxu0
  %v1922 = vadd.f32 %v1809, %v1921
  %v1923 = vpop.f32.mrb[0].mxu0
  %v1924 = vadd.f32 %v1811, %v1923
  %v1925 = vpop.f32.mrb[0].mxu0
  %v1926 = vadd.f32 %v1813, %v1925
  %v1927 = vpop.f32.mrb[0].mxu0
  %v1928 = vadd.f32 %v1815, %v1927
  %1929 = vmatprep.mubr.bf16.mxu0 0
  %1930 = vmatmul.mubr.bf16.gmra.mrb[0].mxu0 %v471
  %v1931 = vpop.f32.mrb[0].mxu0
  %v1932 = vadd.f32 %v1819, %v1931
  %v1933 = vpop.f32.mrb[0].mxu0
  %v1934 = vadd.f32 %v1821, %v1933
  %v1935 = vpop.f32.mrb[0].mxu0
  %v1936 = vadd.f32 %v1823, %v1935
  %v1937 = vpop.f32.mrb[0].mxu0
  %v1938 = vadd.f32 %v1825, %v1937
  %1939 = vmatprep.mubr.bf16.mxu0 0
  %1940 = vmatmul.mubr.bf16.gmra.mrb[0].mxu0 %v474
  %v1941 = vpop.f32.mrb[0].mxu0
  %v1942 = vadd.f32 %v1829, %v1941
  %v1943 = vpop.f32.mrb[0].mxu0
  %v1944 = vadd.f32 %v1831, %v1943
  %v1945 = vpop.f32.mrb[0].mxu0
  %v1946 = vadd.f32 %v1833, %v1945
  %v1947 = vpop.f32.mrb[0].mxu0
  %v1948 = vadd.f32 %v1835, %v1947
  %1949 = vmatprep.mubr.bf16.mxu0 0
  %1950 = vmatmul.mubr.bf16.gmra.mrb[0].mxu0 %v477
  %v1951 = vpop.f32.mrb[0].mxu0
  %v1952 = vadd.f32 %v1839, %v1951
  %v1953 = vpop.f32.mrb[0].mxu0
  %v1954 = vadd.f32 %v1841, %v1953
  %v1955 = vpop.f32.mrb[0].mxu0
  %v1956 = vadd.f32 %v1843, %v1955
  %v1957 = vpop.f32.mrb[0].mxu0
  %v1958 = vadd.f32 %v1845, %v1957
  %1959 = vmatprep.mubr.bf16.mxu0 0
  %1960 = vmatmul.mubr.bf16.gmra.mrb[0].mxu0 %v480
  %v1961 = vpop.f32.mrb[0].mxu0
  %v1962 = vadd.f32 %v1849, %v1961
  %v1963 = vpop.f32.mrb[0].mxu0
  %v1964 = vadd.f32 %v1851, %v1963
  %v1965 = vpop.f32.mrb[0].mxu0
  %v1966 = vadd.f32 %v1853, %v1965
  %v1967 = vpop.f32.mrb[0].mxu0
  %v1968 = vadd.f32 %v1855, %v1967
  %1969 = vmatprep.mubr.bf16.mxu0 0
  %1970 = vmatmul.mubr.bf16.gmra.mrb[0].mxu0 %v483
  %v1971 = vpop.f32.mrb[0].mxu0
  %v1972 = vadd.f32 %v1859, %v1971
  %v1973 = vpop.f32.mrb[0].mxu0
  %v1974 = vadd.f32 %v1861, %v1973
  %v1975 = vpop.f32.mrb[0].mxu0
  %v1976 = vadd.f32 %v1863, %v1975
  %v1977 = vpop.f32.mrb[0].mxu0
  %v1978 = vadd.f32 %v1865, %v1977
  %1979 = vdwg.mxu0
  %s1980 = scalar_lea.vmem %s0, 8
  %v1981 = vld [vmem:[%s1980] sm:$0xf]
  %v1982 = vld [vmem:[%s1980 + $0x8] sm:$0xf]
  %v1983 = vld [vmem:[%s1980 + $0x10] sm:$0xf]
  %v1984 = vld [vmem:[%s1980 + $0x18] sm:$0xf]
  %v1985 = vld [vmem:[%s1980 + $0x20] sm:$0xf]
  %v1986 = vld [vmem:[%s1980 + $0x28] sm:$0xf]
  %v1987 = vld [vmem:[%s1980 + $0x30] sm:$0xf]
  %v1988 = vld [vmem:[%s1980 + $0x38] sm:$0xf]
  %v1997 = vunpack.c.l.b16 %v1981
  %v1998 = vunpack.c.l.b16 %v1982
  %v1999 = vunpack.c.l.b16 %v1983
  %v2000 = vunpack.c.l.b16 %v1984
  %v2001 = vunpack.c.l.b16 %v1985
  %v2002 = vunpack.c.l.b16 %v1986
  %v2003 = vunpack.c.l.b16 %v1987
  %v2004 = vunpack.c.l.b16 %v1988
  %v2005 = vpack.c.b16 %v1998, %v1997
  %v2006 = vpack.c.b16 %v2000, %v1999
  %v2007 = vpack.c.b16 %v2002, %v2001
  %v2008 = vpack.c.b16 %v2004, %v2003
  %2013 = vst [vmem:[#allocation2] sm:$0xff] %v2005
  %2014 = vst [vmem:[#allocation2 + $0x18] sm:$0xff] %v2006
  %2015 = vst [vmem:[#allocation2 + $0x30] sm:$0xff] %v2007
  %2016 = vst [vmem:[#allocation2 + $0x48] sm:$0xff] %v2008
  %s2017 = scalar_lea.vmem %s0, 80
  %v2018 = vld [vmem:[%s2017] sm:$0xf]
  %v2019 = vld [vmem:[%s2017 + $0x8] sm:$0xf]
  %v2020 = vld [vmem:[%s2017 + $0x10] sm:$0xf]
  %v2021 = vld [vmem:[%s2017 + $0x18] sm:$0xf]
  %v2022 = vld [vmem:[%s2017 + $0x20] sm:$0xf]
  %v2023 = vld [vmem:[%s2017 + $0x28] sm:$0xf]
  %v2024 = vld [vmem:[%s2017 + $0x30] sm:$0xf]
  %v2025 = vld [vmem:[%s2017 + $0x38] sm:$0xf]
  %v2034 = vunpack.c.l.b16 %v2018
  %v2035 = vunpack.c.l.b16 %v2019
  %v2036 = vunpack.c.l.b16 %v2020
  %v2037 = vunpack.c.l.b16 %v2021
  %v2038 = vunpack.c.l.b16 %v2022
  %v2039 = vunpack.c.l.b16 %v2023
  %v2040 = vunpack.c.l.b16 %v2024
  %v2041 = vunpack.c.l.b16 %v2025
  %v2042 = vpack.c.b16 %v2035, %v2034
  %v2043 = vpack.c.b16 %v2037, %v2036
  %v2044 = vpack.c.b16 %v2039, %v2038
  %v2045 = vpack.c.b16 %v2041, %v2040
  %2050 = vst [vmem:[#allocation2 + $0x8] sm:$0xff] %v2042
  %2051 = vst [vmem:[#allocation2 + $0x20] sm:$0xff] %v2043
  %2052 = vst [vmem:[#allocation2 + $0x38] sm:$0xff] %v2044
  %2053 = vst [vmem:[#allocation2 + $0x50] sm:$0xff] %v2045
  %v2054 = vld [vmem:[%s1980] sm:$0xf]
  %v2055 = vld [vmem:[%s1980 + $0x4] sm:$0x1]
  %v2056 = vld [vmem:[%s1980 + $0x8] sm:$0xf]
  %v2057 = vld [vmem:[%s1980 + $0xc] sm:$0x1]
  %v2058 = vld [vmem:[%s1980 + $0x10] sm:$0xf]
  %v2059 = vld [vmem:[%s1980 + $0x14] sm:$0x1]
  %v2060 = vld [vmem:[%s1980 + $0x18] sm:$0xf]
  %v2061 = vld [vmem:[%s1980 + $0x1c] sm:$0x1]
  %v2062 = vld [vmem:[%s1980 + $0x20] sm:$0xf]
  %v2063 = vld [vmem:[%s1980 + $0x24] sm:$0x1]
  %v2064 = vld [vmem:[%s1980 + $0x28] sm:$0xf]
  %v2065 = vld [vmem:[%s1980 + $0x2c] sm:$0x1]
  %v2066 = vld [vmem:[%s1980 + $0x30] sm:$0xf]
  %v2067 = vld [vmem:[%s1980 + $0x34] sm:$0x1]
  %v2068 = vld [vmem:[%s1980 + $0x38] sm:$0xf]
  %v2069 = vld [vmem:[%s1980 + $0x3c] sm:$0x1]
  %v2071 = vshrl.u32 %v2054, 16
  %v2073 = vrot.slane %v2071, 4
  %v2074 = vshll.u32 %v2054, 16
  %v2076 = vrot.slane %v2074, 5
  %v2077 = vor.u32 %v2073, %v2076
  %v2078 = vrot.slane %v2077, 4
  %v2080 = vshll.u32 %v2055, 16
  %v2082 = vrot.slane %v2080, 5
  %v2083 = vsel %vm105, %v2078, %v2082
  %v2085 = vshrl.u32 %v2056, 16
  %v2087 = vrot.slane %v2085, 4
  %v2088 = vshll.u32 %v2056, 16
  %v2090 = vrot.slane %v2088, 5
  %v2091 = vor.u32 %v2087, %v2090
  %v2092 = vrot.slane %v2091, 4
  %v2094 = vshll.u32 %v2057, 16
  %v2096 = vrot.slane %v2094, 5
  %v2097 = vsel %vm105, %v2092, %v2096
  %v2099 = vshrl.u32 %v2058, 16
  %v2101 = vrot.slane %v2099, 4
  %v2102 = vshll.u32 %v2058, 16
  %v2104 = vrot.slane %v2102, 5
  %v2105 = vor.u32 %v2101, %v2104
  %v2106 = vrot.slane %v2105, 4
  %v2108 = vshll.u32 %v2059, 16
  %v2110 = vrot.slane %v2108, 5
  %v2111 = vsel %vm105, %v2106, %v2110
  %v2113 = vshrl.u32 %v2060, 16
  %v2115 = vrot.slane %v2113, 4
  %v2116 = vshll.u32 %v2060, 16
  %v2118 = vrot.slane %v2116, 5
  %v2119 = vor.u32 %v2115, %v2118
  %v2120 = vrot.slane %v2119, 4
  %v2122 = vshll.u32 %v2061, 16
  %v2124 = vrot.slane %v2122, 5
  %v2125 = vsel %vm105, %v2120, %v2124
  %v2127 = vshrl.u32 %v2062, 16
  %v2129 = vrot.slane %v2127, 4
  %v2130 = vshll.u32 %v2062, 16
  %v2132 = vrot.slane %v2130, 5
  %v2133 = vor.u32 %v2129, %v2132
  %v2134 = vrot.slane %v2133, 4
  %v2136 = vshll.u32 %v2063, 16
  %v2138 = vrot.slane %v2136, 5
  %v2139 = vsel %vm105, %v2134, %v2138
  %v2141 = vshrl.u32 %v2064, 16
  %v2143 = vrot.slane %v2141, 4
  %v2144 = vshll.u32 %v2064, 16
  %v2146 = vrot.slane %v2144, 5
  %v2147 = vor.u32 %v2143, %v2146
  %v2148 = vrot.slane %v2147, 4
  %v2150 = vshll.u32 %v2065, 16
  %v2152 = vrot.slane %v2150, 5
  %v2153 = vsel %vm105, %v2148, %v2152
  %v2155 = vshrl.u32 %v2066, 16
  %v2157 = vrot.slane %v2155, 4
  %v2158 = vshll.u32 %v2066, 16
  %v2160 = vrot.slane %v2158, 5
  %v2161 = vor.u32 %v2157, %v2160
  %v2162 = vrot.slane %v2161, 4
  %v2164 = vshll.u32 %v2067, 16
  %v2166 = vrot.slane %v2164, 5
  %v2167 = vsel %vm105, %v2162, %v2166
  %v2169 = vshrl.u32 %v2068, 16
  %v2171 = vrot.slane %v2169, 4
  %v2172 = vshll.u32 %v2068, 16
  %v2174 = vrot.slane %v2172, 5
  %v2175 = vor.u32 %v2171, %v2174
  %v2176 = vrot.slane %v2175, 4
  %v2178 = vshll.u32 %v2069, 16
  %v2180 = vrot.slane %v2178, 5
  %v2181 = vsel %vm105, %v2176, %v2180
  %v2182 = vunpack.c.l.b16 %v2083
  %v2183 = vunpack.c.l.b16 %v2097
  %v2184 = vunpack.c.l.b16 %v2111
  %v2185 = vunpack.c.l.b16 %v2125
  %v2186 = vunpack.c.l.b16 %v2139
  %v2187 = vunpack.c.l.b16 %v2153
  %v2188 = vunpack.c.l.b16 %v2167
  %v2189 = vunpack.c.l.b16 %v2181
  %v2190 = vpack.c.b16 %v2183, %v2182
  %v2191 = vpack.c.b16 %v2185, %v2184
  %v2192 = vpack.c.b16 %v2187, %v2186
  %v2193 = vpack.c.b16 %v2189, %v2188
  %2198 = vst [vmem:[#allocation2 + $0x10] sm:$0xff] %v2190
  %2199 = vst [vmem:[#allocation2 + $0x28] sm:$0xff] %v2191
  %2200 = vst [vmem:[#allocation2 + $0x40] sm:$0xff] %v2192
  %2201 = vst [vmem:[#allocation2 + $0x58] sm:$0xff] %v2193
  %s2202 = scalar_lea.vmem %s0, 296
  %v2203 = vld [vmem:[%s2202] sm:$0xf]
  %v2204 = vld [vmem:[%s2202 + $0x8] sm:$0xf]
  %v2205 = vld [vmem:[%s2202 + $0x10] sm:$0xf]
  %v2206 = vld [vmem:[%s2202 + $0x18] sm:$0xf]
  %v2207 = vld [vmem:[%s2202 + $0x20] sm:$0xf]
  %v2208 = vld [vmem:[%s2202 + $0x28] sm:$0xf]
  %v2209 = vld [vmem:[%s2202 + $0x30] sm:$0xf]
  %v2210 = vld [vmem:[%s2202 + $0x38] sm:$0xf]
  %v2219 = vunpack.c.l.b16 %v2203
  %v2220 = vunpack.c.l.b16 %v2204
  %v2221 = vunpack.c.l.b16 %v2205
  %v2222 = vunpack.c.l.b16 %v2206
  %v2223 = vunpack.c.l.b16 %v2207
  %v2224 = vunpack.c.l.b16 %v2208
  %v2225 = vunpack.c.l.b16 %v2209
  %v2226 = vunpack.c.l.b16 %v2210
  %v2227 = vpack.c.b16 %v2220, %v2219
  %v2228 = vpack.c.b16 %v2222, %v2221
  %v2229 = vpack.c.b16 %v2224, %v2223
  %v2230 = vpack.c.b16 %v2226, %v2225
  %2235 = vst [vmem:[#allocation2 + $0x60] sm:$0xff] %v2227
  %2236 = vst [vmem:[#allocation2 + $0x78] sm:$0xff] %v2228
  %2237 = vst [vmem:[#allocation2 + $0x90] sm:$0xff] %v2229
  %2238 = vst [vmem:[#allocation2 + $0xa8] sm:$0xff] %v2230
  %s2239 = scalar_lea.vmem %s0, 368
  %v2240 = vld [vmem:[%s2239] sm:$0xf]
  %v2241 = vld [vmem:[%s2239 + $0x8] sm:$0xf]
  %v2242 = vld [vmem:[%s2239 + $0x10] sm:$0xf]
  %v2243 = vld [vmem:[%s2239 + $0x18] sm:$0xf]
  %v2244 = vld [vmem:[%s2239 + $0x20] sm:$0xf]
  %v2245 = vld [vmem:[%s2239 + $0x28] sm:$0xf]
  %v2246 = vld [vmem:[%s2239 + $0x30] sm:$0xf]
  %v2247 = vld [vmem:[%s2239 + $0x38] sm:$0xf]
  %v2256 = vunpack.c.l.b16 %v2240
  %v2257 = vunpack.c.l.b16 %v2241
  %v2258 = vunpack.c.l.b16 %v2242
  %v2259 = vunpack.c.l.b16 %v2243
  %v2260 = vunpack.c.l.b16 %v2244
  %v2261 = vunpack.c.l.b16 %v2245
  %v2262 = vunpack.c.l.b16 %v2246
  %v2263 = vunpack.c.l.b16 %v2247
  %v2264 = vpack.c.b16 %v2257, %v2256
  %v2265 = vpack.c.b16 %v2259, %v2258
  %v2266 = vpack.c.b16 %v2261, %v2260
  %v2267 = vpack.c.b16 %v2263, %v2262
  %2272 = vst [vmem:[#allocation2 + $0x68] sm:$0xff] %v2264
  %2273 = vst [vmem:[#allocation2 + $0x80] sm:$0xff] %v2265
  %2274 = vst [vmem:[#allocation2 + $0x98] sm:$0xff] %v2266
  %2275 = vst [vmem:[#allocation2 + $0xb0] sm:$0xff] %v2267
  %v2276 = vld [vmem:[%s2202] sm:$0xf]
  %v2277 = vld [vmem:[%s2202 + $0x4] sm:$0x1]
  %v2278 = vld [vmem:[%s2202 + $0x8] sm:$0xf]
  %v2279 = vld [vmem:[%s2202 + $0xc] sm:$0x1]
  %v2280 = vld [vmem:[%s2202 + $0x10] sm:$0xf]
  %v2281 = vld [vmem:[%s2202 + $0x14] sm:$0x1]
  %v2282 = vld [vmem:[%s2202 + $0x18] sm:$0xf]
  %v2283 = vld [vmem:[%s2202 + $0x1c] sm:$0x1]
  %v2284 = vld [vmem:[%s2202 + $0x20] sm:$0xf]
  %v2285 = vld [vmem:[%s2202 + $0x24] sm:$0x1]
  %v2286 = vld [vmem:[%s2202 + $0x28] sm:$0xf]
  %v2287 = vld [vmem:[%s2202 + $0x2c] sm:$0x1]
  %v2288 = vld [vmem:[%s2202 + $0x30] sm:$0xf]
  %v2289 = vld [vmem:[%s2202 + $0x34] sm:$0x1]
  %v2290 = vld [vmem:[%s2202 + $0x38] sm:$0xf]
  %v2291 = vld [vmem:[%s2202 + $0x3c] sm:$0x1]
  %v2293 = vshrl.u32 %v2276, 16
  %v2295 = vrot.slane %v2293, 4
  %v2296 = vshll.u32 %v2276, 16
  %v2298 = vrot.slane %v2296, 5
  %v2299 = vor.u32 %v2295, %v2298
  %v2300 = vrot.slane %v2299, 4
  %v2302 = vshll.u32 %v2277, 16
  %v2304 = vrot.slane %v2302, 5
  %v2305 = vsel %vm105, %v2300, %v2304
  %v2307 = vshrl.u32 %v2278, 16
  %v2309 = vrot.slane %v2307, 4
  %v2310 = vshll.u32 %v2278, 16
  %v2312 = vrot.slane %v2310, 5
  %v2313 = vor.u32 %v2309, %v2312
  %v2314 = vrot.slane %v2313, 4
  %v2316 = vshll.u32 %v2279, 16
  %v2318 = vrot.slane %v2316, 5
  %v2319 = vsel %vm105, %v2314, %v2318
  %v2321 = vshrl.u32 %v2280, 16
  %v2323 = vrot.slane %v2321, 4
  %v2324 = vshll.u32 %v2280, 16
  %v2326 = vrot.slane %v2324, 5
  %v2327 = vor.u32 %v2323, %v2326
  %v2328 = vrot.slane %v2327, 4
  %v2330 = vshll.u32 %v2281, 16
  %v2332 = vrot.slane %v2330, 5
  %v2333 = vsel %vm105, %v2328, %v2332
  %v2335 = vshrl.u32 %v2282, 16
  %v2337 = vrot.slane %v2335, 4
  %v2338 = vshll.u32 %v2282, 16
  %v2340 = vrot.slane %v2338, 5
  %v2341 = vor.u32 %v2337, %v2340
  %v2342 = vrot.slane %v2341, 4
  %v2344 = vshll.u32 %v2283, 16
  %v2346 = vrot.slane %v2344, 5
  %v2347 = vsel %vm105, %v2342, %v2346
  %v2349 = vshrl.u32 %v2284, 16
  %v2351 = vrot.slane %v2349, 4
  %v2352 = vshll.u32 %v2284, 16
  %v2354 = vrot.slane %v2352, 5
  %v2355 = vor.u32 %v2351, %v2354
  %v2356 = vrot.slane %v2355, 4
  %v2358 = vshll.u32 %v2285, 16
  %v2360 = vrot.slane %v2358, 5
  %v2361 = vsel %vm105, %v2356, %v2360
  %v2363 = vshrl.u32 %v2286, 16
  %v2365 = vrot.slane %v2363, 4
  %v2366 = vshll.u32 %v2286, 16
  %v2368 = vrot.slane %v2366, 5
  %v2369 = vor.u32 %v2365, %v2368
  %v2370 = vrot.slane %v2369, 4
  %v2372 = vshll.u32 %v2287, 16
  %v2374 = vrot.slane %v2372, 5
  %v2375 = vsel %vm105, %v2370, %v2374
  %v2377 = vshrl.u32 %v2288, 16
  %v2379 = vrot.slane %v2377, 4
  %v2380 = vshll.u32 %v2288, 16
  %v2382 = vrot.slane %v2380, 5
  %v2383 = vor.u32 %v2379, %v2382
  %v2384 = vrot.slane %v2383, 4
  %v2386 = vshll.u32 %v2289, 16
  %v2388 = vrot.slane %v2386, 5
  %v2389 = vsel %vm105, %v2384, %v2388
  %v2391 = vshrl.u32 %v2290, 16
  %v2393 = vrot.slane %v2391, 4
  %v2394 = vshll.u32 %v2290, 16
  %v2396 = vrot.slane %v2394, 5
  %v2397 = vor.u32 %v2393, %v2396
  %v2398 = vrot.slane %v2397, 4
  %v2400 = vshll.u32 %v2291, 16
  %v2402 = vrot.slane %v2400, 5
  %v2403 = vsel %vm105, %v2398, %v2402
  %v2404 = vunpack.c.l.b16 %v2305
  %v2405 = vunpack.c.l.b16 %v2319
  %v2406 = vunpack.c.l.b16 %v2333
  %v2407 = vunpack.c.l.b16 %v2347
  %v2408 = vunpack.c.l.b16 %v2361
  %v2409 = vunpack.c.l.b16 %v2375
  %v2410 = vunpack.c.l.b16 %v2389
  %v2411 = vunpack.c.l.b16 %v2403
  %v2412 = vpack.c.b16 %v2405, %v2404
  %v2413 = vpack.c.b16 %v2407, %v2406
  %v2414 = vpack.c.b16 %v2409, %v2408
  %v2415 = vpack.c.b16 %v2411, %v2410
  %2420 = vst [vmem:[#allocation2 + $0x70] sm:$0xff] %v2412
  %2421 = vst [vmem:[#allocation2 + $0x88] sm:$0xff] %v2413
  %2422 = vst [vmem:[#allocation2 + $0xa0] sm:$0xff] %v2414
  %2423 = vst [vmem:[#allocation2 + $0xb8] sm:$0xff] %v2415
  %v2424 = vld [vmem:[#allocation2] sm:$0xff]
  %v2425 = vld [vmem:[#allocation2 + $0x8] sm:$0xff]
  %v2426 = vld [vmem:[#allocation2 + $0x10] sm:$0xff]
  %v2427 = vld [vmem:[#allocation2 + $0x18] sm:$0xff]
  %v2428 = vld [vmem:[#allocation2 + $0x20] sm:$0xff]
  %v2429 = vld [vmem:[#allocation2 + $0x28] sm:$0xff]
  %v2430 = vld [vmem:[#allocation2 + $0x30] sm:$0xff]
  %v2431 = vld [vmem:[#allocation2 + $0x38] sm:$0xff]
  %v2432 = vld [vmem:[#allocation2 + $0x40] sm:$0xff]
  %v2433 = vld [vmem:[#allocation2 + $0x48] sm:$0xff]
  %v2434 = vld [vmem:[#allocation2 + $0x50] sm:$0xff]
  %v2435 = vld [vmem:[#allocation2 + $0x58] sm:$0xff]
  %v2436 = vld [vmem:[#allocation2 + $0x60] sm:$0xff]
  %v2437 = vld [vmem:[#allocation2 + $0x68] sm:$0xff]
  %v2438 = vld [vmem:[#allocation2 + $0x70] sm:$0xff]
  %v2439 = vld [vmem:[#allocation2 + $0x78] sm:$0xff]
  %v2440 = vld [vmem:[#allocation2 + $0x80] sm:$0xff]
  %v2441 = vld [vmem:[#allocation2 + $0x88] sm:$0xff]
  %v2442 = vld [vmem:[#allocation2 + $0x90] sm:$0xff]
  %v2443 = vld [vmem:[#allocation2 + $0x98] sm:$0xff]
  %v2444 = vld [vmem:[#allocation2 + $0xa0] sm:$0xff]
  %v2445 = vld [vmem:[#allocation2 + $0xa8] sm:$0xff]
  %v2446 = vld [vmem:[#allocation2 + $0xb0] sm:$0xff]
  %v2447 = vld [vmem:[#allocation2 + $0xb8] sm:$0xff]
  %v2448 = vld [vmem:[%s1 + $0x300] sm:$0xff]
  %v2449 = vld [vmem:[%s1 + $0x308] sm:$0xff]
  %v2450 = vld [vmem:[%s1 + $0x310] sm:$0xff]
  %v2451 = vld [vmem:[%s1 + $0x318] sm:$0xff]
  %v2452 = vld [vmem:[%s1 + $0x320] sm:$0xff]
  %v2453 = vld [vmem:[%s1 + $0x328] sm:$0xff]
  %v2454 = vld [vmem:[%s1 + $0x330] sm:$0xff]
  %v2455 = vld [vmem:[%s1 + $0x338] sm:$0xff]
  %v2456 = vld [vmem:[%s1 + $0x340] sm:$0xff]
  %v2457 = vld [vmem:[%s1 + $0x348] sm:$0xff]
  %v2458 = vld [vmem:[%s1 + $0x350] sm:$0xff]
  %v2459 = vld [vmem:[%s1 + $0x358] sm:$0xff]
  %v2460 = vld [vmem:[%s1 + $0x360] sm:$0xff]
  %v2461 = vld [vmem:[%s1 + $0x368] sm:$0xff]
  %v2462 = vld [vmem:[%s1 + $0x370] sm:$0xff]
  %v2463 = vld [vmem:[%s1 + $0x378] sm:$0xff]
  %v2464 = vld [vmem:[%s1 + $0x380] sm:$0xff]
  %v2465 = vld [vmem:[%s1 + $0x388] sm:$0xff]
  %v2466 = vld [vmem:[%s1 + $0x390] sm:$0xff]
  %v2467 = vld [vmem:[%s1 + $0x398] sm:$0xff]
  %v2468 = vld [vmem:[%s1 + $0x3a0] sm:$0xff]
  %v2469 = vld [vmem:[%s1 + $0x3a8] sm:$0xff]
  %v2470 = vld [vmem:[%s1 + $0x3b0] sm:$0xff]
  %v2471 = vld [vmem:[%s1 + $0x3b8] sm:$0xff]
  %v2472 = vld [vmem:[%s1 + $0x3c0] sm:$0xff]
  %v2473 = vld [vmem:[%s1 + $0x3c8] sm:$0xff]
  %v2474 = vld [vmem:[%s1 + $0x3d0] sm:$0xff]
  %v2475 = vld [vmem:[%s1 + $0x3d8] sm:$0xff]
  %v2476 = vld [vmem:[%s1 + $0x3e0] sm:$0xff]
  %v2477 = vld [vmem:[%s1 + $0x3e8] sm:$0xff]
  %v2478 = vld [vmem:[%s1 + $0x3f0] sm:$0xff]
  %v2479 = vld [vmem:[%s1 + $0x3f8] sm:$0xff]
  %v2480 = vld [vmem:[%s1 + $0x400] sm:$0xff]
  %v2481 = vld [vmem:[%s1 + $0x408] sm:$0xff]
  %v2482 = vld [vmem:[%s1 + $0x410] sm:$0xff]
  %v2483 = vld [vmem:[%s1 + $0x418] sm:$0xff]
  %v2484 = vld [vmem:[%s1 + $0x420] sm:$0xff]
  %v2485 = vld [vmem:[%s1 + $0x428] sm:$0xff]
  %v2486 = vld [vmem:[%s1 + $0x430] sm:$0xff]
  %v2487 = vld [vmem:[%s1 + $0x438] sm:$0xff]
  %v2488 = vld [vmem:[%s1 + $0x440] sm:$0xff]
  %v2489 = vld [vmem:[%s1 + $0x448] sm:$0xff]
  %v2490 = vld [vmem:[%s1 + $0x450] sm:$0xff]
  %v2491 = vld [vmem:[%s1 + $0x458] sm:$0xff]
  %v2492 = vld [vmem:[%s1 + $0x460] sm:$0xff]
  %v2493 = vld [vmem:[%s1 + $0x468] sm:$0xff]
  %v2494 = vld [vmem:[%s1 + $0x470] sm:$0xff]
  %v2495 = vld [vmem:[%s1 + $0x478] sm:$0xff]
  %v2544 = vunpack.c.l.b16 %v2448
  %v2545 = vunpack.c.h.b16 %v2448
  %v2546 = vunpack.c.l.b16 %v2449
  %v2547 = vunpack.c.h.b16 %v2449
  %v2548 = vunpack.c.l.b16 %v2450
  %v2549 = vunpack.c.h.b16 %v2450
  %v2550 = vunpack.c.l.b16 %v2451
  %v2551 = vunpack.c.h.b16 %v2451
  %v2552 = vunpack.c.l.b16 %v2452
  %v2553 = vunpack.c.h.b16 %v2452
  %v2554 = vunpack.c.l.b16 %v2453
  %v2555 = vunpack.c.h.b16 %v2453
  %v2556 = vunpack.c.l.b16 %v2454
  %v2557 = vunpack.c.h.b16 %v2454
  %v2558 = vunpack.c.l.b16 %v2455
  %v2559 = vunpack.c.h.b16 %v2455
  %v2560 = vunpack.c.l.b16 %v2456
  %v2561 = vunpack.c.h.b16 %v2456
  %v2562 = vunpack.c.l.b16 %v2457
  %v2563 = vunpack.c.h.b16 %v2457
  %v2564 = vunpack.c.l.b16 %v2458
  %v2565 = vunpack.c.h.b16 %v2458
  %v2566 = vunpack.c.l.b16 %v2459
  %v2567 = vunpack.c.h.b16 %v2459
  %v2568 = vunpack.c.l.b16 %v2460
  %v2569 = vunpack.c.h.b16 %v2460
  %v2570 = vunpack.c.l.b16 %v2461
  %v2571 = vunpack.c.h.b16 %v2461
  %v2572 = vunpack.c.l.b16 %v2462
  %v2573 = vunpack.c.h.b16 %v2462
  %v2574 = vunpack.c.l.b16 %v2463
  %v2575 = vunpack.c.h.b16 %v2463
  %v2576 = vunpack.c.l.b16 %v2464
  %v2577 = vunpack.c.h.b16 %v2464
  %v2578 = vunpack.c.l.b16 %v2465
  %v2579 = vunpack.c.h.b16 %v2465
  %v2580 = vunpack.c.l.b16 %v2466
  %v2581 = vunpack.c.h.b16 %v2466
  %v2582 = vunpack.c.l.b16 %v2467
  %v2583 = vunpack.c.h.b16 %v2467
  %v2584 = vunpack.c.l.b16 %v2468
  %v2585 = vunpack.c.h.b16 %v2468
  %v2586 = vunpack.c.l.b16 %v2469
  %v2587 = vunpack.c.h.b16 %v2469
  %v2588 = vunpack.c.l.b16 %v2470
  %v2589 = vunpack.c.h.b16 %v2470
  %v2590 = vunpack.c.l.b16 %v2471
  %v2591 = vunpack.c.h.b16 %v2471
  %v2592 = vunpack.c.l.b16 %v2472
  %v2593 = vunpack.c.h.b16 %v2472
  %v2594 = vunpack.c.l.b16 %v2473
  %v2595 = vunpack.c.h.b16 %v2473
  %v2596 = vunpack.c.l.b16 %v2474
  %v2597 = vunpack.c.h.b16 %v2474
  %v2598 = vunpack.c.l.b16 %v2475
  %v2599 = vunpack.c.h.b16 %v2475
  %v2600 = vunpack.c.l.b16 %v2476
  %v2601 = vunpack.c.h.b16 %v2476
  %v2602 = vunpack.c.l.b16 %v2477
  %v2603 = vunpack.c.h.b16 %v2477
  %v2604 = vunpack.c.l.b16 %v2478
  %v2605 = vunpack.c.h.b16 %v2478
  %v2606 = vunpack.c.l.b16 %v2479
  %v2607 = vunpack.c.h.b16 %v2479
  %v2608 = vunpack.c.l.b16 %v2480
  %v2609 = vunpack.c.h.b16 %v2480
  %v2610 = vunpack.c.l.b16 %v2481
  %v2611 = vunpack.c.h.b16 %v2481
  %v2612 = vunpack.c.l.b16 %v2482
  %v2613 = vunpack.c.h.b16 %v2482
  %v2614 = vunpack.c.l.b16 %v2483
  %v2615 = vunpack.c.h.b16 %v2483
  %v2616 = vunpack.c.l.b16 %v2484
  %v2617 = vunpack.c.h.b16 %v2484
  %v2618 = vunpack.c.l.b16 %v2485
  %v2619 = vunpack.c.h.b16 %v2485
  %v2620 = vunpack.c.l.b16 %v2486
  %v2621 = vunpack.c.h.b16 %v2486
  %v2622 = vunpack.c.l.b16 %v2487
  %v2623 = vunpack.c.h.b16 %v2487
  %v2624 = vunpack.c.l.b16 %v2488
  %v2625 = vunpack.c.h.b16 %v2488
  %v2626 = vunpack.c.l.b16 %v2489
  %v2627 = vunpack.c.h.b16 %v2489
  %v2628 = vunpack.c.l.b16 %v2490
  %v2629 = vunpack.c.h.b16 %v2490
  %v2630 = vunpack.c.l.b16 %v2491
  %v2631 = vunpack.c.h.b16 %v2491
  %v2632 = vunpack.c.l.b16 %v2492
  %v2633 = vunpack.c.h.b16 %v2492
  %v2634 = vunpack.c.l.b16 %v2493
  %v2635 = vunpack.c.h.b16 %v2493
  %v2636 = vunpack.c.l.b16 %v2494
  %v2637 = vunpack.c.h.b16 %v2494
  %v2638 = vunpack.c.l.b16 %v2495
  %v2639 = vunpack.c.h.b16 %v2495
  %v2640 = vpack.c.b16 %v2546, %v2544
  %v2641 = vpack.c.b16 %v2547, %v2545
  %v2642 = vpack.c.b16 %v2550, %v2548
  %v2643 = vpack.c.b16 %v2551, %v2549
  %v2644 = vpack.c.b16 %v2554, %v2552
  %v2645 = vpack.c.b16 %v2555, %v2553
  %v2646 = vpack.c.b16 %v2558, %v2556
  %v2647 = vpack.c.b16 %v2559, %v2557
  %v2648 = vpack.c.b16 %v2562, %v2560
  %v2649 = vpack.c.b16 %v2563, %v2561
  %v2650 = vpack.c.b16 %v2566, %v2564
  %v2651 = vpack.c.b16 %v2567, %v2565
  %v2652 = vpack.c.b16 %v2570, %v2568
  %v2653 = vpack.c.b16 %v2571, %v2569
  %v2654 = vpack.c.b16 %v2574, %v2572
  %v2655 = vpack.c.b16 %v2575, %v2573
  %v2656 = vpack.c.b16 %v2578, %v2576
  %v2657 = vpack.c.b16 %v2579, %v2577
  %v2658 = vpack.c.b16 %v2582, %v2580
  %v2659 = vpack.c.b16 %v2583, %v2581
  %v2660 = vpack.c.b16 %v2586, %v2584
  %v2661 = vpack.c.b16 %v2587, %v2585
  %v2662 = vpack.c.b16 %v2590, %v2588
  %v2663 = vpack.c.b16 %v2591, %v2589
  %v2664 = vpack.c.b16 %v2594, %v2592
  %v2665 = vpack.c.b16 %v2595, %v2593
  %v2666 = vpack.c.b16 %v2598, %v2596
  %v2667 = vpack.c.b16 %v2599, %v2597
  %v2668 = vpack.c.b16 %v2602, %v2600
  %v2669 = vpack.c.b16 %v2603, %v2601
  %v2670 = vpack.c.b16 %v2606, %v2604
  %v2671 = vpack.c.b16 %v2607, %v2605
  %v2672 = vpack.c.b16 %v2610, %v2608
  %v2673 = vpack.c.b16 %v2611, %v2609
  %v2674 = vpack.c.b16 %v2614, %v2612
  %v2675 = vpack.c.b16 %v2615, %v2613
  %v2676 = vpack.c.b16 %v2618, %v2616
  %v2677 = vpack.c.b16 %v2619, %v2617
  %v2678 = vpack.c.b16 %v2622, %v2620
  %v2679 = vpack.c.b16 %v2623, %v2621
  %v2680 = vpack.c.b16 %v2626, %v2624
  %v2681 = vpack.c.b16 %v2627, %v2625
  %v2682 = vpack.c.b16 %v2630, %v2628
  %v2683 = vpack.c.b16 %v2631, %v2629
  %v2684 = vpack.c.b16 %v2634, %v2632
  %v2685 = vpack.c.b16 %v2635, %v2633
  %v2686 = vpack.c.b16 %v2638, %v2636
  %v2687 = vpack.c.b16 %v2639, %v2637
  %2736 = vmatprep.subr.bf16.mxu0 %v2641
  %2737 = vmatpush1.bf16.msra.mxu0 %v2640
  %2738 = vmatprep.subr.bf16.mxu0 %v2643
  %2739 = vmatpush1.bf16.msra.mxu0 %v2642
  %2740 = vmatprep.subr.bf16.mxu0 %v2645
  %2741 = vmatpush1.bf16.msra.mxu0 %v2644
  %2742 = vmatprep.subr.bf16.mxu0 %v2647
  %2743 = vmatpush1.bf16.msra.mxu0 %v2646
  %2744 = vmatprep.subr.bf16.mxu0 %v2649
  %2745 = vmatpush1.bf16.msra.mxu0 %v2648
  %2746 = vmatprep.subr.bf16.mxu0 %v2651
  %2747 = vmatpush1.bf16.msra.mxu0 %v2650
  %2748 = vmatprep.subr.bf16.mxu0 %v2653
  %2749 = vmatpush1.bf16.msra.mxu0 %v2652
  %2750 = vmatprep.subr.bf16.mxu0 %v2655
  %2751 = vmatpush1.bf16.msra.mxu0 %v2654
  %2752 = vmatprep.subr.bf16.mxu0 %v2657
  %2753 = vmatpush1.bf16.msra.mxu0 %v2656
  %2754 = vmatprep.subr.bf16.mxu0 %v2659
  %2755 = vmatpush1.bf16.msra.mxu0 %v2658
  %2756 = vmatprep.subr.bf16.mxu0 %v2661
  %2757 = vmatpush1.bf16.msra.mxu0 %v2660
  %2758 = vmatprep.subr.bf16.mxu0 %v2663
  %2759 = vmatpush1.bf16.msra.mxu0 %v2662
  %2760 = vmatprep.subr.bf16.mxu0 %v2665
  %2761 = vmatpush1.bf16.msra.mxu0 %v2664
  %2762 = vmatprep.subr.bf16.mxu0 %v2667
  %2763 = vmatpush1.bf16.msra.mxu0 %v2666
  %2764 = vmatprep.subr.bf16.mxu0 %v2669
  %2765 = vmatpush1.bf16.msra.mxu0 %v2668
  %2766 = vmatprep.subr.bf16.mxu0 %v2671
  %2767 = vmatpush1.bf16.msra.mxu0 %v2670
  %2768 = vmatprep.mubr.bf16.mxu0 %v2425
  %2769 = vmatmul.mubr.bf16.gmra.mrb[0].mxu0 %v2424
  %v2770 = vpop.f32.mrb[0].mxu0
  %v2771 = vadd.f32 0.0, %v2770
  %v2772 = vpop.f32.mrb[0].mxu0
  %v2773 = vadd.f32 0.0, %v2772
  %v2774 = vpop.f32.mrb[0].mxu0
  %v2775 = vadd.f32 0.0, %v2774
  %v2776 = vpop.f32.mrb[0].mxu0
  %v2777 = vadd.f32 0.0, %v2776
  %2778 = vmatprep.mubr.bf16.mxu0 %v2428
  %2779 = vmatmul.mubr.bf16.gmra.mrb[0].mxu0 %v2427
  %v2780 = vpop.f32.mrb[0].mxu0
  %v2781 = vadd.f32 0.0, %v2780
  %v2782 = vpop.f32.mrb[0].mxu0
  %v2783 = vadd.f32 0.0, %v2782
  %v2784 = vpop.f32.mrb[0].mxu0
  %v2785 = vadd.f32 0.0, %v2784
  %v2786 = vpop.f32.mrb[0].mxu0
  %v2787 = vadd.f32 0.0, %v2786
  %2788 = vmatprep.mubr.bf16.mxu0 %v2431
  %2789 = vmatmul.mubr.bf16.gmra.mrb[0].mxu0 %v2430
  %v2790 = vpop.f32.mrb[0].mxu0
  %v2791 = vadd.f32 0.0, %v2790
  %v2792 = vpop.f32.mrb[0].mxu0
  %v2793 = vadd.f32 0.0, %v2792
  %v2794 = vpop.f32.mrb[0].mxu0
  %v2795 = vadd.f32 0.0, %v2794
  %v2796 = vpop.f32.mrb[0].mxu0
  %v2797 = vadd.f32 0.0, %v2796
  %2798 = vmatprep.mubr.bf16.mxu0 %v2434
  %2799 = vmatmul.mubr.bf16.gmra.mrb[0].mxu0 %v2433
  %v2800 = vpop.f32.mrb[0].mxu0
  %v2801 = vadd.f32 0.0, %v2800
  %v2802 = vpop.f32.mrb[0].mxu0
  %v2803 = vadd.f32 0.0, %v2802
  %v2804 = vpop.f32.mrb[0].mxu0
  %v2805 = vadd.f32 0.0, %v2804
  %v2806 = vpop.f32.mrb[0].mxu0
  %v2807 = vadd.f32 0.0, %v2806
  %2808 = vmatprep.mubr.bf16.mxu0 %v2437
  %2809 = vmatmul.mubr.bf16.gmra.mrb[0].mxu0 %v2436
  %v2810 = vpop.f32.mrb[0].mxu0
  %v2811 = vadd.f32 0.0, %v2810
  %v2812 = vpop.f32.mrb[0].mxu0
  %v2813 = vadd.f32 0.0, %v2812
  %v2814 = vpop.f32.mrb[0].mxu0
  %v2815 = vadd.f32 0.0, %v2814
  %v2816 = vpop.f32.mrb[0].mxu0
  %v2817 = vadd.f32 0.0, %v2816
  %2818 = vmatprep.mubr.bf16.mxu0 %v2440
  %2819 = vmatmul.mubr.bf16.gmra.mrb[0].mxu0 %v2439
  %v2820 = vpop.f32.mrb[0].mxu0
  %v2821 = vadd.f32 0.0, %v2820
  %v2822 = vpop.f32.mrb[0].mxu0
  %v2823 = vadd.f32 0.0, %v2822
  %v2824 = vpop.f32.mrb[0].mxu0
  %v2825 = vadd.f32 0.0, %v2824
  %v2826 = vpop.f32.mrb[0].mxu0
  %v2827 = vadd.f32 0.0, %v2826
  %2828 = vmatprep.mubr.bf16.mxu0 %v2443
  %2829 = vmatmul.mubr.bf16.gmra.mrb[0].mxu0 %v2442
  %v2830 = vpop.f32.mrb[0].mxu0
  %v2831 = vadd.f32 0.0, %v2830
  %v2832 = vpop.f32.mrb[0].mxu0
  %v2833 = vadd.f32 0.0, %v2832
  %v2834 = vpop.f32.mrb[0].mxu0
  %v2835 = vadd.f32 0.0, %v2834
  %v2836 = vpop.f32.mrb[0].mxu0
  %v2837 = vadd.f32 0.0, %v2836
  %2838 = vmatprep.mubr.bf16.mxu0 %v2446
  %2839 = vmatmul.mubr.bf16.gmra.mrb[0].mxu0 %v2445
  %v2840 = vpop.f32.mrb[0].mxu0
  %v2841 = vadd.f32 0.0, %v2840
  %v2842 = vpop.f32.mrb[0].mxu0
  %v2843 = vadd.f32 0.0, %v2842
  %v2844 = vpop.f32.mrb[0].mxu0
  %v2845 = vadd.f32 0.0, %v2844
  %v2846 = vpop.f32.mrb[0].mxu0
  %v2847 = vadd.f32 0.0, %v2846
  %2848 = vdwg.mxu0
  %2849 = vmatprep.subr.bf16.mxu0 %v2673
  %2850 = vmatpush1.bf16.msra.mxu0 %v2672
  %2851 = vmatprep.subr.bf16.mxu0 %v2675
  %2852 = vmatpush1.bf16.msra.mxu0 %v2674
  %2853 = vmatprep.subr.bf16.mxu0 %v2677
  %2854 = vmatpush1.bf16.msra.mxu0 %v2676
  %2855 = vmatprep.subr.bf16.mxu0 %v2679
  %2856 = vmatpush1.bf16.msra.mxu0 %v2678
  %2857 = vmatprep.subr.bf16.mxu0 %v2681
  %2858 = vmatpush1.bf16.msra.mxu0 %v2680
  %2859 = vmatprep.subr.bf16.mxu0 %v2683
  %2860 = vmatpush1.bf16.msra.mxu0 %v2682
  %2861 = vmatprep.subr.bf16.mxu0 %v2685
  %2862 = vmatpush1.bf16.msra.mxu0 %v2684
  %2863 = vmatprep.subr.bf16.mxu0 %v2687
  %2864 = vmatpush1.bf16.msra.mxu0 %v2686
  %2865 = vmatprep.subr.bf16.mxu0 0
  %2866 = vmatpush1.bf16.msra.mxu0 0
  %2867 = vmatprep.subr.bf16.mxu0 0
  %2868 = vmatpush1.bf16.msra.mxu0 0
  %2869 = vmatprep.subr.bf16.mxu0 0
  %2870 = vmatpush1.bf16.msra.mxu0 0
  %2871 = vmatprep.subr.bf16.mxu0 0
  %2872 = vmatpush1.bf16.msra.mxu0 0
  %2873 = vmatprep.subr.bf16.mxu0 0
  %2874 = vmatpush1.bf16.msra.mxu0 0
  %2875 = vmatprep.subr.bf16.mxu0 0
  %2876 = vmatpush1.bf16.msra.mxu0 0
  %2877 = vmatprep.subr.bf16.mxu0 0
  %2878 = vmatpush1.bf16.msra.mxu0 0
  %2879 = vmatprep.subr.bf16.mxu0 0
  %2880 = vmatpush1.bf16.msra.mxu0 0
  %2881 = vmatprep.mubr.bf16.mxu0 0
  %2882 = vmatmul.mubr.bf16.gmra.mrb[0].mxu0 %v2426
  %v2883 = vpop.f32.mrb[0].mxu0
  %v2884 = vadd.f32 %v2771, %v2883
  %v2885 = vpop.f32.mrb[0].mxu0
  %v2886 = vadd.f32 %v2773, %v2885
  %v2887 = vpop.f32.mrb[0].mxu0
  %v2888 = vadd.f32 %v2775, %v2887
  %v2889 = vpop.f32.mrb[0].mxu0
  %v2890 = vadd.f32 %v2777, %v2889
  %2891 = vmatprep.mubr.bf16.mxu0 0
  %2892 = vmatmul.mubr.bf16.gmra.mrb[0].mxu0 %v2429
  %v2893 = vpop.f32.mrb[0].mxu0
  %v2894 = vadd.f32 %v2781, %v2893
  %v2895 = vpop.f32.mrb[0].mxu0
  %v2896 = vadd.f32 %v2783, %v2895
  %v2897 = vpop.f32.mrb[0].mxu0
  %v2898 = vadd.f32 %v2785, %v2897
  %v2899 = vpop.f32.mrb[0].mxu0
  %v2900 = vadd.f32 %v2787, %v2899
  %2901 = vmatprep.mubr.bf16.mxu0 0
  %2902 = vmatmul.mubr.bf16.gmra.mrb[0].mxu0 %v2432
  %v2903 = vpop.f32.mrb[0].mxu0
  %v2904 = vadd.f32 %v2791, %v2903
  %v2905 = vpop.f32.mrb[0].mxu0
  %v2906 = vadd.f32 %v2793, %v2905
  %v2907 = vpop.f32.mrb[0].mxu0
  %v2908 = vadd.f32 %v2795, %v2907
  %v2909 = vpop.f32.mrb[0].mxu0
  %v2910 = vadd.f32 %v2797, %v2909
  %2911 = vmatprep.mubr.bf16.mxu0 0
  %2912 = vmatmul.mubr.bf16.gmra.mrb[0].mxu0 %v2435
  %v2913 = vpop.f32.mrb[0].mxu0
  %v2914 = vadd.f32 %v2801, %v2913
  %v2915 = vpop.f32.mrb[0].mxu0
  %v2916 = vadd.f32 %v2803, %v2915
  %v2917 = vpop.f32.mrb[0].mxu0
  %v2918 = vadd.f32 %v2805, %v2917
  %v2919 = vpop.f32.mrb[0].mxu0
  %v2920 = vadd.f32 %v2807, %v2919
  %2921 = vmatprep.mubr.bf16.mxu0 0
  %2922 = vmatmul.mubr.bf16.gmra.mrb[0].mxu0 %v2438
  %v2923 = vpop.f32.mrb[0].mxu0
  %v2924 = vadd.f32 %v2811, %v2923
  %v2925 = vpop.f32.mrb[0].mxu0
  %v2926 = vadd.f32 %v2813, %v2925
  %v2927 = vpop.f32.mrb[0].mxu0
  %v2928 = vadd.f32 %v2815, %v2927
  %v2929 = vpop.f32.mrb[0].mxu0
  %v2930 = vadd.f32 %v2817, %v2929
  %2931 = vmatprep.mubr.bf16.mxu0 0
  %2932 = vmatmul.mubr.bf16.gmra.mrb[0].mxu0 %v2441
  %v2933 = vpop.f32.mrb[0].mxu0
  %v2934 = vadd.f32 %v2821, %v2933
  %v2935 = vpop.f32.mrb[0].mxu0
  %v2936 = vadd.f32 %v2823, %v2935
  %v2937 = vpop.f32.mrb[0].mxu0
  %v2938 = vadd.f32 %v2825, %v2937
  %v2939 = vpop.f32.mrb[0].mxu0
  %v2940 = vadd.f32 %v2827, %v2939
  %2941 = vmatprep.mubr.bf16.mxu0 0
  %2942 = vmatmul.mubr.bf16.gmra.mrb[0].mxu0 %v2444
  %v2943 = vpop.f32.mrb[0].mxu0
  %v2944 = vadd.f32 %v2831, %v2943
  %v2945 = vpop.f32.mrb[0].mxu0
  %v2946 = vadd.f32 %v2833, %v2945
  %v2947 = vpop.f32.mrb[0].mxu0
  %v2948 = vadd.f32 %v2835, %v2947
  %v2949 = vpop.f32.mrb[0].mxu0
  %v2950 = vadd.f32 %v2837, %v2949
  %2951 = vmatprep.mubr.bf16.mxu0 0
  %2952 = vmatmul.mubr.bf16.gmra.mrb[0].mxu0 %v2447
  %v2953 = vpop.f32.mrb[0].mxu0
  %v2954 = vadd.f32 %v2841, %v2953
  %v2955 = vpop.f32.mrb[0].mxu0
  %v2956 = vadd.f32 %v2843, %v2955
  %v2957 = vpop.f32.mrb[0].mxu0
  %v2958 = vadd.f32 %v2845, %v2957
  %v2959 = vpop.f32.mrb[0].mxu0
  %v2960 = vadd.f32 %v2847, %v2959
  %2961 = vdwg.mxu0
  %v2962 = vadd.f32 %v1902, %v2884
  %v2963 = vadd.f32 %v1904, %v2886
  %v2964 = vadd.f32 %v1906, %v2888
  %v2965 = vadd.f32 %v1908, %v2890
  %v2966 = vadd.f32 %v1912, %v2894
  %v2967 = vadd.f32 %v1914, %v2896
  %v2968 = vadd.f32 %v1916, %v2898
  %v2969 = vadd.f32 %v1918, %v2900
  %v2970 = vadd.f32 %v1922, %v2904
  %v2971 = vadd.f32 %v1924, %v2906
  %v2972 = vadd.f32 %v1926, %v2908
  %v2973 = vadd.f32 %v1928, %v2910
  %v2974 = vadd.f32 %v1932, %v2914
  %v2975 = vadd.f32 %v1934, %v2916
  %v2976 = vadd.f32 %v1936, %v2918
  %v2977 = vadd.f32 %v1938, %v2920
  %v2978 = vadd.f32 %v1942, %v2924
  %v2979 = vadd.f32 %v1944, %v2926
  %v2980 = vadd.f32 %v1946, %v2928
  %v2981 = vadd.f32 %v1948, %v2930
  %v2982 = vadd.f32 %v1952, %v2934
  %v2983 = vadd.f32 %v1954, %v2936
  %v2984 = vadd.f32 %v1956, %v2938
  %v2985 = vadd.f32 %v1958, %v2940
  %v2986 = vadd.f32 %v1962, %v2944
  %v2987 = vadd.f32 %v1964, %v2946
  %v2988 = vadd.f32 %v1966, %v2948
  %v2989 = vadd.f32 %v1968, %v2950
  %v2990 = vadd.f32 %v1972, %v2954
  %v2991 = vadd.f32 %v1974, %v2956
  %v2992 = vadd.f32 %v1976, %v2958
  %v2993 = vadd.f32 %v1978, %v2960
  %v2994 = vadd.f32 %v2962, %v2964
  %v2995 = vadd.f32 %v2994, %v2966
  %v2996 = vadd.f32 %v2995, %v2968
  %v2997 = vadd.f32 %v2996, %v2970
  %v2998 = vadd.f32 %v2997, %v2972
  %v2999 = vadd.f32 %v2998, %v2974
  %v3000 = vadd.f32 %v2999, %v2976
  %v3001 = vadd.f32 %v3000, %v2978
  %v3002 = vadd.f32 %v3001, %v2980
  %v3003 = vadd.f32 %v3002, %v2982
  %v3004 = vadd.f32 %v3003, %v2984
  %v3005 = vadd.f32 %v3004, %v2986
  %v3006 = vadd.f32 %v3005, %v2988
  %v3007 = vadd.f32 %v3006, %v2990
  %v3008 = vadd.f32 %v3007, %v2992
  %v3009 = vrot.slane %v3008, 4
  %v3010 = vadd.f32 %v3008, %v3009
  %v3011 = vrot.slane %v3010, 2
  %v3012 = vadd.f32 %v3010, %v3011
  %v3013 = vrot.slane %v3012, 1
  %v3014 = vadd.f32 %v3012, %v3013
  %v3015 = vadd.f32 %v2963, %v2965
  %v3016 = vadd.f32 %v3015, %v2967
  %v3017 = vadd.f32 %v3016, %v2969
  %v3018 = vadd.f32 %v3017, %v2971
  %v3019 = vadd.f32 %v3018, %v2973
  %v3020 = vadd.f32 %v3019, %v2975
  %v3021 = vadd.f32 %v3020, %v2977
  %v3022 = vadd.f32 %v3021, %v2979
  %v3023 = vadd.f32 %v3022, %v2981
  %v3024 = vadd.f32 %v3023, %v2983
  %v3025 = vadd.f32 %v3024, %v2985
  %v3026 = vadd.f32 %v3025, %v2987
  %v3027 = vadd.f32 %v3026, %v2989
  %v3028 = vadd.f32 %v3027, %v2991
  %v3029 = vadd.f32 %v3028, %v2993
  %v3030 = vrot.slane %v3029, 4
  %v3031 = vadd.f32 %v3029, %v3030
  %v3032 = vrot.slane %v3031, 2
  %v3033 = vadd.f32 %v3031, %v3032
  %v3034 = vrot.slane %v3033, 1
  %v3035 = vadd.f32 %v3033, %v3034
  %v3038 = vcombine.low %v3014, %v3035
  %v3040 = vunpack.c.l.s4 1966171168
  %v3041 = vunpack.c.0.s8 %v3040
  %v3042 = vlaneseq
  %v3043 = vshrl.u32 %v3042, 7
  %v3044 = vsub.s32 %v3041, %v3043
  %v3045 = vrot.slane %v3038, %v3044
  %v3047 = vunpack.c.l.s4 1966171168
  %v3048 = vunpack.c.0.s8 %v3047
  %v3049 = vlaneseq
  %v3050 = vshrl.u32 %v3049, 7
  %v3051 = vsub.s32 %v3048, %v3050
  %v3052 = vrot.slane %v3045, %v3051
  %v3054 = vlaneseq
  %vm3055 = vcmp.ge.s32.totalorder %v3054, 0
  %vm3056 = vcmp.lt.s32.totalorder %v3054, 256
  %vm3057 = vmand %vm3055, %vm3056
  %3058 = vst.msk [vmem:[%s3] ss:$2 sm:$0x3] %vm3057, %v3052
  %v3059 = vmul.f32 %v2962, %v2962
  %v3060 = vmul.f32 %v2963, %v2963
  %v3061 = vmul.f32 %v2964, %v2964
  %v3062 = vmul.f32 %v2965, %v2965
  %v3063 = vmul.f32 %v2966, %v2966
  %v3064 = vmul.f32 %v2967, %v2967
  %v3065 = vmul.f32 %v2968, %v2968
  %v3066 = vmul.f32 %v2969, %v2969
  %v3067 = vmul.f32 %v2970, %v2970
  %v3068 = vmul.f32 %v2971, %v2971
  %v3069 = vmul.f32 %v2972, %v2972
  %v3070 = vmul.f32 %v2973, %v2973
  %v3071 = vmul.f32 %v2974, %v2974
  %v3072 = vmul.f32 %v2975, %v2975
  %v3073 = vmul.f32 %v2976, %v2976
  %v3074 = vmul.f32 %v2977, %v2977
  %v3075 = vmul.f32 %v2978, %v2978
  %v3076 = vmul.f32 %v2979, %v2979
  %v3077 = vmul.f32 %v2980, %v2980
  %v3078 = vmul.f32 %v2981, %v2981
  %v3079 = vmul.f32 %v2982, %v2982
  %v3080 = vmul.f32 %v2983, %v2983
  %v3081 = vmul.f32 %v2984, %v2984
  %v3082 = vmul.f32 %v2985, %v2985
  %v3083 = vmul.f32 %v2986, %v2986
  %v3084 = vmul.f32 %v2987, %v2987
  %v3085 = vmul.f32 %v2988, %v2988
  %v3086 = vmul.f32 %v2989, %v2989
  %v3087 = vmul.f32 %v2990, %v2990
  %v3088 = vmul.f32 %v2991, %v2991
  %v3089 = vmul.f32 %v2992, %v2992
  %v3090 = vmul.f32 %v2993, %v2993
  %v3091 = vadd.f32 %v3059, %v3061
  %v3092 = vadd.f32 %v3091, %v3063
  %v3093 = vadd.f32 %v3092, %v3065
  %v3094 = vadd.f32 %v3093, %v3067
  %v3095 = vadd.f32 %v3094, %v3069
  %v3096 = vadd.f32 %v3095, %v3071
  %v3097 = vadd.f32 %v3096, %v3073
  %v3098 = vadd.f32 %v3097, %v3075
  %v3099 = vadd.f32 %v3098, %v3077
  %v3100 = vadd.f32 %v3099, %v3079
  %v3101 = vadd.f32 %v3100, %v3081
  %v3102 = vadd.f32 %v3101, %v3083
  %v3103 = vadd.f32 %v3102, %v3085
  %v3104 = vadd.f32 %v3103, %v3087
  %v3105 = vadd.f32 %v3104, %v3089
  %v3106 = vrot.slane %v3105, 4
  %v3107 = vadd.f32 %v3105, %v3106
  %v3108 = vrot.slane %v3107, 2
  %v3109 = vadd.f32 %v3107, %v3108
  %v3110 = vrot.slane %v3109, 1
  %v3111 = vadd.f32 %v3109, %v3110
  %v3112 = vadd.f32 %v3060, %v3062
  %v3113 = vadd.f32 %v3112, %v3064
  %v3114 = vadd.f32 %v3113, %v3066
  %v3115 = vadd.f32 %v3114, %v3068
  %v3116 = vadd.f32 %v3115, %v3070
  %v3117 = vadd.f32 %v3116, %v3072
  %v3118 = vadd.f32 %v3117, %v3074
  %v3119 = vadd.f32 %v3118, %v3076
  %v3120 = vadd.f32 %v3119, %v3078
  %v3121 = vadd.f32 %v3120, %v3080
  %v3122 = vadd.f32 %v3121, %v3082
  %v3123 = vadd.f32 %v3122, %v3084
  %v3124 = vadd.f32 %v3123, %v3086
  %v3125 = vadd.f32 %v3124, %v3088
  %v3126 = vadd.f32 %v3125, %v3090
  %v3127 = vrot.slane %v3126, 4
  %v3128 = vadd.f32 %v3126, %v3127
  %v3129 = vrot.slane %v3128, 2
  %v3130 = vadd.f32 %v3128, %v3129
  %v3131 = vrot.slane %v3130, 1
  %v3132 = vadd.f32 %v3130, %v3131
  %v3135 = vcombine.low %v3111, %v3132
  %v3137 = vunpack.c.l.s4 1966171168
  %v3138 = vunpack.c.0.s8 %v3137
  %v3139 = vlaneseq
  %v3140 = vshrl.u32 %v3139, 7
  %v3141 = vsub.s32 %v3138, %v3140
  %v3142 = vrot.slane %v3135, %v3141
  %v3144 = vunpack.c.l.s4 1966171168
  %v3145 = vunpack.c.0.s8 %v3144
  %v3146 = vlaneseq
  %v3147 = vshrl.u32 %v3146, 7
  %v3148 = vsub.s32 %v3145, %v3147
  %v3149 = vrot.slane %v3142, %v3148
  %s3151 = scalar_lea.vmem %s3, 1
  %3152 = vst.msk [vmem:[%s3151] ss:$2 sm:$0x3] %vm3057, %v3149
  %v3153 = vpack.c.bf16 %v2964, %v2962
  %v3154 = vpack.c.bf16 %v2965, %v2963
  %v3155 = vpack.c.bf16 %v2968, %v2966
  %v3156 = vpack.c.bf16 %v2969, %v2967
  %v3157 = vpack.c.bf16 %v2972, %v2970
  %v3158 = vpack.c.bf16 %v2973, %v2971
  %v3159 = vpack.c.bf16 %v2976, %v2974
  %v3160 = vpack.c.bf16 %v2977, %v2975
  %v3161 = vpack.c.bf16 %v2980, %v2978
  %v3162 = vpack.c.bf16 %v2981, %v2979
  %v3163 = vpack.c.bf16 %v2984, %v2982
  %v3164 = vpack.c.bf16 %v2985, %v2983
  %v3165 = vpack.c.bf16 %v2988, %v2986
  %v3166 = vpack.c.bf16 %v2989, %v2987
  %v3167 = vpack.c.bf16 %v2992, %v2990
  %v3168 = vpack.c.bf16 %v2993, %v2991
  %v3185 = vunpack.c.l.b16 %v3153
  %v3186 = vunpack.c.l.b16 %v3154
  %v3187 = vunpack.c.h.b16 %v3153
  %v3188 = vunpack.c.h.b16 %v3154
  %v3189 = vunpack.c.l.b16 %v3155
  %v3190 = vunpack.c.l.b16 %v3156
  %v3191 = vunpack.c.h.b16 %v3155
  %v3192 = vunpack.c.h.b16 %v3156
  %v3193 = vunpack.c.l.b16 %v3157
  %v3194 = vunpack.c.l.b16 %v3158
  %v3195 = vunpack.c.h.b16 %v3157
  %v3196 = vunpack.c.h.b16 %v3158
  %v3197 = vunpack.c.l.b16 %v3159
  %v3198 = vunpack.c.l.b16 %v3160
  %v3199 = vunpack.c.h.b16 %v3159
  %v3200 = vunpack.c.h.b16 %v3160
  %v3201 = vunpack.c.l.b16 %v3161
  %v3202 = vunpack.c.l.b16 %v3162
  %v3203 = vunpack.c.h.b16 %v3161
  %v3204 = vunpack.c.h.b16 %v3162
  %v3205 = vunpack.c.l.b16 %v3163
  %v3206 = vunpack.c.l.b16 %v3164
  %v3207 = vunpack.c.h.b16 %v3163
  %v3208 = vunpack.c.h.b16 %v3164
  %v3209 = vunpack.c.l.b16 %v3165
  %v3210 = vunpack.c.l.b16 %v3166
  %v3211 = vunpack.c.h.b16 %v3165
  %v3212 = vunpack.c.h.b16 %v3166
  %v3213 = vunpack.c.l.b16 %v3167
  %v3214 = vunpack.c.l.b16 %v3168
  %v3215 = vunpack.c.h.b16 %v3167
  %v3216 = vunpack.c.h.b16 %v3168
  %v3217 = vpack.c.b16 %v3186, %v3185
  %v3218 = vpack.c.b16 %v3188, %v3187
  %v3219 = vpack.c.b16 %v3190, %v3189
  %v3220 = vpack.c.b16 %v3192, %v3191
  %v3221 = vpack.c.b16 %v3194, %v3193
  %v3222 = vpack.c.b16 %v3196, %v3195
  %v3223 = vpack.c.b16 %v3198, %v3197
  %v3224 = vpack.c.b16 %v3200, %v3199
  %v3225 = vpack.c.b16 %v3202, %v3201
  %v3226 = vpack.c.b16 %v3204, %v3203
  %v3227 = vpack.c.b16 %v3206, %v3205
  %v3228 = vpack.c.b16 %v3208, %v3207
  %v3229 = vpack.c.b16 %v3210, %v3209
  %v3230 = vpack.c.b16 %v3212, %v3211
  %v3231 = vpack.c.b16 %v3214, %v3213
  %v3232 = vpack.c.b16 %v3216, %v3215
  %3249 = vst [vmem:[%s2] sm:$0xff] %v3217
  %3250 = vst [vmem:[%s2 + $0x8] sm:$0xff] %v3218
  %3251 = vst [vmem:[%s2 + $0x10] sm:$0xff] %v3219
  %3252 = vst [vmem:[%s2 + $0x18] sm:$0xff] %v3220
  %3253 = vst [vmem:[%s2 + $0x20] sm:$0xff] %v3221
  %3254 = vst [vmem:[%s2 + $0x28] sm:$0xff] %v3222
  %3255 = vst [vmem:[%s2 + $0x30] sm:$0xff] %v3223
  %3256 = vst [vmem:[%s2 + $0x38] sm:$0xff] %v3224
  %3257 = vst [vmem:[%s2 + $0x40] sm:$0xff] %v3225
  %3258 = vst [vmem:[%s2 + $0x48] sm:$0xff] %v3226
  %3259 = vst [vmem:[%s2 + $0x50] sm:$0xff] %v3227
  %3260 = vst [vmem:[%s2 + $0x58] sm:$0xff] %v3228
  %3261 = vst [vmem:[%s2 + $0x60] sm:$0xff] %v3229
  %3262 = vst [vmem:[%s2 + $0x68] sm:$0xff] %v3230
  %3263 = vst [vmem:[%s2 + $0x70] sm:$0xff] %v3231
  %3264 = vst [vmem:[%s2 + $0x78] sm:$0xff] %v3232
  // Predicated region
  $region10: #{basic_block_forward.3} parent=0 // pred_check
    _
  $region11: #{basic_block_forward.3} parent=0 // pred_check_branch
    %3266 = sbr.rel (0) target = $region13
  $region12: #{basic_block_forward.3} parent=0 // pred_region
    _
  $region13: #{basic_block_forward.3} parent=0 // pred_fallthru
    _
  // Predicated region
  $region14: #{basic_block_forward.3} parent=0 // pred_check
    _
  $region15: #{basic_block_forward.3} parent=0 // pred_check_branch
    %3268 = sbr.rel (0) target = $region17
  $region16: #{basic_block_forward.3} parent=0 // pred_region
    _
  $region17: #{basic_block_forward.3} parent=0 // pred_fallthru
    _
  // Predicated region
  $region18: #{basic_block_forward.3} parent=0 // pred_check
    _
  $region19: #{basic_block_forward.3} parent=0 // pred_check_branch
    %3270 = sbr.rel (0) target = $region21
  $region20: #{basic_block_forward.3} parent=0 // pred_region
    _
  $region21: #{basic_block_forward.3} parent=0 // pred_fallthru
    _
  // Predicated region
  $region22: #{basic_block_forward.3} parent=0 // pred_check
    _
  $region23: #{basic_block_forward.3} parent=0 // pred_check_branch
    %3272 = sbr.rel (0) target = $region25
  $region24: #{basic_block_forward.3} parent=0 // pred_region
    _
  $region25: #{basic_block_forward.3} parent=0 // pred_fallthru
    _

// kernel: basic_block_forward.4
$region0: #{basic_block_forward.4}
  #allocation0 [shape = 'u32[]', space=smem, size = 0x4, offset = 0x4, fixed_abs, tag = 'smem constant byte address 0x4 - core index']
  #allocation1 [shape = 'u32[144,128]{1,0:T(1,128)}', space=vmem, size = 0x12000, scoped, tag = 'internal scratch']
  #allocation2 [shape = 'bf16[2,10,10,128]{3,2,1,0:T(8,128)(2,1)}', space=vmem, size = 0x14000, scoped, tag = 'scratch operand']
  #allocation3 [shape = 'bf16[128,384]{1,0:T(16,128)(2,1)}', space=vmem, size = 0x18000, scoped, tag = 'scratch operand']
  %s0 = inlined_call_operand.vmem [shape: bf16[2,64,256], index: 0, kind: input, shape index: {}]
  %s1 = inlined_call_operand.vmem [shape: f32[1,128], index: 1, kind: input, shape index: {}]
  %s2 = inlined_call_operand.vmem [shape: f32[1,128], index: 2, kind: input, shape index: {}]
  %s3 = inlined_call_operand.vmem [shape: bf16[1152,128], index: 3, kind: input, shape index: {}]
  %s4 = inlined_call_operand.vmem [shape: bf16[2,64,128], index: 4, kind: output, shape index: {0}]
  %s5 = inlined_call_operand.vmem [shape: f32[1,2,128], index: 5, kind: output, shape index: {1}]
  %6 = xla_tuple %s4, %s5
  %s7 = sld [smem:[#allocation0]]
  $region75: #{basic_block_forward.4} parent=0
    _
  %s9 = ssub.s32 1, %s7
  %s10 = scalar_select 0, %s9, %s7
  $region1: #{basic_block_forward.4} parent=0
    #allocation4 [shape = 'u8[32768]{0}', space=vmem, size = 0x8000, scoped, tag = 'input window, operand 0, single buffered']
    // Predicated region
    $region2: #{basic_block_forward.4} parent=1 // pred_check
      _
    $region3: #{basic_block_forward.4} parent=1 // pred_check_branch
      %12 = sbr.rel (0) target = $region5
    $region4: #{basic_block_forward.4} parent=1 // pred_region
      // Predicated region
      $region6: #{basic_block_forward.4} parent=4 // pred_check
        _
      $region7: #{basic_block_forward.4} parent=4 // pred_check_branch
        %14 = sbr.rel (0) target = $region9
      $region8: #{basic_block_forward.4} parent=4 // pred_region
        // Predicated region
        $region10: #{basic_block_forward.4} parent=8 // pred_check
          _
        $region11: #{basic_block_forward.4} parent=8 // pred_check_branch
          %16 = sbr.rel target = $region13
        $region12: #{basic_block_forward.4} parent=8 // pred_region
          // Predicated region
          $region25: #{basic_block_forward.4} parent=12 // pred_check
            _
          $region26: #{basic_block_forward.4} parent=12 // pred_check_branch
            %61 = sbr.rel (0) target = $region28
          $region27: #{basic_block_forward.4} parent=12 // pred_region
            loop: start=0, step=1, limit=1
            $region29: #{basic_block_forward.4} parent=27 // loop_pre_header
              _
            $region30: #{basic_block_forward.4} parent=27 // loop_header
              %s63 = sphi 0, %s67
              %p64 = scmp.ge.s32.totalorder %s63, 1
              %s68 = sphi %s0, %s0
              %s69 = sphi [#allocation4], [#allocation4]
            $region31: #{basic_block_forward.4} parent=27 // loop_header_branch
              %66 = sbr.rel (%p64) target = $region35
            $region32: #{basic_block_forward.4} parent=27 // loop_body
              _
            $region33: #{basic_block_forward.4} parent=27 // loop_footer
              %s67 = sadd.s32 1, %s63
            $region34: #{basic_block_forward.4} parent=27 // loop_footer_branch
              %62 = sbr.rel target = $region30
            $region35: #{basic_block_forward.4} parent=27 // loop_exit
              _
            loop: start=0, step=1, limit=1
            $region36: #{basic_block_forward.4} parent=27 // loop_pre_header
              _
            $region37: #{basic_block_forward.4} parent=27 // loop_header
              %s72 = sphi 0, %s76
              %p73 = scmp.ge.s32.totalorder %s72, 1
              %s77 = sphi %s0, %s0
              %s78 = sphi [#allocation4], [#allocation4]
            $region38: #{basic_block_forward.4} parent=27 // loop_header_branch
              %75 = sbr.rel (%p73) target = $region42
            $region39: #{basic_block_forward.4} parent=27 // loop_body
              %v79 = vld [vmem:[%s77] sm:$0xf]
              %80 = vst [vmem:[%s78] sm:$0xf] %v79
              %v81 = vld [vmem:[%s77 + $0x8] sm:$0xf]
              %82 = vst [vmem:[%s78 + $0x4] sm:$0xf] %v81
              %v83 = vld [vmem:[%s77 + $0x10] sm:$0xf]
              %84 = vst [vmem:[%s78 + $0x8] sm:$0xf] %v83
              %v85 = vld [vmem:[%s77 + $0x18] sm:$0xf]
              %86 = vst [vmem:[%s78 + $0xc] sm:$0xf] %v85
              %v87 = vld [vmem:[%s77 + $0x20] sm:$0xf]
              %88 = vst [vmem:[%s78 + $0x10] sm:$0xf] %v87
              %v89 = vld [vmem:[%s77 + $0x28] sm:$0xf]
              %90 = vst [vmem:[%s78 + $0x14] sm:$0xf] %v89
              %v91 = vld [vmem:[%s77 + $0x30] sm:$0xf]
              %92 = vst [vmem:[%s78 + $0x18] sm:$0xf] %v91
              %v93 = vld [vmem:[%s77 + $0x38] sm:$0xf]
              %94 = vst [vmem:[%s78 + $0x1c] sm:$0xf] %v93
              %v95 = vld [vmem:[%s77 + $0x40] sm:$0xf]
              %96 = vst [vmem:[%s78 + $0x20] sm:$0xf] %v95
              %v97 = vld [vmem:[%s77 + $0x48] sm:$0xf]
              %98 = vst [vmem:[%s78 + $0x24] sm:$0xf] %v97
              %v99 = vld [vmem:[%s77 + $0x50] sm:$0xf]
              %100 = vst [vmem:[%s78 + $0x28] sm:$0xf] %v99
              %v101 = vld [vmem:[%s77 + $0x58] sm:$0xf]
              %102 = vst [vmem:[%s78 + $0x2c] sm:$0xf] %v101
              %v103 = vld [vmem:[%s77 + $0x60] sm:$0xf]
              %104 = vst [vmem:[%s78 + $0x30] sm:$0xf] %v103
              %v105 = vld [vmem:[%s77 + $0x68] sm:$0xf]
              %106 = vst [vmem:[%s78 + $0x34] sm:$0xf] %v105
              %v107 = vld [vmem:[%s77 + $0x70] sm:$0xf]
              %108 = vst [vmem:[%s78 + $0x38] sm:$0xf] %v107
              %v109 = vld [vmem:[%s77 + $0x78] sm:$0xf]
              %110 = vst [vmem:[%s78 + $0x3c] sm:$0xf] %v109
            $region40: #{basic_block_forward.4} parent=27 // loop_footer
              %s76 = sadd.s32 1, %s72
            $region41: #{basic_block_forward.4} parent=27 // loop_footer_branch
              %71 = sbr.rel target = $region37
            $region42: #{basic_block_forward.4} parent=27 // loop_exit
              _
          $region28: #{basic_block_forward.4} parent=12 // pred_fallthru
            _
        $region13: #{basic_block_forward.4} parent=8 // pred_fallthru
          _
        // Predicated region
        $region14: #{basic_block_forward.4} parent=8 // pred_check
          _
        $region15: #{basic_block_forward.4} parent=8 // pred_check_branch
          %18 = sbr.rel (0) target = $region17
        $region16: #{basic_block_forward.4} parent=8 // pred_region
          loop: start=0, step=1, limit=1
          $region18: #{basic_block_forward.4} parent=16 // loop_pre_header
            _
          $region19: #{basic_block_forward.4} parent=16 // loop_header
            %s21 = sphi 0, %s25
            %p22 = scmp.ge.s32.totalorder %s21, 1
            %s26 = sphi %s0, %s0
            %s27 = sphi [#allocation4], [#allocation4]
          $region20: #{basic_block_forward.4} parent=16 // loop_header_branch
            %24 = sbr.rel (%p22) target = $region24
          $region21: #{basic_block_forward.4} parent=16 // loop_body
            %v28 = vld [vmem:[%s26] sm:$0xf]
            %29 = vst [vmem:[%s27] sm:$0xf] %v28
            %v30 = vld [vmem:[%s26 + $0x8] sm:$0xf]
            %31 = vst [vmem:[%s27 + $0x4] sm:$0xf] %v30
            %v32 = vld [vmem:[%s26 + $0x10] sm:$0xf]
            %33 = vst [vmem:[%s27 + $0x8] sm:$0xf] %v32
            %v34 = vld [vmem:[%s26 + $0x18] sm:$0xf]
            %35 = vst [vmem:[%s27 + $0xc] sm:$0xf] %v34
            %v36 = vld [vmem:[%s26 + $0x20] sm:$0xf]
            %37 = vst [vmem:[%s27 + $0x10] sm:$0xf] %v36
            %v38 = vld [vmem:[%s26 + $0x28] sm:$0xf]
            %39 = vst [vmem:[%s27 + $0x14] sm:$0xf] %v38
            %v40 = vld [vmem:[%s26 + $0x30] sm:$0xf]
            %41 = vst [vmem:[%s27 + $0x18] sm:$0xf] %v40
            %v42 = vld [vmem:[%s26 + $0x38] sm:$0xf]
            %43 = vst [vmem:[%s27 + $0x1c] sm:$0xf] %v42
            %v44 = vld [vmem:[%s26 + $0x40] sm:$0xf]
            %45 = vst [vmem:[%s27 + $0x20] sm:$0xf] %v44
            %v46 = vld [vmem:[%s26 + $0x48] sm:$0xf]
            %47 = vst [vmem:[%s27 + $0x24] sm:$0xf] %v46
            %v48 = vld [vmem:[%s26 + $0x50] sm:$0xf]
            %49 = vst [vmem:[%s27 + $0x28] sm:$0xf] %v48
            %v50 = vld [vmem:[%s26 + $0x58] sm:$0xf]
            %51 = vst [vmem:[%s27 + $0x2c] sm:$0xf] %v50
            %v52 = vld [vmem:[%s26 + $0x60] sm:$0xf]
            %53 = vst [vmem:[%s27 + $0x30] sm:$0xf] %v52
            %v54 = vld [vmem:[%s26 + $0x68] sm:$0xf]
            %55 = vst [vmem:[%s27 + $0x34] sm:$0xf] %v54
            %v56 = vld [vmem:[%s26 + $0x70] sm:$0xf]
            %57 = vst [vmem:[%s27 + $0x38] sm:$0xf] %v56
            %v58 = vld [vmem:[%s26 + $0x78] sm:$0xf]
            %59 = vst [vmem:[%s27 + $0x3c] sm:$0xf] %v58
          $region22: #{basic_block_forward.4} parent=16 // loop_footer
            %s25 = sadd.s32 1, %s21
          $region23: #{basic_block_forward.4} parent=16 // loop_footer_branch
            %20 = sbr.rel target = $region19
          $region24: #{basic_block_forward.4} parent=16 // loop_exit
            _
        $region17: #{basic_block_forward.4} parent=8 // pred_fallthru
          _
      $region9: #{basic_block_forward.4} parent=4 // pred_fallthru
        _
      %111 = vnop
    $region5: #{basic_block_forward.4} parent=1 // pred_fallthru
      _
    // Predicated region
    $region43: #{basic_block_forward.4} parent=1 // pred_check
      _
    $region44: #{basic_block_forward.4} parent=1 // pred_check_branch
      %113 = sbr.rel (0) target = $region46
    $region45: #{basic_block_forward.4} parent=1 // pred_region
      _
    $region46: #{basic_block_forward.4} parent=1 // pred_fallthru
      _
    // Predicated region
    $region47: #{basic_block_forward.4} parent=1 // pred_check
      _
    $region48: #{basic_block_forward.4} parent=1 // pred_check_branch
      %115 = sbr.rel (0) target = $region50
    $region49: #{basic_block_forward.4} parent=1 // pred_region
      _
    $region50: #{basic_block_forward.4} parent=1 // pred_fallthru
      _
    // Predicated region
    $region51: #{basic_block_forward.4} parent=1 // pred_check
      _
    $region52: #{basic_block_forward.4} parent=1 // pred_check_branch
      %117 = sbr.rel (0) target = $region54
    $region53: #{basic_block_forward.4} parent=1 // pred_region
      _
    $region54: #{basic_block_forward.4} parent=1 // pred_fallthru
      _
    // Predicated region
    $region55: #{basic_block_forward.4} parent=1 // pred_check
      _
    $region56: #{basic_block_forward.4} parent=1 // pred_check_branch
      %119 = sbr.rel (0) target = $region58
    $region57: #{basic_block_forward.4} parent=1 // pred_region
      _
    $region58: #{basic_block_forward.4} parent=1 // pred_fallthru
      _
    %v121 = vld [vmem:[#allocation4] sm:$0xf]
    %v122 = vld [vmem:[#allocation4 + $0x4] sm:$0xf]
    %v123 = vld [vmem:[#allocation4 + $0x8] sm:$0xf]
    %v124 = vld [vmem:[#allocation4 + $0xc] sm:$0xf]
    %v125 = vld [vmem:[#allocation4 + $0x10] sm:$0xf]
    %v126 = vld [vmem:[#allocation4 + $0x14] sm:$0xf]
    %v127 = vld [vmem:[#allocation4 + $0x18] sm:$0xf]
    %v128 = vld [vmem:[#allocation4 + $0x1c] sm:$0xf]
    %v129 = vld [vmem:[#allocation4 + $0x20] sm:$0xf]
    %v130 = vld [vmem:[#allocation4 + $0x24] sm:$0xf]
    %v131 = vld [vmem:[#allocation4 + $0x28] sm:$0xf]
    %v132 = vld [vmem:[#allocation4 + $0x2c] sm:$0xf]
    %v133 = vld [vmem:[#allocation4 + $0x30] sm:$0xf]
    %v134 = vld [vmem:[#allocation4 + $0x34] sm:$0xf]
    %v135 = vld [vmem:[#allocation4 + $0x38] sm:$0xf]
    %v136 = vld [vmem:[#allocation4 + $0x3c] sm:$0xf]
    %v137 = vunpack.c.l.bf16 %v121
    %v138 = vunpack.c.l.bf16 %v122
    %v139 = vunpack.c.l.bf16 %v123
    %v140 = vunpack.c.l.bf16 %v124
    %v141 = vunpack.c.l.bf16 %v125
    %v142 = vunpack.c.l.bf16 %v126
    %v143 = vunpack.c.l.bf16 %v127
    %v144 = vunpack.c.l.bf16 %v128
    %v145 = vunpack.c.l.bf16 %v129
    %v146 = vunpack.c.l.bf16 %v130
    %v147 = vunpack.c.l.bf16 %v131
    %v148 = vunpack.c.l.bf16 %v132
    %v149 = vunpack.c.l.bf16 %v133
    %v150 = vunpack.c.l.bf16 %v134
    %v151 = vunpack.c.l.bf16 %v135
    %v152 = vunpack.c.l.bf16 %v136
    %v153 = vld [vmem:[%s1] sm:$0x1]
    %v155 = vlaneseq
    %v156 = vshrl.u32 %v155, 7
    %v157 = vsub.s32 0, %v156
    %v158 = vrot.slane %v153, %v157
    %v160 = vmul.f32 %v137, %v158
    %v161 = vmul.f32 %v138, %v158
    %v162 = vmul.f32 %v139, %v158
    %v163 = vmul.f32 %v140, %v158
    %v164 = vmul.f32 %v141, %v158
    %v165 = vmul.f32 %v142, %v158
    %v166 = vmul.f32 %v143, %v158
    %v167 = vmul.f32 %v144, %v158
    %v168 = vmul.f32 %v145, %v158
    %v169 = vmul.f32 %v146, %v158
    %v170 = vmul.f32 %v147, %v158
    %v171 = vmul.f32 %v148, %v158
    %v172 = vmul.f32 %v149, %v158
    %v173 = vmul.f32 %v150, %v158
    %v174 = vmul.f32 %v151, %v158
    %v175 = vmul.f32 %v152, %v158
    %v176 = vld [vmem:[%s2] sm:$0x1]
    %v178 = vlaneseq
    %v179 = vshrl.u32 %v178, 7
    %v180 = vsub.s32 0, %v179
    %v181 = vrot.slane %v176, %v180
    %v183 = vadd.f32 %v160, %v181
    %v184 = vadd.f32 %v161, %v181
    %v185 = vadd.f32 %v162, %v181
    %v186 = vadd.f32 %v163, %v181
    %v187 = vadd.f32 %v164, %v181
    %v188 = vadd.f32 %v165, %v181
    %v189 = vadd.f32 %v166, %v181
    %v190 = vadd.f32 %v167, %v181
    %v191 = vadd.f32 %v168, %v181
    %v192 = vadd.f32 %v169, %v181
    %v193 = vadd.f32 %v170, %v181
    %v194 = vadd.f32 %v171, %v181
    %v195 = vadd.f32 %v172, %v181
    %v196 = vadd.f32 %v173, %v181
    %v197 = vadd.f32 %v174, %v181
    %v198 = vadd.f32 %v175, %v181
    %v199 = vmax.f32 %v183, 0.0
    %v200 = vmax.f32 %v184, 0.0
    %v201 = vmax.f32 %v185, 0.0
    %v202 = vmax.f32 %v186, 0.0
    %v203 = vmax.f32 %v187, 0.0
    %v204 = vmax.f32 %v188, 0.0
    %v205 = vmax.f32 %v189, 0.0
    %v206 = vmax.f32 %v190, 0.0
    %v207 = vmax.f32 %v191, 0.0
    %v208 = vmax.f32 %v192, 0.0
    %v209 = vmax.f32 %v193, 0.0
    %v210 = vmax.f32 %v194, 0.0
    %v211 = vmax.f32 %v195, 0.0
    %v212 = vmax.f32 %v196, 0.0
    %v213 = vmax.f32 %v197, 0.0
    %v214 = vmax.f32 %v198, 0.0
    %v215 = vpack.c.bf16 %v200, %v199
    %v216 = vpack.c.bf16 %v202, %v201
    %v217 = vpack.c.bf16 %v204, %v203
    %v218 = vpack.c.bf16 %v206, %v205
    %v219 = vpack.c.bf16 %v208, %v207
    %v220 = vpack.c.bf16 %v210, %v209
    %v221 = vpack.c.bf16 %v212, %v211
    %v222 = vpack.c.bf16 %v214, %v213
    %v231 = vunpack.c.l.b16 %v215
    %v232 = vunpack.c.h.b16 %v215
    %v233 = vunpack.c.l.b16 %v216
    %v234 = vunpack.c.h.b16 %v216
    %v235 = vunpack.c.l.b16 %v217
    %v236 = vunpack.c.h.b16 %v217
    %v237 = vunpack.c.l.b16 %v218
    %v238 = vunpack.c.h.b16 %v218
    %v239 = vunpack.c.l.b16 %v219
    %v240 = vunpack.c.h.b16 %v219
    %v241 = vunpack.c.l.b16 %v220
    %v242 = vunpack.c.h.b16 %v220
    %v243 = vunpack.c.l.b16 %v221
    %v244 = vunpack.c.h.b16 %v221
    %v245 = vunpack.c.l.b16 %v222
    %v246 = vunpack.c.h.b16 %v222
    %v247 = vpack.c.b16 %v231, %v231
    %v248 = vpack.c.b16 %v232, %v232
    %v249 = vpack.c.b16 %v233, %v233
    %v250 = vpack.c.b16 %v234, %v234
    %v251 = vpack.c.b16 %v235, %v235
    %v252 = vpack.c.b16 %v236, %v236
    %v253 = vpack.c.b16 %v237, %v237
    %v254 = vpack.c.b16 %v238, %v238
    %v255 = vpack.c.b16 %v239, %v239
    %v256 = vpack.c.b16 %v240, %v240
    %v257 = vpack.c.b16 %v241, %v241
    %v258 = vpack.c.b16 %v242, %v242
    %v259 = vpack.c.b16 %v243, %v243
    %v260 = vpack.c.b16 %v244, %v244
    %v261 = vpack.c.b16 %v245, %v245
    %v262 = vpack.c.b16 %v246, %v246
    %263 = vst [vmem:[#allocation2] sm:$0xf] 0
    %264 = vst [vmem:[#allocation2 + $0x4] sm:$0x1] 0
    %s265 = scalar_lea.vmem [#allocation2], 72
    %266 = vst [vmem:[%s265] sm:$0xf] 0
    %267 = vst [vmem:[%s265 + $0x4] sm:$0x1] 0
    %s268 = scalar_lea.vmem [#allocation2], 8
    %vm269 = vcmask 1040384
    %vm270 = vsmask.f32 256
    %vm271 = vmand %vm269, %vm270
    %v272 = vld [vmem:[%s268] sm:$0x1]
    %v273 = vsel %vm271, 0, %v272
    %274 = vst [vmem:[%s268] sm:$0x1] %v273
    %v275 = vld [vmem:[%s268 + $0x8] sm:$0x1]
    %v276 = vsel %vm271, 0, %v275
    %277 = vst [vmem:[%s268 + $0x8] sm:$0x1] %v276
    %v278 = vld [vmem:[%s268 + $0x10] sm:$0x1]
    %v279 = vsel %vm271, 0, %v278
    %280 = vst [vmem:[%s268 + $0x10] sm:$0x1] %v279
    %v281 = vld [vmem:[%s268 + $0x18] sm:$0x1]
    %v282 = vsel %vm271, 0, %v281
    %283 = vst [vmem:[%s268 + $0x18] sm:$0x1] %v282
    %v284 = vld [vmem:[%s268 + $0x20] sm:$0x1]
    %v285 = vsel %vm271, 0, %v284
    %286 = vst [vmem:[%s268 + $0x20] sm:$0x1] %v285
    %v287 = vld [vmem:[%s268 + $0x28] sm:$0x1]
    %v288 = vsel %vm271, 0, %v287
    %289 = vst [vmem:[%s268 + $0x28] sm:$0x1] %v288
    %v290 = vld [vmem:[%s268 + $0x30] sm:$0x1]
    %v291 = vsel %vm271, 0, %v290
    %292 = vst [vmem:[%s268 + $0x30] sm:$0x1] %v291
    %v293 = vld [vmem:[%s268 + $0x38] sm:$0x1]
    %v294 = vsel %vm271, 0, %v293
    %295 = vst [vmem:[%s268 + $0x38] sm:$0x1] %v294
    %vm296 = vsmask.f32 7938
    %vm297 = vmand %vm269, %vm296
    %v298 = vld [vmem:[%s268 + $0x4] sm:$0x1]
    %v299 = vsel %vm297, 0, %v298
    %300 = vst [vmem:[%s268 + $0x4] sm:$0x1] %v299
    %v301 = vld [vmem:[%s268 + $0xc] sm:$0x1]
    %v302 = vsel %vm297, 0, %v301
    %303 = vst [vmem:[%s268 + $0xc] sm:$0x1] %v302
    %v304 = vld [vmem:[%s268 + $0x14] sm:$0x1]
    %v305 = vsel %vm297, 0, %v304
    %306 = vst [vmem:[%s268 + $0x14] sm:$0x1] %v305
    %v307 = vld [vmem:[%s268 + $0x1c] sm:$0x1]
    %v308 = vsel %vm297, 0, %v307
    %309 = vst [vmem:[%s268 + $0x1c] sm:$0x1] %v308
    %v310 = vld [vmem:[%s268 + $0x24] sm:$0x1]
    %v311 = vsel %vm297, 0, %v310
    %312 = vst [vmem:[%s268 + $0x24] sm:$0x1] %v311
    %v313 = vld [vmem:[%s268 + $0x2c] sm:$0x1]
    %v314 = vsel %vm297, 0, %v313
    %315 = vst [vmem:[%s268 + $0x2c] sm:$0x1] %v314
    %v316 = vld [vmem:[%s268 + $0x34] sm:$0x1]
    %v317 = vsel %vm297, 0, %v316
    %318 = vst [vmem:[%s268 + $0x34] sm:$0x1] %v317
    %v319 = vld [vmem:[%s268 + $0x3c] sm:$0x1]
    %v320 = vsel %vm297, 0, %v319
    %321 = vst [vmem:[%s268 + $0x3c] sm:$0x1] %v320
    %v323 = vshrl.u32 %v247, 16
    %v325 = vrot.slane %v323, 7
    %v326 = vshll.u32 %v247, 16
    %v328 = vor.u32 %v325, %v326
    %v329 = vrot.slane %v325, 4
    %v331 = vshrl.u32 %v248, 16
    %v333 = vrot.slane %v331, 7
    %v334 = vshll.u32 %v248, 16
    %v336 = vor.u32 %v333, %v334
    %v337 = vrot.slane %v333, 4
    %v339 = vshrl.u32 %v249, 16
    %v341 = vrot.slane %v339, 7
    %v342 = vshll.u32 %v249, 16
    %v344 = vor.u32 %v341, %v342
    %v345 = vrot.slane %v341, 4
    %v347 = vshrl.u32 %v250, 16
    %v349 = vrot.slane %v347, 7
    %v350 = vshll.u32 %v250, 16
    %v352 = vor.u32 %v349, %v350
    %v353 = vrot.slane %v349, 4
    %v355 = vshrl.u32 %v251, 16
    %v357 = vrot.slane %v355, 7
    %v358 = vshll.u32 %v251, 16
    %v360 = vor.u32 %v357, %v358
    %v361 = vrot.slane %v357, 4
    %v363 = vshrl.u32 %v252, 16
    %v365 = vrot.slane %v363, 7
    %v366 = vshll.u32 %v252, 16
    %v368 = vor.u32 %v365, %v366
    %v369 = vrot.slane %v365, 4
    %v371 = vshrl.u32 %v253, 16
    %v373 = vrot.slane %v371, 7
    %v374 = vshll.u32 %v253, 16
    %v376 = vor.u32 %v373, %v374
    %v377 = vrot.slane %v373, 4
    %v379 = vshrl.u32 %v254, 16
    %v381 = vrot.slane %v379, 7
    %v382 = vshll.u32 %v254, 16
    %v384 = vor.u32 %v381, %v382
    %v385 = vrot.slane %v381, 4
    %vm402 = vcmask 1043456
    %vm403 = vmand %vm402, %vm296
    %v404 = vld [vmem:[%s268] sm:$0xf]
    %v405 = vsel %vm403, %v328, %v404
    %406 = vst [vmem:[%s268] sm:$0xf] %v405
    %v407 = vld [vmem:[%s268 + $0x4] sm:$0x1]
    %v408 = vsel %vm271, %v329, %v407
    %409 = vst [vmem:[%s268 + $0x4] sm:$0x1] %v408
    %v410 = vld [vmem:[%s268 + $0x8] sm:$0xf]
    %v411 = vsel %vm403, %v336, %v410
    %412 = vst [vmem:[%s268 + $0x8] sm:$0xf] %v411
    %v413 = vld [vmem:[%s268 + $0xc] sm:$0x1]
    %v414 = vsel %vm271, %v337, %v413
    %415 = vst [vmem:[%s268 + $0xc] sm:$0x1] %v414
    %v416 = vld [vmem:[%s268 + $0x10] sm:$0xf]
    %v417 = vsel %vm403, %v344, %v416
    %418 = vst [vmem:[%s268 + $0x10] sm:$0xf] %v417
    %v419 = vld [vmem:[%s268 + $0x14] sm:$0x1]
    %v420 = vsel %vm271, %v345, %v419
    %421 = vst [vmem:[%s268 + $0x14] sm:$0x1] %v420
    %v422 = vld [vmem:[%s268 + $0x18] sm:$0xf]
    %v423 = vsel %vm403, %v352, %v422
    %424 = vst [vmem:[%s268 + $0x18] sm:$0xf] %v423
    %v425 = vld [vmem:[%s268 + $0x1c] sm:$0x1]
    %v426 = vsel %vm271, %v353, %v425
    %427 = vst [vmem:[%s268 + $0x1c] sm:$0x1] %v426
    %v428 = vld [vmem:[%s268 + $0x20] sm:$0xf]
    %v429 = vsel %vm403, %v360, %v428
    %430 = vst [vmem:[%s268 + $0x20] sm:$0xf] %v429
    %v431 = vld [vmem:[%s268 + $0x24] sm:$0x1]
    %v432 = vsel %vm271, %v361, %v431
    %433 = vst [vmem:[%s268 + $0x24] sm:$0x1] %v432
    %v434 = vld [vmem:[%s268 + $0x28] sm:$0xf]
    %v435 = vsel %vm403, %v368, %v434
    %436 = vst [vmem:[%s268 + $0x28] sm:$0xf] %v435
    %v437 = vld [vmem:[%s268 + $0x2c] sm:$0x1]
    %v438 = vsel %vm271, %v369, %v437
    %439 = vst [vmem:[%s268 + $0x2c] sm:$0x1] %v438
    %v440 = vld [vmem:[%s268 + $0x30] sm:$0xf]
    %v441 = vsel %vm403, %v376, %v440
    %442 = vst [vmem:[%s268 + $0x30] sm:$0xf] %v441
    %v443 = vld [vmem:[%s268 + $0x34] sm:$0x1]
    %v444 = vsel %vm271, %v377, %v443
    %445 = vst [vmem:[%s268 + $0x34] sm:$0x1] %v444
    %v446 = vld [vmem:[%s268 + $0x38] sm:$0xf]
    %v447 = vsel %vm403, %v384, %v446
    %448 = vst [vmem:[%s268 + $0x38] sm:$0xf] %v447
    %v449 = vld [vmem:[%s268 + $0x3c] sm:$0x1]
    %v450 = vsel %vm271, %v385, %v449
    %451 = vst [vmem:[%s268 + $0x3c] sm:$0x1] %v450
    %s452 = scalar_lea.vmem [#allocation2], 80
    %453 = vst [vmem:[%s452] sm:$0xf] 0
    %454 = vst [vmem:[%s452 + $0x4] sm:$0x1] 0
    %s455 = scalar_lea.vmem [#allocation2], 152
    %456 = vst [vmem:[%s455] sm:$0xf] 0
    %457 = vst [vmem:[%s455 + $0x4] sm:$0x1] 0
    %s458 = scalar_lea.vmem [#allocation2], 88
    %v459 = vld [vmem:[%s458] sm:$0x1]
    %v460 = vsel %vm271, 0, %v459
    %461 = vst [vmem:[%s458] sm:$0x1] %v460
    %v462 = vld [vmem:[%s458 + $0x8] sm:$0x1]
    %v463 = vsel %vm271, 0, %v462
    %464 = vst [vmem:[%s458 + $0x8] sm:$0x1] %v463
    %v465 = vld [vmem:[%s458 + $0x10] sm:$0x1]
    %v466 = vsel %vm271, 0, %v465
    %467 = vst [vmem:[%s458 + $0x10] sm:$0x1] %v466
    %v468 = vld [vmem:[%s458 + $0x18] sm:$0x1]
    %v469 = vsel %vm271, 0, %v468
    %470 = vst [vmem:[%s458 + $0x18] sm:$0x1] %v469
    %v471 = vld [vmem:[%s458 + $0x20] sm:$0x1]
    %v472 = vsel %vm271, 0, %v471
    %473 = vst [vmem:[%s458 + $0x20] sm:$0x1] %v472
    %v474 = vld [vmem:[%s458 + $0x28] sm:$0x1]
    %v475 = vsel %vm271, 0, %v474
    %476 = vst [vmem:[%s458 + $0x28] sm:$0x1] %v475
    %v477 = vld [vmem:[%s458 + $0x30] sm:$0x1]
    %v478 = vsel %vm271, 0, %v477
    %479 = vst [vmem:[%s458 + $0x30] sm:$0x1] %v478
    %v480 = vld [vmem:[%s458 + $0x38] sm:$0x1]
    %v481 = vsel %vm271, 0, %v480
    %482 = vst [vmem:[%s458 + $0x38] sm:$0x1] %v481
    %v483 = vld [vmem:[%s458 + $0x4] sm:$0x1]
    %v484 = vsel %vm297, 0, %v483
    %485 = vst [vmem:[%s458 + $0x4] sm:$0x1] %v484
    %v486 = vld [vmem:[%s458 + $0xc] sm:$0x1]
    %v487 = vsel %vm297, 0, %v486
    %488 = vst [vmem:[%s458 + $0xc] sm:$0x1] %v487
    %v489 = vld [vmem:[%s458 + $0x14] sm:$0x1]
    %v490 = vsel %vm297, 0, %v489
    %491 = vst [vmem:[%s458 + $0x14] sm:$0x1] %v490
    %v492 = vld [vmem:[%s458 + $0x1c] sm:$0x1]
    %v493 = vsel %vm297, 0, %v492
    %494 = vst [vmem:[%s458 + $0x1c] sm:$0x1] %v493
    %v495 = vld [vmem:[%s458 + $0x24] sm:$0x1]
    %v496 = vsel %vm297, 0, %v495
    %497 = vst [vmem:[%s458 + $0x24] sm:$0x1] %v496
    %v498 = vld [vmem:[%s458 + $0x2c] sm:$0x1]
    %v499 = vsel %vm297, 0, %v498
    %500 = vst [vmem:[%s458 + $0x2c] sm:$0x1] %v499
    %v501 = vld [vmem:[%s458 + $0x34] sm:$0x1]
    %v502 = vsel %vm297, 0, %v501
    %503 = vst [vmem:[%s458 + $0x34] sm:$0x1] %v502
    %v504 = vld [vmem:[%s458 + $0x3c] sm:$0x1]
    %v505 = vsel %vm297, 0, %v504
    %506 = vst [vmem:[%s458 + $0x3c] sm:$0x1] %v505
    %v508 = vshrl.u32 %v255, 16
    %v510 = vrot.slane %v508, 7
    %v511 = vshll.u32 %v255, 16
    %v513 = vor.u32 %v510, %v511
    %v514 = vrot.slane %v510, 4
    %v516 = vshrl.u32 %v256, 16
    %v518 = vrot.slane %v516, 7
    %v519 = vshll.u32 %v256, 16
    %v521 = vor.u32 %v518, %v519
    %v522 = vrot.slane %v518, 4
    %v524 = vshrl.u32 %v257, 16
    %v526 = vrot.slane %v524, 7
    %v527 = vshll.u32 %v257, 16
    %v529 = vor.u32 %v526, %v527
    %v530 = vrot.slane %v526, 4
    %v532 = vshrl.u32 %v258, 16
    %v534 = vrot.slane %v532, 7
    %v535 = vshll.u32 %v258, 16
    %v537 = vor.u32 %v534, %v535
    %v538 = vrot.slane %v534, 4
    %v540 = vshrl.u32 %v259, 16
    %v542 = vrot.slane %v540, 7
    %v543 = vshll.u32 %v259, 16
    %v545 = vor.u32 %v542, %v543
    %v546 = vrot.slane %v542, 4
    %v548 = vshrl.u32 %v260, 16
    %v550 = vrot.slane %v548, 7
    %v551 = vshll.u32 %v260, 16
    %v553 = vor.u32 %v550, %v551
    %v554 = vrot.slane %v550, 4
    %v556 = vshrl.u32 %v261, 16
    %v558 = vrot.slane %v556, 7
    %v559 = vshll.u32 %v261, 16
    %v561 = vor.u32 %v558, %v559
    %v562 = vrot.slane %v558, 4
    %v564 = vshrl.u32 %v262, 16
    %v566 = vrot.slane %v564, 7
    %v567 = vshll.u32 %v262, 16
    %v569 = vor.u32 %v566, %v567
    %v570 = vrot.slane %v566, 4
    %v587 = vld [vmem:[%s458] sm:$0xf]
    %v588 = vsel %vm403, %v513, %v587
    %589 = vst [vmem:[%s458] sm:$0xf] %v588
    %v590 = vld [vmem:[%s458 + $0x4] sm:$0x1]
    %v591 = vsel %vm271, %v514, %v590
    %592 = vst [vmem:[%s458 + $0x4] sm:$0x1] %v591
    %v593 = vld [vmem:[%s458 + $0x8] sm:$0xf]
    %v594 = vsel %vm403, %v521, %v593
    %595 = vst [vmem:[%s458 + $0x8] sm:$0xf] %v594
    %v596 = vld [vmem:[%s458 + $0xc] sm:$0x1]
    %v597 = vsel %vm271, %v522, %v596
    %598 = vst [vmem:[%s458 + $0xc] sm:$0x1] %v597
    %v599 = vld [vmem:[%s458 + $0x10] sm:$0xf]
    %v600 = vsel %vm403, %v529, %v599
    %601 = vst [vmem:[%s458 + $0x10] sm:$0xf] %v600
    %v602 = vld [vmem:[%s458 + $0x14] sm:$0x1]
    %v603 = vsel %vm271, %v530, %v602
    %604 = vst [vmem:[%s458 + $0x14] sm:$0x1] %v603
    %v605 = vld [vmem:[%s458 + $0x18] sm:$0xf]
    %v606 = vsel %vm403, %v537, %v605
    %607 = vst [vmem:[%s458 + $0x18] sm:$0xf] %v606
    %v608 = vld [vmem:[%s458 + $0x1c] sm:$0x1]
    %v609 = vsel %vm271, %v538, %v608
    %610 = vst [vmem:[%s458 + $0x1c] sm:$0x1] %v609
    %v611 = vld [vmem:[%s458 + $0x20] sm:$0xf]
    %v612 = vsel %vm403, %v545, %v611
    %613 = vst [vmem:[%s458 + $0x20] sm:$0xf] %v612
    %v614 = vld [vmem:[%s458 + $0x24] sm:$0x1]
    %v615 = vsel %vm271, %v546, %v614
    %616 = vst [vmem:[%s458 + $0x24] sm:$0x1] %v615
    %v617 = vld [vmem:[%s458 + $0x28] sm:$0xf]
    %v618 = vsel %vm403, %v553, %v617
    %619 = vst [vmem:[%s458 + $0x28] sm:$0xf] %v618
    %v620 = vld [vmem:[%s458 + $0x2c] sm:$0x1]
    %v621 = vsel %vm271, %v554, %v620
    %622 = vst [vmem:[%s458 + $0x2c] sm:$0x1] %v621
    %v623 = vld [vmem:[%s458 + $0x30] sm:$0xf]
    %v624 = vsel %vm403, %v561, %v623
    %625 = vst [vmem:[%s458 + $0x30] sm:$0xf] %v624
    %v626 = vld [vmem:[%s458 + $0x34] sm:$0x1]
    %v627 = vsel %vm271, %v562, %v626
    %628 = vst [vmem:[%s458 + $0x34] sm:$0x1] %v627
    %v629 = vld [vmem:[%s458 + $0x38] sm:$0xf]
    %v630 = vsel %vm403, %v569, %v629
    %631 = vst [vmem:[%s458 + $0x38] sm:$0xf] %v630
    %v632 = vld [vmem:[%s458 + $0x3c] sm:$0x1]
    %v633 = vsel %vm271, %v570, %v632
    %634 = vst [vmem:[%s458 + $0x3c] sm:$0x1] %v633
    %v635 = vld [vmem:[#allocation2] sm:$0xf]
    %v636 = vld [vmem:[#allocation2 + $0x8] sm:$0xf]
    %v637 = vld [vmem:[#allocation2 + $0x10] sm:$0xf]
    %v638 = vld [vmem:[#allocation2 + $0x18] sm:$0xf]
    %v639 = vld [vmem:[#allocation2 + $0x20] sm:$0xf]
    %v640 = vld [vmem:[#allocation2 + $0x28] sm:$0xf]
    %v641 = vld [vmem:[#allocation2 + $0x30] sm:$0xf]
    %v642 = vld [vmem:[#allocation2 + $0x38] sm:$0xf]
    %v651 = vunpack.c.l.b16 %v635
    %v652 = vunpack.c.l.b16 %v636
    %v653 = vunpack.c.l.b16 %v637
    %v654 = vunpack.c.l.b16 %v638
    %v655 = vunpack.c.l.b16 %v639
    %v656 = vunpack.c.l.b16 %v640
    %v657 = vunpack.c.l.b16 %v641
    %v658 = vunpack.c.l.b16 %v642
    %v659 = vpack.c.b16 %v652, %v651
    %v660 = vpack.c.b16 %v654, %v653
    %v661 = vpack.c.b16 %v656, %v655
    %v662 = vpack.c.b16 %v658, %v657
    %667 = vst [vmem:[#allocation3] sm:$0xff] %v659
    %668 = vst [vmem:[#allocation3 + $0x18] sm:$0xff] %v660
    %669 = vst [vmem:[#allocation3 + $0x30] sm:$0xff] %v661
    %670 = vst [vmem:[#allocation3 + $0x48] sm:$0xff] %v662
    %v671 = vld [vmem:[#allocation2] sm:$0xf]
    %v672 = vld [vmem:[#allocation2 + $0x4] sm:$0x1]
    %v673 = vld [vmem:[#allocation2 + $0x8] sm:$0xf]
    %v674 = vld [vmem:[#allocation2 + $0xc] sm:$0x1]
    %v675 = vld [vmem:[#allocation2 + $0x10] sm:$0xf]
    %v676 = vld [vmem:[#allocation2 + $0x14] sm:$0x1]
    %v677 = vld [vmem:[#allocation2 + $0x18] sm:$0xf]
    %v678 = vld [vmem:[#allocation2 + $0x1c] sm:$0x1]
    %v679 = vld [vmem:[#allocation2 + $0x20] sm:$0xf]
    %v680 = vld [vmem:[#allocation2 + $0x24] sm:$0x1]
    %v681 = vld [vmem:[#allocation2 + $0x28] sm:$0xf]
    %v682 = vld [vmem:[#allocation2 + $0x2c] sm:$0x1]
    %v683 = vld [vmem:[#allocation2 + $0x30] sm:$0xf]
    %v684 = vld [vmem:[#allocation2 + $0x34] sm:$0x1]
    %v685 = vld [vmem:[#allocation2 + $0x38] sm:$0xf]
    %v686 = vld [vmem:[#allocation2 + $0x3c] sm:$0x1]
    %vm687 = vsmask.f32 3328
    %vm688 = vsmask.f32 7440
    %vm689 = vmor %vm687, %vm688
    %v691 = vshrl.u32 %v671, 16
    %v693 = vrot.slane %v691, 4
    %v694 = vshll.u32 %v671, 16
    %v696 = vrot.slane %v694, 5
    %v697 = vor.u32 %v693, %v696
    %v698 = vrot.slane %v697, 4
    %v700 = vshll.u32 %v672, 16
    %v702 = vrot.slane %v700, 5
    %v703 = vsel %vm689, %v698, %v702
    %v705 = vshrl.u32 %v673, 16
    %v707 = vrot.slane %v705, 4
    %v708 = vshll.u32 %v673, 16
    %v710 = vrot.slane %v708, 5
    %v711 = vor.u32 %v707, %v710
    %v712 = vrot.slane %v711, 4
    %v714 = vshll.u32 %v674, 16
    %v716 = vrot.slane %v714, 5
    %v717 = vsel %vm689, %v712, %v716
    %v719 = vshrl.u32 %v675, 16
    %v721 = vrot.slane %v719, 4
    %v722 = vshll.u32 %v675, 16
    %v724 = vrot.slane %v722, 5
    %v725 = vor.u32 %v721, %v724
    %v726 = vrot.slane %v725, 4
    %v728 = vshll.u32 %v676, 16
    %v730 = vrot.slane %v728, 5
    %v731 = vsel %vm689, %v726, %v730
    %v733 = vshrl.u32 %v677, 16
    %v735 = vrot.slane %v733, 4
    %v736 = vshll.u32 %v677, 16
    %v738 = vrot.slane %v736, 5
    %v739 = vor.u32 %v735, %v738
    %v740 = vrot.slane %v739, 4
    %v742 = vshll.u32 %v678, 16
    %v744 = vrot.slane %v742, 5
    %v745 = vsel %vm689, %v740, %v744
    %v747 = vshrl.u32 %v679, 16
    %v749 = vrot.slane %v747, 4
    %v750 = vshll.u32 %v679, 16
    %v752 = vrot.slane %v750, 5
    %v753 = vor.u32 %v749, %v752
    %v754 = vrot.slane %v753, 4
    %v756 = vshll.u32 %v680, 16
    %v758 = vrot.slane %v756, 5
    %v759 = vsel %vm689, %v754, %v758
    %v761 = vshrl.u32 %v681, 16
    %v763 = vrot.slane %v761, 4
    %v764 = vshll.u32 %v681, 16
    %v766 = vrot.slane %v764, 5
    %v767 = vor.u32 %v763, %v766
    %v768 = vrot.slane %v767, 4
    %v770 = vshll.u32 %v682, 16
    %v772 = vrot.slane %v770, 5
    %v773 = vsel %vm689, %v768, %v772
    %v775 = vshrl.u32 %v683, 16
    %v777 = vrot.slane %v775, 4
    %v778 = vshll.u32 %v683, 16
    %v780 = vrot.slane %v778, 5
    %v781 = vor.u32 %v777, %v780
    %v782 = vrot.slane %v781, 4
    %v784 = vshll.u32 %v684, 16
    %v786 = vrot.slane %v784, 5
    %v787 = vsel %vm689, %v782, %v786
    %v789 = vshrl.u32 %v685, 16
    %v791 = vrot.slane %v789, 4
    %v792 = vshll.u32 %v685, 16
    %v794 = vrot.slane %v792, 5
    %v795 = vor.u32 %v791, %v794
    %v796 = vrot.slane %v795, 4
    %v798 = vshll.u32 %v686, 16
    %v800 = vrot.slane %v798, 5
    %v801 = vsel %vm689, %v796, %v800
    %v802 = vunpack.c.l.b16 %v703
    %v803 = vunpack.c.l.b16 %v717
    %v804 = vunpack.c.l.b16 %v731
    %v805 = vunpack.c.l.b16 %v745
    %v806 = vunpack.c.l.b16 %v759
    %v807 = vunpack.c.l.b16 %v773
    %v808 = vunpack.c.l.b16 %v787
    %v809 = vunpack.c.l.b16 %v801
    %v810 = vpack.c.b16 %v803, %v802
    %v811 = vpack.c.b16 %v805, %v804
    %v812 = vpack.c.b16 %v807, %v806
    %v813 = vpack.c.b16 %v809, %v808
    %818 = vst [vmem:[#allocation3 + $0x8] sm:$0xff] %v810
    %819 = vst [vmem:[#allocation3 + $0x20] sm:$0xff] %v811
    %820 = vst [vmem:[#allocation3 + $0x38] sm:$0xff] %v812
    %821 = vst [vmem:[#allocation3 + $0x50] sm:$0xff] %v813
    %v822 = vld [vmem:[#allocation2] sm:$0xe]
    %v823 = vld [vmem:[#allocation2 + $0x4] sm:$0x1]
    %v824 = vld [vmem:[#allocation2 + $0x8] sm:$0xe]
    %v825 = vld [vmem:[#allocation2 + $0xc] sm:$0x1]
    %v826 = vld [vmem:[#allocation2 + $0x10] sm:$0xe]
    %v827 = vld [vmem:[#allocation2 + $0x14] sm:$0x1]
    %v828 = vld [vmem:[#allocation2 + $0x18] sm:$0xe]
    %v829 = vld [vmem:[#allocation2 + $0x1c] sm:$0x1]
    %v830 = vld [vmem:[#allocation2 + $0x20] sm:$0xe]
    %v831 = vld [vmem:[#allocation2 + $0x24] sm:$0x1]
    %v832 = vld [vmem:[#allocation2 + $0x28] sm:$0xe]
    %v833 = vld [vmem:[#allocation2 + $0x2c] sm:$0x1]
    %v834 = vld [vmem:[#allocation2 + $0x30] sm:$0xe]
    %v835 = vld [vmem:[#allocation2 + $0x34] sm:$0x1]
    %v836 = vld [vmem:[#allocation2 + $0x38] sm:$0xe]
    %v837 = vld [vmem:[#allocation2 + $0x3c] sm:$0x1]
    %vm854 = vcmask 1042432
    %vm855 = vcmask 1046532
    %vm856 = vmor %vm854, %vm855
    %v857 = vrot.slane %v822, 5
    %v858 = vrot.slane %v857, 4
    %v859 = vrot.slane %v823, 5
    %v860 = vsel %vm856, %v858, %v859
    %v861 = vrot.slane %v824, 5
    %v862 = vrot.slane %v861, 4
    %v863 = vrot.slane %v825, 5
    %v864 = vsel %vm856, %v862, %v863
    %v865 = vrot.slane %v826, 5
    %v866 = vrot.slane %v865, 4
    %v867 = vrot.slane %v827, 5
    %v868 = vsel %vm856, %v866, %v867
    %v869 = vrot.slane %v828, 5
    %v870 = vrot.slane %v869, 4
    %v871 = vrot.slane %v829, 5
    %v872 = vsel %vm856, %v870, %v871
    %v873 = vrot.slane %v830, 5
    %v874 = vrot.slane %v873, 4
    %v875 = vrot.slane %v831, 5
    %v876 = vsel %vm856, %v874, %v875
    %v877 = vrot.slane %v832, 5
    %v878 = vrot.slane %v877, 4
    %v879 = vrot.slane %v833, 5
    %v880 = vsel %vm856, %v878, %v879
    %v881 = vrot.slane %v834, 5
    %v882 = vrot.slane %v881, 4
    %v883 = vrot.slane %v835, 5
    %v884 = vsel %vm856, %v882, %v883
    %v885 = vrot.slane %v836, 5
    %v886 = vrot.slane %v885, 4
    %v887 = vrot.slane %v837, 5
    %v888 = vsel %vm856, %v886, %v887
    %v889 = vunpack.c.l.b16 %v860
    %v890 = vunpack.c.l.b16 %v864
    %v891 = vunpack.c.l.b16 %v868
    %v892 = vunpack.c.l.b16 %v872
    %v893 = vunpack.c.l.b16 %v876
    %v894 = vunpack.c.l.b16 %v880
    %v895 = vunpack.c.l.b16 %v884
    %v896 = vunpack.c.l.b16 %v888
    %v897 = vpack.c.b16 %v890, %v889
    %v898 = vpack.c.b16 %v892, %v891
    %v899 = vpack.c.b16 %v894, %v893
    %v900 = vpack.c.b16 %v896, %v895
    %905 = vst [vmem:[#allocation3 + $0x10] sm:$0xff] %v897
    %906 = vst [vmem:[#allocation3 + $0x28] sm:$0xff] %v898
    %907 = vst [vmem:[#allocation3 + $0x40] sm:$0xff] %v899
    %908 = vst [vmem:[#allocation3 + $0x58] sm:$0xff] %v900
    %v909 = vld [vmem:[%s452] sm:$0xf]
    %v910 = vld [vmem:[%s452 + $0x8] sm:$0xf]
    %v911 = vld [vmem:[%s452 + $0x10] sm:$0xf]
    %v912 = vld [vmem:[%s452 + $0x18] sm:$0xf]
    %v913 = vld [vmem:[%s452 + $0x20] sm:$0xf]
    %v914 = vld [vmem:[%s452 + $0x28] sm:$0xf]
    %v915 = vld [vmem:[%s452 + $0x30] sm:$0xf]
    %v916 = vld [vmem:[%s452 + $0x38] sm:$0xf]
    %v925 = vunpack.c.l.b16 %v909
    %v926 = vunpack.c.l.b16 %v910
    %v927 = vunpack.c.l.b16 %v911
    %v928 = vunpack.c.l.b16 %v912
    %v929 = vunpack.c.l.b16 %v913
    %v930 = vunpack.c.l.b16 %v914
    %v931 = vunpack.c.l.b16 %v915
    %v932 = vunpack.c.l.b16 %v916
    %v933 = vpack.c.b16 %v926, %v925
    %v934 = vpack.c.b16 %v928, %v927
    %v935 = vpack.c.b16 %v930, %v929
    %v936 = vpack.c.b16 %v932, %v931
    %941 = vst [vmem:[#allocation3 + $0x60] sm:$0xff] %v933
    %942 = vst [vmem:[#allocation3 + $0x78] sm:$0xff] %v934
    %943 = vst [vmem:[#allocation3 + $0x90] sm:$0xff] %v935
    %944 = vst [vmem:[#allocation3 + $0xa8] sm:$0xff] %v936
    %v945 = vld [vmem:[%s452] sm:$0xf]
    %v946 = vld [vmem:[%s452 + $0x4] sm:$0x1]
    %v947 = vld [vmem:[%s452 + $0x8] sm:$0xf]
    %v948 = vld [vmem:[%s452 + $0xc] sm:$0x1]
    %v949 = vld [vmem:[%s452 + $0x10] sm:$0xf]
    %v950 = vld [vmem:[%s452 + $0x14] sm:$0x1]
    %v951 = vld [vmem:[%s452 + $0x18] sm:$0xf]
    %v952 = vld [vmem:[%s452 + $0x1c] sm:$0x1]
    %v953 = vld [vmem:[%s452 + $0x20] sm:$0xf]
    %v954 = vld [vmem:[%s452 + $0x24] sm:$0x1]
    %v955 = vld [vmem:[%s452 + $0x28] sm:$0xf]
    %v956 = vld [vmem:[%s452 + $0x2c] sm:$0x1]
    %v957 = vld [vmem:[%s452 + $0x30] sm:$0xf]
    %v958 = vld [vmem:[%s452 + $0x34] sm:$0x1]
    %v959 = vld [vmem:[%s452 + $0x38] sm:$0xf]
    %v960 = vld [vmem:[%s452 + $0x3c] sm:$0x1]
    %v962 = vshrl.u32 %v945, 16
    %v964 = vrot.slane %v962, 4
    %v965 = vshll.u32 %v945, 16
    %v967 = vrot.slane %v965, 5
    %v968 = vor.u32 %v964, %v967
    %v969 = vrot.slane %v968, 4
    %v971 = vshll.u32 %v946, 16
    %v973 = vrot.slane %v971, 5
    %v974 = vsel %vm689, %v969, %v973
    %v976 = vshrl.u32 %v947, 16
    %v978 = vrot.slane %v976, 4
    %v979 = vshll.u32 %v947, 16
    %v981 = vrot.slane %v979, 5
    %v982 = vor.u32 %v978, %v981
    %v983 = vrot.slane %v982, 4
    %v985 = vshll.u32 %v948, 16
    %v987 = vrot.slane %v985, 5
    %v988 = vsel %vm689, %v983, %v987
    %v990 = vshrl.u32 %v949, 16
    %v992 = vrot.slane %v990, 4
    %v993 = vshll.u32 %v949, 16
    %v995 = vrot.slane %v993, 5
    %v996 = vor.u32 %v992, %v995
    %v997 = vrot.slane %v996, 4
    %v999 = vshll.u32 %v950, 16
    %v1001 = vrot.slane %v999, 5
    %v1002 = vsel %vm689, %v997, %v1001
    %v1004 = vshrl.u32 %v951, 16
    %v1006 = vrot.slane %v1004, 4
    %v1007 = vshll.u32 %v951, 16
    %v1009 = vrot.slane %v1007, 5
    %v1010 = vor.u32 %v1006, %v1009
    %v1011 = vrot.slane %v1010, 4
    %v1013 = vshll.u32 %v952, 16
    %v1015 = vrot.slane %v1013, 5
    %v1016 = vsel %vm689, %v1011, %v1015
    %v1018 = vshrl.u32 %v953, 16
    %v1020 = vrot.slane %v1018, 4
    %v1021 = vshll.u32 %v953, 16
    %v1023 = vrot.slane %v1021, 5
    %v1024 = vor.u32 %v1020, %v1023
    %v1025 = vrot.slane %v1024, 4
    %v1027 = vshll.u32 %v954, 16
    %v1029 = vrot.slane %v1027, 5
    %v1030 = vsel %vm689, %v1025, %v1029
    %v1032 = vshrl.u32 %v955, 16
    %v1034 = vrot.slane %v1032, 4
    %v1035 = vshll.u32 %v955, 16
    %v1037 = vrot.slane %v1035, 5
    %v1038 = vor.u32 %v1034, %v1037
    %v1039 = vrot.slane %v1038, 4
    %v1041 = vshll.u32 %v956, 16
    %v1043 = vrot.slane %v1041, 5
    %v1044 = vsel %vm689, %v1039, %v1043
    %v1046 = vshrl.u32 %v957, 16
    %v1048 = vrot.slane %v1046, 4
    %v1049 = vshll.u32 %v957, 16
    %v1051 = vrot.slane %v1049, 5
    %v1052 = vor.u32 %v1048, %v1051
    %v1053 = vrot.slane %v1052, 4
    %v1055 = vshll.u32 %v958, 16
    %v1057 = vrot.slane %v1055, 5
    %v1058 = vsel %vm689, %v1053, %v1057
    %v1060 = vshrl.u32 %v959, 16
    %v1062 = vrot.slane %v1060, 4
    %v1063 = vshll.u32 %v959, 16
    %v1065 = vrot.slane %v1063, 5
    %v1066 = vor.u32 %v1062, %v1065
    %v1067 = vrot.slane %v1066, 4
    %v1069 = vshll.u32 %v960, 16
    %v1071 = vrot.slane %v1069, 5
    %v1072 = vsel %vm689, %v1067, %v1071
    %v1073 = vunpack.c.l.b16 %v974
    %v1074 = vunpack.c.l.b16 %v988
    %v1075 = vunpack.c.l.b16 %v1002
    %v1076 = vunpack.c.l.b16 %v1016
    %v1077 = vunpack.c.l.b16 %v1030
    %v1078 = vunpack.c.l.b16 %v1044
    %v1079 = vunpack.c.l.b16 %v1058
    %v1080 = vunpack.c.l.b16 %v1072
    %v1081 = vpack.c.b16 %v1074, %v1073
    %v1082 = vpack.c.b16 %v1076, %v1075
    %v1083 = vpack.c.b16 %v1078, %v1077
    %v1084 = vpack.c.b16 %v1080, %v1079
    %1089 = vst [vmem:[#allocation3 + $0x68] sm:$0xff] %v1081
    %1090 = vst [vmem:[#allocation3 + $0x80] sm:$0xff] %v1082
    %1091 = vst [vmem:[#allocation3 + $0x98] sm:$0xff] %v1083
    %1092 = vst [vmem:[#allocation3 + $0xb0] sm:$0xff] %v1084
    %v1093 = vld [vmem:[%s452] sm:$0xe]
    %v1094 = vld [vmem:[%s452 + $0x4] sm:$0x1]
    %v1095 = vld [vmem:[%s452 + $0x8] sm:$0xe]
    %v1096 = vld [vmem:[%s452 + $0xc] sm:$0x1]
    %v1097 = vld [vmem:[%s452 + $0x10] sm:$0xe]
    %v1098 = vld [vmem:[%s452 + $0x14] sm:$0x1]
    %v1099 = vld [vmem:[%s452 + $0x18] sm:$0xe]
    %v1100 = vld [vmem:[%s452 + $0x1c] sm:$0x1]
    %v1101 = vld [vmem:[%s452 + $0x20] sm:$0xe]
    %v1102 = vld [vmem:[%s452 + $0x24] sm:$0x1]
    %v1103 = vld [vmem:[%s452 + $0x28] sm:$0xe]
    %v1104 = vld [vmem:[%s452 + $0x2c] sm:$0x1]
    %v1105 = vld [vmem:[%s452 + $0x30] sm:$0xe]
    %v1106 = vld [vmem:[%s452 + $0x34] sm:$0x1]
    %v1107 = vld [vmem:[%s452 + $0x38] sm:$0xe]
    %v1108 = vld [vmem:[%s452 + $0x3c] sm:$0x1]
    %v1125 = vrot.slane %v1093, 5
    %v1126 = vrot.slane %v1125, 4
    %v1127 = vrot.slane %v1094, 5
    %v1128 = vsel %vm856, %v1126, %v1127
    %v1129 = vrot.slane %v1095, 5
    %v1130 = vrot.slane %v1129, 4
    %v1131 = vrot.slane %v1096, 5
    %v1132 = vsel %vm856, %v1130, %v1131
    %v1133 = vrot.slane %v1097, 5
    %v1134 = vrot.slane %v1133, 4
    %v1135 = vrot.slane %v1098, 5
    %v1136 = vsel %vm856, %v1134, %v1135
    %v1137 = vrot.slane %v1099, 5
    %v1138 = vrot.slane %v1137, 4
    %v1139 = vrot.slane %v1100, 5
    %v1140 = vsel %vm856, %v1138, %v1139
    %v1141 = vrot.slane %v1101, 5
    %v1142 = vrot.slane %v1141, 4
    %v1143 = vrot.slane %v1102, 5
    %v1144 = vsel %vm856, %v1142, %v1143
    %v1145 = vrot.slane %v1103, 5
    %v1146 = vrot.slane %v1145, 4
    %v1147 = vrot.slane %v1104, 5
    %v1148 = vsel %vm856, %v1146, %v1147
    %v1149 = vrot.slane %v1105, 5
    %v1150 = vrot.slane %v1149, 4
    %v1151 = vrot.slane %v1106, 5
    %v1152 = vsel %vm856, %v1150, %v1151
    %v1153 = vrot.slane %v1107, 5
    %v1154 = vrot.slane %v1153, 4
    %v1155 = vrot.slane %v1108, 5
    %v1156 = vsel %vm856, %v1154, %v1155
    %v1157 = vunpack.c.l.b16 %v1128
    %v1158 = vunpack.c.l.b16 %v1132
    %v1159 = vunpack.c.l.b16 %v1136
    %v1160 = vunpack.c.l.b16 %v1140
    %v1161 = vunpack.c.l.b16 %v1144
    %v1162 = vunpack.c.l.b16 %v1148
    %v1163 = vunpack.c.l.b16 %v1152
    %v1164 = vunpack.c.l.b16 %v1156
    %v1165 = vpack.c.b16 %v1158, %v1157
    %v1166 = vpack.c.b16 %v1160, %v1159
    %v1167 = vpack.c.b16 %v1162, %v1161
    %v1168 = vpack.c.b16 %v1164, %v1163
    %1173 = vst [vmem:[#allocation3 + $0x70] sm:$0xff] %v1165
    %1174 = vst [vmem:[#allocation3 + $0x88] sm:$0xff] %v1166
    %1175 = vst [vmem:[#allocation3 + $0xa0] sm:$0xff] %v1167
    %1176 = vst [vmem:[#allocation3 + $0xb8] sm:$0xff] %v1168
    %v1177 = vld [vmem:[#allocation3] sm:$0xff]
    %v1178 = vld [vmem:[#allocation3 + $0x8] sm:$0xff]
    %v1179 = vld [vmem:[#allocation3 + $0x10] sm:$0xff]
    %v1180 = vld [vmem:[#allocation3 + $0x18] sm:$0xff]
    %v1181 = vld [vmem:[#allocation3 + $0x20] sm:$0xff]
    %v1182 = vld [vmem:[#allocation3 + $0x28] sm:$0xff]
    %v1183 = vld [vmem:[#allocation3 + $0x30] sm:$0xff]
    %v1184 = vld [vmem:[#allocation3 + $0x38] sm:$0xff]
    %v1185 = vld [vmem:[#allocation3 + $0x40] sm:$0xff]
    %v1186 = vld [vmem:[#allocation3 + $0x48] sm:$0xff]
    %v1187 = vld [vmem:[#allocation3 + $0x50] sm:$0xff]
    %v1188 = vld [vmem:[#allocation3 + $0x58] sm:$0xff]
    %v1189 = vld [vmem:[#allocation3 + $0x60] sm:$0xff]
    %v1190 = vld [vmem:[#allocation3 + $0x68] sm:$0xff]
    %v1191 = vld [vmem:[#allocation3 + $0x70] sm:$0xff]
    %v1192 = vld [vmem:[#allocation3 + $0x78] sm:$0xff]
    %v1193 = vld [vmem:[#allocation3 + $0x80] sm:$0xff]
    %v1194 = vld [vmem:[#allocation3 + $0x88] sm:$0xff]
    %v1195 = vld [vmem:[#allocation3 + $0x90] sm:$0xff]
    %v1196 = vld [vmem:[#allocation3 + $0x98] sm:$0xff]
    %v1197 = vld [vmem:[#allocation3 + $0xa0] sm:$0xff]
    %v1198 = vld [vmem:[#allocation3 + $0xa8] sm:$0xff]
    %v1199 = vld [vmem:[#allocation3 + $0xb0] sm:$0xff]
    %v1200 = vld [vmem:[#allocation3 + $0xb8] sm:$0xff]
    %v1201 = vld [vmem:[%s3] sm:$0xf]
    %v1202 = vld [vmem:[%s3 + $0x4] sm:$0xf]
    %v1203 = vld [vmem:[%s3 + $0x8] sm:$0xf]
    %v1204 = vld [vmem:[%s3 + $0xc] sm:$0xf]
    %v1205 = vld [vmem:[%s3 + $0x10] sm:$0xf]
    %v1206 = vld [vmem:[%s3 + $0x14] sm:$0xf]
    %v1207 = vld [vmem:[%s3 + $0x18] sm:$0xf]
    %v1208 = vld [vmem:[%s3 + $0x1c] sm:$0xf]
    %v1209 = vld [vmem:[%s3 + $0x20] sm:$0xf]
    %v1210 = vld [vmem:[%s3 + $0x24] sm:$0xf]
    %v1211 = vld [vmem:[%s3 + $0x28] sm:$0xf]
    %v1212 = vld [vmem:[%s3 + $0x2c] sm:$0xf]
    %v1213 = vld [vmem:[%s3 + $0x30] sm:$0xf]
    %v1214 = vld [vmem:[%s3 + $0x34] sm:$0xf]
    %v1215 = vld [vmem:[%s3 + $0x38] sm:$0xf]
    %v1216 = vld [vmem:[%s3 + $0x3c] sm:$0xf]
    %v1217 = vld [vmem:[%s3 + $0x40] sm:$0xf]
    %v1218 = vld [vmem:[%s3 + $0x44] sm:$0xf]
    %v1219 = vld [vmem:[%s3 + $0x48] sm:$0xf]
    %v1220 = vld [vmem:[%s3 + $0x4c] sm:$0xf]
    %v1221 = vld [vmem:[%s3 + $0x50] sm:$0xf]
    %v1222 = vld [vmem:[%s3 + $0x54] sm:$0xf]
    %v1223 = vld [vmem:[%s3 + $0x58] sm:$0xf]
    %v1224 = vld [vmem:[%s3 + $0x5c] sm:$0xf]
    %v1225 = vld [vmem:[%s3 + $0x60] sm:$0xf]
    %v1226 = vld [vmem:[%s3 + $0x64] sm:$0xf]
    %v1227 = vld [vmem:[%s3 + $0x68] sm:$0xf]
    %v1228 = vld [vmem:[%s3 + $0x6c] sm:$0xf]
    %v1229 = vld [vmem:[%s3 + $0x70] sm:$0xf]
    %v1230 = vld [vmem:[%s3 + $0x74] sm:$0xf]
    %v1231 = vld [vmem:[%s3 + $0x78] sm:$0xf]
    %v1232 = vld [vmem:[%s3 + $0x7c] sm:$0xf]
    %v1233 = vld [vmem:[%s3 + $0x80] sm:$0xf]
    %v1234 = vld [vmem:[%s3 + $0x84] sm:$0xf]
    %v1235 = vld [vmem:[%s3 + $0x88] sm:$0xf]
    %v1236 = vld [vmem:[%s3 + $0x8c] sm:$0xf]
    %v1237 = vld [vmem:[%s3 + $0x90] sm:$0xf]
    %v1238 = vld [vmem:[%s3 + $0x94] sm:$0xf]
    %v1239 = vld [vmem:[%s3 + $0x98] sm:$0xf]
    %v1240 = vld [vmem:[%s3 + $0x9c] sm:$0xf]
    %v1241 = vld [vmem:[%s3 + $0xa0] sm:$0xf]
    %v1242 = vld [vmem:[%s3 + $0xa4] sm:$0xf]
    %v1243 = vld [vmem:[%s3 + $0xa8] sm:$0xf]
    %v1244 = vld [vmem:[%s3 + $0xac] sm:$0xf]
    %v1245 = vld [vmem:[%s3 + $0xb0] sm:$0xf]
    %v1246 = vld [vmem:[%s3 + $0xb4] sm:$0xf]
    %v1247 = vld [vmem:[%s3 + $0xb8] sm:$0xf]
    %v1248 = vld [vmem:[%s3 + $0xbc] sm:$0xf]
    %v1249 = vld [vmem:[%s268] sm:$0xf]
    %v1250 = vld [vmem:[%s268 + $0x8] sm:$0xf]
    %v1251 = vld [vmem:[%s268 + $0x10] sm:$0xf]
    %v1252 = vld [vmem:[%s268 + $0x18] sm:$0xf]
    %v1253 = vld [vmem:[%s268 + $0x20] sm:$0xf]
    %v1254 = vld [vmem:[%s268 + $0x28] sm:$0xf]
    %v1255 = vld [vmem:[%s268 + $0x30] sm:$0xf]
    %v1256 = vld [vmem:[%s268 + $0x38] sm:$0xf]
    %v1265 = vunpack.c.l.b16 %v1249
    %v1266 = vunpack.c.l.b16 %v1250
    %v1267 = vunpack.c.l.b16 %v1251
    %v1268 = vunpack.c.l.b16 %v1252
    %v1269 = vunpack.c.l.b16 %v1253
    %v1270 = vunpack.c.l.b16 %v1254
    %v1271 = vunpack.c.l.b16 %v1255
    %v1272 = vunpack.c.l.b16 %v1256
    %v1273 = vpack.c.b16 %v1266, %v1265
    %v1274 = vpack.c.b16 %v1268, %v1267
    %v1275 = vpack.c.b16 %v1270, %v1269
    %v1276 = vpack.c.b16 %v1272, %v1271
    %1281 = vst [vmem:[#allocation3] sm:$0xff] %v1273
    %1282 = vst [vmem:[#allocation3 + $0x18] sm:$0xff] %v1274
    %1283 = vst [vmem:[#allocation3 + $0x30] sm:$0xff] %v1275
    %1284 = vst [vmem:[#allocation3 + $0x48] sm:$0xff] %v1276
    %v1285 = vld [vmem:[%s268] sm:$0xf]
    %v1286 = vld [vmem:[%s268 + $0x4] sm:$0x1]
    %v1287 = vld [vmem:[%s268 + $0x8] sm:$0xf]
    %v1288 = vld [vmem:[%s268 + $0xc] sm:$0x1]
    %v1289 = vld [vmem:[%s268 + $0x10] sm:$0xf]
    %v1290 = vld [vmem:[%s268 + $0x14] sm:$0x1]
    %v1291 = vld [vmem:[%s268 + $0x18] sm:$0xf]
    %v1292 = vld [vmem:[%s268 + $0x1c] sm:$0x1]
    %v1293 = vld [vmem:[%s268 + $0x20] sm:$0xf]
    %v1294 = vld [vmem:[%s268 + $0x24] sm:$0x1]
    %v1295 = vld [vmem:[%s268 + $0x28] sm:$0xf]
    %v1296 = vld [vmem:[%s268 + $0x2c] sm:$0x1]
    %v1297 = vld [vmem:[%s268 + $0x30] sm:$0xf]
    %v1298 = vld [vmem:[%s268 + $0x34] sm:$0x1]
    %v1299 = vld [vmem:[%s268 + $0x38] sm:$0xf]
    %v1300 = vld [vmem:[%s268 + $0x3c] sm:$0x1]
    %v1302 = vshrl.u32 %v1285, 16
    %v1304 = vrot.slane %v1302, 4
    %v1305 = vshll.u32 %v1285, 16
    %v1307 = vrot.slane %v1305, 5
    %v1308 = vor.u32 %v1304, %v1307
    %v1309 = vrot.slane %v1308, 4
    %v1311 = vshll.u32 %v1286, 16
    %v1313 = vrot.slane %v1311, 5
    %v1314 = vsel %vm689, %v1309, %v1313
    %v1316 = vshrl.u32 %v1287, 16
    %v1318 = vrot.slane %v1316, 4
    %v1319 = vshll.u32 %v1287, 16
    %v1321 = vrot.slane %v1319, 5
    %v1322 = vor.u32 %v1318, %v1321
    %v1323 = vrot.slane %v1322, 4
    %v1325 = vshll.u32 %v1288, 16
    %v1327 = vrot.slane %v1325, 5
    %v1328 = vsel %vm689, %v1323, %v1327
    %v1330 = vshrl.u32 %v1289, 16
    %v1332 = vrot.slane %v1330, 4
    %v1333 = vshll.u32 %v1289, 16
    %v1335 = vrot.slane %v1333, 5
    %v1336 = vor.u32 %v1332, %v1335
    %v1337 = vrot.slane %v1336, 4
    %v1339 = vshll.u32 %v1290, 16
    %v1341 = vrot.slane %v1339, 5
    %v1342 = vsel %vm689, %v1337, %v1341
    %v1344 = vshrl.u32 %v1291, 16
    %v1346 = vrot.slane %v1344, 4
    %v1347 = vshll.u32 %v1291, 16
    %v1349 = vrot.slane %v1347, 5
    %v1350 = vor.u32 %v1346, %v1349
    %v1351 = vrot.slane %v1350, 4
    %v1353 = vshll.u32 %v1292, 16
    %v1355 = vrot.slane %v1353, 5
    %v1356 = vsel %vm689, %v1351, %v1355
    %v1358 = vshrl.u32 %v1293, 16
    %v1360 = vrot.slane %v1358, 4
    %v1361 = vshll.u32 %v1293, 16
    %v1363 = vrot.slane %v1361, 5
    %v1364 = vor.u32 %v1360, %v1363
    %v1365 = vrot.slane %v1364, 4
    %v1367 = vshll.u32 %v1294, 16
    %v1369 = vrot.slane %v1367, 5
    %v1370 = vsel %vm689, %v1365, %v1369
    %v1372 = vshrl.u32 %v1295, 16
    %v1374 = vrot.slane %v1372, 4
    %v1375 = vshll.u32 %v1295, 16
    %v1377 = vrot.slane %v1375, 5
    %v1378 = vor.u32 %v1374, %v1377
    %v1379 = vrot.slane %v1378, 4
    %v1381 = vshll.u32 %v1296, 16
    %v1383 = vrot.slane %v1381, 5
    %v1384 = vsel %vm689, %v1379, %v1383
    %v1386 = vshrl.u32 %v1297, 16
    %v1388 = vrot.slane %v1386, 4
    %v1389 = vshll.u32 %v1297, 16
    %v1391 = vrot.slane %v1389, 5
    %v1392 = vor.u32 %v1388, %v1391
    %v1393 = vrot.slane %v1392, 4
    %v1395 = vshll.u32 %v1298, 16
    %v1397 = vrot.slane %v1395, 5
    %v1398 = vsel %vm689, %v1393, %v1397
    %v1400 = vshrl.u32 %v1299, 16
    %v1402 = vrot.slane %v1400, 4
    %v1403 = vshll.u32 %v1299, 16
    %v1405 = vrot.slane %v1403, 5
    %v1406 = vor.u32 %v1402, %v1405
    %v1407 = vrot.slane %v1406, 4
    %v1409 = vshll.u32 %v1300, 16
    %v1411 = vrot.slane %v1409, 5
    %v1412 = vsel %vm689, %v1407, %v1411
    %v1413 = vunpack.c.l.b16 %v1314
    %v1414 = vunpack.c.l.b16 %v1328
    %v1415 = vunpack.c.l.b16 %v1342
    %v1416 = vunpack.c.l.b16 %v1356
    %v1417 = vunpack.c.l.b16 %v1370
    %v1418 = vunpack.c.l.b16 %v1384
    %v1419 = vunpack.c.l.b16 %v1398
    %v1420 = vunpack.c.l.b16 %v1412
    %v1421 = vpack.c.b16 %v1414, %v1413
    %v1422 = vpack.c.b16 %v1416, %v1415
    %v1423 = vpack.c.b16 %v1418, %v1417
    %v1424 = vpack.c.b16 %v1420, %v1419
    %1429 = vst [vmem:[#allocation3 + $0x8] sm:$0xff] %v1421
    %1430 = vst [vmem:[#allocation3 + $0x20] sm:$0xff] %v1422
    %1431 = vst [vmem:[#allocation3 + $0x38] sm:$0xff] %v1423
    %1432 = vst [vmem:[#allocation3 + $0x50] sm:$0xff] %v1424
    %v1433 = vld [vmem:[%s268] sm:$0xe]
    %v1434 = vld [vmem:[%s268 + $0x4] sm:$0x1]
    %v1435 = vld [vmem:[%s268 + $0x8] sm:$0xe]
    %v1436 = vld [vmem:[%s268 + $0xc] sm:$0x1]
    %v1437 = vld [vmem:[%s268 + $0x10] sm:$0xe]
    %v1438 = vld [vmem:[%s268 + $0x14] sm:$0x1]
    %v1439 = vld [vmem:[%s268 + $0x18] sm:$0xe]
    %v1440 = vld [vmem:[%s268 + $0x1c] sm:$0x1]
    %v1441 = vld [vmem:[%s268 + $0x20] sm:$0xe]
    %v1442 = vld [vmem:[%s268 + $0x24] sm:$0x1]
    %v1443 = vld [vmem:[%s268 + $0x28] sm:$0xe]
    %v1444 = vld [vmem:[%s268 + $0x2c] sm:$0x1]
    %v1445 = vld [vmem:[%s268 + $0x30] sm:$0xe]
    %v1446 = vld [vmem:[%s268 + $0x34] sm:$0x1]
    %v1447 = vld [vmem:[%s268 + $0x38] sm:$0xe]
    %v1448 = vld [vmem:[%s268 + $0x3c] sm:$0x1]
    %v1465 = vrot.slane %v1433, 5
    %v1466 = vrot.slane %v1465, 4
    %v1467 = vrot.slane %v1434, 5
    %v1468 = vsel %vm856, %v1466, %v1467
    %v1469 = vrot.slane %v1435, 5
    %v1470 = vrot.slane %v1469, 4
    %v1471 = vrot.slane %v1436, 5
    %v1472 = vsel %vm856, %v1470, %v1471
    %v1473 = vrot.slane %v1437, 5
    %v1474 = vrot.slane %v1473, 4
    %v1475 = vrot.slane %v1438, 5
    %v1476 = vsel %vm856, %v1474, %v1475
    %v1477 = vrot.slane %v1439, 5
    %v1478 = vrot.slane %v1477, 4
    %v1479 = vrot.slane %v1440, 5
    %v1480 = vsel %vm856, %v1478, %v1479
    %v1481 = vrot.slane %v1441, 5
    %v1482 = vrot.slane %v1481, 4
    %v1483 = vrot.slane %v1442, 5
    %v1484 = vsel %vm856, %v1482, %v1483
    %v1485 = vrot.slane %v1443, 5
    %v1486 = vrot.slane %v1485, 4
    %v1487 = vrot.slane %v1444, 5
    %v1488 = vsel %vm856, %v1486, %v1487
    %v1489 = vrot.slane %v1445, 5
    %v1490 = vrot.slane %v1489, 4
    %v1491 = vrot.slane %v1446, 5
    %v1492 = vsel %vm856, %v1490, %v1491
    %v1493 = vrot.slane %v1447, 5
    %v1494 = vrot.slane %v1493, 4
    %v1495 = vrot.slane %v1448, 5
    %v1496 = vsel %vm856, %v1494, %v1495
    %v1497 = vunpack.c.l.b16 %v1468
    %v1498 = vunpack.c.l.b16 %v1472
    %v1499 = vunpack.c.l.b16 %v1476
    %v1500 = vunpack.c.l.b16 %v1480
    %v1501 = vunpack.c.l.b16 %v1484
    %v1502 = vunpack.c.l.b16 %v1488
    %v1503 = vunpack.c.l.b16 %v1492
    %v1504 = vunpack.c.l.b16 %v1496
    %v1505 = vpack.c.b16 %v1498, %v1497
    %v1506 = vpack.c.b16 %v1500, %v1499
    %v1507 = vpack.c.b16 %v1502, %v1501
    %v1508 = vpack.c.b16 %v1504, %v1503
    %1513 = vst [vmem:[#allocation3 + $0x10] sm:$0xff] %v1505
    %1514 = vst [vmem:[#allocation3 + $0x28] sm:$0xff] %v1506
    %1515 = vst [vmem:[#allocation3 + $0x40] sm:$0xff] %v1507
    %1516 = vst [vmem:[#allocation3 + $0x58] sm:$0xff] %v1508
    %v1517 = vld [vmem:[%s458] sm:$0xf]
    %v1518 = vld [vmem:[%s458 + $0x8] sm:$0xf]
    %v1519 = vld [vmem:[%s458 + $0x10] sm:$0xf]
    %v1520 = vld [vmem:[%s458 + $0x18] sm:$0xf]
    %v1521 = vld [vmem:[%s458 + $0x20] sm:$0xf]
    %v1522 = vld [vmem:[%s458 + $0x28] sm:$0xf]
    %v1523 = vld [vmem:[%s458 + $0x30] sm:$0xf]
    %v1524 = vld [vmem:[%s458 + $0x38] sm:$0xf]
    %v1533 = vunpack.c.l.b16 %v1517
    %v1534 = vunpack.c.l.b16 %v1518
    %v1535 = vunpack.c.l.b16 %v1519
    %v1536 = vunpack.c.l.b16 %v1520
    %v1537 = vunpack.c.l.b16 %v1521
    %v1538 = vunpack.c.l.b16 %v1522
    %v1539 = vunpack.c.l.b16 %v1523
    %v1540 = vunpack.c.l.b16 %v1524
    %v1541 = vpack.c.b16 %v1534, %v1533
    %v1542 = vpack.c.b16 %v1536, %v1535
    %v1543 = vpack.c.b16 %v1538, %v1537
    %v1544 = vpack.c.b16 %v1540, %v1539
    %1549 = vst [vmem:[#allocation3 + $0x60] sm:$0xff] %v1541
    %1550 = vst [vmem:[#allocation3 + $0x78] sm:$0xff] %v1542
    %1551 = vst [vmem:[#allocation3 + $0x90] sm:$0xff] %v1543
    %1552 = vst [vmem:[#allocation3 + $0xa8] sm:$0xff] %v1544
    %v1553 = vld [vmem:[%s458] sm:$0xf]
    %v1554 = vld [vmem:[%s458 + $0x4] sm:$0x1]
    %v1555 = vld [vmem:[%s458 + $0x8] sm:$0xf]
    %v1556 = vld [vmem:[%s458 + $0xc] sm:$0x1]
    %v1557 = vld [vmem:[%s458 + $0x10] sm:$0xf]
    %v1558 = vld [vmem:[%s458 + $0x14] sm:$0x1]
    %v1559 = vld [vmem:[%s458 + $0x18] sm:$0xf]
    %v1560 = vld [vmem:[%s458 + $0x1c] sm:$0x1]
    %v1561 = vld [vmem:[%s458 + $0x20] sm:$0xf]
    %v1562 = vld [vmem:[%s458 + $0x24] sm:$0x1]
    %v1563 = vld [vmem:[%s458 + $0x28] sm:$0xf]
    %v1564 = vld [vmem:[%s458 + $0x2c] sm:$0x1]
    %v1565 = vld [vmem:[%s458 + $0x30] sm:$0xf]
    %v1566 = vld [vmem:[%s458 + $0x34] sm:$0x1]
    %v1567 = vld [vmem:[%s458 + $0x38] sm:$0xf]
    %v1568 = vld [vmem:[%s458 + $0x3c] sm:$0x1]
    %v1570 = vshrl.u32 %v1553, 16
    %v1572 = vrot.slane %v1570, 4
    %v1573 = vshll.u32 %v1553, 16
    %v1575 = vrot.slane %v1573, 5
    %v1576 = vor.u32 %v1572, %v1575
    %v1577 = vrot.slane %v1576, 4
    %v1579 = vshll.u32 %v1554, 16
    %v1581 = vrot.slane %v1579, 5
    %v1582 = vsel %vm689, %v1577, %v1581
    %v1584 = vshrl.u32 %v1555, 16
    %v1586 = vrot.slane %v1584, 4
    %v1587 = vshll.u32 %v1555, 16
    %v1589 = vrot.slane %v1587, 5
    %v1590 = vor.u32 %v1586, %v1589
    %v1591 = vrot.slane %v1590, 4
    %v1593 = vshll.u32 %v1556, 16
    %v1595 = vrot.slane %v1593, 5
    %v1596 = vsel %vm689, %v1591, %v1595
    %v1598 = vshrl.u32 %v1557, 16
    %v1600 = vrot.slane %v1598, 4
    %v1601 = vshll.u32 %v1557, 16
    %v1603 = vrot.slane %v1601, 5
    %v1604 = vor.u32 %v1600, %v1603
    %v1605 = vrot.slane %v1604, 4
    %v1607 = vshll.u32 %v1558, 16
    %v1609 = vrot.slane %v1607, 5
    %v1610 = vsel %vm689, %v1605, %v1609
    %v1612 = vshrl.u32 %v1559, 16
    %v1614 = vrot.slane %v1612, 4
    %v1615 = vshll.u32 %v1559, 16
    %v1617 = vrot.slane %v1615, 5
    %v1618 = vor.u32 %v1614, %v1617
    %v1619 = vrot.slane %v1618, 4
    %v1621 = vshll.u32 %v1560, 16
    %v1623 = vrot.slane %v1621, 5
    %v1624 = vsel %vm689, %v1619, %v1623
    %v1626 = vshrl.u32 %v1561, 16
    %v1628 = vrot.slane %v1626, 4
    %v1629 = vshll.u32 %v1561, 16
    %v1631 = vrot.slane %v1629, 5
    %v1632 = vor.u32 %v1628, %v1631
    %v1633 = vrot.slane %v1632, 4
    %v1635 = vshll.u32 %v1562, 16
    %v1637 = vrot.slane %v1635, 5
    %v1638 = vsel %vm689, %v1633, %v1637
    %v1640 = vshrl.u32 %v1563, 16
    %v1642 = vrot.slane %v1640, 4
    %v1643 = vshll.u32 %v1563, 16
    %v1645 = vrot.slane %v1643, 5
    %v1646 = vor.u32 %v1642, %v1645
    %v1647 = vrot.slane %v1646, 4
    %v1649 = vshll.u32 %v1564, 16
    %v1651 = vrot.slane %v1649, 5
    %v1652 = vsel %vm689, %v1647, %v1651
    %v1654 = vshrl.u32 %v1565, 16
    %v1656 = vrot.slane %v1654, 4
    %v1657 = vshll.u32 %v1565, 16
    %v1659 = vrot.slane %v1657, 5
    %v1660 = vor.u32 %v1656, %v1659
    %v1661 = vrot.slane %v1660, 4
    %v1663 = vshll.u32 %v1566, 16
    %v1665 = vrot.slane %v1663, 5
    %v1666 = vsel %vm689, %v1661, %v1665
    %v1668 = vshrl.u32 %v1567, 16
    %v1670 = vrot.slane %v1668, 4
    %v1671 = vshll.u32 %v1567, 16
    %v1673 = vrot.slane %v1671, 5
    %v1674 = vor.u32 %v1670, %v1673
    %v1675 = vrot.slane %v1674, 4
    %v1677 = vshll.u32 %v1568, 16
    %v1679 = vrot.slane %v1677, 5
    %v1680 = vsel %vm689, %v1675, %v1679
    %v1681 = vunpack.c.l.b16 %v1582
    %v1682 = vunpack.c.l.b16 %v1596
    %v1683 = vunpack.c.l.b16 %v1610
    %v1684 = vunpack.c.l.b16 %v1624
    %v1685 = vunpack.c.l.b16 %v1638
    %v1686 = vunpack.c.l.b16 %v1652
    %v1687 = vunpack.c.l.b16 %v1666
    %v1688 = vunpack.c.l.b16 %v1680
    %v1689 = vpack.c.b16 %v1682, %v1681
    %v1690 = vpack.c.b16 %v1684, %v1683
    %v1691 = vpack.c.b16 %v1686, %v1685
    %v1692 = vpack.c.b16 %v1688, %v1687
    %1697 = vst [vmem:[#allocation3 + $0x68] sm:$0xff] %v1689
    %1698 = vst [vmem:[#allocation3 + $0x80] sm:$0xff] %v1690
    %1699 = vst [vmem:[#allocation3 + $0x98] sm:$0xff] %v1691
    %1700 = vst [vmem:[#allocation3 + $0xb0] sm:$0xff] %v1692
    %v1701 = vld [vmem:[%s458] sm:$0xe]
    %v1702 = vld [vmem:[%s458 + $0x4] sm:$0x1]
    %v1703 = vld [vmem:[%s458 + $0x8] sm:$0xe]
    %v1704 = vld [vmem:[%s458 + $0xc] sm:$0x1]
    %v1705 = vld [vmem:[%s458 + $0x10] sm:$0xe]
    %v1706 = vld [vmem:[%s458 + $0x14] sm:$0x1]
    %v1707 = vld [vmem:[%s458 + $0x18] sm:$0xe]
    %v1708 = vld [vmem:[%s458 + $0x1c] sm:$0x1]
    %v1709 = vld [vmem:[%s458 + $0x20] sm:$0xe]
    %v1710 = vld [vmem:[%s458 + $0x24] sm:$0x1]
    %v1711 = vld [vmem:[%s458 + $0x28] sm:$0xe]
    %v1712 = vld [vmem:[%s458 + $0x2c] sm:$0x1]
    %v1713 = vld [vmem:[%s458 + $0x30] sm:$0xe]
    %v1714 = vld [vmem:[%s458 + $0x34] sm:$0x1]
    %v1715 = vld [vmem:[%s458 + $0x38] sm:$0xe]
    %v1716 = vld [vmem:[%s458 + $0x3c] sm:$0x1]
    %v1733 = vrot.slane %v1701, 5
    %v1734 = vrot.slane %v1733, 4
    %v1735 = vrot.slane %v1702, 5
    %v1736 = vsel %vm856, %v1734, %v1735
    %v1737 = vrot.slane %v1703, 5
    %v1738 = vrot.slane %v1737, 4
    %v1739 = vrot.slane %v1704, 5
    %v1740 = vsel %vm856, %v1738, %v1739
    %v1741 = vrot.slane %v1705, 5
    %v1742 = vrot.slane %v1741, 4
    %v1743 = vrot.slane %v1706, 5
    %v1744 = vsel %vm856, %v1742, %v1743
    %v1745 = vrot.slane %v1707, 5
    %v1746 = vrot.slane %v1745, 4
    %v1747 = vrot.slane %v1708, 5
    %v1748 = vsel %vm856, %v1746, %v1747
    %v1749 = vrot.slane %v1709, 5
    %v1750 = vrot.slane %v1749, 4
    %v1751 = vrot.slane %v1710, 5
    %v1752 = vsel %vm856, %v1750, %v1751
    %v1753 = vrot.slane %v1711, 5
    %v1754 = vrot.slane %v1753, 4
    %v1755 = vrot.slane %v1712, 5
    %v1756 = vsel %vm856, %v1754, %v1755
    %v1757 = vrot.slane %v1713, 5
    %v1758 = vrot.slane %v1757, 4
    %v1759 = vrot.slane %v1714, 5
    %v1760 = vsel %vm856, %v1758, %v1759
    %v1761 = vrot.slane %v1715, 5
    %v1762 = vrot.slane %v1761, 4
    %v1763 = vrot.slane %v1716, 5
    %v1764 = vsel %vm856, %v1762, %v1763
    %v1765 = vunpack.c.l.b16 %v1736
    %v1766 = vunpack.c.l.b16 %v1740
    %v1767 = vunpack.c.l.b16 %v1744
    %v1768 = vunpack.c.l.b16 %v1748
    %v1769 = vunpack.c.l.b16 %v1752
    %v1770 = vunpack.c.l.b16 %v1756
    %v1771 = vunpack.c.l.b16 %v1760
    %v1772 = vunpack.c.l.b16 %v1764
    %v1773 = vpack.c.b16 %v1766, %v1765
    %v1774 = vpack.c.b16 %v1768, %v1767
    %v1775 = vpack.c.b16 %v1770, %v1769
    %v1776 = vpack.c.b16 %v1772, %v1771
    %1781 = vst [vmem:[#allocation3 + $0x70] sm:$0xff] %v1773
    %1782 = vst [vmem:[#allocation3 + $0x88] sm:$0xff] %v1774
    %1783 = vst [vmem:[#allocation3 + $0xa0] sm:$0xff] %v1775
    %1784 = vst [vmem:[#allocation3 + $0xb8] sm:$0xff] %v1776
    %v1785 = vld [vmem:[#allocation3] sm:$0xff]
    %v1786 = vld [vmem:[#allocation3 + $0x8] sm:$0xff]
    %v1787 = vld [vmem:[#allocation3 + $0x10] sm:$0xff]
    %v1788 = vld [vmem:[#allocation3 + $0x18] sm:$0xff]
    %v1789 = vld [vmem:[#allocation3 + $0x20] sm:$0xff]
    %v1790 = vld [vmem:[#allocation3 + $0x28] sm:$0xff]
    %v1791 = vld [vmem:[#allocation3 + $0x30] sm:$0xff]
    %v1792 = vld [vmem:[#allocation3 + $0x38] sm:$0xff]
    %v1793 = vld [vmem:[#allocation3 + $0x40] sm:$0xff]
    %v1794 = vld [vmem:[#allocation3 + $0x48] sm:$0xff]
    %v1795 = vld [vmem:[#allocation3 + $0x50] sm:$0xff]
    %v1796 = vld [vmem:[#allocation3 + $0x58] sm:$0xff]
    %v1797 = vld [vmem:[#allocation3 + $0x60] sm:$0xff]
    %v1798 = vld [vmem:[#allocation3 + $0x68] sm:$0xff]
    %v1799 = vld [vmem:[#allocation3 + $0x70] sm:$0xff]
    %v1800 = vld [vmem:[#allocation3 + $0x78] sm:$0xff]
    %v1801 = vld [vmem:[#allocation3 + $0x80] sm:$0xff]
    %v1802 = vld [vmem:[#allocation3 + $0x88] sm:$0xff]
    %v1803 = vld [vmem:[#allocation3 + $0x90] sm:$0xff]
    %v1804 = vld [vmem:[#allocation3 + $0x98] sm:$0xff]
    %v1805 = vld [vmem:[#allocation3 + $0xa0] sm:$0xff]
    %v1806 = vld [vmem:[#allocation3 + $0xa8] sm:$0xff]
    %v1807 = vld [vmem:[#allocation3 + $0xb0] sm:$0xff]
    %v1808 = vld [vmem:[#allocation3 + $0xb8] sm:$0xff]
    %v1809 = vld [vmem:[%s3 + $0xc0] sm:$0xf]
    %v1810 = vld [vmem:[%s3 + $0xc4] sm:$0xf]
    %v1811 = vld [vmem:[%s3 + $0xc8] sm:$0xf]
    %v1812 = vld [vmem:[%s3 + $0xcc] sm:$0xf]
    %v1813 = vld [vmem:[%s3 + $0xd0] sm:$0xf]
    %v1814 = vld [vmem:[%s3 + $0xd4] sm:$0xf]
    %v1815 = vld [vmem:[%s3 + $0xd8] sm:$0xf]
    %v1816 = vld [vmem:[%s3 + $0xdc] sm:$0xf]
    %v1817 = vld [vmem:[%s3 + $0xe0] sm:$0xf]
    %v1818 = vld [vmem:[%s3 + $0xe4] sm:$0xf]
    %v1819 = vld [vmem:[%s3 + $0xe8] sm:$0xf]
    %v1820 = vld [vmem:[%s3 + $0xec] sm:$0xf]
    %v1821 = vld [vmem:[%s3 + $0xf0] sm:$0xf]
    %v1822 = vld [vmem:[%s3 + $0xf4] sm:$0xf]
    %v1823 = vld [vmem:[%s3 + $0xf8] sm:$0xf]
    %v1824 = vld [vmem:[%s3 + $0xfc] sm:$0xf]
    %v1825 = vld [vmem:[%s3 + $0x100] sm:$0xf]
    %v1826 = vld [vmem:[%s3 + $0x104] sm:$0xf]
    %v1827 = vld [vmem:[%s3 + $0x108] sm:$0xf]
    %v1828 = vld [vmem:[%s3 + $0x10c] sm:$0xf]
    %v1829 = vld [vmem:[%s3 + $0x110] sm:$0xf]
    %v1830 = vld [vmem:[%s3 + $0x114] sm:$0xf]
    %v1831 = vld [vmem:[%s3 + $0x118] sm:$0xf]
    %v1832 = vld [vmem:[%s3 + $0x11c] sm:$0xf]
    %v1833 = vld [vmem:[%s3 + $0x120] sm:$0xf]
    %v1834 = vld [vmem:[%s3 + $0x124] sm:$0xf]
    %v1835 = vld [vmem:[%s3 + $0x128] sm:$0xf]
    %v1836 = vld [vmem:[%s3 + $0x12c] sm:$0xf]
    %v1837 = vld [vmem:[%s3 + $0x130] sm:$0xf]
    %v1838 = vld [vmem:[%s3 + $0x134] sm:$0xf]
    %v1839 = vld [vmem:[%s3 + $0x138] sm:$0xf]
    %v1840 = vld [vmem:[%s3 + $0x13c] sm:$0xf]
    %v1841 = vld [vmem:[%s3 + $0x140] sm:$0xf]
    %v1842 = vld [vmem:[%s3 + $0x144] sm:$0xf]
    %v1843 = vld [vmem:[%s3 + $0x148] sm:$0xf]
    %v1844 = vld [vmem:[%s3 + $0x14c] sm:$0xf]
    %v1845 = vld [vmem:[%s3 + $0x150] sm:$0xf]
    %v1846 = vld [vmem:[%s3 + $0x154] sm:$0xf]
    %v1847 = vld [vmem:[%s3 + $0x158] sm:$0xf]
    %v1848 = vld [vmem:[%s3 + $0x15c] sm:$0xf]
    %v1849 = vld [vmem:[%s3 + $0x160] sm:$0xf]
    %v1850 = vld [vmem:[%s3 + $0x164] sm:$0xf]
    %v1851 = vld [vmem:[%s3 + $0x168] sm:$0xf]
    %v1852 = vld [vmem:[%s3 + $0x16c] sm:$0xf]
    %v1853 = vld [vmem:[%s3 + $0x170] sm:$0xf]
    %v1854 = vld [vmem:[%s3 + $0x174] sm:$0xf]
    %v1855 = vld [vmem:[%s3 + $0x178] sm:$0xf]
    %v1856 = vld [vmem:[%s3 + $0x17c] sm:$0xf]
    %v1905 = vunpack.c.l.b16 %v1809
    %v1906 = vunpack.c.l.b16 %v1810
    %v1907 = vunpack.c.l.b16 %v1811
    %v1908 = vunpack.c.l.b16 %v1812
    %v1909 = vunpack.c.l.b16 %v1813
    %v1910 = vunpack.c.l.b16 %v1814
    %v1911 = vunpack.c.l.b16 %v1815
    %v1912 = vunpack.c.l.b16 %v1816
    %v1913 = vunpack.c.l.b16 %v1817
    %v1914 = vunpack.c.l.b16 %v1818
    %v1915 = vunpack.c.l.b16 %v1819
    %v1916 = vunpack.c.l.b16 %v1820
    %v1917 = vunpack.c.l.b16 %v1821
    %v1918 = vunpack.c.l.b16 %v1822
    %v1919 = vunpack.c.l.b16 %v1823
    %v1920 = vunpack.c.l.b16 %v1824
    %v1921 = vunpack.c.l.b16 %v1825
    %v1922 = vunpack.c.l.b16 %v1826
    %v1923 = vunpack.c.l.b16 %v1827
    %v1924 = vunpack.c.l.b16 %v1828
    %v1925 = vunpack.c.l.b16 %v1829
    %v1926 = vunpack.c.l.b16 %v1830
    %v1927 = vunpack.c.l.b16 %v1831
    %v1928 = vunpack.c.l.b16 %v1832
    %v1929 = vunpack.c.l.b16 %v1833
    %v1930 = vunpack.c.l.b16 %v1834
    %v1931 = vunpack.c.l.b16 %v1835
    %v1932 = vunpack.c.l.b16 %v1836
    %v1933 = vunpack.c.l.b16 %v1837
    %v1934 = vunpack.c.l.b16 %v1838
    %v1935 = vunpack.c.l.b16 %v1839
    %v1936 = vunpack.c.l.b16 %v1840
    %v1937 = vunpack.c.l.b16 %v1841
    %v1938 = vunpack.c.l.b16 %v1842
    %v1939 = vunpack.c.l.b16 %v1843
    %v1940 = vunpack.c.l.b16 %v1844
    %v1941 = vunpack.c.l.b16 %v1845
    %v1942 = vunpack.c.l.b16 %v1846
    %v1943 = vunpack.c.l.b16 %v1847
    %v1944 = vunpack.c.l.b16 %v1848
    %v1945 = vunpack.c.l.b16 %v1849
    %v1946 = vunpack.c.l.b16 %v1850
    %v1947 = vunpack.c.l.b16 %v1851
    %v1948 = vunpack.c.l.b16 %v1852
    %v1949 = vunpack.c.l.b16 %v1853
    %v1950 = vunpack.c.l.b16 %v1854
    %v1951 = vunpack.c.l.b16 %v1855
    %v1952 = vunpack.c.l.b16 %v1856
    %v1953 = vpack.c.b16 %v1906, %v1905
    %v1954 = vpack.c.b16 %v1908, %v1907
    %v1955 = vpack.c.b16 %v1910, %v1909
    %v1956 = vpack.c.b16 %v1912, %v1911
    %v1957 = vpack.c.b16 %v1914, %v1913
    %v1958 = vpack.c.b16 %v1916, %v1915
    %v1959 = vpack.c.b16 %v1918, %v1917
    %v1960 = vpack.c.b16 %v1920, %v1919
    %v1961 = vpack.c.b16 %v1922, %v1921
    %v1962 = vpack.c.b16 %v1924, %v1923
    %v1963 = vpack.c.b16 %v1926, %v1925
    %v1964 = vpack.c.b16 %v1928, %v1927
    %v1965 = vpack.c.b16 %v1930, %v1929
    %v1966 = vpack.c.b16 %v1932, %v1931
    %v1967 = vpack.c.b16 %v1934, %v1933
    %v1968 = vpack.c.b16 %v1936, %v1935
    %v1969 = vpack.c.b16 %v1938, %v1937
    %v1970 = vpack.c.b16 %v1940, %v1939
    %v1971 = vpack.c.b16 %v1942, %v1941
    %v1972 = vpack.c.b16 %v1944, %v1943
    %v1973 = vpack.c.b16 %v1946, %v1945
    %v1974 = vpack.c.b16 %v1948, %v1947
    %v1975 = vpack.c.b16 %v1950, %v1949
    %v1976 = vpack.c.b16 %v1952, %v1951
    %2001 = vmatprep.subr.bf16.mxu0 0
    %2002 = vmatpush1.bf16.msra.mxu0 %v1953
    %2003 = vmatprep.subr.bf16.mxu0 0
    %2004 = vmatpush1.bf16.msra.mxu0 %v1954
    %2005 = vmatprep.subr.bf16.mxu0 0
    %2006 = vmatpush1.bf16.msra.mxu0 %v1955
    %2007 = vmatprep.subr.bf16.mxu0 0
    %2008 = vmatpush1.bf16.msra.mxu0 %v1956
    %2009 = vmatprep.subr.bf16.mxu0 0
    %2010 = vmatpush1.bf16.msra.mxu0 %v1957
    %2011 = vmatprep.subr.bf16.mxu0 0
    %2012 = vmatpush1.bf16.msra.mxu0 %v1958
    %2013 = vmatprep.subr.bf16.mxu0 0
    %2014 = vmatpush1.bf16.msra.mxu0 %v1959
    %2015 = vmatprep.subr.bf16.mxu0 0
    %2016 = vmatpush1.bf16.msra.mxu0 %v1960
    %2017 = vmatprep.subr.bf16.mxu0 0
    %2018 = vmatpush1.bf16.msra.mxu0 %v1961
    %2019 = vmatprep.subr.bf16.mxu0 0
    %2020 = vmatpush1.bf16.msra.mxu0 %v1962
    %2021 = vmatprep.subr.bf16.mxu0 0
    %2022 = vmatpush1.bf16.msra.mxu0 %v1963
    %2023 = vmatprep.subr.bf16.mxu0 0
    %2024 = vmatpush1.bf16.msra.mxu0 %v1964
    %2025 = vmatprep.subr.bf16.mxu0 0
    %2026 = vmatpush1.bf16.msra.mxu0 %v1965
    %2027 = vmatprep.subr.bf16.mxu0 0
    %2028 = vmatpush1.bf16.msra.mxu0 %v1966
    %2029 = vmatprep.subr.bf16.mxu0 0
    %2030 = vmatpush1.bf16.msra.mxu0 %v1967
    %2031 = vmatprep.subr.bf16.mxu0 0
    %2032 = vmatpush1.bf16.msra.mxu0 %v1968
    %2033 = vmatprep.mubr.bf16.mxu0 %v1786
    %2034 = vmatmul.mubr.bf16.gmra.mrb[0].mxu0 %v1785
    %v2035 = vpop.f32.mrb[0].mxu0
    %v2036 = vadd.f32 0.0, %v2035
    %v2037 = vpop.f32.mrb[0].mxu0
    %v2038 = vpop.f32.mrb[0].mxu0
    %v2039 = vadd.f32 0.0, %v2038
    %v2040 = vpop.f32.mrb[0].mxu0
    %2041 = vmatprep.mubr.bf16.mxu0 %v1789
    %2042 = vmatmul.mubr.bf16.gmra.mrb[0].mxu0 %v1788
    %v2043 = vpop.f32.mrb[0].mxu0
    %v2044 = vadd.f32 0.0, %v2043
    %v2045 = vpop.f32.mrb[0].mxu0
    %v2046 = vpop.f32.mrb[0].mxu0
    %v2047 = vadd.f32 0.0, %v2046
    %v2048 = vpop.f32.mrb[0].mxu0
    %2049 = vmatprep.mubr.bf16.mxu0 %v1792
    %2050 = vmatmul.mubr.bf16.gmra.mrb[0].mxu0 %v1791
    %v2051 = vpop.f32.mrb[0].mxu0
    %v2052 = vadd.f32 0.0, %v2051
    %v2053 = vpop.f32.mrb[0].mxu0
    %v2054 = vpop.f32.mrb[0].mxu0
    %v2055 = vadd.f32 0.0, %v2054
    %v2056 = vpop.f32.mrb[0].mxu0
    %2057 = vmatprep.mubr.bf16.mxu0 %v1795
    %2058 = vmatmul.mubr.bf16.gmra.mrb[0].mxu0 %v1794
    %v2059 = vpop.f32.mrb[0].mxu0
    %v2060 = vadd.f32 0.0, %v2059
    %v2061 = vpop.f32.mrb[0].mxu0
    %v2062 = vpop.f32.mrb[0].mxu0
    %v2063 = vadd.f32 0.0, %v2062
    %v2064 = vpop.f32.mrb[0].mxu0
    %2065 = vmatprep.mubr.bf16.mxu0 %v1798
    %2066 = vmatmul.mubr.bf16.gmra.mrb[0].mxu0 %v1797
    %v2067 = vpop.f32.mrb[0].mxu0
    %v2068 = vadd.f32 0.0, %v2067
    %v2069 = vpop.f32.mrb[0].mxu0
    %v2070 = vpop.f32.mrb[0].mxu0
    %v2071 = vadd.f32 0.0, %v2070
    %v2072 = vpop.f32.mrb[0].mxu0
    %2073 = vmatprep.mubr.bf16.mxu0 %v1801
    %2074 = vmatmul.mubr.bf16.gmra.mrb[0].mxu0 %v1800
    %v2075 = vpop.f32.mrb[0].mxu0
    %v2076 = vadd.f32 0.0, %v2075
    %v2077 = vpop.f32.mrb[0].mxu0
    %v2078 = vpop.f32.mrb[0].mxu0
    %v2079 = vadd.f32 0.0, %v2078
    %v2080 = vpop.f32.mrb[0].mxu0
    %2081 = vmatprep.mubr.bf16.mxu0 %v1804
    %2082 = vmatmul.mubr.bf16.gmra.mrb[0].mxu0 %v1803
    %v2083 = vpop.f32.mrb[0].mxu0
    %v2084 = vadd.f32 0.0, %v2083
    %v2085 = vpop.f32.mrb[0].mxu0
    %v2086 = vpop.f32.mrb[0].mxu0
    %v2087 = vadd.f32 0.0, %v2086
    %v2088 = vpop.f32.mrb[0].mxu0
    %2089 = vmatprep.mubr.bf16.mxu0 %v1807
    %2090 = vmatmul.mubr.bf16.gmra.mrb[0].mxu0 %v1806
    %v2091 = vpop.f32.mrb[0].mxu0
    %v2092 = vadd.f32 0.0, %v2091
    %v2093 = vpop.f32.mrb[0].mxu0
    %v2094 = vpop.f32.mrb[0].mxu0
    %v2095 = vadd.f32 0.0, %v2094
    %v2096 = vpop.f32.mrb[0].mxu0
    %2097 = vdwg.mxu0
    %2098 = vmatprep.subr.bf16.mxu0 0
    %2099 = vmatpush1.bf16.msra.mxu0 %v1969
    %2100 = vmatprep.subr.bf16.mxu0 0
    %2101 = vmatpush1.bf16.msra.mxu0 %v1970
    %2102 = vmatprep.subr.bf16.mxu0 0
    %2103 = vmatpush1.bf16.msra.mxu0 %v1971
    %2104 = vmatprep.subr.bf16.mxu0 0
    %2105 = vmatpush1.bf16.msra.mxu0 %v1972
    %2106 = vmatprep.subr.bf16.mxu0 0
    %2107 = vmatpush1.bf16.msra.mxu0 %v1973
    %2108 = vmatprep.subr.bf16.mxu0 0
    %2109 = vmatpush1.bf16.msra.mxu0 %v1974
    %2110 = vmatprep.subr.bf16.mxu0 0
    %2111 = vmatpush1.bf16.msra.mxu0 %v1975
    %2112 = vmatprep.subr.bf16.mxu0 0
    %2113 = vmatpush1.bf16.msra.mxu0 %v1976
    %2114 = vmatprep.subr.bf16.mxu0 0
    %2115 = vmatpush1.bf16.msra.mxu0 0
    %2116 = vmatprep.subr.bf16.mxu0 0
    %2117 = vmatpush1.bf16.msra.mxu0 0
    %2118 = vmatprep.subr.bf16.mxu0 0
    %2119 = vmatpush1.bf16.msra.mxu0 0
    %2120 = vmatprep.subr.bf16.mxu0 0
    %2121 = vmatpush1.bf16.msra.mxu0 0
    %2122 = vmatprep.subr.bf16.mxu0 0
    %2123 = vmatpush1.bf16.msra.mxu0 0
    %2124 = vmatprep.subr.bf16.mxu0 0
    %2125 = vmatpush1.bf16.msra.mxu0 0
    %2126 = vmatprep.subr.bf16.mxu0 0
    %2127 = vmatpush1.bf16.msra.mxu0 0
    %2128 = vmatprep.subr.bf16.mxu0 0
    %2129 = vmatpush1.bf16.msra.mxu0 0
    %2130 = vmatprep.mubr.bf16.mxu0 0
    %2131 = vmatmul.mubr.bf16.gmra.mrb[0].mxu0 %v1787
    %v2132 = vpop.f32.mrb[0].mxu0
    %v2133 = vadd.f32 %v2036, %v2132
    %v2134 = vpop.f32.mrb[0].mxu0
    %v2135 = vpop.f32.mrb[0].mxu0
    %v2136 = vadd.f32 %v2039, %v2135
    %v2137 = vpop.f32.mrb[0].mxu0
    %2138 = vmatprep.mubr.bf16.mxu0 0
    %2139 = vmatmul.mubr.bf16.gmra.mrb[0].mxu0 %v1790
    %v2140 = vpop.f32.mrb[0].mxu0
    %v2141 = vadd.f32 %v2044, %v2140
    %v2142 = vpop.f32.mrb[0].mxu0
    %v2143 = vpop.f32.mrb[0].mxu0
    %v2144 = vadd.f32 %v2047, %v2143
    %v2145 = vpop.f32.mrb[0].mxu0
    %2146 = vmatprep.mubr.bf16.mxu0 0
    %2147 = vmatmul.mubr.bf16.gmra.mrb[0].mxu0 %v1793
    %v2148 = vpop.f32.mrb[0].mxu0
    %v2149 = vadd.f32 %v2052, %v2148
    %v2150 = vpop.f32.mrb[0].mxu0
    %v2151 = vpop.f32.mrb[0].mxu0
    %v2152 = vadd.f32 %v2055, %v2151
    %v2153 = vpop.f32.mrb[0].mxu0
    %2154 = vmatprep.mubr.bf16.mxu0 0
    %2155 = vmatmul.mubr.bf16.gmra.mrb[0].mxu0 %v1796
    %v2156 = vpop.f32.mrb[0].mxu0
    %v2157 = vadd.f32 %v2060, %v2156
    %v2158 = vpop.f32.mrb[0].mxu0
    %v2159 = vpop.f32.mrb[0].mxu0
    %v2160 = vadd.f32 %v2063, %v2159
    %v2161 = vpop.f32.mrb[0].mxu0
    %2162 = vmatprep.mubr.bf16.mxu0 0
    %2163 = vmatmul.mubr.bf16.gmra.mrb[0].mxu0 %v1799
    %v2164 = vpop.f32.mrb[0].mxu0
    %v2165 = vadd.f32 %v2068, %v2164
    %v2166 = vpop.f32.mrb[0].mxu0
    %v2167 = vpop.f32.mrb[0].mxu0
    %v2168 = vadd.f32 %v2071, %v2167
    %v2169 = vpop.f32.mrb[0].mxu0
    %2170 = vmatprep.mubr.bf16.mxu0 0
    %2171 = vmatmul.mubr.bf16.gmra.mrb[0].mxu0 %v1802
    %v2172 = vpop.f32.mrb[0].mxu0
    %v2173 = vadd.f32 %v2076, %v2172
    %v2174 = vpop.f32.mrb[0].mxu0
    %v2175 = vpop.f32.mrb[0].mxu0
    %v2176 = vadd.f32 %v2079, %v2175
    %v2177 = vpop.f32.mrb[0].mxu0
    %2178 = vmatprep.mubr.bf16.mxu0 0
    %2179 = vmatmul.mubr.bf16.gmra.mrb[0].mxu0 %v1805
    %v2180 = vpop.f32.mrb[0].mxu0
    %v2181 = vadd.f32 %v2084, %v2180
    %v2182 = vpop.f32.mrb[0].mxu0
    %v2183 = vpop.f32.mrb[0].mxu0
    %v2184 = vadd.f32 %v2087, %v2183
    %v2185 = vpop.f32.mrb[0].mxu0
    %2186 = vmatprep.mubr.bf16.mxu0 0
    %2187 = vmatmul.mubr.bf16.gmra.mrb[0].mxu0 %v1808
    %v2188 = vpop.f32.mrb[0].mxu0
    %v2189 = vadd.f32 %v2092, %v2188
    %v2190 = vpop.f32.mrb[0].mxu0
    %v2191 = vpop.f32.mrb[0].mxu0
    %v2192 = vadd.f32 %v2095, %v2191
    %v2193 = vpop.f32.mrb[0].mxu0
    %2194 = vdwg.mxu0
    %v2243 = vunpack.c.l.b16 %v1201
    %v2244 = vunpack.c.l.b16 %v1202
    %v2245 = vunpack.c.l.b16 %v1203
    %v2246 = vunpack.c.l.b16 %v1204
    %v2247 = vunpack.c.l.b16 %v1205
    %v2248 = vunpack.c.l.b16 %v1206
    %v2249 = vunpack.c.l.b16 %v1207
    %v2250 = vunpack.c.l.b16 %v1208
    %v2251 = vunpack.c.l.b16 %v1209
    %v2252 = vunpack.c.l.b16 %v1210
    %v2253 = vunpack.c.l.b16 %v1211
    %v2254 = vunpack.c.l.b16 %v1212
    %v2255 = vunpack.c.l.b16 %v1213
    %v2256 = vunpack.c.l.b16 %v1214
    %v2257 = vunpack.c.l.b16 %v1215
    %v2258 = vunpack.c.l.b16 %v1216
    %v2259 = vunpack.c.l.b16 %v1217
    %v2260 = vunpack.c.l.b16 %v1218
    %v2261 = vunpack.c.l.b16 %v1219
    %v2262 = vunpack.c.l.b16 %v1220
    %v2263 = vunpack.c.l.b16 %v1221
    %v2264 = vunpack.c.l.b16 %v1222
    %v2265 = vunpack.c.l.b16 %v1223
    %v2266 = vunpack.c.l.b16 %v1224
    %v2267 = vunpack.c.l.b16 %v1225
    %v2268 = vunpack.c.l.b16 %v1226
    %v2269 = vunpack.c.l.b16 %v1227
    %v2270 = vunpack.c.l.b16 %v1228
    %v2271 = vunpack.c.l.b16 %v1229
    %v2272 = vunpack.c.l.b16 %v1230
    %v2273 = vunpack.c.l.b16 %v1231
    %v2274 = vunpack.c.l.b16 %v1232
    %v2275 = vunpack.c.l.b16 %v1233
    %v2276 = vunpack.c.l.b16 %v1234
    %v2277 = vunpack.c.l.b16 %v1235
    %v2278 = vunpack.c.l.b16 %v1236
    %v2279 = vunpack.c.l.b16 %v1237
    %v2280 = vunpack.c.l.b16 %v1238
    %v2281 = vunpack.c.l.b16 %v1239
    %v2282 = vunpack.c.l.b16 %v1240
    %v2283 = vunpack.c.l.b16 %v1241
    %v2284 = vunpack.c.l.b16 %v1242
    %v2285 = vunpack.c.l.b16 %v1243
    %v2286 = vunpack.c.l.b16 %v1244
    %v2287 = vunpack.c.l.b16 %v1245
    %v2288 = vunpack.c.l.b16 %v1246
    %v2289 = vunpack.c.l.b16 %v1247
    %v2290 = vunpack.c.l.b16 %v1248
    %v2291 = vpack.c.b16 %v2244, %v2243
    %v2292 = vpack.c.b16 %v2246, %v2245
    %v2293 = vpack.c.b16 %v2248, %v2247
    %v2294 = vpack.c.b16 %v2250, %v2249
    %v2295 = vpack.c.b16 %v2252, %v2251
    %v2296 = vpack.c.b16 %v2254, %v2253
    %v2297 = vpack.c.b16 %v2256, %v2255
    %v2298 = vpack.c.b16 %v2258, %v2257
    %v2299 = vpack.c.b16 %v2260, %v2259
    %v2300 = vpack.c.b16 %v2262, %v2261
    %v2301 = vpack.c.b16 %v2264, %v2263
    %v2302 = vpack.c.b16 %v2266, %v2265
    %v2303 = vpack.c.b16 %v2268, %v2267
    %v2304 = vpack.c.b16 %v2270, %v2269
    %v2305 = vpack.c.b16 %v2272, %v2271
    %v2306 = vpack.c.b16 %v2274, %v2273
    %v2307 = vpack.c.b16 %v2276, %v2275
    %v2308 = vpack.c.b16 %v2278, %v2277
    %v2309 = vpack.c.b16 %v2280, %v2279
    %v2310 = vpack.c.b16 %v2282, %v2281
    %v2311 = vpack.c.b16 %v2284, %v2283
    %v2312 = vpack.c.b16 %v2286, %v2285
    %v2313 = vpack.c.b16 %v2288, %v2287
    %v2314 = vpack.c.b16 %v2290, %v2289
    %2339 = vmatprep.subr.bf16.mxu0 0
    %2340 = vmatpush1.bf16.msra.mxu0 %v2291
    %2341 = vmatprep.subr.bf16.mxu0 0
    %2342 = vmatpush1.bf16.msra.mxu0 %v2292
    %2343 = vmatprep.subr.bf16.mxu0 0
    %2344 = vmatpush1.bf16.msra.mxu0 %v2293
    %2345 = vmatprep.subr.bf16.mxu0 0
    %2346 = vmatpush1.bf16.msra.mxu0 %v2294
    %2347 = vmatprep.subr.bf16.mxu0 0
    %2348 = vmatpush1.bf16.msra.mxu0 %v2295
    %2349 = vmatprep.subr.bf16.mxu0 0
    %2350 = vmatpush1.bf16.msra.mxu0 %v2296
    %2351 = vmatprep.subr.bf16.mxu0 0
    %2352 = vmatpush1.bf16.msra.mxu0 %v2297
    %2353 = vmatprep.subr.bf16.mxu0 0
    %2354 = vmatpush1.bf16.msra.mxu0 %v2298
    %2355 = vmatprep.subr.bf16.mxu0 0
    %2356 = vmatpush1.bf16.msra.mxu0 %v2299
    %2357 = vmatprep.subr.bf16.mxu0 0
    %2358 = vmatpush1.bf16.msra.mxu0 %v2300
    %2359 = vmatprep.subr.bf16.mxu0 0
    %2360 = vmatpush1.bf16.msra.mxu0 %v2301
    %2361 = vmatprep.subr.bf16.mxu0 0
    %2362 = vmatpush1.bf16.msra.mxu0 %v2302
    %2363 = vmatprep.subr.bf16.mxu0 0
    %2364 = vmatpush1.bf16.msra.mxu0 %v2303
    %2365 = vmatprep.subr.bf16.mxu0 0
    %2366 = vmatpush1.bf16.msra.mxu0 %v2304
    %2367 = vmatprep.subr.bf16.mxu0 0
    %2368 = vmatpush1.bf16.msra.mxu0 %v2305
    %2369 = vmatprep.subr.bf16.mxu0 0
    %2370 = vmatpush1.bf16.msra.mxu0 %v2306
    %2371 = vmatprep.mubr.bf16.mxu0 %v1178
    %2372 = vmatmul.mubr.bf16.gmra.mrb[0].mxu0 %v1177
    %v2373 = vpop.f32.mrb[0].mxu0
    %v2374 = vadd.f32 %v2133, %v2373
    %v2375 = vpop.f32.mrb[0].mxu0
    %v2376 = vpop.f32.mrb[0].mxu0
    %v2377 = vadd.f32 %v2136, %v2376
    %v2378 = vpop.f32.mrb[0].mxu0
    %2379 = vmatprep.mubr.bf16.mxu0 %v1181
    %2380 = vmatmul.mubr.bf16.gmra.mrb[0].mxu0 %v1180
    %v2381 = vpop.f32.mrb[0].mxu0
    %v2382 = vadd.f32 %v2141, %v2381
    %v2383 = vpop.f32.mrb[0].mxu0
    %v2384 = vpop.f32.mrb[0].mxu0
    %v2385 = vadd.f32 %v2144, %v2384
    %v2386 = vpop.f32.mrb[0].mxu0
    %2387 = vmatprep.mubr.bf16.mxu0 %v1184
    %2388 = vmatmul.mubr.bf16.gmra.mrb[0].mxu0 %v1183
    %v2389 = vpop.f32.mrb[0].mxu0
    %v2390 = vadd.f32 %v2149, %v2389
    %v2391 = vpop.f32.mrb[0].mxu0
    %v2392 = vpop.f32.mrb[0].mxu0
    %v2393 = vadd.f32 %v2152, %v2392
    %v2394 = vpop.f32.mrb[0].mxu0
    %2395 = vmatprep.mubr.bf16.mxu0 %v1187
    %2396 = vmatmul.mubr.bf16.gmra.mrb[0].mxu0 %v1186
    %v2397 = vpop.f32.mrb[0].mxu0
    %v2398 = vadd.f32 %v2157, %v2397
    %v2399 = vpop.f32.mrb[0].mxu0
    %v2400 = vpop.f32.mrb[0].mxu0
    %v2401 = vadd.f32 %v2160, %v2400
    %v2402 = vpop.f32.mrb[0].mxu0
    %2403 = vmatprep.mubr.bf16.mxu0 %v1190
    %2404 = vmatmul.mubr.bf16.gmra.mrb[0].mxu0 %v1189
    %v2405 = vpop.f32.mrb[0].mxu0
    %v2406 = vadd.f32 %v2165, %v2405
    %v2407 = vpop.f32.mrb[0].mxu0
    %v2408 = vpop.f32.mrb[0].mxu0
    %v2409 = vadd.f32 %v2168, %v2408
    %v2410 = vpop.f32.mrb[0].mxu0
    %2411 = vmatprep.mubr.bf16.mxu0 %v1193
    %2412 = vmatmul.mubr.bf16.gmra.mrb[0].mxu0 %v1192
    %v2413 = vpop.f32.mrb[0].mxu0
    %v2414 = vadd.f32 %v2173, %v2413
    %v2415 = vpop.f32.mrb[0].mxu0
    %v2416 = vpop.f32.mrb[0].mxu0
    %v2417 = vadd.f32 %v2176, %v2416
    %v2418 = vpop.f32.mrb[0].mxu0
    %2419 = vmatprep.mubr.bf16.mxu0 %v1196
    %2420 = vmatmul.mubr.bf16.gmra.mrb[0].mxu0 %v1195
    %v2421 = vpop.f32.mrb[0].mxu0
    %v2422 = vadd.f32 %v2181, %v2421
    %v2423 = vpop.f32.mrb[0].mxu0
    %v2424 = vpop.f32.mrb[0].mxu0
    %v2425 = vadd.f32 %v2184, %v2424
    %v2426 = vpop.f32.mrb[0].mxu0
    %2427 = vmatprep.mubr.bf16.mxu0 %v1199
    %2428 = vmatmul.mubr.bf16.gmra.mrb[0].mxu0 %v1198
    %v2429 = vpop.f32.mrb[0].mxu0
    %v2430 = vadd.f32 %v2189, %v2429
    %v2431 = vpop.f32.mrb[0].mxu0
    %v2432 = vpop.f32.mrb[0].mxu0
    %v2433 = vadd.f32 %v2192, %v2432
    %v2434 = vpop.f32.mrb[0].mxu0
    %2435 = vdwg.mxu0
    %2436 = vmatprep.subr.bf16.mxu0 0
    %2437 = vmatpush1.bf16.msra.mxu0 %v2307
    %2438 = vmatprep.subr.bf16.mxu0 0
    %2439 = vmatpush1.bf16.msra.mxu0 %v2308
    %2440 = vmatprep.subr.bf16.mxu0 0
    %2441 = vmatpush1.bf16.msra.mxu0 %v2309
    %2442 = vmatprep.subr.bf16.mxu0 0
    %2443 = vmatpush1.bf16.msra.mxu0 %v2310
    %2444 = vmatprep.subr.bf16.mxu0 0
    %2445 = vmatpush1.bf16.msra.mxu0 %v2311
    %2446 = vmatprep.subr.bf16.mxu0 0
    %2447 = vmatpush1.bf16.msra.mxu0 %v2312
    %2448 = vmatprep.subr.bf16.mxu0 0
    %2449 = vmatpush1.bf16.msra.mxu0 %v2313
    %2450 = vmatprep.subr.bf16.mxu0 0
    %2451 = vmatpush1.bf16.msra.mxu0 %v2314
    %2452 = vmatprep.subr.bf16.mxu0 0
    %2453 = vmatpush1.bf16.msra.mxu0 0
    %2454 = vmatprep.subr.bf16.mxu0 0
    %2455 = vmatpush1.bf16.msra.mxu0 0
    %2456 = vmatprep.subr.bf16.mxu0 0
    %2457 = vmatpush1.bf16.msra.mxu0 0
    %2458 = vmatprep.subr.bf16.mxu0 0
    %2459 = vmatpush1.bf16.msra.mxu0 0
    %2460 = vmatprep.subr.bf16.mxu0 0
    %2461 = vmatpush1.bf16.msra.mxu0 0
    %2462 = vmatprep.subr.bf16.mxu0 0
    %2463 = vmatpush1.bf16.msra.mxu0 0
    %2464 = vmatprep.subr.bf16.mxu0 0
    %2465 = vmatpush1.bf16.msra.mxu0 0
    %2466 = vmatprep.subr.bf16.mxu0 0
    %2467 = vmatpush1.bf16.msra.mxu0 0
    %2468 = vmatprep.mubr.bf16.mxu0 0
    %2469 = vmatmul.mubr.bf16.gmra.mrb[0].mxu0 %v1179
    %v2470 = vpop.f32.mrb[0].mxu0
    %v2471 = vadd.f32 %v2374, %v2470
    %v2472 = vpop.f32.mrb[0].mxu0
    %v2473 = vpop.f32.mrb[0].mxu0
    %v2474 = vadd.f32 %v2377, %v2473
    %v2475 = vpop.f32.mrb[0].mxu0
    %2476 = vmatprep.mubr.bf16.mxu0 0
    %2477 = vmatmul.mubr.bf16.gmra.mrb[0].mxu0 %v1182
    %v2478 = vpop.f32.mrb[0].mxu0
    %v2479 = vadd.f32 %v2382, %v2478
    %v2480 = vpop.f32.mrb[0].mxu0
    %v2481 = vpop.f32.mrb[0].mxu0
    %v2482 = vadd.f32 %v2385, %v2481
    %v2483 = vpop.f32.mrb[0].mxu0
    %2484 = vmatprep.mubr.bf16.mxu0 0
    %2485 = vmatmul.mubr.bf16.gmra.mrb[0].mxu0 %v1185
    %v2486 = vpop.f32.mrb[0].mxu0
    %v2487 = vadd.f32 %v2390, %v2486
    %v2488 = vpop.f32.mrb[0].mxu0
    %v2489 = vpop.f32.mrb[0].mxu0
    %v2490 = vadd.f32 %v2393, %v2489
    %v2491 = vpop.f32.mrb[0].mxu0
    %2492 = vmatprep.mubr.bf16.mxu0 0
    %2493 = vmatmul.mubr.bf16.gmra.mrb[0].mxu0 %v1188
    %v2494 = vpop.f32.mrb[0].mxu0
    %v2495 = vadd.f32 %v2398, %v2494
    %v2496 = vpop.f32.mrb[0].mxu0
    %v2497 = vpop.f32.mrb[0].mxu0
    %v2498 = vadd.f32 %v2401, %v2497
    %v2499 = vpop.f32.mrb[0].mxu0
    %2500 = vmatprep.mubr.bf16.mxu0 0
    %2501 = vmatmul.mubr.bf16.gmra.mrb[0].mxu0 %v1191
    %v2502 = vpop.f32.mrb[0].mxu0
    %v2503 = vadd.f32 %v2406, %v2502
    %v2504 = vpop.f32.mrb[0].mxu0
    %v2505 = vpop.f32.mrb[0].mxu0
    %v2506 = vadd.f32 %v2409, %v2505
    %v2507 = vpop.f32.mrb[0].mxu0
    %2508 = vmatprep.mubr.bf16.mxu0 0
    %2509 = vmatmul.mubr.bf16.gmra.mrb[0].mxu0 %v1194
    %v2510 = vpop.f32.mrb[0].mxu0
    %v2511 = vadd.f32 %v2414, %v2510
    %v2512 = vpop.f32.mrb[0].mxu0
    %v2513 = vpop.f32.mrb[0].mxu0
    %v2514 = vadd.f32 %v2417, %v2513
    %v2515 = vpop.f32.mrb[0].mxu0
    %2516 = vmatprep.mubr.bf16.mxu0 0
    %2517 = vmatmul.mubr.bf16.gmra.mrb[0].mxu0 %v1197
    %v2518 = vpop.f32.mrb[0].mxu0
    %v2519 = vadd.f32 %v2422, %v2518
    %v2520 = vpop.f32.mrb[0].mxu0
    %v2521 = vpop.f32.mrb[0].mxu0
    %v2522 = vadd.f32 %v2425, %v2521
    %v2523 = vpop.f32.mrb[0].mxu0
    %2524 = vmatprep.mubr.bf16.mxu0 0
    %2525 = vmatmul.mubr.bf16.gmra.mrb[0].mxu0 %v1200
    %v2526 = vpop.f32.mrb[0].mxu0
    %v2527 = vadd.f32 %v2430, %v2526
    %v2528 = vpop.f32.mrb[0].mxu0
    %v2529 = vpop.f32.mrb[0].mxu0
    %v2530 = vadd.f32 %v2433, %v2529
    %v2531 = vpop.f32.mrb[0].mxu0
    %2532 = vdwg.mxu0
    %s2533 = scalar_lea.vmem [#allocation2], 16
    %v2534 = vld [vmem:[%s2533] sm:$0xf]
    %v2535 = vld [vmem:[%s2533 + $0x8] sm:$0xf]
    %v2536 = vld [vmem:[%s2533 + $0x10] sm:$0xf]
    %v2537 = vld [vmem:[%s2533 + $0x18] sm:$0xf]
    %v2538 = vld [vmem:[%s2533 + $0x20] sm:$0xf]
    %v2539 = vld [vmem:[%s2533 + $0x28] sm:$0xf]
    %v2540 = vld [vmem:[%s2533 + $0x30] sm:$0xf]
    %v2541 = vld [vmem:[%s2533 + $0x38] sm:$0xf]
    %v2550 = vunpack.c.l.b16 %v2534
    %v2551 = vunpack.c.l.b16 %v2535
    %v2552 = vunpack.c.l.b16 %v2536
    %v2553 = vunpack.c.l.b16 %v2537
    %v2554 = vunpack.c.l.b16 %v2538
    %v2555 = vunpack.c.l.b16 %v2539
    %v2556 = vunpack.c.l.b16 %v2540
    %v2557 = vunpack.c.l.b16 %v2541
    %v2558 = vpack.c.b16 %v2551, %v2550
    %v2559 = vpack.c.b16 %v2553, %v2552
    %v2560 = vpack.c.b16 %v2555, %v2554
    %v2561 = vpack.c.b16 %v2557, %v2556
    %2566 = vst [vmem:[#allocation3] sm:$0xff] %v2558
    %2567 = vst [vmem:[#allocation3 + $0x18] sm:$0xff] %v2559
    %2568 = vst [vmem:[#allocation3 + $0x30] sm:$0xff] %v2560
    %2569 = vst [vmem:[#allocation3 + $0x48] sm:$0xff] %v2561
    %v2570 = vld [vmem:[%s2533] sm:$0xf]
    %v2571 = vld [vmem:[%s2533 + $0x4] sm:$0x1]
    %v2572 = vld [vmem:[%s2533 + $0x8] sm:$0xf]
    %v2573 = vld [vmem:[%s2533 + $0xc] sm:$0x1]
    %v2574 = vld [vmem:[%s2533 + $0x10] sm:$0xf]
    %v2575 = vld [vmem:[%s2533 + $0x14] sm:$0x1]
    %v2576 = vld [vmem:[%s2533 + $0x18] sm:$0xf]
    %v2577 = vld [vmem:[%s2533 + $0x1c] sm:$0x1]
    %v2578 = vld [vmem:[%s2533 + $0x20] sm:$0xf]
    %v2579 = vld [vmem:[%s2533 + $0x24] sm:$0x1]
    %v2580 = vld [vmem:[%s2533 + $0x28] sm:$0xf]
    %v2581 = vld [vmem:[%s2533 + $0x2c] sm:$0x1]
    %v2582 = vld [vmem:[%s2533 + $0x30] sm:$0xf]
    %v2583 = vld [vmem:[%s2533 + $0x34] sm:$0x1]
    %v2584 = vld [vmem:[%s2533 + $0x38] sm:$0xf]
    %v2585 = vld [vmem:[%s2533 + $0x3c] sm:$0x1]
    %v2587 = vshrl.u32 %v2570, 16
    %v2589 = vrot.slane %v2587, 4
    %v2590 = vshll.u32 %v2570, 16
    %v2592 = vrot.slane %v2590, 5
    %v2593 = vor.u32 %v2589, %v2592
    %v2594 = vrot.slane %v2593, 4
    %v2596 = vshll.u32 %v2571, 16
    %v2598 = vrot.slane %v2596, 5
    %v2599 = vsel %vm689, %v2594, %v2598
    %v2601 = vshrl.u32 %v2572, 16
    %v2603 = vrot.slane %v2601, 4
    %v2604 = vshll.u32 %v2572, 16
    %v2606 = vrot.slane %v2604, 5
    %v2607 = vor.u32 %v2603, %v2606
    %v2608 = vrot.slane %v2607, 4
    %v2610 = vshll.u32 %v2573, 16
    %v2612 = vrot.slane %v2610, 5
    %v2613 = vsel %vm689, %v2608, %v2612
    %v2615 = vshrl.u32 %v2574, 16
    %v2617 = vrot.slane %v2615, 4
    %v2618 = vshll.u32 %v2574, 16
    %v2620 = vrot.slane %v2618, 5
    %v2621 = vor.u32 %v2617, %v2620
    %v2622 = vrot.slane %v2621, 4
    %v2624 = vshll.u32 %v2575, 16
    %v2626 = vrot.slane %v2624, 5
    %v2627 = vsel %vm689, %v2622, %v2626
    %v2629 = vshrl.u32 %v2576, 16
    %v2631 = vrot.slane %v2629, 4
    %v2632 = vshll.u32 %v2576, 16
    %v2634 = vrot.slane %v2632, 5
    %v2635 = vor.u32 %v2631, %v2634
    %v2636 = vrot.slane %v2635, 4
    %v2638 = vshll.u32 %v2577, 16
    %v2640 = vrot.slane %v2638, 5
    %v2641 = vsel %vm689, %v2636, %v2640
    %v2643 = vshrl.u32 %v2578, 16
    %v2645 = vrot.slane %v2643, 4
    %v2646 = vshll.u32 %v2578, 16
    %v2648 = vrot.slane %v2646, 5
    %v2649 = vor.u32 %v2645, %v2648
    %v2650 = vrot.slane %v2649, 4
    %v2652 = vshll.u32 %v2579, 16
    %v2654 = vrot.slane %v2652, 5
    %v2655 = vsel %vm689, %v2650, %v2654
    %v2657 = vshrl.u32 %v2580, 16
    %v2659 = vrot.slane %v2657, 4
    %v2660 = vshll.u32 %v2580, 16
    %v2662 = vrot.slane %v2660, 5
    %v2663 = vor.u32 %v2659, %v2662
    %v2664 = vrot.slane %v2663, 4
    %v2666 = vshll.u32 %v2581, 16
    %v2668 = vrot.slane %v2666, 5
    %v2669 = vsel %vm689, %v2664, %v2668
    %v2671 = vshrl.u32 %v2582, 16
    %v2673 = vrot.slane %v2671, 4
    %v2674 = vshll.u32 %v2582, 16
    %v2676 = vrot.slane %v2674, 5
    %v2677 = vor.u32 %v2673, %v2676
    %v2678 = vrot.slane %v2677, 4
    %v2680 = vshll.u32 %v2583, 16
    %v2682 = vrot.slane %v2680, 5
    %v2683 = vsel %vm689, %v2678, %v2682
    %v2685 = vshrl.u32 %v2584, 16
    %v2687 = vrot.slane %v2685, 4
    %v2688 = vshll.u32 %v2584, 16
    %v2690 = vrot.slane %v2688, 5
    %v2691 = vor.u32 %v2687, %v2690
    %v2692 = vrot.slane %v2691, 4
    %v2694 = vshll.u32 %v2585, 16
    %v2696 = vrot.slane %v2694, 5
    %v2697 = vsel %vm689, %v2692, %v2696
    %v2698 = vunpack.c.l.b16 %v2599
    %v2699 = vunpack.c.l.b16 %v2613
    %v2700 = vunpack.c.l.b16 %v2627
    %v2701 = vunpack.c.l.b16 %v2641
    %v2702 = vunpack.c.l.b16 %v2655
    %v2703 = vunpack.c.l.b16 %v2669
    %v2704 = vunpack.c.l.b16 %v2683
    %v2705 = vunpack.c.l.b16 %v2697
    %v2706 = vpack.c.b16 %v2699, %v2698
    %v2707 = vpack.c.b16 %v2701, %v2700
    %v2708 = vpack.c.b16 %v2703, %v2702
    %v2709 = vpack.c.b16 %v2705, %v2704
    %2714 = vst [vmem:[#allocation3 + $0x8] sm:$0xff] %v2706
    %2715 = vst [vmem:[#allocation3 + $0x20] sm:$0xff] %v2707
    %2716 = vst [vmem:[#allocation3 + $0x38] sm:$0xff] %v2708
    %2717 = vst [vmem:[#allocation3 + $0x50] sm:$0xff] %v2709
    %v2718 = vld [vmem:[%s2533] sm:$0xe]
    %v2719 = vld [vmem:[%s2533 + $0x4] sm:$0x1]
    %v2720 = vld [vmem:[%s2533 + $0x8] sm:$0xe]
    %v2721 = vld [vmem:[%s2533 + $0xc] sm:$0x1]
    %v2722 = vld [vmem:[%s2533 + $0x10] sm:$0xe]
    %v2723 = vld [vmem:[%s2533 + $0x14] sm:$0x1]
    %v2724 = vld [vmem:[%s2533 + $0x18] sm:$0xe]
    %v2725 = vld [vmem:[%s2533 + $0x1c] sm:$0x1]
    %v2726 = vld [vmem:[%s2533 + $0x20] sm:$0xe]
    %v2727 = vld [vmem:[%s2533 + $0x24] sm:$0x1]
    %v2728 = vld [vmem:[%s2533 + $0x28] sm:$0xe]
    %v2729 = vld [vmem:[%s2533 + $0x2c] sm:$0x1]
    %v2730 = vld [vmem:[%s2533 + $0x30] sm:$0xe]
    %v2731 = vld [vmem:[%s2533 + $0x34] sm:$0x1]
    %v2732 = vld [vmem:[%s2533 + $0x38] sm:$0xe]
    %v2733 = vld [vmem:[%s2533 + $0x3c] sm:$0x1]
    %v2750 = vrot.slane %v2718, 5
    %v2751 = vrot.slane %v2750, 4
    %v2752 = vrot.slane %v2719, 5
    %v2753 = vsel %vm856, %v2751, %v2752
    %v2754 = vrot.slane %v2720, 5
    %v2755 = vrot.slane %v2754, 4
    %v2756 = vrot.slane %v2721, 5
    %v2757 = vsel %vm856, %v2755, %v2756
    %v2758 = vrot.slane %v2722, 5
    %v2759 = vrot.slane %v2758, 4
    %v2760 = vrot.slane %v2723, 5
    %v2761 = vsel %vm856, %v2759, %v2760
    %v2762 = vrot.slane %v2724, 5
    %v2763 = vrot.slane %v2762, 4
    %v2764 = vrot.slane %v2725, 5
    %v2765 = vsel %vm856, %v2763, %v2764
    %v2766 = vrot.slane %v2726, 5
    %v2767 = vrot.slane %v2766, 4
    %v2768 = vrot.slane %v2727, 5
    %v2769 = vsel %vm856, %v2767, %v2768
    %v2770 = vrot.slane %v2728, 5
    %v2771 = vrot.slane %v2770, 4
    %v2772 = vrot.slane %v2729, 5
    %v2773 = vsel %vm856, %v2771, %v2772
    %v2774 = vrot.slane %v2730, 5
    %v2775 = vrot.slane %v2774, 4
    %v2776 = vrot.slane %v2731, 5
    %v2777 = vsel %vm856, %v2775, %v2776
    %v2778 = vrot.slane %v2732, 5
    %v2779 = vrot.slane %v2778, 4
    %v2780 = vrot.slane %v2733, 5
    %v2781 = vsel %vm856, %v2779, %v2780
    %v2782 = vunpack.c.l.b16 %v2753
    %v2783 = vunpack.c.l.b16 %v2757
    %v2784 = vunpack.c.l.b16 %v2761
    %v2785 = vunpack.c.l.b16 %v2765
    %v2786 = vunpack.c.l.b16 %v2769
    %v2787 = vunpack.c.l.b16 %v2773
    %v2788 = vunpack.c.l.b16 %v2777
    %v2789 = vunpack.c.l.b16 %v2781
    %v2790 = vpack.c.b16 %v2783, %v2782
    %v2791 = vpack.c.b16 %v2785, %v2784
    %v2792 = vpack.c.b16 %v2787, %v2786
    %v2793 = vpack.c.b16 %v2789, %v2788
    %2798 = vst [vmem:[#allocation3 + $0x10] sm:$0xff] %v2790
    %2799 = vst [vmem:[#allocation3 + $0x28] sm:$0xff] %v2791
    %2800 = vst [vmem:[#allocation3 + $0x40] sm:$0xff] %v2792
    %2801 = vst [vmem:[#allocation3 + $0x58] sm:$0xff] %v2793
    %s2802 = scalar_lea.vmem [#allocation2], 96
    %v2803 = vld [vmem:[%s2802] sm:$0xf]
    %v2804 = vld [vmem:[%s2802 + $0x8] sm:$0xf]
    %v2805 = vld [vmem:[%s2802 + $0x10] sm:$0xf]
    %v2806 = vld [vmem:[%s2802 + $0x18] sm:$0xf]
    %v2807 = vld [vmem:[%s2802 + $0x20] sm:$0xf]
    %v2808 = vld [vmem:[%s2802 + $0x28] sm:$0xf]
    %v2809 = vld [vmem:[%s2802 + $0x30] sm:$0xf]
    %v2810 = vld [vmem:[%s2802 + $0x38] sm:$0xf]
    %v2819 = vunpack.c.l.b16 %v2803
    %v2820 = vunpack.c.l.b16 %v2804
    %v2821 = vunpack.c.l.b16 %v2805
    %v2822 = vunpack.c.l.b16 %v2806
    %v2823 = vunpack.c.l.b16 %v2807
    %v2824 = vunpack.c.l.b16 %v2808
    %v2825 = vunpack.c.l.b16 %v2809
    %v2826 = vunpack.c.l.b16 %v2810
    %v2827 = vpack.c.b16 %v2820, %v2819
    %v2828 = vpack.c.b16 %v2822, %v2821
    %v2829 = vpack.c.b16 %v2824, %v2823
    %v2830 = vpack.c.b16 %v2826, %v2825
    %2835 = vst [vmem:[#allocation3 + $0x60] sm:$0xff] %v2827
    %2836 = vst [vmem:[#allocation3 + $0x78] sm:$0xff] %v2828
    %2837 = vst [vmem:[#allocation3 + $0x90] sm:$0xff] %v2829
    %2838 = vst [vmem:[#allocation3 + $0xa8] sm:$0xff] %v2830
    %v2839 = vld [vmem:[%s2802] sm:$0xf]
    %v2840 = vld [vmem:[%s2802 + $0x4] sm:$0x1]
    %v2841 = vld [vmem:[%s2802 + $0x8] sm:$0xf]
    %v2842 = vld [vmem:[%s2802 + $0xc] sm:$0x1]
    %v2843 = vld [vmem:[%s2802 + $0x10] sm:$0xf]
    %v2844 = vld [vmem:[%s2802 + $0x14] sm:$0x1]
    %v2845 = vld [vmem:[%s2802 + $0x18] sm:$0xf]
    %v2846 = vld [vmem:[%s2802 + $0x1c] sm:$0x1]
    %v2847 = vld [vmem:[%s2802 + $0x20] sm:$0xf]
    %v2848 = vld [vmem:[%s2802 + $0x24] sm:$0x1]
    %v2849 = vld [vmem:[%s2802 + $0x28] sm:$0xf]
    %v2850 = vld [vmem:[%s2802 + $0x2c] sm:$0x1]
    %v2851 = vld [vmem:[%s2802 + $0x30] sm:$0xf]
    %v2852 = vld [vmem:[%s2802 + $0x34] sm:$0x1]
    %v2853 = vld [vmem:[%s2802 + $0x38] sm:$0xf]
    %v2854 = vld [vmem:[%s2802 + $0x3c] sm:$0x1]
    %v2856 = vshrl.u32 %v2839, 16
    %v2858 = vrot.slane %v2856, 4
    %v2859 = vshll.u32 %v2839, 16
    %v2861 = vrot.slane %v2859, 5
    %v2862 = vor.u32 %v2858, %v2861
    %v2863 = vrot.slane %v2862, 4
    %v2865 = vshll.u32 %v2840, 16
    %v2867 = vrot.slane %v2865, 5
    %v2868 = vsel %vm689, %v2863, %v2867
    %v2870 = vshrl.u32 %v2841, 16
    %v2872 = vrot.slane %v2870, 4
    %v2873 = vshll.u32 %v2841, 16
    %v2875 = vrot.slane %v2873, 5
    %v2876 = vor.u32 %v2872, %v2875
    %v2877 = vrot.slane %v2876, 4
    %v2879 = vshll.u32 %v2842, 16
    %v2881 = vrot.slane %v2879, 5
    %v2882 = vsel %vm689, %v2877, %v2881
    %v2884 = vshrl.u32 %v2843, 16
    %v2886 = vrot.slane %v2884, 4
    %v2887 = vshll.u32 %v2843, 16
    %v2889 = vrot.slane %v2887, 5
    %v2890 = vor.u32 %v2886, %v2889
    %v2891 = vrot.slane %v2890, 4
    %v2893 = vshll.u32 %v2844, 16
    %v2895 = vrot.slane %v2893, 5
    %v2896 = vsel %vm689, %v2891, %v2895
    %v2898 = vshrl.u32 %v2845, 16
    %v2900 = vrot.slane %v2898, 4
    %v2901 = vshll.u32 %v2845, 16
    %v2903 = vrot.slane %v2901, 5
    %v2904 = vor.u32 %v2900, %v2903
    %v2905 = vrot.slane %v2904, 4
    %v2907 = vshll.u32 %v2846, 16
    %v2909 = vrot.slane %v2907, 5
    %v2910 = vsel %vm689, %v2905, %v2909
    %v2912 = vshrl.u32 %v2847, 16
    %v2914 = vrot.slane %v2912, 4
    %v2915 = vshll.u32 %v2847, 16
    %v2917 = vrot.slane %v2915, 5
    %v2918 = vor.u32 %v2914, %v2917
    %v2919 = vrot.slane %v2918, 4
    %v2921 = vshll.u32 %v2848, 16
    %v2923 = vrot.slane %v2921, 5
    %v2924 = vsel %vm689, %v2919, %v2923
    %v2926 = vshrl.u32 %v2849, 16
    %v2928 = vrot.slane %v2926, 4
    %v2929 = vshll.u32 %v2849, 16
    %v2931 = vrot.slane %v2929, 5
    %v2932 = vor.u32 %v2928, %v2931
    %v2933 = vrot.slane %v2932, 4
    %v2935 = vshll.u32 %v2850, 16
    %v2937 = vrot.slane %v2935, 5
    %v2938 = vsel %vm689, %v2933, %v2937
    %v2940 = vshrl.u32 %v2851, 16
    %v2942 = vrot.slane %v2940, 4
    %v2943 = vshll.u32 %v2851, 16
    %v2945 = vrot.slane %v2943, 5
    %v2946 = vor.u32 %v2942, %v2945
    %v2947 = vrot.slane %v2946, 4
    %v2949 = vshll.u32 %v2852, 16
    %v2951 = vrot.slane %v2949, 5
    %v2952 = vsel %vm689, %v2947, %v2951
    %v2954 = vshrl.u32 %v2853, 16
    %v2956 = vrot.slane %v2954, 4
    %v2957 = vshll.u32 %v2853, 16
    %v2959 = vrot.slane %v2957, 5
    %v2960 = vor.u32 %v2956, %v2959
    %v2961 = vrot.slane %v2960, 4
    %v2963 = vshll.u32 %v2854, 16
    %v2965 = vrot.slane %v2963, 5
    %v2966 = vsel %vm689, %v2961, %v2965
    %v2967 = vunpack.c.l.b16 %v2868
    %v2968 = vunpack.c.l.b16 %v2882
    %v2969 = vunpack.c.l.b16 %v2896
    %v2970 = vunpack.c.l.b16 %v2910
    %v2971 = vunpack.c.l.b16 %v2924
    %v2972 = vunpack.c.l.b16 %v2938
    %v2973 = vunpack.c.l.b16 %v2952
    %v2974 = vunpack.c.l.b16 %v2966
    %v2975 = vpack.c.b16 %v2968, %v2967
    %v2976 = vpack.c.b16 %v2970, %v2969
    %v2977 = vpack.c.b16 %v2972, %v2971
    %v2978 = vpack.c.b16 %v2974, %v2973
    %2983 = vst [vmem:[#allocation3 + $0x68] sm:$0xff] %v2975
    %2984 = vst [vmem:[#allocation3 + $0x80] sm:$0xff] %v2976
    %2985 = vst [vmem:[#allocation3 + $0x98] sm:$0xff] %v2977
    %2986 = vst [vmem:[#allocation3 + $0xb0] sm:$0xff] %v2978
    %v2987 = vld [vmem:[%s2802] sm:$0xe]
    %v2988 = vld [vmem:[%s2802 + $0x4] sm:$0x1]
    %v2989 = vld [vmem:[%s2802 + $0x8] sm:$0xe]
    %v2990 = vld [vmem:[%s2802 + $0xc] sm:$0x1]
    %v2991 = vld [vmem:[%s2802 + $0x10] sm:$0xe]
    %v2992 = vld [vmem:[%s2802 + $0x14] sm:$0x1]
    %v2993 = vld [vmem:[%s2802 + $0x18] sm:$0xe]
    %v2994 = vld [vmem:[%s2802 + $0x1c] sm:$0x1]
    %v2995 = vld [vmem:[%s2802 + $0x20] sm:$0xe]
    %v2996 = vld [vmem:[%s2802 + $0x24] sm:$0x1]
    %v2997 = vld [vmem:[%s2802 + $0x28] sm:$0xe]
    %v2998 = vld [vmem:[%s2802 + $0x2c] sm:$0x1]
    %v2999 = vld [vmem:[%s2802 + $0x30] sm:$0xe]
    %v3000 = vld [vmem:[%s2802 + $0x34] sm:$0x1]
    %v3001 = vld [vmem:[%s2802 + $0x38] sm:$0xe]
    %v3002 = vld [vmem:[%s2802 + $0x3c] sm:$0x1]
    %v3019 = vrot.slane %v2987, 5
    %v3020 = vrot.slane %v3019, 4
    %v3021 = vrot.slane %v2988, 5
    %v3022 = vsel %vm856, %v3020, %v3021
    %v3023 = vrot.slane %v2989, 5
    %v3024 = vrot.slane %v3023, 4
    %v3025 = vrot.slane %v2990, 5
    %v3026 = vsel %vm856, %v3024, %v3025
    %v3027 = vrot.slane %v2991, 5
    %v3028 = vrot.slane %v3027, 4
    %v3029 = vrot.slane %v2992, 5
    %v3030 = vsel %vm856, %v3028, %v3029
    %v3031 = vrot.slane %v2993, 5
    %v3032 = vrot.slane %v3031, 4
    %v3033 = vrot.slane %v2994, 5
    %v3034 = vsel %vm856, %v3032, %v3033
    %v3035 = vrot.slane %v2995, 5
    %v3036 = vrot.slane %v3035, 4
    %v3037 = vrot.slane %v2996, 5
    %v3038 = vsel %vm856, %v3036, %v3037
    %v3039 = vrot.slane %v2997, 5
    %v3040 = vrot.slane %v3039, 4
    %v3041 = vrot.slane %v2998, 5
    %v3042 = vsel %vm856, %v3040, %v3041
    %v3043 = vrot.slane %v2999, 5
    %v3044 = vrot.slane %v3043, 4
    %v3045 = vrot.slane %v3000, 5
    %v3046 = vsel %vm856, %v3044, %v3045
    %v3047 = vrot.slane %v3001, 5
    %v3048 = vrot.slane %v3047, 4
    %v3049 = vrot.slane %v3002, 5
    %v3050 = vsel %vm856, %v3048, %v3049
    %v3051 = vunpack.c.l.b16 %v3022
    %v3052 = vunpack.c.l.b16 %v3026
    %v3053 = vunpack.c.l.b16 %v3030
    %v3054 = vunpack.c.l.b16 %v3034
    %v3055 = vunpack.c.l.b16 %v3038
    %v3056 = vunpack.c.l.b16 %v3042
    %v3057 = vunpack.c.l.b16 %v3046
    %v3058 = vunpack.c.l.b16 %v3050
    %v3059 = vpack.c.b16 %v3052, %v3051
    %v3060 = vpack.c.b16 %v3054, %v3053
    %v3061 = vpack.c.b16 %v3056, %v3055
    %v3062 = vpack.c.b16 %v3058, %v3057
    %3067 = vst [vmem:[#allocation3 + $0x70] sm:$0xff] %v3059
    %3068 = vst [vmem:[#allocation3 + $0x88] sm:$0xff] %v3060
    %3069 = vst [vmem:[#allocation3 + $0xa0] sm:$0xff] %v3061
    %3070 = vst [vmem:[#allocation3 + $0xb8] sm:$0xff] %v3062
    %v3071 = vld [vmem:[#allocation3] sm:$0xff]
    %v3072 = vld [vmem:[#allocation3 + $0x8] sm:$0xff]
    %v3073 = vld [vmem:[#allocation3 + $0x10] sm:$0xff]
    %v3074 = vld [vmem:[#allocation3 + $0x18] sm:$0xff]
    %v3075 = vld [vmem:[#allocation3 + $0x20] sm:$0xff]
    %v3076 = vld [vmem:[#allocation3 + $0x28] sm:$0xff]
    %v3077 = vld [vmem:[#allocation3 + $0x30] sm:$0xff]
    %v3078 = vld [vmem:[#allocation3 + $0x38] sm:$0xff]
    %v3079 = vld [vmem:[#allocation3 + $0x40] sm:$0xff]
    %v3080 = vld [vmem:[#allocation3 + $0x48] sm:$0xff]
    %v3081 = vld [vmem:[#allocation3 + $0x50] sm:$0xff]
    %v3082 = vld [vmem:[#allocation3 + $0x58] sm:$0xff]
    %v3083 = vld [vmem:[#allocation3 + $0x60] sm:$0xff]
    %v3084 = vld [vmem:[#allocation3 + $0x68] sm:$0xff]
    %v3085 = vld [vmem:[#allocation3 + $0x70] sm:$0xff]
    %v3086 = vld [vmem:[#allocation3 + $0x78] sm:$0xff]
    %v3087 = vld [vmem:[#allocation3 + $0x80] sm:$0xff]
    %v3088 = vld [vmem:[#allocation3 + $0x88] sm:$0xff]
    %v3089 = vld [vmem:[#allocation3 + $0x90] sm:$0xff]
    %v3090 = vld [vmem:[#allocation3 + $0x98] sm:$0xff]
    %v3091 = vld [vmem:[#allocation3 + $0xa0] sm:$0xff]
    %v3092 = vld [vmem:[#allocation3 + $0xa8] sm:$0xff]
    %v3093 = vld [vmem:[#allocation3 + $0xb0] sm:$0xff]
    %v3094 = vld [vmem:[#allocation3 + $0xb8] sm:$0xff]
    %v3095 = vld [vmem:[%s3 + $0x180] sm:$0xf]
    %v3096 = vld [vmem:[%s3 + $0x184] sm:$0xf]
    %v3097 = vld [vmem:[%s3 + $0x188] sm:$0xf]
    %v3098 = vld [vmem:[%s3 + $0x18c] sm:$0xf]
    %v3099 = vld [vmem:[%s3 + $0x190] sm:$0xf]
    %v3100 = vld [vmem:[%s3 + $0x194] sm:$0xf]
    %v3101 = vld [vmem:[%s3 + $0x198] sm:$0xf]
    %v3102 = vld [vmem:[%s3 + $0x19c] sm:$0xf]
    %v3103 = vld [vmem:[%s3 + $0x1a0] sm:$0xf]
    %v3104 = vld [vmem:[%s3 + $0x1a4] sm:$0xf]
    %v3105 = vld [vmem:[%s3 + $0x1a8] sm:$0xf]
    %v3106 = vld [vmem:[%s3 + $0x1ac] sm:$0xf]
    %v3107 = vld [vmem:[%s3 + $0x1b0] sm:$0xf]
    %v3108 = vld [vmem:[%s3 + $0x1b4] sm:$0xf]
    %v3109 = vld [vmem:[%s3 + $0x1b8] sm:$0xf]
    %v3110 = vld [vmem:[%s3 + $0x1bc] sm:$0xf]
    %v3111 = vld [vmem:[%s3 + $0x1c0] sm:$0xf]
    %v3112 = vld [vmem:[%s3 + $0x1c4] sm:$0xf]
    %v3113 = vld [vmem:[%s3 + $0x1c8] sm:$0xf]
    %v3114 = vld [vmem:[%s3 + $0x1cc] sm:$0xf]
    %v3115 = vld [vmem:[%s3 + $0x1d0] sm:$0xf]
    %v3116 = vld [vmem:[%s3 + $0x1d4] sm:$0xf]
    %v3117 = vld [vmem:[%s3 + $0x1d8] sm:$0xf]
    %v3118 = vld [vmem:[%s3 + $0x1dc] sm:$0xf]
    %v3119 = vld [vmem:[%s3 + $0x1e0] sm:$0xf]
    %v3120 = vld [vmem:[%s3 + $0x1e4] sm:$0xf]
    %v3121 = vld [vmem:[%s3 + $0x1e8] sm:$0xf]
    %v3122 = vld [vmem:[%s3 + $0x1ec] sm:$0xf]
    %v3123 = vld [vmem:[%s3 + $0x1f0] sm:$0xf]
    %v3124 = vld [vmem:[%s3 + $0x1f4] sm:$0xf]
    %v3125 = vld [vmem:[%s3 + $0x1f8] sm:$0xf]
    %v3126 = vld [vmem:[%s3 + $0x1fc] sm:$0xf]
    %v3127 = vld [vmem:[%s3 + $0x200] sm:$0xf]
    %v3128 = vld [vmem:[%s3 + $0x204] sm:$0xf]
    %v3129 = vld [vmem:[%s3 + $0x208] sm:$0xf]
    %v3130 = vld [vmem:[%s3 + $0x20c] sm:$0xf]
    %v3131 = vld [vmem:[%s3 + $0x210] sm:$0xf]
    %v3132 = vld [vmem:[%s3 + $0x214] sm:$0xf]
    %v3133 = vld [vmem:[%s3 + $0x218] sm:$0xf]
    %v3134 = vld [vmem:[%s3 + $0x21c] sm:$0xf]
    %v3135 = vld [vmem:[%s3 + $0x220] sm:$0xf]
    %v3136 = vld [vmem:[%s3 + $0x224] sm:$0xf]
    %v3137 = vld [vmem:[%s3 + $0x228] sm:$0xf]
    %v3138 = vld [vmem:[%s3 + $0x22c] sm:$0xf]
    %v3139 = vld [vmem:[%s3 + $0x230] sm:$0xf]
    %v3140 = vld [vmem:[%s3 + $0x234] sm:$0xf]
    %v3141 = vld [vmem:[%s3 + $0x238] sm:$0xf]
    %v3142 = vld [vmem:[%s3 + $0x23c] sm:$0xf]
    %v3191 = vunpack.c.l.b16 %v3095
    %v3192 = vunpack.c.l.b16 %v3096
    %v3193 = vunpack.c.l.b16 %v3097
    %v3194 = vunpack.c.l.b16 %v3098
    %v3195 = vunpack.c.l.b16 %v3099
    %v3196 = vunpack.c.l.b16 %v3100
    %v3197 = vunpack.c.l.b16 %v3101
    %v3198 = vunpack.c.l.b16 %v3102
    %v3199 = vunpack.c.l.b16 %v3103
    %v3200 = vunpack.c.l.b16 %v3104
    %v3201 = vunpack.c.l.b16 %v3105
    %v3202 = vunpack.c.l.b16 %v3106
    %v3203 = vunpack.c.l.b16 %v3107
    %v3204 = vunpack.c.l.b16 %v3108
    %v3205 = vunpack.c.l.b16 %v3109
    %v3206 = vunpack.c.l.b16 %v3110
    %v3207 = vunpack.c.l.b16 %v3111
    %v3208 = vunpack.c.l.b16 %v3112
    %v3209 = vunpack.c.l.b16 %v3113
    %v3210 = vunpack.c.l.b16 %v3114
    %v3211 = vunpack.c.l.b16 %v3115
    %v3212 = vunpack.c.l.b16 %v3116
    %v3213 = vunpack.c.l.b16 %v3117
    %v3214 = vunpack.c.l.b16 %v3118
    %v3215 = vunpack.c.l.b16 %v3119
    %v3216 = vunpack.c.l.b16 %v3120
    %v3217 = vunpack.c.l.b16 %v3121
    %v3218 = vunpack.c.l.b16 %v3122
    %v3219 = vunpack.c.l.b16 %v3123
    %v3220 = vunpack.c.l.b16 %v3124
    %v3221 = vunpack.c.l.b16 %v3125
    %v3222 = vunpack.c.l.b16 %v3126
    %v3223 = vunpack.c.l.b16 %v3127
    %v3224 = vunpack.c.l.b16 %v3128
    %v3225 = vunpack.c.l.b16 %v3129
    %v3226 = vunpack.c.l.b16 %v3130
    %v3227 = vunpack.c.l.b16 %v3131
    %v3228 = vunpack.c.l.b16 %v3132
    %v3229 = vunpack.c.l.b16 %v3133
    %v3230 = vunpack.c.l.b16 %v3134
    %v3231 = vunpack.c.l.b16 %v3135
    %v3232 = vunpack.c.l.b16 %v3136
    %v3233 = vunpack.c.l.b16 %v3137
    %v3234 = vunpack.c.l.b16 %v3138
    %v3235 = vunpack.c.l.b16 %v3139
    %v3236 = vunpack.c.l.b16 %v3140
    %v3237 = vunpack.c.l.b16 %v3141
    %v3238 = vunpack.c.l.b16 %v3142
    %v3239 = vpack.c.b16 %v3192, %v3191
    %v3240 = vpack.c.b16 %v3194, %v3193
    %v3241 = vpack.c.b16 %v3196, %v3195
    %v3242 = vpack.c.b16 %v3198, %v3197
    %v3243 = vpack.c.b16 %v3200, %v3199
    %v3244 = vpack.c.b16 %v3202, %v3201
    %v3245 = vpack.c.b16 %v3204, %v3203
    %v3246 = vpack.c.b16 %v3206, %v3205
    %v3247 = vpack.c.b16 %v3208, %v3207
    %v3248 = vpack.c.b16 %v3210, %v3209
    %v3249 = vpack.c.b16 %v3212, %v3211
    %v3250 = vpack.c.b16 %v3214, %v3213
    %v3251 = vpack.c.b16 %v3216, %v3215
    %v3252 = vpack.c.b16 %v3218, %v3217
    %v3253 = vpack.c.b16 %v3220, %v3219
    %v3254 = vpack.c.b16 %v3222, %v3221
    %v3255 = vpack.c.b16 %v3224, %v3223
    %v3256 = vpack.c.b16 %v3226, %v3225
    %v3257 = vpack.c.b16 %v3228, %v3227
    %v3258 = vpack.c.b16 %v3230, %v3229
    %v3259 = vpack.c.b16 %v3232, %v3231
    %v3260 = vpack.c.b16 %v3234, %v3233
    %v3261 = vpack.c.b16 %v3236, %v3235
    %v3262 = vpack.c.b16 %v3238, %v3237
    %3287 = vmatprep.subr.bf16.mxu0 0
    %3288 = vmatpush1.bf16.msra.mxu0 %v3239
    %3289 = vmatprep.subr.bf16.mxu0 0
    %3290 = vmatpush1.bf16.msra.mxu0 %v3240
    %3291 = vmatprep.subr.bf16.mxu0 0
    %3292 = vmatpush1.bf16.msra.mxu0 %v3241
    %3293 = vmatprep.subr.bf16.mxu0 0
    %3294 = vmatpush1.bf16.msra.mxu0 %v3242
    %3295 = vmatprep.subr.bf16.mxu0 0
    %3296 = vmatpush1.bf16.msra.mxu0 %v3243
    %3297 = vmatprep.subr.bf16.mxu0 0
    %3298 = vmatpush1.bf16.msra.mxu0 %v3244
    %3299 = vmatprep.subr.bf16.mxu0 0
    %3300 = vmatpush1.bf16.msra.mxu0 %v3245
    %3301 = vmatprep.subr.bf16.mxu0 0
    %3302 = vmatpush1.bf16.msra.mxu0 %v3246
    %3303 = vmatprep.subr.bf16.mxu0 0
    %3304 = vmatpush1.bf16.msra.mxu0 %v3247
    %3305 = vmatprep.subr.bf16.mxu0 0
    %3306 = vmatpush1.bf16.msra.mxu0 %v3248
    %3307 = vmatprep.subr.bf16.mxu0 0
    %3308 = vmatpush1.bf16.msra.mxu0 %v3249
    %3309 = vmatprep.subr.bf16.mxu0 0
    %3310 = vmatpush1.bf16.msra.mxu0 %v3250
    %3311 = vmatprep.subr.bf16.mxu0 0
    %3312 = vmatpush1.bf16.msra.mxu0 %v3251
    %3313 = vmatprep.subr.bf16.mxu0 0
    %3314 = vmatpush1.bf16.msra.mxu0 %v3252
    %3315 = vmatprep.subr.bf16.mxu0 0
    %3316 = vmatpush1.bf16.msra.mxu0 %v3253
    %3317 = vmatprep.subr.bf16.mxu0 0
    %3318 = vmatpush1.bf16.msra.mxu0 %v3254
    %3319 = vmatprep.mubr.bf16.mxu0 %v3072
    %3320 = vmatmul.mubr.bf16.gmra.mrb[0].mxu0 %v3071
    %v3321 = vpop.f32.mrb[0].mxu0
    %v3322 = vadd.f32 0.0, %v3321
    %v3323 = vpop.f32.mrb[0].mxu0
    %v3324 = vpop.f32.mrb[0].mxu0
    %v3325 = vadd.f32 0.0, %v3324
    %v3326 = vpop.f32.mrb[0].mxu0
    %3327 = vmatprep.mubr.bf16.mxu0 %v3075
    %3328 = vmatmul.mubr.bf16.gmra.mrb[0].mxu0 %v3074
    %v3329 = vpop.f32.mrb[0].mxu0
    %v3330 = vadd.f32 0.0, %v3329
    %v3331 = vpop.f32.mrb[0].mxu0
    %v3332 = vpop.f32.mrb[0].mxu0
    %v3333 = vadd.f32 0.0, %v3332
    %v3334 = vpop.f32.mrb[0].mxu0
    %3335 = vmatprep.mubr.bf16.mxu0 %v3078
    %3336 = vmatmul.mubr.bf16.gmra.mrb[0].mxu0 %v3077
    %v3337 = vpop.f32.mrb[0].mxu0
    %v3338 = vadd.f32 0.0, %v3337
    %v3339 = vpop.f32.mrb[0].mxu0
    %v3340 = vpop.f32.mrb[0].mxu0
    %v3341 = vadd.f32 0.0, %v3340
    %v3342 = vpop.f32.mrb[0].mxu0
    %3343 = vmatprep.mubr.bf16.mxu0 %v3081
    %3344 = vmatmul.mubr.bf16.gmra.mrb[0].mxu0 %v3080
    %v3345 = vpop.f32.mrb[0].mxu0
    %v3346 = vadd.f32 0.0, %v3345
    %v3347 = vpop.f32.mrb[0].mxu0
    %v3348 = vpop.f32.mrb[0].mxu0
    %v3349 = vadd.f32 0.0, %v3348
    %v3350 = vpop.f32.mrb[0].mxu0
    %3351 = vmatprep.mubr.bf16.mxu0 %v3084
    %3352 = vmatmul.mubr.bf16.gmra.mrb[0].mxu0 %v3083
    %v3353 = vpop.f32.mrb[0].mxu0
    %v3354 = vadd.f32 0.0, %v3353
    %v3355 = vpop.f32.mrb[0].mxu0
    %v3356 = vpop.f32.mrb[0].mxu0
    %v3357 = vadd.f32 0.0, %v3356
    %v3358 = vpop.f32.mrb[0].mxu0
    %3359 = vmatprep.mubr.bf16.mxu0 %v3087
    %3360 = vmatmul.mubr.bf16.gmra.mrb[0].mxu0 %v3086
    %v3361 = vpop.f32.mrb[0].mxu0
    %v3362 = vadd.f32 0.0, %v3361
    %v3363 = vpop.f32.mrb[0].mxu0
    %v3364 = vpop.f32.mrb[0].mxu0
    %v3365 = vadd.f32 0.0, %v3364
    %v3366 = vpop.f32.mrb[0].mxu0
    %3367 = vmatprep.mubr.bf16.mxu0 %v3090
    %3368 = vmatmul.mubr.bf16.gmra.mrb[0].mxu0 %v3089
    %v3369 = vpop.f32.mrb[0].mxu0
    %v3370 = vadd.f32 0.0, %v3369
    %v3371 = vpop.f32.mrb[0].mxu0
    %v3372 = vpop.f32.mrb[0].mxu0
    %v3373 = vadd.f32 0.0, %v3372
    %v3374 = vpop.f32.mrb[0].mxu0
    %3375 = vmatprep.mubr.bf16.mxu0 %v3093
    %3376 = vmatmul.mubr.bf16.gmra.mrb[0].mxu0 %v3092
    %v3377 = vpop.f32.mrb[0].mxu0
    %v3378 = vadd.f32 0.0, %v3377
    %v3379 = vpop.f32.mrb[0].mxu0
    %v3380 = vpop.f32.mrb[0].mxu0
    %v3381 = vadd.f32 0.0, %v3380
    %v3382 = vpop.f32.mrb[0].mxu0
    %3383 = vdwg.mxu0
    %3384 = vmatprep.subr.bf16.mxu0 0
    %3385 = vmatpush1.bf16.msra.mxu0 %v3255
    %3386 = vmatprep.subr.bf16.mxu0 0
    %3387 = vmatpush1.bf16.msra.mxu0 %v3256
    %3388 = vmatprep.subr.bf16.mxu0 0
    %3389 = vmatpush1.bf16.msra.mxu0 %v3257
    %3390 = vmatprep.subr.bf16.mxu0 0
    %3391 = vmatpush1.bf16.msra.mxu0 %v3258
    %3392 = vmatprep.subr.bf16.mxu0 0
    %3393 = vmatpush1.bf16.msra.mxu0 %v3259
    %3394 = vmatprep.subr.bf16.mxu0 0
    %3395 = vmatpush1.bf16.msra.mxu0 %v3260
    %3396 = vmatprep.subr.bf16.mxu0 0
    %3397 = vmatpush1.bf16.msra.mxu0 %v3261
    %3398 = vmatprep.subr.bf16.mxu0 0
    %3399 = vmatpush1.bf16.msra.mxu0 %v3262
    %3400 = vmatprep.subr.bf16.mxu0 0
    %3401 = vmatpush1.bf16.msra.mxu0 0
    %3402 = vmatprep.subr.bf16.mxu0 0
    %3403 = vmatpush1.bf16.msra.mxu0 0
    %3404 = vmatprep.subr.bf16.mxu0 0
    %3405 = vmatpush1.bf16.msra.mxu0 0
    %3406 = vmatprep.subr.bf16.mxu0 0
    %3407 = vmatpush1.bf16.msra.mxu0 0
    %3408 = vmatprep.subr.bf16.mxu0 0
    %3409 = vmatpush1.bf16.msra.mxu0 0
    %3410 = vmatprep.subr.bf16.mxu0 0
    %3411 = vmatpush1.bf16.msra.mxu0 0
    %3412 = vmatprep.subr.bf16.mxu0 0
    %3413 = vmatpush1.bf16.msra.mxu0 0
    %3414 = vmatprep.subr.bf16.mxu0 0
    %3415 = vmatpush1.bf16.msra.mxu0 0
    %3416 = vmatprep.mubr.bf16.mxu0 0
    %3417 = vmatmul.mubr.bf16.gmra.mrb[0].mxu0 %v3073
    %v3418 = vpop.f32.mrb[0].mxu0
    %v3419 = vadd.f32 %v3322, %v3418
    %v3420 = vpop.f32.mrb[0].mxu0
    %v3421 = vpop.f32.mrb[0].mxu0
    %v3422 = vadd.f32 %v3325, %v3421
    %v3423 = vpop.f32.mrb[0].mxu0
    %3424 = vmatprep.mubr.bf16.mxu0 0
    %3425 = vmatmul.mubr.bf16.gmra.mrb[0].mxu0 %v3076
    %v3426 = vpop.f32.mrb[0].mxu0
    %v3427 = vadd.f32 %v3330, %v3426
    %v3428 = vpop.f32.mrb[0].mxu0
    %v3429 = vpop.f32.mrb[0].mxu0
    %v3430 = vadd.f32 %v3333, %v3429
    %v3431 = vpop.f32.mrb[0].mxu0
    %3432 = vmatprep.mubr.bf16.mxu0 0
    %3433 = vmatmul.mubr.bf16.gmra.mrb[0].mxu0 %v3079
    %v3434 = vpop.f32.mrb[0].mxu0
    %v3435 = vadd.f32 %v3338, %v3434
    %v3436 = vpop.f32.mrb[0].mxu0
    %v3437 = vpop.f32.mrb[0].mxu0
    %v3438 = vadd.f32 %v3341, %v3437
    %v3439 = vpop.f32.mrb[0].mxu0
    %3440 = vmatprep.mubr.bf16.mxu0 0
    %3441 = vmatmul.mubr.bf16.gmra.mrb[0].mxu0 %v3082
    %v3442 = vpop.f32.mrb[0].mxu0
    %v3443 = vadd.f32 %v3346, %v3442
    %v3444 = vpop.f32.mrb[0].mxu0
    %v3445 = vpop.f32.mrb[0].mxu0
    %v3446 = vadd.f32 %v3349, %v3445
    %v3447 = vpop.f32.mrb[0].mxu0
    %3448 = vmatprep.mubr.bf16.mxu0 0
    %3449 = vmatmul.mubr.bf16.gmra.mrb[0].mxu0 %v3085
    %v3450 = vpop.f32.mrb[0].mxu0
    %v3451 = vadd.f32 %v3354, %v3450
    %v3452 = vpop.f32.mrb[0].mxu0
    %v3453 = vpop.f32.mrb[0].mxu0
    %v3454 = vadd.f32 %v3357, %v3453
    %v3455 = vpop.f32.mrb[0].mxu0
    %3456 = vmatprep.mubr.bf16.mxu0 0
    %3457 = vmatmul.mubr.bf16.gmra.mrb[0].mxu0 %v3088
    %v3458 = vpop.f32.mrb[0].mxu0
    %v3459 = vadd.f32 %v3362, %v3458
    %v3460 = vpop.f32.mrb[0].mxu0
    %v3461 = vpop.f32.mrb[0].mxu0
    %v3462 = vadd.f32 %v3365, %v3461
    %v3463 = vpop.f32.mrb[0].mxu0
    %3464 = vmatprep.mubr.bf16.mxu0 0
    %3465 = vmatmul.mubr.bf16.gmra.mrb[0].mxu0 %v3091
    %v3466 = vpop.f32.mrb[0].mxu0
    %v3467 = vadd.f32 %v3370, %v3466
    %v3468 = vpop.f32.mrb[0].mxu0
    %v3469 = vpop.f32.mrb[0].mxu0
    %v3470 = vadd.f32 %v3373, %v3469
    %v3471 = vpop.f32.mrb[0].mxu0
    %3472 = vmatprep.mubr.bf16.mxu0 0
    %3473 = vmatmul.mubr.bf16.gmra.mrb[0].mxu0 %v3094
    %v3474 = vpop.f32.mrb[0].mxu0
    %v3475 = vadd.f32 %v3378, %v3474
    %v3476 = vpop.f32.mrb[0].mxu0
    %v3477 = vpop.f32.mrb[0].mxu0
    %v3478 = vadd.f32 %v3381, %v3477
    %v3479 = vpop.f32.mrb[0].mxu0
    %3480 = vdwg.mxu0
    %v3481 = vadd.f32 %v2471, %v3419
    %v3482 = vadd.f32 %v2474, %v3422
    %v3483 = vadd.f32 %v2479, %v3427
    %v3484 = vadd.f32 %v2482, %v3430
    %v3485 = vadd.f32 %v2487, %v3435
    %v3486 = vadd.f32 %v2490, %v3438
    %v3487 = vadd.f32 %v2495, %v3443
    %v3488 = vadd.f32 %v2498, %v3446
    %v3489 = vadd.f32 %v2503, %v3451
    %v3490 = vadd.f32 %v2506, %v3454
    %v3491 = vadd.f32 %v2511, %v3459
    %v3492 = vadd.f32 %v2514, %v3462
    %v3493 = vadd.f32 %v2519, %v3467
    %v3494 = vadd.f32 %v2522, %v3470
    %v3495 = vadd.f32 %v2527, %v3475
    %v3496 = vadd.f32 %v2530, %v3478
    %v3497 = vadd.f32 %v3481, %v3482
    %v3498 = vadd.f32 %v3497, %v3483
    %v3499 = vadd.f32 %v3498, %v3484
    %v3500 = vadd.f32 %v3499, %v3485
    %v3501 = vadd.f32 %v3500, %v3486
    %v3502 = vadd.f32 %v3501, %v3487
    %v3503 = vadd.f32 %v3502, %v3488
    %v3504 = vadd.f32 %v3503, %v3489
    %v3505 = vadd.f32 %v3504, %v3490
    %v3506 = vadd.f32 %v3505, %v3491
    %v3507 = vadd.f32 %v3506, %v3492
    %v3508 = vadd.f32 %v3507, %v3493
    %v3509 = vadd.f32 %v3508, %v3494
    %v3510 = vadd.f32 %v3509, %v3495
    %v3511 = vadd.f32 %v3510, %v3496
    %v3512 = vrot.slane %v3511, 4
    %v3513 = vadd.f32 %v3511, %v3512
    %v3514 = vrot.slane %v3513, 2
    %v3515 = vadd.f32 %v3513, %v3514
    %v3516 = vrot.slane %v3515, 1
    %v3517 = vadd.f32 %v3515, %v3516
    %3518 = vst [vmem:[%s5] sm:$0x1] %v3517
    %v3519 = vmul.f32 %v3481, %v3481
    %v3520 = vmul.f32 %v3482, %v3482
    %v3521 = vmul.f32 %v3483, %v3483
    %v3522 = vmul.f32 %v3484, %v3484
    %v3523 = vmul.f32 %v3485, %v3485
    %v3524 = vmul.f32 %v3486, %v3486
    %v3525 = vmul.f32 %v3487, %v3487
    %v3526 = vmul.f32 %v3488, %v3488
    %v3527 = vmul.f32 %v3489, %v3489
    %v3528 = vmul.f32 %v3490, %v3490
    %v3529 = vmul.f32 %v3491, %v3491
    %v3530 = vmul.f32 %v3492, %v3492
    %v3531 = vmul.f32 %v3493, %v3493
    %v3532 = vmul.f32 %v3494, %v3494
    %v3533 = vmul.f32 %v3495, %v3495
    %v3534 = vmul.f32 %v3496, %v3496
    %v3535 = vadd.f32 %v3519, %v3520
    %v3536 = vadd.f32 %v3535, %v3521
    %v3537 = vadd.f32 %v3536, %v3522
    %v3538 = vadd.f32 %v3537, %v3523
    %v3539 = vadd.f32 %v3538, %v3524
    %v3540 = vadd.f32 %v3539, %v3525
    %v3541 = vadd.f32 %v3540, %v3526
    %v3542 = vadd.f32 %v3541, %v3527
    %v3543 = vadd.f32 %v3542, %v3528
    %v3544 = vadd.f32 %v3543, %v3529
    %v3545 = vadd.f32 %v3544, %v3530
    %v3546 = vadd.f32 %v3545, %v3531
    %v3547 = vadd.f32 %v3546, %v3532
    %v3548 = vadd.f32 %v3547, %v3533
    %v3549 = vadd.f32 %v3548, %v3534
    %v3550 = vrot.slane %v3549, 4
    %v3551 = vadd.f32 %v3549, %v3550
    %v3552 = vrot.slane %v3551, 2
    %v3553 = vadd.f32 %v3551, %v3552
    %v3554 = vrot.slane %v3553, 1
    %v3555 = vadd.f32 %v3553, %v3554
    %3556 = vst [vmem:[%s5 + $0x1] sm:$0x1] %v3555
    %v3557 = vpack.c.bf16 %v3482, %v3481
    %v3558 = vpack.c.bf16 %v3484, %v3483
    %v3559 = vpack.c.bf16 %v3486, %v3485
    %v3560 = vpack.c.bf16 %v3488, %v3487
    %v3561 = vpack.c.bf16 %v3490, %v3489
    %v3562 = vpack.c.bf16 %v3492, %v3491
    %v3563 = vpack.c.bf16 %v3494, %v3493
    %v3564 = vpack.c.bf16 %v3496, %v3495
    %v3573 = vunpack.c.l.b16 %v3557
    %v3574 = vunpack.c.h.b16 %v3557
    %v3575 = vunpack.c.l.b16 %v3558
    %v3576 = vunpack.c.h.b16 %v3558
    %v3577 = vunpack.c.l.b16 %v3559
    %v3578 = vunpack.c.h.b16 %v3559
    %v3579 = vunpack.c.l.b16 %v3560
    %v3580 = vunpack.c.h.b16 %v3560
    %v3581 = vunpack.c.l.b16 %v3561
    %v3582 = vunpack.c.h.b16 %v3561
    %v3583 = vunpack.c.l.b16 %v3562
    %v3584 = vunpack.c.h.b16 %v3562
    %v3585 = vunpack.c.l.b16 %v3563
    %v3586 = vunpack.c.h.b16 %v3563
    %v3587 = vunpack.c.l.b16 %v3564
    %v3588 = vunpack.c.h.b16 %v3564
    %v3589 = vpack.c.b16 %v3573, %v3573
    %v3590 = vpack.c.b16 %v3574, %v3574
    %v3591 = vpack.c.b16 %v3575, %v3575
    %v3592 = vpack.c.b16 %v3576, %v3576
    %v3593 = vpack.c.b16 %v3577, %v3577
    %v3594 = vpack.c.b16 %v3578, %v3578
    %v3595 = vpack.c.b16 %v3579, %v3579
    %v3596 = vpack.c.b16 %v3580, %v3580
    %v3597 = vpack.c.b16 %v3581, %v3581
    %v3598 = vpack.c.b16 %v3582, %v3582
    %v3599 = vpack.c.b16 %v3583, %v3583
    %v3600 = vpack.c.b16 %v3584, %v3584
    %v3601 = vpack.c.b16 %v3585, %v3585
    %v3602 = vpack.c.b16 %v3586, %v3586
    %v3603 = vpack.c.b16 %v3587, %v3587
    %v3604 = vpack.c.b16 %v3588, %v3588
    %3621 = vst [vmem:[%s4] sm:$0xf] %v3589
    %3622 = vst [vmem:[%s4 + $0x4] sm:$0xf] %v3590
    %3623 = vst [vmem:[%s4 + $0x8] sm:$0xf] %v3591
    %3624 = vst [vmem:[%s4 + $0xc] sm:$0xf] %v3592
    %3625 = vst [vmem:[%s4 + $0x10] sm:$0xf] %v3593
    %3626 = vst [vmem:[%s4 + $0x14] sm:$0xf] %v3594
    %3627 = vst [vmem:[%s4 + $0x18] sm:$0xf] %v3595
    %3628 = vst [vmem:[%s4 + $0x1c] sm:$0xf] %v3596
    %3629 = vst [vmem:[%s4 + $0x20] sm:$0xf] %v3597
    %3630 = vst [vmem:[%s4 + $0x24] sm:$0xf] %v3598
    %3631 = vst [vmem:[%s4 + $0x28] sm:$0xf] %v3599
    %3632 = vst [vmem:[%s4 + $0x2c] sm:$0xf] %v3600
    %3633 = vst [vmem:[%s4 + $0x30] sm:$0xf] %v3601
    %3634 = vst [vmem:[%s4 + $0x34] sm:$0xf] %v3602
    %3635 = vst [vmem:[%s4 + $0x38] sm:$0xf] %v3603
    %3636 = vst [vmem:[%s4 + $0x3c] sm:$0xf] %v3604
    // Predicated region
    $region59: #{basic_block_forward.4} parent=1 // pred_check
      _
    $region60: #{basic_block_forward.4} parent=1 // pred_check_branch
      %3638 = sbr.rel (0) target = $region62
    $region61: #{basic_block_forward.4} parent=1 // pred_region
      _
    $region62: #{basic_block_forward.4} parent=1 // pred_fallthru
      _
    // Predicated region
    $region63: #{basic_block_forward.4} parent=1 // pred_check
      _
    $region64: #{basic_block_forward.4} parent=1 // pred_check_branch
      %3640 = sbr.rel (0) target = $region66
    $region65: #{basic_block_forward.4} parent=1 // pred_region
      _
    $region66: #{basic_block_forward.4} parent=1 // pred_fallthru
      _
    // Predicated region
    $region67: #{basic_block_forward.4} parent=1 // pred_check
      _
    $region68: #{basic_block_forward.4} parent=1 // pred_check_branch
      %3642 = sbr.rel (0) target = $region70
    $region69: #{basic_block_forward.4} parent=1 // pred_region
      _
    $region70: #{basic_block_forward.4} parent=1 // pred_fallthru
      _
    // Predicated region
    $region71: #{basic_block_forward.4} parent=1 // pred_check
      _
    $region72: #{basic_block_forward.4} parent=1 // pred_check_branch
      %3644 = sbr.rel (0) target = $region74
    $region73: #{basic_block_forward.4} parent=1 // pred_region
      _
    $region74: #{basic_block_forward.4} parent=1 // pred_fallthru
      _

</llo_original>
